<compile_context>
chip_gen: v5e
topology: v5e:2x2
jax: 0.10.0
libtpu: 0.0.40
codegen_flags: <defaults>
</compile_context>

<pallas_src>
import math

import jax
import jax.numpy as jnp
from jax import lax
from jax.experimental import pallas as pl
from jax.experimental.pallas import tpu as pltpu  # noqa: F401  (TPU backend)

# ----------------------------- config (small) -------------------------------
B = 2              # batch
S = 8              # sequence length
H = 32             # base-model hidden size == GRU input_size
NH = 4             # attention heads
DH = H // NH       # head dim
FF = 64            # encoder feed-forward size
G = 320            # GRU hidden size        (spec: nn.GRU(hidden_size=320))
FC1 = 80           # fc: Linear(320, 80)
FC2 = 20           # fc: Linear(80, 20)
NUM_CLASSES = 4    # fc: Linear(20, num_classes)
VOCAB = 100
NUM_LAYERS = 2
LN_EPS = 1e-5


# --------------------------- in-kernel helpers -------------------------------
def _layer_norm(x, gamma, beta):
    mean = jnp.mean(x, axis=-1, keepdims=True)
    var = jnp.mean(jnp.square(x - mean), axis=-1, keepdims=True)
    return (x - mean) * lax.rsqrt(var + LN_EPS) * gamma + beta


def _gelu(x):
    c = 0.7978845608028654  # sqrt(2/pi)
    return 0.5 * x * (1.0 + jnp.tanh(c * (x + 0.044715 * x * x * x)))


def _sigmoid(x):
    return 1.0 / (1.0 + jnp.exp(-x))


def _softmax_last(x, approx):
    m = jnp.max(x, axis=-1, keepdims=True)
    e = jnp.exp(x - m)
    s = jnp.sum(e, axis=-1, keepdims=True)
    if approx:
        return e * pl.reciprocal(s, approx=True)   # EUP slot -> effectively free
    return e / s


# --------------------------- fused forward kernel ----------------------------
def fused_forward_kernel(x_ref,
                         wqkv0_ref, wo0_ref, w10_ref, w20_ref, vec0_ref,
                         wqkv1_ref, wo1_ref, w11_ref, w21_ref, vec1_ref,
                         gwih_ref, gwhh_ref, gb_ref,
                         fc1w_ref, fc2w_ref, fc3w_ref, fcb_ref,
                         out_ref):
    # Entire forward in one kernel invocation; no grid (B*S = 16 rows total).
    xf = x_ref[...].reshape(B * S, H)                      # (B*S, H), batch-flattened tokens
    scale = 1.0 / math.sqrt(DH)

    layer_refs = ((wqkv0_ref, wo0_ref, w10_ref, w20_ref, vec0_ref),
                  (wqkv1_ref, wo1_ref, w11_ref, w21_ref, vec1_ref))

    # -------- base_model: 2-layer post-LN transformer encoder (stays in VMEM) --------
    for wqkv_ref, wo_ref, w1_ref, w2_ref, vec_ref in layer_refs:
        vecs = vec_ref[...]                                # (8, 3H) packed param slab
        b_qkv = vecs[0:1, :]
        b_o, ln1g, ln1b = vecs[1:2, :H], vecs[2:3, :H], vecs[3:4, :H]
        b1 = vecs[4:5, :FF]
        b2, ln2g, ln2b = vecs[5:6, :H], vecs[6:7, :H], vecs[7:8, :H]

        # packed QKV: one matmul over the whole (B*S, H) activation slab
        qkv = jnp.dot(xf, wqkv_ref[...], preferred_element_type=jnp.float32) + b_qkv
        qkv = qkv.reshape(B, S, 3 * H)
        q, k, v = qkv[..., 0:H], qkv[..., H:2 * H], qkv[..., 2 * H:3 * H]

        # TODO(synk): attention_mask from `inputs` is not applied (all-ones mask assumed).
        head_ctx = []
        for hh in range(NH):                               # static, NH = 4
            sl = slice(hh * DH, (hh + 1) * DH)
            s = jnp.einsum('bqd,bkd->bqk', q[..., sl], k[..., sl],
                           preferred_element_type=jnp.float32) * scale     # (B, S, S)
            p = _softmax_last(s, approx=True)
            head_ctx.append(jnp.einsum('bqk,bkd->bqd', p, v[..., sl],
                                       preferred_element_type=jnp.float32))  # (B, S, DH)
        ctx = jnp.concatenate(head_ctx, axis=-1).reshape(B * S, H)

        attn = jnp.dot(ctx, wo_ref[...], preferred_element_type=jnp.float32) + b_o
        h1 = _layer_norm(xf + attn, ln1g, ln1b)
        ff = _gelu(jnp.dot(h1, w1_ref[...], preferred_element_type=jnp.float32) + b1)
        ff = jnp.dot(ff, w2_ref[...], preferred_element_type=jnp.float32) + b2
        xf = _layer_norm(h1 + ff, ln2g, ln2b)              # inter-layer act never hits HBM

    # -------- nn.GRU(input_size=H, hidden_size=320, num_layers=1, batch_first) --------
    gb = gb_ref[...]                                       # (2, 3G): rows [b_ih ; b_hh]
    b_ih, b_hh = gb[0:1, :], gb[1:2, :]
    # input projections for all timesteps in one packed matmul (independent of hidden state)
    gi_all = (jnp.dot(xf, gwih_ref[...], preferred_element_type=jnp.float32)
              + b_ih).reshape(B, S, 3 * G)                 # (B, S, 3G), gates [r | z | n]
    whh = gwhh_ref[...]                                    # (G, 3G)

    h = jnp.zeros((B, G), jnp.float32)                     # h0 = 0 (PyTorch default)
    for t in range(S):                                     # static unroll, S = 8
        gi = gi_all[:, t, :]                               # (B, 3G)
        gh = jnp.dot(h, whh, preferred_element_type=jnp.float32) + b_hh
        r = _sigmoid(gi[:, 0:G] + gh[:, 0:G])
        z = _sigmoid(gi[:, G:2 * G] + gh[:, G:2 * G])
        n = jnp.tanh(gi[:, 2 * G:3 * G] + r * gh[:, 2 * G:3 * G])
        h = (1.0 - z) * n + z * h                          # h after t==S-1 == gru_out[:, -1, :]

    # -------- fc head: Dropout(0.5) -> 320->80 -> 80->20 -> 20->C -> Softmax(dim=1) --------
    # TODO(synk): Dropout(p=0.5) is identity here (eval mode); training parity needs pltpu.prng_*.
    fb = fcb_ref[...]                                      # (3, FC1) packed biases
    y = jnp.dot(h, fc1w_ref[...], preferred_element_type=jnp.float32) + fb[0:1, :FC1]
    y = jnp.dot(y, fc2w_ref[...], preferred_element_type=jnp.float32) + fb[1:2, :FC2]
    y = jnp.dot(y, fc3w_ref[...], preferred_element_type=jnp.float32) + fb[2:3, :NUM_CLASSES]
    out_ref[...] = _softmax_last(y, approx=False).astype(out_ref.dtype)


# ------------------------------ pallas wrapper --------------------------------
def _full_spec(shape):
    zeros = (0,) * len(shape)
    return pl.BlockSpec(shape, lambda: zeros)              # no grid -> 0-arg index_map


def fused_forward(x_emb, flat_params):
    operands = (x_emb,) + tuple(flat_params)
    return pl.pallas_call(
        fused_forward_kernel,
        out_shape=jax.ShapeDtypeStruct((B, NUM_CLASSES), jnp.float32),
        in_specs=[_full_spec(op.shape) for op in operands],
        out_specs=_full_spec((B, NUM_CLASSES)),
    )(*operands)


@jax.jit
def gru_model_forward(input_ids, tok_emb, pos_emb, layer_params, gru_params, fc_params):
    # glue: embedding gather stays in plain JAX
    x = tok_emb[input_ids] + pos_emb[None, :, :]           # (B, S, H)
    flat = []
    for lp in layer_params:
        flat.extend(lp)
    flat.extend(gru_params)
    flat.extend(fc_params)
    return fused_forward(x, flat)                          # (B, NUM_CLASSES) probabilities


# ------------------------------ parameter init --------------------------------
def _pack_rows(vectors, width):
    rows = [jnp.pad(v.reshape(-1), (0, width - v.shape[0])) for v in vectors]
    return jnp.stack(rows, axis=0).astype(jnp.float32)


def init_params(key):
    k_tok, k_pos, k_l0, k_l1, k_gru, k_fc = jax.random.split(key, 6)

    def uni(k, shape, fan_in):
        lim = 1.0 / math.sqrt(fan_in)
        return jax.random.uniform(k, shape, jnp.float32, -lim, lim)

    tok_emb = jax.random.normal(k_tok, (VOCAB, H), jnp.float32) * 0.02
    pos_emb = jax.random.normal(k_pos, (S, H), jnp.float32) * 0.02

    layers = []
    for k_layer in (k_l0, k_l1):
        lk = jax.random.split(k_layer, 8)
        w_qkv = uni(lk[0], (H, 3 * H), H)
        b_qkv = uni(lk[1], (3 * H,), H)
        w_o = uni(lk[2], (H, H), H)
        b_o = uni(lk[3], (H,), H)
        w1 = uni(lk[4], (H, FF), H)
        b1 = uni(lk[5], (FF,), H)
        w2 = uni(lk[6], (FF, H), FF)
        b2 = uni(lk[7], (H,), FF)
        ln1g = jnp.ones((H,), jnp.float32); ln1b = jnp.zeros((H,), jnp.float32)
        ln2g = jnp.ones((H,), jnp.float32); ln2b = jnp.zeros((H,), jnp.float32)
        vec = _pack_rows([b_qkv, b_o, ln1g, ln1b, b1, b2, ln2g, ln2b], 3 * H)   # (8, 3H)
        layers.append((w_qkv, w_o, w1, w2, vec))

    gk = jax.random.split(k_gru, 4)
    w_ih = uni(gk[0], (H, 3 * G), G)        # gate order [r | z | n] along columns
    w_hh = uni(gk[1], (G, 3 * G), G)
    b_ih = uni(gk[2], (3 * G,), G)
    b_hh = uni(gk[3], (3 * G,), G)
    gru_params = (w_ih, w_hh, jnp.stack([b_ih, b_hh], axis=0))                  # (2, 3G)

    fk = jax.random.split(k_fc, 6)
    fc1_w = uni(fk[0], (G, FC1), G);            fc1_b = uni(fk[1], (FC1,), G)
    fc2_w = uni(fk[2], (FC1, FC2), FC1);        fc2_b = uni(fk[3], (FC2,), FC1)
    fc3_w = uni(fk[4], (FC2, NUM_CLASSES), FC2); fc3_b = uni(fk[5], (NUM_CLASSES,), FC2)
    fc_params = (fc1_w, fc2_w, fc3_w, _pack_rows([fc1_b, fc2_b, fc3_b], FC1))   # (3, FC1)

    return tok_emb, pos_emb, tuple(layers), gru_params, fc_params


# ---------------------------------- main ---------------------------------------
if __name__ == "__main__":
    key = jax.random.PRNGKey(0)
    k_ids, k_params = jax.random.split(key)
    input_ids = jax.random.randint(k_ids, (B, S), 0, VOCAB, dtype=jnp.int32)
    tok_emb, pos_emb, layers, gru_params, fc_params = init_params(k_params)

    out = gru_model_forward(input_ids, tok_emb, pos_emb, layers, gru_params, fc_params)
    out = jax.block_until_ready(out)

    assert out.shape == (B, NUM_CLASSES)
    assert bool(jnp.all(jnp.isfinite(out)))
    # softmax probabilities sum to 1 along the class dim
    assert bool(jnp.allclose(jnp.sum(out, axis=-1), 1.0, atol=1e-4))
    print("KERNEL_OK")
</pallas_src>

<mosaic_0001>
module attributes {stable_mosaic.version = 11 : i64} {
  func.func @fused_forward_kernel(%arg0: memref<2x8x32xf32, #tpu.memory_space<vmem>>, %arg1: memref<32x96xf32, #tpu.memory_space<vmem>>, %arg2: memref<32x32xf32, #tpu.memory_space<vmem>>, %arg3: memref<32x64xf32, #tpu.memory_space<vmem>>, %arg4: memref<64x32xf32, #tpu.memory_space<vmem>>, %arg5: memref<8x96xf32, #tpu.memory_space<vmem>>, %arg6: memref<32x96xf32, #tpu.memory_space<vmem>>, %arg7: memref<32x32xf32, #tpu.memory_space<vmem>>, %arg8: memref<32x64xf32, #tpu.memory_space<vmem>>, %arg9: memref<64x32xf32, #tpu.memory_space<vmem>>, %arg10: memref<8x96xf32, #tpu.memory_space<vmem>>, %arg11: memref<32x960xf32, #tpu.memory_space<vmem>>, %arg12: memref<320x960xf32, #tpu.memory_space<vmem>>, %arg13: memref<2x960xf32, #tpu.memory_space<vmem>>, %arg14: memref<320x80xf32, #tpu.memory_space<vmem>>, %arg15: memref<80x20xf32, #tpu.memory_space<vmem>>, %arg16: memref<20x4xf32, #tpu.memory_space<vmem>>, %arg17: memref<3x80xf32, #tpu.memory_space<vmem>>, %arg18: memref<2x4xf32, #tpu.memory_space<vmem>>) attributes {dimension_semantics = [], scalar_prefetch = 0 : i64, scratch_operands = 0 : i64, tpu.core_type = #tpu.core_type<tc>} {
    %c0 = arith.constant 0 : index
    %c0_0 = arith.constant 0 : index
    %c0_1 = arith.constant 0 : index
    %0 = vector.load %arg0[%c0, %c0_0, %c0_1] : memref<2x8x32xf32, #tpu.memory_space<vmem>>, vector<2x8x32xf32>
    %1 = vector.shape_cast %0 : vector<2x8x32xf32> to vector<16x32xf32>
    %c0_2 = arith.constant 0 : index
    %c0_3 = arith.constant 0 : index
    %2 = vector.load %arg5[%c0_2, %c0_3] : memref<8x96xf32, #tpu.memory_space<vmem>>, vector<8x96xf32>
    %3 = vector.extract_strided_slice %2 {offsets = [0, 0], sizes = [1, 96], strides = [1, 1]} : vector<8x96xf32> to vector<1x96xf32>
    %4 = vector.extract_strided_slice %2 {offsets = [1, 0], sizes = [1, 32], strides = [1, 1]} : vector<8x96xf32> to vector<1x32xf32>
    %5 = vector.extract_strided_slice %2 {offsets = [2, 0], sizes = [1, 32], strides = [1, 1]} : vector<8x96xf32> to vector<1x32xf32>
    %6 = vector.extract_strided_slice %2 {offsets = [3, 0], sizes = [1, 32], strides = [1, 1]} : vector<8x96xf32> to vector<1x32xf32>
    %7 = vector.extract_strided_slice %2 {offsets = [4, 0], sizes = [1, 64], strides = [1, 1]} : vector<8x96xf32> to vector<1x64xf32>
    %8 = vector.extract_strided_slice %2 {offsets = [5, 0], sizes = [1, 32], strides = [1, 1]} : vector<8x96xf32> to vector<1x32xf32>
    %9 = vector.extract_strided_slice %2 {offsets = [6, 0], sizes = [1, 32], strides = [1, 1]} : vector<8x96xf32> to vector<1x32xf32>
    %10 = vector.extract_strided_slice %2 {offsets = [7, 0], sizes = [1, 32], strides = [1, 1]} : vector<8x96xf32> to vector<1x32xf32>
    %c0_4 = arith.constant 0 : index
    %c0_5 = arith.constant 0 : index
    %11 = vector.load %arg1[%c0_4, %c0_5] : memref<32x96xf32, #tpu.memory_space<vmem>>, vector<32x96xf32>
    %cst = arith.constant dense<0.000000e+00> : vector<16x96xf32>
    %12 = tpu.matmul %1, %11, %cst {dimension_numbers = #tpu.dot_dimension_numbers<[1], [0], [0], [1], [0, 0, 1, 1], [], []>} : vector<16x32xf32>, vector<32x96xf32>, vector<16x96xf32> -> vector<16x96xf32>
    %13 = vector.broadcast %3 : vector<1x96xf32> to vector<16x96xf32>
    %14 = arith.addf %12, %13 : vector<16x96xf32>
    %15 = vector.shape_cast %14 : vector<16x96xf32> to vector<2x8x96xf32>
    %16 = vector.extract_strided_slice %15 {offsets = [0, 0, 0], sizes = [2, 8, 32], strides = [1, 1, 1]} : vector<2x8x96xf32> to vector<2x8x32xf32>
    %17 = vector.extract_strided_slice %15 {offsets = [0, 0, 32], sizes = [2, 8, 32], strides = [1, 1, 1]} : vector<2x8x96xf32> to vector<2x8x32xf32>
    %18 = vector.extract_strided_slice %15 {offsets = [0, 0, 64], sizes = [2, 8, 32], strides = [1, 1, 1]} : vector<2x8x96xf32> to vector<2x8x32xf32>
    %19 = vector.extract_strided_slice %16 {offsets = [0, 0, 0], sizes = [2, 8, 8], strides = [1, 1, 1]} : vector<2x8x32xf32> to vector<2x8x8xf32>
    %20 = vector.extract_strided_slice %17 {offsets = [0, 0, 0], sizes = [2, 8, 8], strides = [1, 1, 1]} : vector<2x8x32xf32> to vector<2x8x8xf32>
    "tpu.trace_start"() <{level = 10 : i32, message = "bqd,bkd->bqk"}> : () -> ()
    %cst_6 = arith.constant dense<0.000000e+00> : vector<2x8x8xf32>
    %21 = tpu.matmul %19, %20, %cst_6 {dimension_numbers = #tpu.dot_dimension_numbers<[2], [2], [1], [1], [0, 0, 0, 1, 1, 1], [0], [0]>} : vector<2x8x8xf32>, vector<2x8x8xf32>, vector<2x8x8xf32> -> vector<2x8x8xf32>
    "tpu.trace_stop"() : () -> ()
    %cst_7 = arith.constant 0.353553385 : f32
    %22 = vector.broadcast %cst_7 : f32 to vector<2x8x8xf32>
    %23 = arith.mulf %21, %22 : vector<2x8x8xf32>
    %cst_8 = arith.constant dense<0xFF800000> : vector<2x8xf32>
    %24 = vector.multi_reduction <maximumf>, %23, %cst_8 [2] : vector<2x8x8xf32> to vector<2x8xf32>
    %25 = vector.shape_cast %24 : vector<2x8xf32> to vector<2x8x1xf32>
    %26 = vector.broadcast %25 : vector<2x8x1xf32> to vector<2x8x8xf32>
    %27 = arith.subf %23, %26 : vector<2x8x8xf32>
    %28 = math.exp %27 : vector<2x8x8xf32>
    %cst_9 = arith.constant dense<0.000000e+00> : vector<2x8xf32>
    %29 = vector.multi_reduction <add>, %28, %cst_9 [2] : vector<2x8x8xf32> to vector<2x8xf32>
    %30 = vector.shape_cast %29 : vector<2x8xf32> to vector<2x8x1xf32>
    %31 = tpu.reciprocal %30 {approx = true} : vector<2x8x1xf32> -> vector<2x8x1xf32>
    %32 = vector.broadcast %31 : vector<2x8x1xf32> to vector<2x8x8xf32>
    %33 = arith.mulf %28, %32 : vector<2x8x8xf32>
    %34 = vector.extract_strided_slice %18 {offsets = [0, 0, 0], sizes = [2, 8, 8], strides = [1, 1, 1]} : vector<2x8x32xf32> to vector<2x8x8xf32>
    "tpu.trace_start"() <{level = 10 : i32, message = "bqk,bkd->bqd"}> : () -> ()
    %cst_10 = arith.constant dense<0.000000e+00> : vector<2x8x8xf32>
    %35 = tpu.matmul %33, %34, %cst_10 {dimension_numbers = #tpu.dot_dimension_numbers<[2], [1], [1], [2], [0, 0, 0, 1, 1, 2], [0], [0]>} : vector<2x8x8xf32>, vector<2x8x8xf32>, vector<2x8x8xf32> -> vector<2x8x8xf32>
    "tpu.trace_stop"() : () -> ()
    %36 = vector.extract_strided_slice %16 {offsets = [0, 0, 8], sizes = [2, 8, 8], strides = [1, 1, 1]} : vector<2x8x32xf32> to vector<2x8x8xf32>
    %37 = vector.extract_strided_slice %17 {offsets = [0, 0, 8], sizes = [2, 8, 8], strides = [1, 1, 1]} : vector<2x8x32xf32> to vector<2x8x8xf32>
    "tpu.trace_start"() <{level = 10 : i32, message = "bqd,bkd->bqk"}> : () -> ()
    %cst_11 = arith.constant dense<0.000000e+00> : vector<2x8x8xf32>
    %38 = tpu.matmul %36, %37, %cst_11 {dimension_numbers = #tpu.dot_dimension_numbers<[2], [2], [1], [1], [0, 0, 0, 1, 1, 1], [0], [0]>} : vector<2x8x8xf32>, vector<2x8x8xf32>, vector<2x8x8xf32> -> vector<2x8x8xf32>
    "tpu.trace_stop"() : () -> ()
    %cst_12 = arith.constant 0.353553385 : f32
    %39 = vector.broadcast %cst_12 : f32 to vector<2x8x8xf32>
    %40 = arith.mulf %38, %39 : vector<2x8x8xf32>
    %cst_13 = arith.constant dense<0xFF800000> : vector<2x8xf32>
    %41 = vector.multi_reduction <maximumf>, %40, %cst_13 [2] : vector<2x8x8xf32> to vector<2x8xf32>
    %42 = vector.shape_cast %41 : vector<2x8xf32> to vector<2x8x1xf32>
    %43 = vector.broadcast %42 : vector<2x8x1xf32> to vector<2x8x8xf32>
    %44 = arith.subf %40, %43 : vector<2x8x8xf32>
    %45 = math.exp %44 : vector<2x8x8xf32>
    %cst_14 = arith.constant dense<0.000000e+00> : vector<2x8xf32>
    %46 = vector.multi_reduction <add>, %45, %cst_14 [2] : vector<2x8x8xf32> to vector<2x8xf32>
    %47 = vector.shape_cast %46 : vector<2x8xf32> to vector<2x8x1xf32>
    %48 = tpu.reciprocal %47 {approx = true} : vector<2x8x1xf32> -> vector<2x8x1xf32>
    %49 = vector.broadcast %48 : vector<2x8x1xf32> to vector<2x8x8xf32>
    %50 = arith.mulf %45, %49 : vector<2x8x8xf32>
    %51 = vector.extract_strided_slice %18 {offsets = [0, 0, 8], sizes = [2, 8, 8], strides = [1, 1, 1]} : vector<2x8x32xf32> to vector<2x8x8xf32>
    "tpu.trace_start"() <{level = 10 : i32, message = "bqk,bkd->bqd"}> : () -> ()
    %cst_15 = arith.constant dense<0.000000e+00> : vector<2x8x8xf32>
    %52 = tpu.matmul %50, %51, %cst_15 {dimension_numbers = #tpu.dot_dimension_numbers<[2], [1], [1], [2], [0, 0, 0, 1, 1, 2], [0], [0]>} : vector<2x8x8xf32>, vector<2x8x8xf32>, vector<2x8x8xf32> -> vector<2x8x8xf32>
    "tpu.trace_stop"() : () -> ()
    %53 = vector.extract_strided_slice %16 {offsets = [0, 0, 16], sizes = [2, 8, 8], strides = [1, 1, 1]} : vector<2x8x32xf32> to vector<2x8x8xf32>
    %54 = vector.extract_strided_slice %17 {offsets = [0, 0, 16], sizes = [2, 8, 8], strides = [1, 1, 1]} : vector<2x8x32xf32> to vector<2x8x8xf32>
    "tpu.trace_start"() <{level = 10 : i32, message = "bqd,bkd->bqk"}> : () -> ()
    %cst_16 = arith.constant dense<0.000000e+00> : vector<2x8x8xf32>
    %55 = tpu.matmul %53, %54, %cst_16 {dimension_numbers = #tpu.dot_dimension_numbers<[2], [2], [1], [1], [0, 0, 0, 1, 1, 1], [0], [0]>} : vector<2x8x8xf32>, vector<2x8x8xf32>, vector<2x8x8xf32> -> vector<2x8x8xf32>
    "tpu.trace_stop"() : () -> ()
    %cst_17 = arith.constant 0.353553385 : f32
    %56 = vector.broadcast %cst_17 : f32 to vector<2x8x8xf32>
    %57 = arith.mulf %55, %56 : vector<2x8x8xf32>
    %cst_18 = arith.constant dense<0xFF800000> : vector<2x8xf32>
    %58 = vector.multi_reduction <maximumf>, %57, %cst_18 [2] : vector<2x8x8xf32> to vector<2x8xf32>
    %59 = vector.shape_cast %58 : vector<2x8xf32> to vector<2x8x1xf32>
    %60 = vector.broadcast %59 : vector<2x8x1xf32> to vector<2x8x8xf32>
    %61 = arith.subf %57, %60 : vector<2x8x8xf32>
    %62 = math.exp %61 : vector<2x8x8xf32>
    %cst_19 = arith.constant dense<0.000000e+00> : vector<2x8xf32>
    %63 = vector.multi_reduction <add>, %62, %cst_19 [2] : vector<2x8x8xf32> to vector<2x8xf32>
    %64 = vector.shape_cast %63 : vector<2x8xf32> to vector<2x8x1xf32>
    %65 = tpu.reciprocal %64 {approx = true} : vector<2x8x1xf32> -> vector<2x8x1xf32>
    %66 = vector.broadcast %65 : vector<2x8x1xf32> to vector<2x8x8xf32>
    %67 = arith.mulf %62, %66 : vector<2x8x8xf32>
    %68 = vector.extract_strided_slice %18 {offsets = [0, 0, 16], sizes = [2, 8, 8], strides = [1, 1, 1]} : vector<2x8x32xf32> to vector<2x8x8xf32>
    "tpu.trace_start"() <{level = 10 : i32, message = "bqk,bkd->bqd"}> : () -> ()
    %cst_20 = arith.constant dense<0.000000e+00> : vector<2x8x8xf32>
    %69 = tpu.matmul %67, %68, %cst_20 {dimension_numbers = #tpu.dot_dimension_numbers<[2], [1], [1], [2], [0, 0, 0, 1, 1, 2], [0], [0]>} : vector<2x8x8xf32>, vector<2x8x8xf32>, vector<2x8x8xf32> -> vector<2x8x8xf32>
    "tpu.trace_stop"() : () -> ()
    %70 = vector.extract_strided_slice %16 {offsets = [0, 0, 24], sizes = [2, 8, 8], strides = [1, 1, 1]} : vector<2x8x32xf32> to vector<2x8x8xf32>
    %71 = vector.extract_strided_slice %17 {offsets = [0, 0, 24], sizes = [2, 8, 8], strides = [1, 1, 1]} : vector<2x8x32xf32> to vector<2x8x8xf32>
    "tpu.trace_start"() <{level = 10 : i32, message = "bqd,bkd->bqk"}> : () -> ()
    %cst_21 = arith.constant dense<0.000000e+00> : vector<2x8x8xf32>
    %72 = tpu.matmul %70, %71, %cst_21 {dimension_numbers = #tpu.dot_dimension_numbers<[2], [2], [1], [1], [0, 0, 0, 1, 1, 1], [0], [0]>} : vector<2x8x8xf32>, vector<2x8x8xf32>, vector<2x8x8xf32> -> vector<2x8x8xf32>
    "tpu.trace_stop"() : () -> ()
    %cst_22 = arith.constant 0.353553385 : f32
    %73 = vector.broadcast %cst_22 : f32 to vector<2x8x8xf32>
    %74 = arith.mulf %72, %73 : vector<2x8x8xf32>
    %cst_23 = arith.constant dense<0xFF800000> : vector<2x8xf32>
    %75 = vector.multi_reduction <maximumf>, %74, %cst_23 [2] : vector<2x8x8xf32> to vector<2x8xf32>
    %76 = vector.shape_cast %75 : vector<2x8xf32> to vector<2x8x1xf32>
    %77 = vector.broadcast %76 : vector<2x8x1xf32> to vector<2x8x8xf32>
    %78 = arith.subf %74, %77 : vector<2x8x8xf32>
    %79 = math.exp %78 : vector<2x8x8xf32>
    %cst_24 = arith.constant dense<0.000000e+00> : vector<2x8xf32>
    %80 = vector.multi_reduction <add>, %79, %cst_24 [2] : vector<2x8x8xf32> to vector<2x8xf32>
    %81 = vector.shape_cast %80 : vector<2x8xf32> to vector<2x8x1xf32>
    %82 = tpu.reciprocal %81 {approx = true} : vector<2x8x1xf32> -> vector<2x8x1xf32>
    %83 = vector.broadcast %82 : vector<2x8x1xf32> to vector<2x8x8xf32>
    %84 = arith.mulf %79, %83 : vector<2x8x8xf32>
    %85 = vector.extract_strided_slice %18 {offsets = [0, 0, 24], sizes = [2, 8, 8], strides = [1, 1, 1]} : vector<2x8x32xf32> to vector<2x8x8xf32>
    "tpu.trace_start"() <{level = 10 : i32, message = "bqk,bkd->bqd"}> : () -> ()
    %cst_25 = arith.constant dense<0.000000e+00> : vector<2x8x8xf32>
    %86 = tpu.matmul %84, %85, %cst_25 {dimension_numbers = #tpu.dot_dimension_numbers<[2], [1], [1], [2], [0, 0, 0, 1, 1, 2], [0], [0]>} : vector<2x8x8xf32>, vector<2x8x8xf32>, vector<2x8x8xf32> -> vector<2x8x8xf32>
    "tpu.trace_stop"() : () -> ()
    %87 = tpu.concatenate %35, %52, %69, %86 in 2 : vector<2x8x8xf32>, vector<2x8x8xf32>, vector<2x8x8xf32>, vector<2x8x8xf32> -> vector<2x8x32xf32>
    %88 = vector.shape_cast %87 : vector<2x8x32xf32> to vector<16x32xf32>
    %c0_26 = arith.constant 0 : index
    %c0_27 = arith.constant 0 : index
    %89 = vector.load %arg2[%c0_26, %c0_27] : memref<32x32xf32, #tpu.memory_space<vmem>>, vector<32x32xf32>
    %cst_28 = arith.constant dense<0.000000e+00> : vector<16x32xf32>
    %90 = tpu.matmul %88, %89, %cst_28 {dimension_numbers = #tpu.dot_dimension_numbers<[1], [0], [0], [1], [0, 0, 1, 1], [], []>} : vector<16x32xf32>, vector<32x32xf32>, vector<16x32xf32> -> vector<16x32xf32>
    %91 = vector.broadcast %4 : vector<1x32xf32> to vector<16x32xf32>
    %92 = arith.addf %90, %91 : vector<16x32xf32>
    %93 = arith.addf %1, %92 : vector<16x32xf32>
    %cst_29 = arith.constant dense<0.000000e+00> : vector<16xf32>
    %94 = vector.multi_reduction <add>, %93, %cst_29 [1] : vector<16x32xf32> to vector<16xf32>
    %95 = vector.shape_cast %94 : vector<16xf32> to vector<16x1xf32>
    %cst_30 = arith.constant 3.200000e+01 : f32
    %96 = vector.broadcast %cst_30 : f32 to vector<16x1xf32>
    %97 = arith.divf %95, %96 : vector<16x1xf32>
    %98 = vector.broadcast %97 : vector<16x1xf32> to vector<16x32xf32>
    %99 = arith.subf %93, %98 : vector<16x32xf32>
    %100 = arith.mulf %99, %99 : vector<16x32xf32>
    %cst_31 = arith.constant dense<0.000000e+00> : vector<16xf32>
    %101 = vector.multi_reduction <add>, %100, %cst_31 [1] : vector<16x32xf32> to vector<16xf32>
    %102 = vector.shape_cast %101 : vector<16xf32> to vector<16x1xf32>
    %cst_32 = arith.constant 3.200000e+01 : f32
    %103 = vector.broadcast %cst_32 : f32 to vector<16x1xf32>
    %104 = arith.divf %102, %103 : vector<16x1xf32>
    %105 = vector.broadcast %97 : vector<16x1xf32> to vector<16x32xf32>
    %106 = arith.subf %93, %105 : vector<16x32xf32>
    %cst_33 = arith.constant 9.99999974E-6 : f32
    %107 = vector.broadcast %cst_33 : f32 to vector<16x1xf32>
    %108 = arith.addf %104, %107 : vector<16x1xf32>
    %109 = math.rsqrt %108 : vector<16x1xf32>
    %110 = vector.broadcast %109 : vector<16x1xf32> to vector<16x32xf32>
    %111 = arith.mulf %106, %110 : vector<16x32xf32>
    %112 = vector.broadcast %5 : vector<1x32xf32> to vector<16x32xf32>
    %113 = arith.mulf %111, %112 : vector<16x32xf32>
    %114 = vector.broadcast %6 : vector<1x32xf32> to vector<16x32xf32>
    %115 = arith.addf %113, %114 : vector<16x32xf32>
    %c0_34 = arith.constant 0 : index
    %c0_35 = arith.constant 0 : index
    %116 = vector.load %arg3[%c0_34, %c0_35] : memref<32x64xf32, #tpu.memory_space<vmem>>, vector<32x64xf32>
    %cst_36 = arith.constant dense<0.000000e+00> : vector<16x64xf32>
    %117 = tpu.matmul %115, %116, %cst_36 {dimension_numbers = #tpu.dot_dimension_numbers<[1], [0], [0], [1], [0, 0, 1, 1], [], []>} : vector<16x32xf32>, vector<32x64xf32>, vector<16x64xf32> -> vector<16x64xf32>
    %118 = vector.broadcast %7 : vector<1x64xf32> to vector<16x64xf32>
    %119 = arith.addf %117, %118 : vector<16x64xf32>
    %cst_37 = arith.constant 5.000000e-01 : f32
    %120 = vector.broadcast %cst_37 : f32 to vector<16x64xf32>
    %121 = arith.mulf %120, %119 : vector<16x64xf32>
    %cst_38 = arith.constant 4.471500e-02 : f32
    %122 = vector.broadcast %cst_38 : f32 to vector<16x64xf32>
    %123 = arith.mulf %122, %119 : vector<16x64xf32>
    %124 = arith.mulf %123, %119 : vector<16x64xf32>
    %125 = arith.mulf %124, %119 : vector<16x64xf32>
    %126 = arith.addf %119, %125 : vector<16x64xf32>
    %cst_39 = arith.constant 0.797884583 : f32
    %127 = vector.broadcast %cst_39 : f32 to vector<16x64xf32>
    %128 = arith.mulf %127, %126 : vector<16x64xf32>
    %129 = math.tanh %128 : vector<16x64xf32>
    %cst_40 = arith.constant 1.000000e+00 : f32
    %130 = vector.broadcast %cst_40 : f32 to vector<16x64xf32>
    %131 = arith.addf %130, %129 : vector<16x64xf32>
    %132 = arith.mulf %121, %131 : vector<16x64xf32>
    %c0_41 = arith.constant 0 : index
    %c0_42 = arith.constant 0 : index
    %133 = vector.load %arg4[%c0_41, %c0_42] : memref<64x32xf32, #tpu.memory_space<vmem>>, vector<64x32xf32>
    %cst_43 = arith.constant dense<0.000000e+00> : vector<16x32xf32>
    %134 = tpu.matmul %132, %133, %cst_43 {dimension_numbers = #tpu.dot_dimension_numbers<[1], [0], [0], [1], [0, 0, 1, 1], [], []>} : vector<16x64xf32>, vector<64x32xf32>, vector<16x32xf32> -> vector<16x32xf32>
    %135 = vector.broadcast %8 : vector<1x32xf32> to vector<16x32xf32>
    %136 = arith.addf %134, %135 : vector<16x32xf32>
    %137 = arith.addf %115, %136 : vector<16x32xf32>
    %cst_44 = arith.constant dense<0.000000e+00> : vector<16xf32>
    %138 = vector.multi_reduction <add>, %137, %cst_44 [1] : vector<16x32xf32> to vector<16xf32>
    %139 = vector.shape_cast %138 : vector<16xf32> to vector<16x1xf32>
    %cst_45 = arith.constant 3.200000e+01 : f32
    %140 = vector.broadcast %cst_45 : f32 to vector<16x1xf32>
    %141 = arith.divf %139, %140 : vector<16x1xf32>
    %142 = vector.broadcast %141 : vector<16x1xf32> to vector<16x32xf32>
    %143 = arith.subf %137, %142 : vector<16x32xf32>
    %144 = arith.mulf %143, %143 : vector<16x32xf32>
    %cst_46 = arith.constant dense<0.000000e+00> : vector<16xf32>
    %145 = vector.multi_reduction <add>, %144, %cst_46 [1] : vector<16x32xf32> to vector<16xf32>
    %146 = vector.shape_cast %145 : vector<16xf32> to vector<16x1xf32>
    %cst_47 = arith.constant 3.200000e+01 : f32
    %147 = vector.broadcast %cst_47 : f32 to vector<16x1xf32>
    %148 = arith.divf %146, %147 : vector<16x1xf32>
    %149 = vector.broadcast %141 : vector<16x1xf32> to vector<16x32xf32>
    %150 = arith.subf %137, %149 : vector<16x32xf32>
    %cst_48 = arith.constant 9.99999974E-6 : f32
    %151 = vector.broadcast %cst_48 : f32 to vector<16x1xf32>
    %152 = arith.addf %148, %151 : vector<16x1xf32>
    %153 = math.rsqrt %152 : vector<16x1xf32>
    %154 = vector.broadcast %153 : vector<16x1xf32> to vector<16x32xf32>
    %155 = arith.mulf %150, %154 : vector<16x32xf32>
    %156 = vector.broadcast %9 : vector<1x32xf32> to vector<16x32xf32>
    %157 = arith.mulf %155, %156 : vector<16x32xf32>
    %158 = vector.broadcast %10 : vector<1x32xf32> to vector<16x32xf32>
    %159 = arith.addf %157, %158 : vector<16x32xf32>
    %c0_49 = arith.constant 0 : index
    %c0_50 = arith.constant 0 : index
    %160 = vector.load %arg10[%c0_49, %c0_50] : memref<8x96xf32, #tpu.memory_space<vmem>>, vector<8x96xf32>
    %161 = vector.extract_strided_slice %160 {offsets = [0, 0], sizes = [1, 96], strides = [1, 1]} : vector<8x96xf32> to vector<1x96xf32>
    %162 = vector.extract_strided_slice %160 {offsets = [1, 0], sizes = [1, 32], strides = [1, 1]} : vector<8x96xf32> to vector<1x32xf32>
    %163 = vector.extract_strided_slice %160 {offsets = [2, 0], sizes = [1, 32], strides = [1, 1]} : vector<8x96xf32> to vector<1x32xf32>
    %164 = vector.extract_strided_slice %160 {offsets = [3, 0], sizes = [1, 32], strides = [1, 1]} : vector<8x96xf32> to vector<1x32xf32>
    %165 = vector.extract_strided_slice %160 {offsets = [4, 0], sizes = [1, 64], strides = [1, 1]} : vector<8x96xf32> to vector<1x64xf32>
    %166 = vector.extract_strided_slice %160 {offsets = [5, 0], sizes = [1, 32], strides = [1, 1]} : vector<8x96xf32> to vector<1x32xf32>
    %167 = vector.extract_strided_slice %160 {offsets = [6, 0], sizes = [1, 32], strides = [1, 1]} : vector<8x96xf32> to vector<1x32xf32>
    %168 = vector.extract_strided_slice %160 {offsets = [7, 0], sizes = [1, 32], strides = [1, 1]} : vector<8x96xf32> to vector<1x32xf32>
    %c0_51 = arith.constant 0 : index
    %c0_52 = arith.constant 0 : index
    %169 = vector.load %arg6[%c0_51, %c0_52] : memref<32x96xf32, #tpu.memory_space<vmem>>, vector<32x96xf32>
    %cst_53 = arith.constant dense<0.000000e+00> : vector<16x96xf32>
    %170 = tpu.matmul %159, %169, %cst_53 {dimension_numbers = #tpu.dot_dimension_numbers<[1], [0], [0], [1], [0, 0, 1, 1], [], []>} : vector<16x32xf32>, vector<32x96xf32>, vector<16x96xf32> -> vector<16x96xf32>
    %171 = vector.broadcast %161 : vector<1x96xf32> to vector<16x96xf32>
    %172 = arith.addf %170, %171 : vector<16x96xf32>
    %173 = vector.shape_cast %172 : vector<16x96xf32> to vector<2x8x96xf32>
    %174 = vector.extract_strided_slice %173 {offsets = [0, 0, 0], sizes = [2, 8, 32], strides = [1, 1, 1]} : vector<2x8x96xf32> to vector<2x8x32xf32>
    %175 = vector.extract_strided_slice %173 {offsets = [0, 0, 32], sizes = [2, 8, 32], strides = [1, 1, 1]} : vector<2x8x96xf32> to vector<2x8x32xf32>
    %176 = vector.extract_strided_slice %173 {offsets = [0, 0, 64], sizes = [2, 8, 32], strides = [1, 1, 1]} : vector<2x8x96xf32> to vector<2x8x32xf32>
    %177 = vector.extract_strided_slice %174 {offsets = [0, 0, 0], sizes = [2, 8, 8], strides = [1, 1, 1]} : vector<2x8x32xf32> to vector<2x8x8xf32>
    %178 = vector.extract_strided_slice %175 {offsets = [0, 0, 0], sizes = [2, 8, 8], strides = [1, 1, 1]} : vector<2x8x32xf32> to vector<2x8x8xf32>
    "tpu.trace_start"() <{level = 10 : i32, message = "bqd,bkd->bqk"}> : () -> ()
    %cst_54 = arith.constant dense<0.000000e+00> : vector<2x8x8xf32>
    %179 = tpu.matmul %177, %178, %cst_54 {dimension_numbers = #tpu.dot_dimension_numbers<[2], [2], [1], [1], [0, 0, 0, 1, 1, 1], [0], [0]>} : vector<2x8x8xf32>, vector<2x8x8xf32>, vector<2x8x8xf32> -> vector<2x8x8xf32>
    "tpu.trace_stop"() : () -> ()
    %cst_55 = arith.constant 0.353553385 : f32
    %180 = vector.broadcast %cst_55 : f32 to vector<2x8x8xf32>
    %181 = arith.mulf %179, %180 : vector<2x8x8xf32>
    %cst_56 = arith.constant dense<0xFF800000> : vector<2x8xf32>
    %182 = vector.multi_reduction <maximumf>, %181, %cst_56 [2] : vector<2x8x8xf32> to vector<2x8xf32>
    %183 = vector.shape_cast %182 : vector<2x8xf32> to vector<2x8x1xf32>
    %184 = vector.broadcast %183 : vector<2x8x1xf32> to vector<2x8x8xf32>
    %185 = arith.subf %181, %184 : vector<2x8x8xf32>
    %186 = math.exp %185 : vector<2x8x8xf32>
    %cst_57 = arith.constant dense<0.000000e+00> : vector<2x8xf32>
    %187 = vector.multi_reduction <add>, %186, %cst_57 [2] : vector<2x8x8xf32> to vector<2x8xf32>
    %188 = vector.shape_cast %187 : vector<2x8xf32> to vector<2x8x1xf32>
    %189 = tpu.reciprocal %188 {approx = true} : vector<2x8x1xf32> -> vector<2x8x1xf32>
    %190 = vector.broadcast %189 : vector<2x8x1xf32> to vector<2x8x8xf32>
    %191 = arith.mulf %186, %190 : vector<2x8x8xf32>
    %192 = vector.extract_strided_slice %176 {offsets = [0, 0, 0], sizes = [2, 8, 8], strides = [1, 1, 1]} : vector<2x8x32xf32> to vector<2x8x8xf32>
    "tpu.trace_start"() <{level = 10 : i32, message = "bqk,bkd->bqd"}> : () -> ()
    %cst_58 = arith.constant dense<0.000000e+00> : vector<2x8x8xf32>
    %193 = tpu.matmul %191, %192, %cst_58 {dimension_numbers = #tpu.dot_dimension_numbers<[2], [1], [1], [2], [0, 0, 0, 1, 1, 2], [0], [0]>} : vector<2x8x8xf32>, vector<2x8x8xf32>, vector<2x8x8xf32> -> vector<2x8x8xf32>
    "tpu.trace_stop"() : () -> ()
    %194 = vector.extract_strided_slice %174 {offsets = [0, 0, 8], sizes = [2, 8, 8], strides = [1, 1, 1]} : vector<2x8x32xf32> to vector<2x8x8xf32>
    %195 = vector.extract_strided_slice %175 {offsets = [0, 0, 8], sizes = [2, 8, 8], strides = [1, 1, 1]} : vector<2x8x32xf32> to vector<2x8x8xf32>
    "tpu.trace_start"() <{level = 10 : i32, message = "bqd,bkd->bqk"}> : () -> ()
    %cst_59 = arith.constant dense<0.000000e+00> : vector<2x8x8xf32>
    %196 = tpu.matmul %194, %195, %cst_59 {dimension_numbers = #tpu.dot_dimension_numbers<[2], [2], [1], [1], [0, 0, 0, 1, 1, 1], [0], [0]>} : vector<2x8x8xf32>, vector<2x8x8xf32>, vector<2x8x8xf32> -> vector<2x8x8xf32>
    "tpu.trace_stop"() : () -> ()
    %cst_60 = arith.constant 0.353553385 : f32
    %197 = vector.broadcast %cst_60 : f32 to vector<2x8x8xf32>
    %198 = arith.mulf %196, %197 : vector<2x8x8xf32>
    %cst_61 = arith.constant dense<0xFF800000> : vector<2x8xf32>
    %199 = vector.multi_reduction <maximumf>, %198, %cst_61 [2] : vector<2x8x8xf32> to vector<2x8xf32>
    %200 = vector.shape_cast %199 : vector<2x8xf32> to vector<2x8x1xf32>
    %201 = vector.broadcast %200 : vector<2x8x1xf32> to vector<2x8x8xf32>
    %202 = arith.subf %198, %201 : vector<2x8x8xf32>
    %203 = math.exp %202 : vector<2x8x8xf32>
    %cst_62 = arith.constant dense<0.000000e+00> : vector<2x8xf32>
    %204 = vector.multi_reduction <add>, %203, %cst_62 [2] : vector<2x8x8xf32> to vector<2x8xf32>
    %205 = vector.shape_cast %204 : vector<2x8xf32> to vector<2x8x1xf32>
    %206 = tpu.reciprocal %205 {approx = true} : vector<2x8x1xf32> -> vector<2x8x1xf32>
    %207 = vector.broadcast %206 : vector<2x8x1xf32> to vector<2x8x8xf32>
    %208 = arith.mulf %203, %207 : vector<2x8x8xf32>
    %209 = vector.extract_strided_slice %176 {offsets = [0, 0, 8], sizes = [2, 8, 8], strides = [1, 1, 1]} : vector<2x8x32xf32> to vector<2x8x8xf32>
    "tpu.trace_start"() <{level = 10 : i32, message = "bqk,bkd->bqd"}> : () -> ()
    %cst_63 = arith.constant dense<0.000000e+00> : vector<2x8x8xf32>
    %210 = tpu.matmul %208, %209, %cst_63 {dimension_numbers = #tpu.dot_dimension_numbers<[2], [1], [1], [2], [0, 0, 0, 1, 1, 2], [0], [0]>} : vector<2x8x8xf32>, vector<2x8x8xf32>, vector<2x8x8xf32> -> vector<2x8x8xf32>
    "tpu.trace_stop"() : () -> ()
    %211 = vector.extract_strided_slice %174 {offsets = [0, 0, 16], sizes = [2, 8, 8], strides = [1, 1, 1]} : vector<2x8x32xf32> to vector<2x8x8xf32>
    %212 = vector.extract_strided_slice %175 {offsets = [0, 0, 16], sizes = [2, 8, 8], strides = [1, 1, 1]} : vector<2x8x32xf32> to vector<2x8x8xf32>
    "tpu.trace_start"() <{level = 10 : i32, message = "bqd,bkd->bqk"}> : () -> ()
    %cst_64 = arith.constant dense<0.000000e+00> : vector<2x8x8xf32>
    %213 = tpu.matmul %211, %212, %cst_64 {dimension_numbers = #tpu.dot_dimension_numbers<[2], [2], [1], [1], [0, 0, 0, 1, 1, 1], [0], [0]>} : vector<2x8x8xf32>, vector<2x8x8xf32>, vector<2x8x8xf32> -> vector<2x8x8xf32>
    "tpu.trace_stop"() : () -> ()
    %cst_65 = arith.constant 0.353553385 : f32
    %214 = vector.broadcast %cst_65 : f32 to vector<2x8x8xf32>
    %215 = arith.mulf %213, %214 : vector<2x8x8xf32>
    %cst_66 = arith.constant dense<0xFF800000> : vector<2x8xf32>
    %216 = vector.multi_reduction <maximumf>, %215, %cst_66 [2] : vector<2x8x8xf32> to vector<2x8xf32>
    %217 = vector.shape_cast %216 : vector<2x8xf32> to vector<2x8x1xf32>
    %218 = vector.broadcast %217 : vector<2x8x1xf32> to vector<2x8x8xf32>
    %219 = arith.subf %215, %218 : vector<2x8x8xf32>
    %220 = math.exp %219 : vector<2x8x8xf32>
    %cst_67 = arith.constant dense<0.000000e+00> : vector<2x8xf32>
    %221 = vector.multi_reduction <add>, %220, %cst_67 [2] : vector<2x8x8xf32> to vector<2x8xf32>
    %222 = vector.shape_cast %221 : vector<2x8xf32> to vector<2x8x1xf32>
    %223 = tpu.reciprocal %222 {approx = true} : vector<2x8x1xf32> -> vector<2x8x1xf32>
    %224 = vector.broadcast %223 : vector<2x8x1xf32> to vector<2x8x8xf32>
    %225 = arith.mulf %220, %224 : vector<2x8x8xf32>
    %226 = vector.extract_strided_slice %176 {offsets = [0, 0, 16], sizes = [2, 8, 8], strides = [1, 1, 1]} : vector<2x8x32xf32> to vector<2x8x8xf32>
    "tpu.trace_start"() <{level = 10 : i32, message = "bqk,bkd->bqd"}> : () -> ()
    %cst_68 = arith.constant dense<0.000000e+00> : vector<2x8x8xf32>
    %227 = tpu.matmul %225, %226, %cst_68 {dimension_numbers = #tpu.dot_dimension_numbers<[2], [1], [1], [2], [0, 0, 0, 1, 1, 2], [0], [0]>} : vector<2x8x8xf32>, vector<2x8x8xf32>, vector<2x8x8xf32> -> vector<2x8x8xf32>
    "tpu.trace_stop"() : () -> ()
    %228 = vector.extract_strided_slice %174 {offsets = [0, 0, 24], sizes = [2, 8, 8], strides = [1, 1, 1]} : vector<2x8x32xf32> to vector<2x8x8xf32>
    %229 = vector.extract_strided_slice %175 {offsets = [0, 0, 24], sizes = [2, 8, 8], strides = [1, 1, 1]} : vector<2x8x32xf32> to vector<2x8x8xf32>
    "tpu.trace_start"() <{level = 10 : i32, message = "bqd,bkd->bqk"}> : () -> ()
    %cst_69 = arith.constant dense<0.000000e+00> : vector<2x8x8xf32>
    %230 = tpu.matmul %228, %229, %cst_69 {dimension_numbers = #tpu.dot_dimension_numbers<[2], [2], [1], [1], [0, 0, 0, 1, 1, 1], [0], [0]>} : vector<2x8x8xf32>, vector<2x8x8xf32>, vector<2x8x8xf32> -> vector<2x8x8xf32>
    "tpu.trace_stop"() : () -> ()
    %cst_70 = arith.constant 0.353553385 : f32
    %231 = vector.broadcast %cst_70 : f32 to vector<2x8x8xf32>
    %232 = arith.mulf %230, %231 : vector<2x8x8xf32>
    %cst_71 = arith.constant dense<0xFF800000> : vector<2x8xf32>
    %233 = vector.multi_reduction <maximumf>, %232, %cst_71 [2] : vector<2x8x8xf32> to vector<2x8xf32>
    %234 = vector.shape_cast %233 : vector<2x8xf32> to vector<2x8x1xf32>
    %235 = vector.broadcast %234 : vector<2x8x1xf32> to vector<2x8x8xf32>
    %236 = arith.subf %232, %235 : vector<2x8x8xf32>
    %237 = math.exp %236 : vector<2x8x8xf32>
    %cst_72 = arith.constant dense<0.000000e+00> : vector<2x8xf32>
    %238 = vector.multi_reduction <add>, %237, %cst_72 [2] : vector<2x8x8xf32> to vector<2x8xf32>
    %239 = vector.shape_cast %238 : vector<2x8xf32> to vector<2x8x1xf32>
    %240 = tpu.reciprocal %239 {approx = true} : vector<2x8x1xf32> -> vector<2x8x1xf32>
    %241 = vector.broadcast %240 : vector<2x8x1xf32> to vector<2x8x8xf32>
    %242 = arith.mulf %237, %241 : vector<2x8x8xf32>
    %243 = vector.extract_strided_slice %176 {offsets = [0, 0, 24], sizes = [2, 8, 8], strides = [1, 1, 1]} : vector<2x8x32xf32> to vector<2x8x8xf32>
    "tpu.trace_start"() <{level = 10 : i32, message = "bqk,bkd->bqd"}> : () -> ()
    %cst_73 = arith.constant dense<0.000000e+00> : vector<2x8x8xf32>
    %244 = tpu.matmul %242, %243, %cst_73 {dimension_numbers = #tpu.dot_dimension_numbers<[2], [1], [1], [2], [0, 0, 0, 1, 1, 2], [0], [0]>} : vector<2x8x8xf32>, vector<2x8x8xf32>, vector<2x8x8xf32> -> vector<2x8x8xf32>
    "tpu.trace_stop"() : () -> ()
    %245 = tpu.concatenate %193, %210, %227, %244 in 2 : vector<2x8x8xf32>, vector<2x8x8xf32>, vector<2x8x8xf32>, vector<2x8x8xf32> -> vector<2x8x32xf32>
    %246 = vector.shape_cast %245 : vector<2x8x32xf32> to vector<16x32xf32>
    %c0_74 = arith.constant 0 : index
    %c0_75 = arith.constant 0 : index
    %247 = vector.load %arg7[%c0_74, %c0_75] : memref<32x32xf32, #tpu.memory_space<vmem>>, vector<32x32xf32>
    %cst_76 = arith.constant dense<0.000000e+00> : vector<16x32xf32>
    %248 = tpu.matmul %246, %247, %cst_76 {dimension_numbers = #tpu.dot_dimension_numbers<[1], [0], [0], [1], [0, 0, 1, 1], [], []>} : vector<16x32xf32>, vector<32x32xf32>, vector<16x32xf32> -> vector<16x32xf32>
    %249 = vector.broadcast %162 : vector<1x32xf32> to vector<16x32xf32>
    %250 = arith.addf %248, %249 : vector<16x32xf32>
    %251 = arith.addf %159, %250 : vector<16x32xf32>
    %cst_77 = arith.constant dense<0.000000e+00> : vector<16xf32>
    %252 = vector.multi_reduction <add>, %251, %cst_77 [1] : vector<16x32xf32> to vector<16xf32>
    %253 = vector.shape_cast %252 : vector<16xf32> to vector<16x1xf32>
    %cst_78 = arith.constant 3.200000e+01 : f32
    %254 = vector.broadcast %cst_78 : f32 to vector<16x1xf32>
    %255 = arith.divf %253, %254 : vector<16x1xf32>
    %256 = vector.broadcast %255 : vector<16x1xf32> to vector<16x32xf32>
    %257 = arith.subf %251, %256 : vector<16x32xf32>
    %258 = arith.mulf %257, %257 : vector<16x32xf32>
    %cst_79 = arith.constant dense<0.000000e+00> : vector<16xf32>
    %259 = vector.multi_reduction <add>, %258, %cst_79 [1] : vector<16x32xf32> to vector<16xf32>
    %260 = vector.shape_cast %259 : vector<16xf32> to vector<16x1xf32>
    %cst_80 = arith.constant 3.200000e+01 : f32
    %261 = vector.broadcast %cst_80 : f32 to vector<16x1xf32>
    %262 = arith.divf %260, %261 : vector<16x1xf32>
    %263 = vector.broadcast %255 : vector<16x1xf32> to vector<16x32xf32>
    %264 = arith.subf %251, %263 : vector<16x32xf32>
    %cst_81 = arith.constant 9.99999974E-6 : f32
    %265 = vector.broadcast %cst_81 : f32 to vector<16x1xf32>
    %266 = arith.addf %262, %265 : vector<16x1xf32>
    %267 = math.rsqrt %266 : vector<16x1xf32>
    %268 = vector.broadcast %267 : vector<16x1xf32> to vector<16x32xf32>
    %269 = arith.mulf %264, %268 : vector<16x32xf32>
    %270 = vector.broadcast %163 : vector<1x32xf32> to vector<16x32xf32>
    %271 = arith.mulf %269, %270 : vector<16x32xf32>
    %272 = vector.broadcast %164 : vector<1x32xf32> to vector<16x32xf32>
    %273 = arith.addf %271, %272 : vector<16x32xf32>
    %c0_82 = arith.constant 0 : index
    %c0_83 = arith.constant 0 : index
    %274 = vector.load %arg8[%c0_82, %c0_83] : memref<32x64xf32, #tpu.memory_space<vmem>>, vector<32x64xf32>
    %cst_84 = arith.constant dense<0.000000e+00> : vector<16x64xf32>
    %275 = tpu.matmul %273, %274, %cst_84 {dimension_numbers = #tpu.dot_dimension_numbers<[1], [0], [0], [1], [0, 0, 1, 1], [], []>} : vector<16x32xf32>, vector<32x64xf32>, vector<16x64xf32> -> vector<16x64xf32>
    %276 = vector.broadcast %165 : vector<1x64xf32> to vector<16x64xf32>
    %277 = arith.addf %275, %276 : vector<16x64xf32>
    %cst_85 = arith.constant 5.000000e-01 : f32
    %278 = vector.broadcast %cst_85 : f32 to vector<16x64xf32>
    %279 = arith.mulf %278, %277 : vector<16x64xf32>
    %cst_86 = arith.constant 4.471500e-02 : f32
    %280 = vector.broadcast %cst_86 : f32 to vector<16x64xf32>
    %281 = arith.mulf %280, %277 : vector<16x64xf32>
    %282 = arith.mulf %281, %277 : vector<16x64xf32>
    %283 = arith.mulf %282, %277 : vector<16x64xf32>
    %284 = arith.addf %277, %283 : vector<16x64xf32>
    %cst_87 = arith.constant 0.797884583 : f32
    %285 = vector.broadcast %cst_87 : f32 to vector<16x64xf32>
    %286 = arith.mulf %285, %284 : vector<16x64xf32>
    %287 = math.tanh %286 : vector<16x64xf32>
    %cst_88 = arith.constant 1.000000e+00 : f32
    %288 = vector.broadcast %cst_88 : f32 to vector<16x64xf32>
    %289 = arith.addf %288, %287 : vector<16x64xf32>
    %290 = arith.mulf %279, %289 : vector<16x64xf32>
    %c0_89 = arith.constant 0 : index
    %c0_90 = arith.constant 0 : index
    %291 = vector.load %arg9[%c0_89, %c0_90] : memref<64x32xf32, #tpu.memory_space<vmem>>, vector<64x32xf32>
    %cst_91 = arith.constant dense<0.000000e+00> : vector<16x32xf32>
    %292 = tpu.matmul %290, %291, %cst_91 {dimension_numbers = #tpu.dot_dimension_numbers<[1], [0], [0], [1], [0, 0, 1, 1], [], []>} : vector<16x64xf32>, vector<64x32xf32>, vector<16x32xf32> -> vector<16x32xf32>
    %293 = vector.broadcast %166 : vector<1x32xf32> to vector<16x32xf32>
    %294 = arith.addf %292, %293 : vector<16x32xf32>
    %295 = arith.addf %273, %294 : vector<16x32xf32>
    %cst_92 = arith.constant dense<0.000000e+00> : vector<16xf32>
    %296 = vector.multi_reduction <add>, %295, %cst_92 [1] : vector<16x32xf32> to vector<16xf32>
    %297 = vector.shape_cast %296 : vector<16xf32> to vector<16x1xf32>
    %cst_93 = arith.constant 3.200000e+01 : f32
    %298 = vector.broadcast %cst_93 : f32 to vector<16x1xf32>
    %299 = arith.divf %297, %298 : vector<16x1xf32>
    %300 = vector.broadcast %299 : vector<16x1xf32> to vector<16x32xf32>
    %301 = arith.subf %295, %300 : vector<16x32xf32>
    %302 = arith.mulf %301, %301 : vector<16x32xf32>
    %cst_94 = arith.constant dense<0.000000e+00> : vector<16xf32>
    %303 = vector.multi_reduction <add>, %302, %cst_94 [1] : vector<16x32xf32> to vector<16xf32>
    %304 = vector.shape_cast %303 : vector<16xf32> to vector<16x1xf32>
    %cst_95 = arith.constant 3.200000e+01 : f32
    %305 = vector.broadcast %cst_95 : f32 to vector<16x1xf32>
    %306 = arith.divf %304, %305 : vector<16x1xf32>
    %307 = vector.broadcast %299 : vector<16x1xf32> to vector<16x32xf32>
    %308 = arith.subf %295, %307 : vector<16x32xf32>
    %cst_96 = arith.constant 9.99999974E-6 : f32
    %309 = vector.broadcast %cst_96 : f32 to vector<16x1xf32>
    %310 = arith.addf %306, %309 : vector<16x1xf32>
    %311 = math.rsqrt %310 : vector<16x1xf32>
    %312 = vector.broadcast %311 : vector<16x1xf32> to vector<16x32xf32>
    %313 = arith.mulf %308, %312 : vector<16x32xf32>
    %314 = vector.broadcast %167 : vector<1x32xf32> to vector<16x32xf32>
    %315 = arith.mulf %313, %314 : vector<16x32xf32>
    %316 = vector.broadcast %168 : vector<1x32xf32> to vector<16x32xf32>
    %317 = arith.addf %315, %316 : vector<16x32xf32>
    %c0_97 = arith.constant 0 : index
    %c0_98 = arith.constant 0 : index
    %318 = vector.load %arg13[%c0_97, %c0_98] : memref<2x960xf32, #tpu.memory_space<vmem>>, vector<2x960xf32>
    %319 = vector.extract_strided_slice %318 {offsets = [0, 0], sizes = [1, 960], strides = [1, 1]} : vector<2x960xf32> to vector<1x960xf32>
    %320 = vector.extract_strided_slice %318 {offsets = [1, 0], sizes = [1, 960], strides = [1, 1]} : vector<2x960xf32> to vector<1x960xf32>
    %c0_99 = arith.constant 0 : index
    %c0_100 = arith.constant 0 : index
    %321 = vector.load %arg11[%c0_99, %c0_100] : memref<32x960xf32, #tpu.memory_space<vmem>>, vector<32x960xf32>
    %cst_101 = arith.constant dense<0.000000e+00> : vector<16x960xf32>
    %322 = tpu.matmul %317, %321, %cst_101 {dimension_numbers = #tpu.dot_dimension_numbers<[1], [0], [0], [1], [0, 0, 1, 1], [], []>} : vector<16x32xf32>, vector<32x960xf32>, vector<16x960xf32> -> vector<16x960xf32>
    %323 = vector.broadcast %319 : vector<1x960xf32> to vector<16x960xf32>
    %324 = arith.addf %322, %323 : vector<16x960xf32>
    %325 = vector.shape_cast %324 : vector<16x960xf32> to vector<2x8x960xf32>
    %c0_102 = arith.constant 0 : index
    %c0_103 = arith.constant 0 : index
    %326 = vector.load %arg12[%c0_102, %c0_103] : memref<320x960xf32, #tpu.memory_space<vmem>>, vector<320x960xf32>
    %cst_104 = arith.constant 0.000000e+00 : f32
    %327 = vector.broadcast %cst_104 : f32 to vector<2x320xf32>
    %328 = vector.extract_strided_slice %325 {offsets = [0, 0, 0], sizes = [2, 1, 960], strides = [1, 1, 1]} : vector<2x8x960xf32> to vector<2x1x960xf32>
    %329 = vector.shape_cast %328 : vector<2x1x960xf32> to vector<2x960xf32>
    %cst_105 = arith.constant dense<0.000000e+00> : vector<2x960xf32>
    %330 = tpu.matmul %327, %326, %cst_105 {dimension_numbers = #tpu.dot_dimension_numbers<[1], [0], [0], [1], [0, 0, 1, 1], [], []>} : vector<2x320xf32>, vector<320x960xf32>, vector<2x960xf32> -> vector<2x960xf32>
    %331 = vector.broadcast %320 : vector<1x960xf32> to vector<2x960xf32>
    %332 = arith.addf %330, %331 : vector<2x960xf32>
    %333 = vector.extract_strided_slice %329 {offsets = [0, 0], sizes = [2, 320], strides = [1, 1]} : vector<2x960xf32> to vector<2x320xf32>
    %334 = vector.extract_strided_slice %332 {offsets = [0, 0], sizes = [2, 320], strides = [1, 1]} : vector<2x960xf32> to vector<2x320xf32>
    %335 = arith.addf %333, %334 : vector<2x320xf32>
    %cst_106 = arith.constant 0.000000e+00 : f32
    %336 = vector.broadcast %cst_106 : f32 to vector<2x320xf32>
    %337 = arith.subf %336, %335 : vector<2x320xf32>
    %338 = math.exp %337 : vector<2x320xf32>
    %cst_107 = arith.constant 1.000000e+00 : f32
    %339 = vector.broadcast %cst_107 : f32 to vector<2x320xf32>
    %340 = arith.addf %339, %338 : vector<2x320xf32>
    %cst_108 = arith.constant 1.000000e+00 : f32
    %341 = vector.broadcast %cst_108 : f32 to vector<2x320xf32>
    %342 = arith.divf %341, %340 : vector<2x320xf32>
    %343 = vector.extract_strided_slice %329 {offsets = [0, 320], sizes = [2, 320], strides = [1, 1]} : vector<2x960xf32> to vector<2x320xf32>
    %344 = vector.extract_strided_slice %332 {offsets = [0, 320], sizes = [2, 320], strides = [1, 1]} : vector<2x960xf32> to vector<2x320xf32>
    %345 = arith.addf %343, %344 : vector<2x320xf32>
    %cst_109 = arith.constant 0.000000e+00 : f32
    %346 = vector.broadcast %cst_109 : f32 to vector<2x320xf32>
    %347 = arith.subf %346, %345 : vector<2x320xf32>
    %348 = math.exp %347 : vector<2x320xf32>
    %cst_110 = arith.constant 1.000000e+00 : f32
    %349 = vector.broadcast %cst_110 : f32 to vector<2x320xf32>
    %350 = arith.addf %349, %348 : vector<2x320xf32>
    %cst_111 = arith.constant 1.000000e+00 : f32
    %351 = vector.broadcast %cst_111 : f32 to vector<2x320xf32>
    %352 = arith.divf %351, %350 : vector<2x320xf32>
    %353 = vector.extract_strided_slice %329 {offsets = [0, 640], sizes = [2, 320], strides = [1, 1]} : vector<2x960xf32> to vector<2x320xf32>
    %354 = vector.extract_strided_slice %332 {offsets = [0, 640], sizes = [2, 320], strides = [1, 1]} : vector<2x960xf32> to vector<2x320xf32>
    %355 = arith.mulf %342, %354 : vector<2x320xf32>
    %356 = arith.addf %353, %355 : vector<2x320xf32>
    %357 = math.tanh %356 : vector<2x320xf32>
    %cst_112 = arith.constant 1.000000e+00 : f32
    %358 = vector.broadcast %cst_112 : f32 to vector<2x320xf32>
    %359 = arith.subf %358, %352 : vector<2x320xf32>
    %360 = arith.mulf %359, %357 : vector<2x320xf32>
    %361 = arith.mulf %352, %327 : vector<2x320xf32>
    %362 = arith.addf %360, %361 : vector<2x320xf32>
    %363 = vector.extract_strided_slice %325 {offsets = [0, 1, 0], sizes = [2, 1, 960], strides = [1, 1, 1]} : vector<2x8x960xf32> to vector<2x1x960xf32>
    %364 = vector.shape_cast %363 : vector<2x1x960xf32> to vector<2x960xf32>
    %cst_113 = arith.constant dense<0.000000e+00> : vector<2x960xf32>
    %365 = tpu.matmul %362, %326, %cst_113 {dimension_numbers = #tpu.dot_dimension_numbers<[1], [0], [0], [1], [0, 0, 1, 1], [], []>} : vector<2x320xf32>, vector<320x960xf32>, vector<2x960xf32> -> vector<2x960xf32>
    %366 = vector.broadcast %320 : vector<1x960xf32> to vector<2x960xf32>
    %367 = arith.addf %365, %366 : vector<2x960xf32>
    %368 = vector.extract_strided_slice %364 {offsets = [0, 0], sizes = [2, 320], strides = [1, 1]} : vector<2x960xf32> to vector<2x320xf32>
    %369 = vector.extract_strided_slice %367 {offsets = [0, 0], sizes = [2, 320], strides = [1, 1]} : vector<2x960xf32> to vector<2x320xf32>
    %370 = arith.addf %368, %369 : vector<2x320xf32>
    %cst_114 = arith.constant 0.000000e+00 : f32
    %371 = vector.broadcast %cst_114 : f32 to vector<2x320xf32>
    %372 = arith.subf %371, %370 : vector<2x320xf32>
    %373 = math.exp %372 : vector<2x320xf32>
    %cst_115 = arith.constant 1.000000e+00 : f32
    %374 = vector.broadcast %cst_115 : f32 to vector<2x320xf32>
    %375 = arith.addf %374, %373 : vector<2x320xf32>
    %cst_116 = arith.constant 1.000000e+00 : f32
    %376 = vector.broadcast %cst_116 : f32 to vector<2x320xf32>
    %377 = arith.divf %376, %375 : vector<2x320xf32>
    %378 = vector.extract_strided_slice %364 {offsets = [0, 320], sizes = [2, 320], strides = [1, 1]} : vector<2x960xf32> to vector<2x320xf32>
    %379 = vector.extract_strided_slice %367 {offsets = [0, 320], sizes = [2, 320], strides = [1, 1]} : vector<2x960xf32> to vector<2x320xf32>
    %380 = arith.addf %378, %379 : vector<2x320xf32>
    %cst_117 = arith.constant 0.000000e+00 : f32
    %381 = vector.broadcast %cst_117 : f32 to vector<2x320xf32>
    %382 = arith.subf %381, %380 : vector<2x320xf32>
    %383 = math.exp %382 : vector<2x320xf32>
    %cst_118 = arith.constant 1.000000e+00 : f32
    %384 = vector.broadcast %cst_118 : f32 to vector<2x320xf32>
    %385 = arith.addf %384, %383 : vector<2x320xf32>
    %cst_119 = arith.constant 1.000000e+00 : f32
    %386 = vector.broadcast %cst_119 : f32 to vector<2x320xf32>
    %387 = arith.divf %386, %385 : vector<2x320xf32>
    %388 = vector.extract_strided_slice %364 {offsets = [0, 640], sizes = [2, 320], strides = [1, 1]} : vector<2x960xf32> to vector<2x320xf32>
    %389 = vector.extract_strided_slice %367 {offsets = [0, 640], sizes = [2, 320], strides = [1, 1]} : vector<2x960xf32> to vector<2x320xf32>
    %390 = arith.mulf %377, %389 : vector<2x320xf32>
    %391 = arith.addf %388, %390 : vector<2x320xf32>
    %392 = math.tanh %391 : vector<2x320xf32>
    %cst_120 = arith.constant 1.000000e+00 : f32
    %393 = vector.broadcast %cst_120 : f32 to vector<2x320xf32>
    %394 = arith.subf %393, %387 : vector<2x320xf32>
    %395 = arith.mulf %394, %392 : vector<2x320xf32>
    %396 = arith.mulf %387, %362 : vector<2x320xf32>
    %397 = arith.addf %395, %396 : vector<2x320xf32>
    %398 = vector.extract_strided_slice %325 {offsets = [0, 2, 0], sizes = [2, 1, 960], strides = [1, 1, 1]} : vector<2x8x960xf32> to vector<2x1x960xf32>
    %399 = vector.shape_cast %398 : vector<2x1x960xf32> to vector<2x960xf32>
    %cst_121 = arith.constant dense<0.000000e+00> : vector<2x960xf32>
    %400 = tpu.matmul %397, %326, %cst_121 {dimension_numbers = #tpu.dot_dimension_numbers<[1], [0], [0], [1], [0, 0, 1, 1], [], []>} : vector<2x320xf32>, vector<320x960xf32>, vector<2x960xf32> -> vector<2x960xf32>
    %401 = vector.broadcast %320 : vector<1x960xf32> to vector<2x960xf32>
    %402 = arith.addf %400, %401 : vector<2x960xf32>
    %403 = vector.extract_strided_slice %399 {offsets = [0, 0], sizes = [2, 320], strides = [1, 1]} : vector<2x960xf32> to vector<2x320xf32>
    %404 = vector.extract_strided_slice %402 {offsets = [0, 0], sizes = [2, 320], strides = [1, 1]} : vector<2x960xf32> to vector<2x320xf32>
    %405 = arith.addf %403, %404 : vector<2x320xf32>
    %cst_122 = arith.constant 0.000000e+00 : f32
    %406 = vector.broadcast %cst_122 : f32 to vector<2x320xf32>
    %407 = arith.subf %406, %405 : vector<2x320xf32>
    %408 = math.exp %407 : vector<2x320xf32>
    %cst_123 = arith.constant 1.000000e+00 : f32
    %409 = vector.broadcast %cst_123 : f32 to vector<2x320xf32>
    %410 = arith.addf %409, %408 : vector<2x320xf32>
    %cst_124 = arith.constant 1.000000e+00 : f32
    %411 = vector.broadcast %cst_124 : f32 to vector<2x320xf32>
    %412 = arith.divf %411, %410 : vector<2x320xf32>
    %413 = vector.extract_strided_slice %399 {offsets = [0, 320], sizes = [2, 320], strides = [1, 1]} : vector<2x960xf32> to vector<2x320xf32>
    %414 = vector.extract_strided_slice %402 {offsets = [0, 320], sizes = [2, 320], strides = [1, 1]} : vector<2x960xf32> to vector<2x320xf32>
    %415 = arith.addf %413, %414 : vector<2x320xf32>
    %cst_125 = arith.constant 0.000000e+00 : f32
    %416 = vector.broadcast %cst_125 : f32 to vector<2x320xf32>
    %417 = arith.subf %416, %415 : vector<2x320xf32>
    %418 = math.exp %417 : vector<2x320xf32>
    %cst_126 = arith.constant 1.000000e+00 : f32
    %419 = vector.broadcast %cst_126 : f32 to vector<2x320xf32>
    %420 = arith.addf %419, %418 : vector<2x320xf32>
    %cst_127 = arith.constant 1.000000e+00 : f32
    %421 = vector.broadcast %cst_127 : f32 to vector<2x320xf32>
    %422 = arith.divf %421, %420 : vector<2x320xf32>
    %423 = vector.extract_strided_slice %399 {offsets = [0, 640], sizes = [2, 320], strides = [1, 1]} : vector<2x960xf32> to vector<2x320xf32>
    %424 = vector.extract_strided_slice %402 {offsets = [0, 640], sizes = [2, 320], strides = [1, 1]} : vector<2x960xf32> to vector<2x320xf32>
    %425 = arith.mulf %412, %424 : vector<2x320xf32>
    %426 = arith.addf %423, %425 : vector<2x320xf32>
    %427 = math.tanh %426 : vector<2x320xf32>
    %cst_128 = arith.constant 1.000000e+00 : f32
    %428 = vector.broadcast %cst_128 : f32 to vector<2x320xf32>
    %429 = arith.subf %428, %422 : vector<2x320xf32>
    %430 = arith.mulf %429, %427 : vector<2x320xf32>
    %431 = arith.mulf %422, %397 : vector<2x320xf32>
    %432 = arith.addf %430, %431 : vector<2x320xf32>
    %433 = vector.extract_strided_slice %325 {offsets = [0, 3, 0], sizes = [2, 1, 960], strides = [1, 1, 1]} : vector<2x8x960xf32> to vector<2x1x960xf32>
    %434 = vector.shape_cast %433 : vector<2x1x960xf32> to vector<2x960xf32>
    %cst_129 = arith.constant dense<0.000000e+00> : vector<2x960xf32>
    %435 = tpu.matmul %432, %326, %cst_129 {dimension_numbers = #tpu.dot_dimension_numbers<[1], [0], [0], [1], [0, 0, 1, 1], [], []>} : vector<2x320xf32>, vector<320x960xf32>, vector<2x960xf32> -> vector<2x960xf32>
    %436 = vector.broadcast %320 : vector<1x960xf32> to vector<2x960xf32>
    %437 = arith.addf %435, %436 : vector<2x960xf32>
    %438 = vector.extract_strided_slice %434 {offsets = [0, 0], sizes = [2, 320], strides = [1, 1]} : vector<2x960xf32> to vector<2x320xf32>
    %439 = vector.extract_strided_slice %437 {offsets = [0, 0], sizes = [2, 320], strides = [1, 1]} : vector<2x960xf32> to vector<2x320xf32>
    %440 = arith.addf %438, %439 : vector<2x320xf32>
    %cst_130 = arith.constant 0.000000e+00 : f32
    %441 = vector.broadcast %cst_130 : f32 to vector<2x320xf32>
    %442 = arith.subf %441, %440 : vector<2x320xf32>
    %443 = math.exp %442 : vector<2x320xf32>
    %cst_131 = arith.constant 1.000000e+00 : f32
    %444 = vector.broadcast %cst_131 : f32 to vector<2x320xf32>
    %445 = arith.addf %444, %443 : vector<2x320xf32>
    %cst_132 = arith.constant 1.000000e+00 : f32
    %446 = vector.broadcast %cst_132 : f32 to vector<2x320xf32>
    %447 = arith.divf %446, %445 : vector<2x320xf32>
    %448 = vector.extract_strided_slice %434 {offsets = [0, 320], sizes = [2, 320], strides = [1, 1]} : vector<2x960xf32> to vector<2x320xf32>
    %449 = vector.extract_strided_slice %437 {offsets = [0, 320], sizes = [2, 320], strides = [1, 1]} : vector<2x960xf32> to vector<2x320xf32>
    %450 = arith.addf %448, %449 : vector<2x320xf32>
    %cst_133 = arith.constant 0.000000e+00 : f32
    %451 = vector.broadcast %cst_133 : f32 to vector<2x320xf32>
    %452 = arith.subf %451, %450 : vector<2x320xf32>
    %453 = math.exp %452 : vector<2x320xf32>
    %cst_134 = arith.constant 1.000000e+00 : f32
    %454 = vector.broadcast %cst_134 : f32 to vector<2x320xf32>
    %455 = arith.addf %454, %453 : vector<2x320xf32>
    %cst_135 = arith.constant 1.000000e+00 : f32
    %456 = vector.broadcast %cst_135 : f32 to vector<2x320xf32>
    %457 = arith.divf %456, %455 : vector<2x320xf32>
    %458 = vector.extract_strided_slice %434 {offsets = [0, 640], sizes = [2, 320], strides = [1, 1]} : vector<2x960xf32> to vector<2x320xf32>
    %459 = vector.extract_strided_slice %437 {offsets = [0, 640], sizes = [2, 320], strides = [1, 1]} : vector<2x960xf32> to vector<2x320xf32>
    %460 = arith.mulf %447, %459 : vector<2x320xf32>
    %461 = arith.addf %458, %460 : vector<2x320xf32>
    %462 = math.tanh %461 : vector<2x320xf32>
    %cst_136 = arith.constant 1.000000e+00 : f32
    %463 = vector.broadcast %cst_136 : f32 to vector<2x320xf32>
    %464 = arith.subf %463, %457 : vector<2x320xf32>
    %465 = arith.mulf %464, %462 : vector<2x320xf32>
    %466 = arith.mulf %457, %432 : vector<2x320xf32>
    %467 = arith.addf %465, %466 : vector<2x320xf32>
    %468 = vector.extract_strided_slice %325 {offsets = [0, 4, 0], sizes = [2, 1, 960], strides = [1, 1, 1]} : vector<2x8x960xf32> to vector<2x1x960xf32>
    %469 = vector.shape_cast %468 : vector<2x1x960xf32> to vector<2x960xf32>
    %cst_137 = arith.constant dense<0.000000e+00> : vector<2x960xf32>
    %470 = tpu.matmul %467, %326, %cst_137 {dimension_numbers = #tpu.dot_dimension_numbers<[1], [0], [0], [1], [0, 0, 1, 1], [], []>} : vector<2x320xf32>, vector<320x960xf32>, vector<2x960xf32> -> vector<2x960xf32>
    %471 = vector.broadcast %320 : vector<1x960xf32> to vector<2x960xf32>
    %472 = arith.addf %470, %471 : vector<2x960xf32>
    %473 = vector.extract_strided_slice %469 {offsets = [0, 0], sizes = [2, 320], strides = [1, 1]} : vector<2x960xf32> to vector<2x320xf32>
    %474 = vector.extract_strided_slice %472 {offsets = [0, 0], sizes = [2, 320], strides = [1, 1]} : vector<2x960xf32> to vector<2x320xf32>
    %475 = arith.addf %473, %474 : vector<2x320xf32>
    %cst_138 = arith.constant 0.000000e+00 : f32
    %476 = vector.broadcast %cst_138 : f32 to vector<2x320xf32>
    %477 = arith.subf %476, %475 : vector<2x320xf32>
    %478 = math.exp %477 : vector<2x320xf32>
    %cst_139 = arith.constant 1.000000e+00 : f32
    %479 = vector.broadcast %cst_139 : f32 to vector<2x320xf32>
    %480 = arith.addf %479, %478 : vector<2x320xf32>
    %cst_140 = arith.constant 1.000000e+00 : f32
    %481 = vector.broadcast %cst_140 : f32 to vector<2x320xf32>
    %482 = arith.divf %481, %480 : vector<2x320xf32>
    %483 = vector.extract_strided_slice %469 {offsets = [0, 320], sizes = [2, 320], strides = [1, 1]} : vector<2x960xf32> to vector<2x320xf32>
    %484 = vector.extract_strided_slice %472 {offsets = [0, 320], sizes = [2, 320], strides = [1, 1]} : vector<2x960xf32> to vector<2x320xf32>
    %485 = arith.addf %483, %484 : vector<2x320xf32>
    %cst_141 = arith.constant 0.000000e+00 : f32
    %486 = vector.broadcast %cst_141 : f32 to vector<2x320xf32>
    %487 = arith.subf %486, %485 : vector<2x320xf32>
    %488 = math.exp %487 : vector<2x320xf32>
    %cst_142 = arith.constant 1.000000e+00 : f32
    %489 = vector.broadcast %cst_142 : f32 to vector<2x320xf32>
    %490 = arith.addf %489, %488 : vector<2x320xf32>
    %cst_143 = arith.constant 1.000000e+00 : f32
    %491 = vector.broadcast %cst_143 : f32 to vector<2x320xf32>
    %492 = arith.divf %491, %490 : vector<2x320xf32>
    %493 = vector.extract_strided_slice %469 {offsets = [0, 640], sizes = [2, 320], strides = [1, 1]} : vector<2x960xf32> to vector<2x320xf32>
    %494 = vector.extract_strided_slice %472 {offsets = [0, 640], sizes = [2, 320], strides = [1, 1]} : vector<2x960xf32> to vector<2x320xf32>
    %495 = arith.mulf %482, %494 : vector<2x320xf32>
    %496 = arith.addf %493, %495 : vector<2x320xf32>
    %497 = math.tanh %496 : vector<2x320xf32>
    %cst_144 = arith.constant 1.000000e+00 : f32
    %498 = vector.broadcast %cst_144 : f32 to vector<2x320xf32>
    %499 = arith.subf %498, %492 : vector<2x320xf32>
    %500 = arith.mulf %499, %497 : vector<2x320xf32>
    %501 = arith.mulf %492, %467 : vector<2x320xf32>
    %502 = arith.addf %500, %501 : vector<2x320xf32>
    %503 = vector.extract_strided_slice %325 {offsets = [0, 5, 0], sizes = [2, 1, 960], strides = [1, 1, 1]} : vector<2x8x960xf32> to vector<2x1x960xf32>
    %504 = vector.shape_cast %503 : vector<2x1x960xf32> to vector<2x960xf32>
    %cst_145 = arith.constant dense<0.000000e+00> : vector<2x960xf32>
    %505 = tpu.matmul %502, %326, %cst_145 {dimension_numbers = #tpu.dot_dimension_numbers<[1], [0], [0], [1], [0, 0, 1, 1], [], []>} : vector<2x320xf32>, vector<320x960xf32>, vector<2x960xf32> -> vector<2x960xf32>
    %506 = vector.broadcast %320 : vector<1x960xf32> to vector<2x960xf32>
    %507 = arith.addf %505, %506 : vector<2x960xf32>
    %508 = vector.extract_strided_slice %504 {offsets = [0, 0], sizes = [2, 320], strides = [1, 1]} : vector<2x960xf32> to vector<2x320xf32>
    %509 = vector.extract_strided_slice %507 {offsets = [0, 0], sizes = [2, 320], strides = [1, 1]} : vector<2x960xf32> to vector<2x320xf32>
    %510 = arith.addf %508, %509 : vector<2x320xf32>
    %cst_146 = arith.constant 0.000000e+00 : f32
    %511 = vector.broadcast %cst_146 : f32 to vector<2x320xf32>
    %512 = arith.subf %511, %510 : vector<2x320xf32>
    %513 = math.exp %512 : vector<2x320xf32>
    %cst_147 = arith.constant 1.000000e+00 : f32
    %514 = vector.broadcast %cst_147 : f32 to vector<2x320xf32>
    %515 = arith.addf %514, %513 : vector<2x320xf32>
    %cst_148 = arith.constant 1.000000e+00 : f32
    %516 = vector.broadcast %cst_148 : f32 to vector<2x320xf32>
    %517 = arith.divf %516, %515 : vector<2x320xf32>
    %518 = vector.extract_strided_slice %504 {offsets = [0, 320], sizes = [2, 320], strides = [1, 1]} : vector<2x960xf32> to vector<2x320xf32>
    %519 = vector.extract_strided_slice %507 {offsets = [0, 320], sizes = [2, 320], strides = [1, 1]} : vector<2x960xf32> to vector<2x320xf32>
    %520 = arith.addf %518, %519 : vector<2x320xf32>
    %cst_149 = arith.constant 0.000000e+00 : f32
    %521 = vector.broadcast %cst_149 : f32 to vector<2x320xf32>
    %522 = arith.subf %521, %520 : vector<2x320xf32>
    %523 = math.exp %522 : vector<2x320xf32>
    %cst_150 = arith.constant 1.000000e+00 : f32
    %524 = vector.broadcast %cst_150 : f32 to vector<2x320xf32>
    %525 = arith.addf %524, %523 : vector<2x320xf32>
    %cst_151 = arith.constant 1.000000e+00 : f32
    %526 = vector.broadcast %cst_151 : f32 to vector<2x320xf32>
    %527 = arith.divf %526, %525 : vector<2x320xf32>
    %528 = vector.extract_strided_slice %504 {offsets = [0, 640], sizes = [2, 320], strides = [1, 1]} : vector<2x960xf32> to vector<2x320xf32>
    %529 = vector.extract_strided_slice %507 {offsets = [0, 640], sizes = [2, 320], strides = [1, 1]} : vector<2x960xf32> to vector<2x320xf32>
    %530 = arith.mulf %517, %529 : vector<2x320xf32>
    %531 = arith.addf %528, %530 : vector<2x320xf32>
    %532 = math.tanh %531 : vector<2x320xf32>
    %cst_152 = arith.constant 1.000000e+00 : f32
    %533 = vector.broadcast %cst_152 : f32 to vector<2x320xf32>
    %534 = arith.subf %533, %527 : vector<2x320xf32>
    %535 = arith.mulf %534, %532 : vector<2x320xf32>
    %536 = arith.mulf %527, %502 : vector<2x320xf32>
    %537 = arith.addf %535, %536 : vector<2x320xf32>
    %538 = vector.extract_strided_slice %325 {offsets = [0, 6, 0], sizes = [2, 1, 960], strides = [1, 1, 1]} : vector<2x8x960xf32> to vector<2x1x960xf32>
    %539 = vector.shape_cast %538 : vector<2x1x960xf32> to vector<2x960xf32>
    %cst_153 = arith.constant dense<0.000000e+00> : vector<2x960xf32>
    %540 = tpu.matmul %537, %326, %cst_153 {dimension_numbers = #tpu.dot_dimension_numbers<[1], [0], [0], [1], [0, 0, 1, 1], [], []>} : vector<2x320xf32>, vector<320x960xf32>, vector<2x960xf32> -> vector<2x960xf32>
    %541 = vector.broadcast %320 : vector<1x960xf32> to vector<2x960xf32>
    %542 = arith.addf %540, %541 : vector<2x960xf32>
    %543 = vector.extract_strided_slice %539 {offsets = [0, 0], sizes = [2, 320], strides = [1, 1]} : vector<2x960xf32> to vector<2x320xf32>
    %544 = vector.extract_strided_slice %542 {offsets = [0, 0], sizes = [2, 320], strides = [1, 1]} : vector<2x960xf32> to vector<2x320xf32>
    %545 = arith.addf %543, %544 : vector<2x320xf32>
    %cst_154 = arith.constant 0.000000e+00 : f32
    %546 = vector.broadcast %cst_154 : f32 to vector<2x320xf32>
    %547 = arith.subf %546, %545 : vector<2x320xf32>
    %548 = math.exp %547 : vector<2x320xf32>
    %cst_155 = arith.constant 1.000000e+00 : f32
    %549 = vector.broadcast %cst_155 : f32 to vector<2x320xf32>
    %550 = arith.addf %549, %548 : vector<2x320xf32>
    %cst_156 = arith.constant 1.000000e+00 : f32
    %551 = vector.broadcast %cst_156 : f32 to vector<2x320xf32>
    %552 = arith.divf %551, %550 : vector<2x320xf32>
    %553 = vector.extract_strided_slice %539 {offsets = [0, 320], sizes = [2, 320], strides = [1, 1]} : vector<2x960xf32> to vector<2x320xf32>
    %554 = vector.extract_strided_slice %542 {offsets = [0, 320], sizes = [2, 320], strides = [1, 1]} : vector<2x960xf32> to vector<2x320xf32>
    %555 = arith.addf %553, %554 : vector<2x320xf32>
    %cst_157 = arith.constant 0.000000e+00 : f32
    %556 = vector.broadcast %cst_157 : f32 to vector<2x320xf32>
    %557 = arith.subf %556, %555 : vector<2x320xf32>
    %558 = math.exp %557 : vector<2x320xf32>
    %cst_158 = arith.constant 1.000000e+00 : f32
    %559 = vector.broadcast %cst_158 : f32 to vector<2x320xf32>
    %560 = arith.addf %559, %558 : vector<2x320xf32>
    %cst_159 = arith.constant 1.000000e+00 : f32
    %561 = vector.broadcast %cst_159 : f32 to vector<2x320xf32>
    %562 = arith.divf %561, %560 : vector<2x320xf32>
    %563 = vector.extract_strided_slice %539 {offsets = [0, 640], sizes = [2, 320], strides = [1, 1]} : vector<2x960xf32> to vector<2x320xf32>
    %564 = vector.extract_strided_slice %542 {offsets = [0, 640], sizes = [2, 320], strides = [1, 1]} : vector<2x960xf32> to vector<2x320xf32>
    %565 = arith.mulf %552, %564 : vector<2x320xf32>
    %566 = arith.addf %563, %565 : vector<2x320xf32>
    %567 = math.tanh %566 : vector<2x320xf32>
    %cst_160 = arith.constant 1.000000e+00 : f32
    %568 = vector.broadcast %cst_160 : f32 to vector<2x320xf32>
    %569 = arith.subf %568, %562 : vector<2x320xf32>
    %570 = arith.mulf %569, %567 : vector<2x320xf32>
    %571 = arith.mulf %562, %537 : vector<2x320xf32>
    %572 = arith.addf %570, %571 : vector<2x320xf32>
    %573 = vector.extract_strided_slice %325 {offsets = [0, 7, 0], sizes = [2, 1, 960], strides = [1, 1, 1]} : vector<2x8x960xf32> to vector<2x1x960xf32>
    %574 = vector.shape_cast %573 : vector<2x1x960xf32> to vector<2x960xf32>
    %cst_161 = arith.constant dense<0.000000e+00> : vector<2x960xf32>
    %575 = tpu.matmul %572, %326, %cst_161 {dimension_numbers = #tpu.dot_dimension_numbers<[1], [0], [0], [1], [0, 0, 1, 1], [], []>} : vector<2x320xf32>, vector<320x960xf32>, vector<2x960xf32> -> vector<2x960xf32>
    %576 = vector.broadcast %320 : vector<1x960xf32> to vector<2x960xf32>
    %577 = arith.addf %575, %576 : vector<2x960xf32>
    %578 = vector.extract_strided_slice %574 {offsets = [0, 0], sizes = [2, 320], strides = [1, 1]} : vector<2x960xf32> to vector<2x320xf32>
    %579 = vector.extract_strided_slice %577 {offsets = [0, 0], sizes = [2, 320], strides = [1, 1]} : vector<2x960xf32> to vector<2x320xf32>
    %580 = arith.addf %578, %579 : vector<2x320xf32>
    %cst_162 = arith.constant 0.000000e+00 : f32
    %581 = vector.broadcast %cst_162 : f32 to vector<2x320xf32>
    %582 = arith.subf %581, %580 : vector<2x320xf32>
    %583 = math.exp %582 : vector<2x320xf32>
    %cst_163 = arith.constant 1.000000e+00 : f32
    %584 = vector.broadcast %cst_163 : f32 to vector<2x320xf32>
    %585 = arith.addf %584, %583 : vector<2x320xf32>
    %cst_164 = arith.constant 1.000000e+00 : f32
    %586 = vector.broadcast %cst_164 : f32 to vector<2x320xf32>
    %587 = arith.divf %586, %585 : vector<2x320xf32>
    %588 = vector.extract_strided_slice %574 {offsets = [0, 320], sizes = [2, 320], strides = [1, 1]} : vector<2x960xf32> to vector<2x320xf32>
    %589 = vector.extract_strided_slice %577 {offsets = [0, 320], sizes = [2, 320], strides = [1, 1]} : vector<2x960xf32> to vector<2x320xf32>
    %590 = arith.addf %588, %589 : vector<2x320xf32>
    %cst_165 = arith.constant 0.000000e+00 : f32
    %591 = vector.broadcast %cst_165 : f32 to vector<2x320xf32>
    %592 = arith.subf %591, %590 : vector<2x320xf32>
    %593 = math.exp %592 : vector<2x320xf32>
    %cst_166 = arith.constant 1.000000e+00 : f32
    %594 = vector.broadcast %cst_166 : f32 to vector<2x320xf32>
    %595 = arith.addf %594, %593 : vector<2x320xf32>
    %cst_167 = arith.constant 1.000000e+00 : f32
    %596 = vector.broadcast %cst_167 : f32 to vector<2x320xf32>
    %597 = arith.divf %596, %595 : vector<2x320xf32>
    %598 = vector.extract_strided_slice %574 {offsets = [0, 640], sizes = [2, 320], strides = [1, 1]} : vector<2x960xf32> to vector<2x320xf32>
    %599 = vector.extract_strided_slice %577 {offsets = [0, 640], sizes = [2, 320], strides = [1, 1]} : vector<2x960xf32> to vector<2x320xf32>
    %600 = arith.mulf %587, %599 : vector<2x320xf32>
    %601 = arith.addf %598, %600 : vector<2x320xf32>
    %602 = math.tanh %601 : vector<2x320xf32>
    %cst_168 = arith.constant 1.000000e+00 : f32
    %603 = vector.broadcast %cst_168 : f32 to vector<2x320xf32>
    %604 = arith.subf %603, %597 : vector<2x320xf32>
    %605 = arith.mulf %604, %602 : vector<2x320xf32>
    %606 = arith.mulf %597, %572 : vector<2x320xf32>
    %607 = arith.addf %605, %606 : vector<2x320xf32>
    %c0_169 = arith.constant 0 : index
    %c0_170 = arith.constant 0 : index
    %608 = vector.load %arg17[%c0_169, %c0_170] : memref<3x80xf32, #tpu.memory_space<vmem>>, vector<3x80xf32>
    %c0_171 = arith.constant 0 : index
    %c0_172 = arith.constant 0 : index
    %609 = vector.load %arg14[%c0_171, %c0_172] : memref<320x80xf32, #tpu.memory_space<vmem>>, vector<320x80xf32>
    %cst_173 = arith.constant dense<0.000000e+00> : vector<2x80xf32>
    %610 = tpu.matmul %607, %609, %cst_173 {dimension_numbers = #tpu.dot_dimension_numbers<[1], [0], [0], [1], [0, 0, 1, 1], [], []>} : vector<2x320xf32>, vector<320x80xf32>, vector<2x80xf32> -> vector<2x80xf32>
    %611 = vector.extract_strided_slice %608 {offsets = [0, 0], sizes = [1, 80], strides = [1, 1]} : vector<3x80xf32> to vector<1x80xf32>
    %612 = vector.broadcast %611 : vector<1x80xf32> to vector<2x80xf32>
    %613 = arith.addf %610, %612 : vector<2x80xf32>
    %c0_174 = arith.constant 0 : index
    %c0_175 = arith.constant 0 : index
    %614 = vector.load %arg15[%c0_174, %c0_175] : memref<80x20xf32, #tpu.memory_space<vmem>>, vector<80x20xf32>
    %cst_176 = arith.constant dense<0.000000e+00> : vector<2x20xf32>
    %615 = tpu.matmul %613, %614, %cst_176 {dimension_numbers = #tpu.dot_dimension_numbers<[1], [0], [0], [1], [0, 0, 1, 1], [], []>} : vector<2x80xf32>, vector<80x20xf32>, vector<2x20xf32> -> vector<2x20xf32>
    %616 = vector.extract_strided_slice %608 {offsets = [1, 0], sizes = [1, 20], strides = [1, 1]} : vector<3x80xf32> to vector<1x20xf32>
    %617 = vector.broadcast %616 : vector<1x20xf32> to vector<2x20xf32>
    %618 = arith.addf %615, %617 : vector<2x20xf32>
    %c0_177 = arith.constant 0 : index
    %c0_178 = arith.constant 0 : index
    %619 = vector.load %arg16[%c0_177, %c0_178] : memref<20x4xf32, #tpu.memory_space<vmem>>, vector<20x4xf32>
    %cst_179 = arith.constant dense<0.000000e+00> : vector<2x4xf32>
    %620 = tpu.matmul %618, %619, %cst_179 {dimension_numbers = #tpu.dot_dimension_numbers<[1], [0], [0], [1], [0, 0, 1, 1], [], []>} : vector<2x20xf32>, vector<20x4xf32>, vector<2x4xf32> -> vector<2x4xf32>
    %621 = vector.extract_strided_slice %608 {offsets = [2, 0], sizes = [1, 4], strides = [1, 1]} : vector<3x80xf32> to vector<1x4xf32>
    %622 = vector.broadcast %621 : vector<1x4xf32> to vector<2x4xf32>
    %623 = arith.addf %620, %622 : vector<2x4xf32>
    %cst_180 = arith.constant dense<0xFF800000> : vector<2xf32>
    %624 = vector.multi_reduction <maximumf>, %623, %cst_180 [1] : vector<2x4xf32> to vector<2xf32>
    %625 = vector.shape_cast %624 : vector<2xf32> to vector<2x1xf32>
    %626 = vector.broadcast %625 : vector<2x1xf32> to vector<2x4xf32>
    %627 = arith.subf %623, %626 : vector<2x4xf32>
    %628 = math.exp %627 : vector<2x4xf32>
    %cst_181 = arith.constant dense<0.000000e+00> : vector<2xf32>
    %629 = vector.multi_reduction <add>, %628, %cst_181 [1] : vector<2x4xf32> to vector<2xf32>
    %630 = vector.shape_cast %629 : vector<2xf32> to vector<2x1xf32>
    %631 = vector.broadcast %630 : vector<2x1xf32> to vector<2x4xf32>
    %632 = arith.divf %628, %631 : vector<2x4xf32>
    %c0_182 = arith.constant 0 : index
    %c0_183 = arith.constant 0 : index
    %633 = vector.load %arg18[%c0_182, %c0_183] : memref<2x4xf32, #tpu.memory_space<vmem>>, vector<2x4xf32>
    tpu.vector_store %arg18[%c0_182, %c0_183], %632 {strides = array<i32>} : memref<2x4xf32, #tpu.memory_space<vmem>>, vector<2x4xf32>,
    return
  }
}

</mosaic_0001>

<llo_original>
// kernel: gru_model_forward.1
$region0: #{gru_model_forward.1}
  #allocation0 [shape = 'u32[]', space=smem, size = 0x4, offset = 0x4, fixed_abs, tag = 'smem constant byte address 0x4 - core index']
  #allocation1 [shape = 'u32[72,128]{1,0:T(1,128)}', space=vmem, size = 0x9000, scoped, tag = 'internal scratch']
  %s0 = inlined_call_operand.vmem [shape: f32[2,8,32], index: 0, kind: input, shape index: {}]
  %s1 = inlined_call_operand.hbm [shape: f32[32,96], index: 1, kind: input, shape index: {}]
  %s2 = inlined_call_operand.hbm [shape: f32[32,32], index: 2, kind: input, shape index: {}]
  %s3 = inlined_call_operand.hbm [shape: f32[32,64], index: 3, kind: input, shape index: {}]
  %s4 = inlined_call_operand.vmem [shape: f32[64,32], index: 4, kind: input, shape index: {}]
  %s5 = inlined_call_operand.hbm [shape: f32[8,96], index: 5, kind: input, shape index: {}]
  %s6 = inlined_call_operand.hbm [shape: f32[32,96], index: 6, kind: input, shape index: {}]
  %s7 = inlined_call_operand.hbm [shape: f32[32,32], index: 7, kind: input, shape index: {}]
  %s8 = inlined_call_operand.hbm [shape: f32[32,64], index: 8, kind: input, shape index: {}]
  %s9 = inlined_call_operand.vmem [shape: f32[64,32], index: 9, kind: input, shape index: {}]
  %s10 = inlined_call_operand.hbm [shape: f32[8,96], index: 10, kind: input, shape index: {}]
  %s11 = inlined_call_operand.hbm [shape: f32[32,960], index: 11, kind: input, shape index: {}]
  %s12 = inlined_call_operand.hbm [shape: f32[320,960], index: 12, kind: input, shape index: {}]
  %s13 = inlined_call_operand.hbm [shape: f32[2,960], index: 13, kind: input, shape index: {}]
  %s14 = inlined_call_operand.vmem [shape: f32[320,80], index: 14, kind: input, shape index: {}]
  %s15 = inlined_call_operand.vmem [shape: f32[80,20], index: 15, kind: input, shape index: {}]
  %s16 = inlined_call_operand.vmem [shape: f32[20,4], index: 16, kind: input, shape index: {}]
  %s17 = inlined_call_operand.hbm [shape: f32[3,80], index: 17, kind: input, shape index: {}]
  %s18 = inlined_call_operand.hbm [shape: f32[2,4], index: 18, kind: output, shape index: {}]
  %s19 = sld [smem:[#allocation0]]
  $region130: #{gru_model_forward.1} parent=0
    _
  %s21 = ssub.s32 1, %s19
  %s22 = scalar_select 0, %s21, %s19
  $region1: #{gru_model_forward.1} parent=0
    #allocation2 [shape = 'u8[16384]{0}', space=vmem, size = 0x4000, scoped, tag = 'input window, operand 1, single buffered']
    #allocation3 [shape = 's32[1]{0}', space=sflag, size = 0x4, scoped, tag = 'scoped memory for gru_model_forward.1']
    #allocation4 [shape = 's32[1]{0}', space=sflag, size = 0x4, scoped, tag = 'scoped memory for gru_model_forward.1']
    #allocation5 [shape = 'u8[16384]{0}', space=vmem, size = 0x4000, scoped, tag = 'input window, operand 2, single buffered']
    #allocation6 [shape = 's32[1]{0}', space=sflag, size = 0x4, scoped, tag = 'scoped memory for gru_model_forward.1']
    #allocation7 [shape = 'u8[16384]{0}', space=vmem, size = 0x4000, scoped, tag = 'input window, operand 3, single buffered']
    #allocation8 [shape = 'u8[4096]{0}', space=vmem, size = 0x1000, scoped, tag = 'input window, operand 5, single buffered']
    #allocation9 [shape = 's32[1]{0}', space=sflag, size = 0x4, scoped, tag = 'scoped memory for gru_model_forward.1']
    #allocation10 [shape = 'u8[16384]{0}', space=vmem, size = 0x4000, scoped, tag = 'input window, operand 6, single buffered']
    #allocation11 [shape = 'u8[16384]{0}', space=vmem, size = 0x4000, scoped, tag = 'input window, operand 7, single buffered']
    #allocation12 [shape = 's32[1]{0}', space=sflag, size = 0x4, scoped, tag = 'scoped memory for gru_model_forward.1']
    #allocation13 [shape = 'u8[16384]{0}', space=vmem, size = 0x4000, scoped, tag = 'input window, operand 8, single buffered']
    #allocation14 [shape = 'u8[4096]{0}', space=vmem, size = 0x1000, scoped, tag = 'input window, operand 10, single buffered']
    #allocation15 [shape = 's32[1]{0}', space=sflag, size = 0x4, scoped, tag = 'scoped memory for gru_model_forward.1']
    #allocation16 [shape = 'u8[131072]{0}', space=vmem, size = 0x20000, scoped, tag = 'input window, operand 11, single buffered']
    #allocation17 [shape = 'u8[1310720]{0}', space=vmem, size = 0x140000, scoped, tag = 'input window, operand 12, single buffered']
    #allocation18 [shape = 's32[1]{0}', space=sflag, size = 0x4, scoped, tag = 'scoped memory for gru_model_forward.1']
    #allocation19 [shape = 'u8[8192]{0}', space=vmem, size = 0x2000, scoped, tag = 'input window, operand 13, single buffered']
    #allocation20 [shape = 'u8[2048]{0}', space=vmem, size = 0x800, scoped, tag = 'input window, operand 17, single buffered']
    #allocation21 [shape = 's32[1]{0}', space=sflag, size = 0x4, scoped, tag = 'scoped memory for gru_model_forward.1']
    #allocation22 [shape = 'u8[1024]{0}', space=vmem, size = 0x400, scoped, tag = 'output window, operand 0, single buffered']
    %23 = vsyncpa [#allocation3], 0
    %24 = vsyncpa [#allocation6], 0
    %25 = vsyncpa [#allocation9], 0
    %26 = vsyncpa [#allocation12], 0
    %27 = vsyncpa [#allocation15], 0
    %28 = vsyncpa [#allocation18], 0
    %29 = vsyncpa [#allocation21], 0
    %30 = vsyncpa [#allocation4], 0
    // Predicated region
    $region2: #{gru_model_forward.1} parent=1 // pred_check
      _
    $region3: #{gru_model_forward.1} parent=1 // pred_check_branch
      %32 = sbr.rel (0) target = $region5
    $region4: #{gru_model_forward.1} parent=1 // pred_region
      _
    $region5: #{gru_model_forward.1} parent=1 // pred_fallthru
      _
    // Predicated region
    $region6: #{gru_model_forward.1} parent=1 // pred_check
      _
    $region7: #{gru_model_forward.1} parent=1 // pred_check_branch
      %34 = sbr.rel (0) target = $region9
    $region8: #{gru_model_forward.1} parent=1 // pred_region
      %36 = vsyncadd [#allocation3], 0
      %s37 = sshll.u32 %s1, 4
      %s38 = int_to_ptr.hbm [resolvable:$true] %s37
      %s39 = sshll.u32 [#allocation2], 4
      %s40 = int_to_ptr.vmem [resolvable:$true] %s39
      %45 = dma.hbm_to_vmem [thread:$0]  %s38, 512, %s40, [#allocation3], 128, 128, 8
    $region9: #{gru_model_forward.1} parent=1 // pred_fallthru
      _
    // Predicated region
    $region10: #{gru_model_forward.1} parent=1 // pred_check
      _
    $region11: #{gru_model_forward.1} parent=1 // pred_check_branch
      %47 = sbr.rel (0) target = $region13
    $region12: #{gru_model_forward.1} parent=1 // pred_region
      %49 = vsyncadd [#allocation6], 0
      %s50 = sshll.u32 %s2, 4
      %s51 = int_to_ptr.hbm [resolvable:$true] %s50
      %s52 = sshll.u32 [#allocation5], 4
      %s53 = int_to_ptr.vmem [resolvable:$true] %s52
      %58 = dma.hbm_to_vmem [thread:$0]  %s51, 512, %s53, [#allocation6], 128, 128, 8
    $region13: #{gru_model_forward.1} parent=1 // pred_fallthru
      _
    // Predicated region
    $region14: #{gru_model_forward.1} parent=1 // pred_check
      _
    $region15: #{gru_model_forward.1} parent=1 // pred_check_branch
      %60 = sbr.rel (0) target = $region17
    $region16: #{gru_model_forward.1} parent=1 // pred_region
      %62 = vsyncadd [#allocation6], 0
      %s63 = sshll.u32 %s3, 4
      %s64 = int_to_ptr.hbm [resolvable:$true] %s63
      %s65 = sshll.u32 [#allocation7], 4
      %s66 = int_to_ptr.vmem [resolvable:$true] %s65
      %71 = dma.hbm_to_vmem [thread:$0]  %s64, 512, %s66, [#allocation6], 128, 128, 8
    $region17: #{gru_model_forward.1} parent=1 // pred_fallthru
      _
    // Predicated region
    $region18: #{gru_model_forward.1} parent=1 // pred_check
      _
    $region19: #{gru_model_forward.1} parent=1 // pred_check_branch
      %73 = sbr.rel (0) target = $region21
    $region20: #{gru_model_forward.1} parent=1 // pred_region
      _
    $region21: #{gru_model_forward.1} parent=1 // pred_fallthru
      _
    // Predicated region
    $region22: #{gru_model_forward.1} parent=1 // pred_check
      _
    $region23: #{gru_model_forward.1} parent=1 // pred_check_branch
      %75 = sbr.rel (0) target = $region25
    $region24: #{gru_model_forward.1} parent=1 // pred_region
      %77 = vsyncadd [#allocation9], 0
      %s79 = sshll.u32 %s5, 4
      %s80 = int_to_ptr.hbm [resolvable:$true] %s79
      %s81 = sshll.u32 [#allocation8], 4
      %s82 = int_to_ptr.vmem [resolvable:$true] %s81
      %84 = dma.hbm_to_vmem [thread:$0]  %s80, 128, %s82, [#allocation9]
    $region25: #{gru_model_forward.1} parent=1 // pred_fallthru
      _
    // Predicated region
    $region26: #{gru_model_forward.1} parent=1 // pred_check
      _
    $region27: #{gru_model_forward.1} parent=1 // pred_check_branch
      %86 = sbr.rel (0) target = $region29
    $region28: #{gru_model_forward.1} parent=1 // pred_region
      %88 = vsyncadd [#allocation9], 0
      %s89 = sshll.u32 %s6, 4
      %s90 = int_to_ptr.hbm [resolvable:$true] %s89
      %s91 = sshll.u32 [#allocation10], 4
      %s92 = int_to_ptr.vmem [resolvable:$true] %s91
      %97 = dma.hbm_to_vmem [thread:$0]  %s90, 512, %s92, [#allocation9], 128, 128, 8
    $region29: #{gru_model_forward.1} parent=1 // pred_fallthru
      _
    // Predicated region
    $region30: #{gru_model_forward.1} parent=1 // pred_check
      _
    $region31: #{gru_model_forward.1} parent=1 // pred_check_branch
      %99 = sbr.rel (0) target = $region33
    $region32: #{gru_model_forward.1} parent=1 // pred_region
      %101 = vsyncadd [#allocation12], 0
      %s102 = sshll.u32 %s7, 4
      %s103 = int_to_ptr.hbm [resolvable:$true] %s102
      %s104 = sshll.u32 [#allocation11], 4
      %s105 = int_to_ptr.vmem [resolvable:$true] %s104
      %110 = dma.hbm_to_vmem [thread:$0]  %s103, 512, %s105, [#allocation12], 128, 128, 8
    $region33: #{gru_model_forward.1} parent=1 // pred_fallthru
      _
    // Predicated region
    $region34: #{gru_model_forward.1} parent=1 // pred_check
      _
    $region35: #{gru_model_forward.1} parent=1 // pred_check_branch
      %112 = sbr.rel (0) target = $region37
    $region36: #{gru_model_forward.1} parent=1 // pred_region
      %114 = vsyncadd [#allocation12], 0
      %s115 = sshll.u32 %s8, 4
      %s116 = int_to_ptr.hbm [resolvable:$true] %s115
      %s117 = sshll.u32 [#allocation13], 4
      %s118 = int_to_ptr.vmem [resolvable:$true] %s117
      %123 = dma.hbm_to_vmem [thread:$0]  %s116, 512, %s118, [#allocation12], 128, 128, 8
    $region37: #{gru_model_forward.1} parent=1 // pred_fallthru
      _
    // Predicated region
    $region38: #{gru_model_forward.1} parent=1 // pred_check
      _
    $region39: #{gru_model_forward.1} parent=1 // pred_check_branch
      %125 = sbr.rel (0) target = $region41
    $region40: #{gru_model_forward.1} parent=1 // pred_region
      _
    $region41: #{gru_model_forward.1} parent=1 // pred_fallthru
      _
    // Predicated region
    $region42: #{gru_model_forward.1} parent=1 // pred_check
      _
    $region43: #{gru_model_forward.1} parent=1 // pred_check_branch
      %127 = sbr.rel (0) target = $region45
    $region44: #{gru_model_forward.1} parent=1 // pred_region
      %129 = vsyncadd [#allocation15], 0
      %s131 = sshll.u32 %s10, 4
      %s132 = int_to_ptr.hbm [resolvable:$true] %s131
      %s133 = sshll.u32 [#allocation14], 4
      %s134 = int_to_ptr.vmem [resolvable:$true] %s133
      %136 = dma.hbm_to_vmem [thread:$0]  %s132, 128, %s134, [#allocation15]
    $region45: #{gru_model_forward.1} parent=1 // pred_fallthru
      _
    // Predicated region
    $region46: #{gru_model_forward.1} parent=1 // pred_check
      _
    $region47: #{gru_model_forward.1} parent=1 // pred_check_branch
      %138 = sbr.rel (0) target = $region49
    $region48: #{gru_model_forward.1} parent=1 // pred_region
      %140 = vsyncadd [#allocation15], 0
      %s141 = sshll.u32 %s11, 4
      %s142 = int_to_ptr.hbm [resolvable:$true] %s141
      %s143 = sshll.u32 [#allocation16], 4
      %s144 = int_to_ptr.vmem [resolvable:$true] %s143
      %149 = dma.hbm_to_vmem [thread:$0]  %s142, 4096, %s144, [#allocation15], 1024, 1024, 64
    $region49: #{gru_model_forward.1} parent=1 // pred_fallthru
      _
    // Predicated region
    $region50: #{gru_model_forward.1} parent=1 // pred_check
      _
    $region51: #{gru_model_forward.1} parent=1 // pred_check_branch
      %151 = sbr.rel (0) target = $region53
    $region52: #{gru_model_forward.1} parent=1 // pred_region
      %153 = vsyncadd [#allocation18], 0
      %s154 = sshll.u32 %s12, 4
      %s155 = int_to_ptr.hbm [resolvable:$true] %s154
      %s156 = sshll.u32 [#allocation17], 4
      %s157 = int_to_ptr.vmem [resolvable:$true] %s156
      %162 = dma.hbm_to_vmem [thread:$0]  %s155, 40960, %s157, [#allocation18], 1024, 1024, 64
    $region53: #{gru_model_forward.1} parent=1 // pred_fallthru
      _
    // Predicated region
    $region54: #{gru_model_forward.1} parent=1 // pred_check
      _
    $region55: #{gru_model_forward.1} parent=1 // pred_check_branch
      %164 = sbr.rel (0) target = $region57
    $region56: #{gru_model_forward.1} parent=1 // pred_region
      %166 = vsyncadd [#allocation18], 0
      %s168 = sshll.u32 %s13, 4
      %s169 = int_to_ptr.hbm [resolvable:$true] %s168
      %s170 = sshll.u32 [#allocation19], 4
      %s171 = int_to_ptr.vmem [resolvable:$true] %s170
      %173 = dma.hbm_to_vmem [thread:$0]  %s169, 256, %s171, [#allocation18]
    $region57: #{gru_model_forward.1} parent=1 // pred_fallthru
      _
    // Predicated region
    $region58: #{gru_model_forward.1} parent=1 // pred_check
      _
    $region59: #{gru_model_forward.1} parent=1 // pred_check_branch
      %175 = sbr.rel (0) target = $region61
    $region60: #{gru_model_forward.1} parent=1 // pred_region
      _
    $region61: #{gru_model_forward.1} parent=1 // pred_fallthru
      _
    // Predicated region
    $region62: #{gru_model_forward.1} parent=1 // pred_check
      _
    $region63: #{gru_model_forward.1} parent=1 // pred_check_branch
      %177 = sbr.rel (0) target = $region65
    $region64: #{gru_model_forward.1} parent=1 // pred_region
      _
    $region65: #{gru_model_forward.1} parent=1 // pred_fallthru
      _
    // Predicated region
    $region66: #{gru_model_forward.1} parent=1 // pred_check
      _
    $region67: #{gru_model_forward.1} parent=1 // pred_check_branch
      %179 = sbr.rel (0) target = $region69
    $region68: #{gru_model_forward.1} parent=1 // pred_region
      _
    $region69: #{gru_model_forward.1} parent=1 // pred_fallthru
      _
    // Predicated region
    $region70: #{gru_model_forward.1} parent=1 // pred_check
      _
    $region71: #{gru_model_forward.1} parent=1 // pred_check_branch
      %181 = sbr.rel (0) target = $region73
    $region72: #{gru_model_forward.1} parent=1 // pred_region
      %183 = vsyncadd [#allocation21], 0
      %s185 = sshll.u32 %s17, 4
      %s186 = int_to_ptr.hbm [resolvable:$true] %s185
      %s187 = sshll.u32 [#allocation20], 4
      %s188 = int_to_ptr.vmem [resolvable:$true] %s187
      %190 = dma.hbm_to_vmem [thread:$0]  %s186, 64, %s188, [#allocation21]
    $region73: #{gru_model_forward.1} parent=1 // pred_fallthru
      _
    // Predicated region
    $region74: #{gru_model_forward.1} parent=1 // pred_check
      _
    $region75: #{gru_model_forward.1} parent=1 // pred_check_branch
      %192 = sbr.rel (0) target = $region77
    $region76: #{gru_model_forward.1} parent=1 // pred_region
      %194 = dma.done [#allocation3], 512
    $region77: #{gru_model_forward.1} parent=1 // pred_fallthru
      _
    // Predicated region
    $region78: #{gru_model_forward.1} parent=1 // pred_check
      _
    $region79: #{gru_model_forward.1} parent=1 // pred_check_branch
      %196 = sbr.rel (0) target = $region81
    $region80: #{gru_model_forward.1} parent=1 // pred_region
      %198 = dma.done [#allocation6], 512
    $region81: #{gru_model_forward.1} parent=1 // pred_fallthru
      _
    // Predicated region
    $region82: #{gru_model_forward.1} parent=1 // pred_check
      _
    $region83: #{gru_model_forward.1} parent=1 // pred_check_branch
      %200 = sbr.rel (0) target = $region85
    $region84: #{gru_model_forward.1} parent=1 // pred_region
      %202 = dma.done [#allocation6], 512
    $region85: #{gru_model_forward.1} parent=1 // pred_fallthru
      _
    // Predicated region
    $region86: #{gru_model_forward.1} parent=1 // pred_check
      _
    $region87: #{gru_model_forward.1} parent=1 // pred_check_branch
      %204 = sbr.rel (0) target = $region89
    $region88: #{gru_model_forward.1} parent=1 // pred_region
      %206 = dma.done [#allocation9], 128
    $region89: #{gru_model_forward.1} parent=1 // pred_fallthru
      _
    // Predicated region
    $region90: #{gru_model_forward.1} parent=1 // pred_check
      _
    $region91: #{gru_model_forward.1} parent=1 // pred_check_branch
      %208 = sbr.rel (0) target = $region93
    $region92: #{gru_model_forward.1} parent=1 // pred_region
      %210 = dma.done [#allocation9], 512
    $region93: #{gru_model_forward.1} parent=1 // pred_fallthru
      _
    // Predicated region
    $region94: #{gru_model_forward.1} parent=1 // pred_check
      _
    $region95: #{gru_model_forward.1} parent=1 // pred_check_branch
      %212 = sbr.rel (0) target = $region97
    $region96: #{gru_model_forward.1} parent=1 // pred_region
      %214 = dma.done [#allocation12], 512
    $region97: #{gru_model_forward.1} parent=1 // pred_fallthru
      _
    // Predicated region
    $region98: #{gru_model_forward.1} parent=1 // pred_check
      _
    $region99: #{gru_model_forward.1} parent=1 // pred_check_branch
      %216 = sbr.rel (0) target = $region101
    $region100: #{gru_model_forward.1} parent=1 // pred_region
      %218 = dma.done [#allocation12], 512
    $region101: #{gru_model_forward.1} parent=1 // pred_fallthru
      _
    // Predicated region
    $region102: #{gru_model_forward.1} parent=1 // pred_check
      _
    $region103: #{gru_model_forward.1} parent=1 // pred_check_branch
      %220 = sbr.rel (0) target = $region105
    $region104: #{gru_model_forward.1} parent=1 // pred_region
      %222 = dma.done [#allocation15], 128
    $region105: #{gru_model_forward.1} parent=1 // pred_fallthru
      _
    // Predicated region
    $region106: #{gru_model_forward.1} parent=1 // pred_check
      _
    $region107: #{gru_model_forward.1} parent=1 // pred_check_branch
      %224 = sbr.rel (0) target = $region109
    $region108: #{gru_model_forward.1} parent=1 // pred_region
      %226 = dma.done [#allocation15], 4096
    $region109: #{gru_model_forward.1} parent=1 // pred_fallthru
      _
    // Predicated region
    $region110: #{gru_model_forward.1} parent=1 // pred_check
      _
    $region111: #{gru_model_forward.1} parent=1 // pred_check_branch
      %228 = sbr.rel (0) target = $region113
    $region112: #{gru_model_forward.1} parent=1 // pred_region
      %230 = dma.done [#allocation18], 40960
    $region113: #{gru_model_forward.1} parent=1 // pred_fallthru
      _
    // Predicated region
    $region114: #{gru_model_forward.1} parent=1 // pred_check
      _
    $region115: #{gru_model_forward.1} parent=1 // pred_check_branch
      %232 = sbr.rel (0) target = $region117
    $region116: #{gru_model_forward.1} parent=1 // pred_region
      %234 = dma.done [#allocation18], 256
    $region117: #{gru_model_forward.1} parent=1 // pred_fallthru
      _
    // Predicated region
    $region118: #{gru_model_forward.1} parent=1 // pred_check
      _
    $region119: #{gru_model_forward.1} parent=1 // pred_check_branch
      %236 = sbr.rel (0) target = $region121
    $region120: #{gru_model_forward.1} parent=1 // pred_region
      %238 = dma.done [#allocation21], 64
    $region121: #{gru_model_forward.1} parent=1 // pred_fallthru
      _
    %v239 = vld [vmem:[%s0] sm:$0xff]
    %v240 = vld [vmem:[%s0 + $0x8] sm:$0xff]
    %v241 = vld [vmem:[#allocation8] sm:$0xff]
    %v242 = vld [vmem:[#allocation2] sm:$0xff]
    %v243 = vld [vmem:[#allocation2 + $0x8] sm:$0xff]
    %v244 = vld [vmem:[#allocation2 + $0x10] sm:$0xff]
    %v245 = vld [vmem:[#allocation2 + $0x18] sm:$0xff]
    %v246 = vperm.slane %v241, 0
    %vm247 = vcmask 261120
    %v249 = vsel %vm247, %v239, 0
    %v252 = vsel %vm247, %v240, 0
    %254 = vmatpush.msra.mxu0 0.0
    %255 = vmatpush.msra.mxu0 0.0
    %256 = vmatpush.msra.mxu0 0.0
    %257 = vmatpush.msra.mxu0 0.0
    %258 = vmatpush.msra.mxu0 0.0
    %259 = vmatpush.msra.mxu0 0.0
    %260 = vmatpush.msra.mxu0 0.0
    %261 = vmatpush.msra.mxu0 0.0
    %262 = vmatpush.msra.mxu0 0.0
    %263 = vmatpush.msra.mxu0 0.0
    %264 = vmatpush.msra.mxu0 0.0
    %265 = vmatpush.msra.mxu0 0.0
    %266 = vmatpush.msra.mxu0 %v245
    %267 = vmatpush.msra.mxu0 %v244
    %268 = vmatpush.msra.mxu0 %v243
    %269 = vmatpush.msra.mxu0 %v242
    %270 = vmatmul.f32.gmra.mxu0 %v249
    %v271 = vpop.f32.mrf.mxu0
    %v272 = vadd.f32 %v246, %v271
    %273 = vmatmul.f32.gmra.mxu0 %v252
    %v274 = vpop.f32.mrf.mxu0
    %v275 = vadd.f32 %v246, %v274
    %276 = vdwg.mxu0
    %278 = vrot.lane.b32.xlu0 %v272, 96
    %v279 = vpop.permute.xlu0 %278
    %vm280 = vcmask 64512
    %v281 = vsel %vm280, %v272, 0
    %v283 = vsel %vm280, %v279, 0
    %285 = vmatpush.xpose.msra.mxu0 0.0
    %286 = vmatpush.xpose.msra.mxu0 0.0
    %287 = vmatpush.xpose.msra.mxu0 0.0
    %288 = vmatpush.xpose.msra.mxu0 0.0
    %289 = vmatpush.xpose.msra.mxu0 0.0
    %290 = vmatpush.xpose.msra.mxu0 0.0
    %291 = vmatpush.xpose.msra.mxu0 0.0
    %292 = vmatpush.xpose.msra.mxu0 0.0
    %293 = vmatpush.xpose.msra.mxu0 0.0
    %294 = vmatpush.xpose.msra.mxu0 0.0
    %295 = vmatpush.xpose.msra.mxu0 0.0
    %296 = vmatpush.xpose.msra.mxu0 0.0
    %297 = vmatpush.xpose.msra.mxu0 0.0
    %298 = vmatpush.xpose.msra.mxu0 0.0
    %299 = vmatpush.xpose.msra.mxu0 0.0
    %300 = vmatpush.xpose.msra.mxu0 %v283
    %301 = vmatmul.f32.gmra.mxu0 %v281
    %v302 = vpop.f32.mrf.mxu0
    %v303 = vadd.f32 0.0, %v302
    %304 = vdwg.mxu0
    %306 = vrot.lane.b32.xlu0 %v275, 96
    %v307 = vpop.permute.xlu0 %306
    %v308 = vsel %vm280, %v275, 0
    %v310 = vsel %vm280, %v307, 0
    %312 = vmatpush.xpose.msra.mxu0 0.0
    %313 = vmatpush.xpose.msra.mxu0 0.0
    %314 = vmatpush.xpose.msra.mxu0 0.0
    %315 = vmatpush.xpose.msra.mxu0 0.0
    %316 = vmatpush.xpose.msra.mxu0 0.0
    %317 = vmatpush.xpose.msra.mxu0 0.0
    %318 = vmatpush.xpose.msra.mxu0 0.0
    %319 = vmatpush.xpose.msra.mxu0 0.0
    %320 = vmatpush.xpose.msra.mxu0 0.0
    %321 = vmatpush.xpose.msra.mxu0 0.0
    %322 = vmatpush.xpose.msra.mxu0 0.0
    %323 = vmatpush.xpose.msra.mxu0 0.0
    %324 = vmatpush.xpose.msra.mxu0 0.0
    %325 = vmatpush.xpose.msra.mxu0 0.0
    %326 = vmatpush.xpose.msra.mxu0 0.0
    %327 = vmatpush.xpose.msra.mxu0 %v310
    %328 = vmatmul.f32.gmra.mxu0 %v308
    %v329 = vpop.f32.mrf.mxu0
    %v330 = vadd.f32 0.0, %v329
    %331 = vdwg.mxu0
    %v332 = vmul.f32 %v303, 0.35355338
    %v333 = vmul.f32 %v330, 0.35355338
    %v334 = vsel %vm280, %v332, -inf
    %335 = vmax.xlane.f32.xlu0 %v334
    %v336 = vpop.xlane.xlu0 %335
    %v337 = vsel %vm280, %v333, -inf
    %338 = vmax.xlane.f32.xlu0 %v337
    %v339 = vpop.xlane.xlu0 %338
    %v340 = vsub.f32 %v332, %v336
    %v341 = vsub.f32 %v333, %v339
    %v342 = vmul.f32 %v340, 1.442695
    %v343 = vpow.pop %v342
    %v344 = vmul.f32 %v341, 1.442695
    %v345 = vpow.pop %v344
    %v346 = vsel %vm280, %v343, 0.0
    %347 = vadd.xlane.f32.xlu0 %v346
    %v348 = vpop.xlane.xlu0 %347
    %v349 = vsel %vm280, %v345, 0.0
    %350 = vadd.xlane.f32.xlu0 %v349
    %v351 = vpop.xlane.xlu0 %350
    %v352 = vrcp.pop %v348
    %v353 = vrcp.pop %v351
    %v354 = vmul.f32 %v343, %v352
    %v355 = vmul.f32 %v345, %v353
    %356 = vrot.lane.b32.xlu0 %v272, 64
    %v357 = vpop.permute.xlu0 %356
    %v360 = vsel %vm280, %v354, 0
    %362 = vmatpush.msra.mxu0 0.0
    %363 = vmatpush.msra.mxu0 0.0
    %364 = vmatpush.msra.mxu0 0.0
    %365 = vmatpush.msra.mxu0 0.0
    %366 = vmatpush.msra.mxu0 0.0
    %367 = vmatpush.msra.mxu0 0.0
    %368 = vmatpush.msra.mxu0 0.0
    %369 = vmatpush.msra.mxu0 0.0
    %370 = vmatpush.msra.mxu0 0.0
    %371 = vmatpush.msra.mxu0 0.0
    %372 = vmatpush.msra.mxu0 0.0
    %373 = vmatpush.msra.mxu0 0.0
    %374 = vmatpush.msra.mxu0 0.0
    %375 = vmatpush.msra.mxu0 0.0
    %376 = vmatpush.msra.mxu0 0.0
    %377 = vmatpush.msra.mxu0 %v357
    %378 = vmatmul.f32.gmra.mxu0 %v360
    %v379 = vpop.f32.mrf.mxu0
    %v380 = vadd.f32 0.0, %v379
    %381 = vdwg.mxu0
    %382 = vrot.lane.b32.xlu0 %v275, 64
    %v383 = vpop.permute.xlu0 %382
    %v386 = vsel %vm280, %v355, 0
    %388 = vmatpush.msra.mxu0 0.0
    %389 = vmatpush.msra.mxu0 0.0
    %390 = vmatpush.msra.mxu0 0.0
    %391 = vmatpush.msra.mxu0 0.0
    %392 = vmatpush.msra.mxu0 0.0
    %393 = vmatpush.msra.mxu0 0.0
    %394 = vmatpush.msra.mxu0 0.0
    %395 = vmatpush.msra.mxu0 0.0
    %396 = vmatpush.msra.mxu0 0.0
    %397 = vmatpush.msra.mxu0 0.0
    %398 = vmatpush.msra.mxu0 0.0
    %399 = vmatpush.msra.mxu0 0.0
    %400 = vmatpush.msra.mxu0 0.0
    %401 = vmatpush.msra.mxu0 0.0
    %402 = vmatpush.msra.mxu0 0.0
    %403 = vmatpush.msra.mxu0 %v383
    %404 = vmatmul.f32.gmra.mxu0 %v386
    %v405 = vpop.f32.mrf.mxu0
    %v406 = vadd.f32 0.0, %v405
    %407 = vdwg.mxu0
    %408 = vrot.lane.b32.xlu0 %v272, 120
    %v409 = vpop.permute.xlu0 %408
    %410 = vrot.lane.b32.xlu0 %v272, 88
    %v411 = vpop.permute.xlu0 %410
    %v412 = vsel %vm280, %v409, 0
    %v414 = vsel %vm280, %v411, 0
    %416 = vmatpush.xpose.msra.mxu0 0.0
    %417 = vmatpush.xpose.msra.mxu0 0.0
    %418 = vmatpush.xpose.msra.mxu0 0.0
    %419 = vmatpush.xpose.msra.mxu0 0.0
    %420 = vmatpush.xpose.msra.mxu0 0.0
    %421 = vmatpush.xpose.msra.mxu0 0.0
    %422 = vmatpush.xpose.msra.mxu0 0.0
    %423 = vmatpush.xpose.msra.mxu0 0.0
    %424 = vmatpush.xpose.msra.mxu0 0.0
    %425 = vmatpush.xpose.msra.mxu0 0.0
    %426 = vmatpush.xpose.msra.mxu0 0.0
    %427 = vmatpush.xpose.msra.mxu0 0.0
    %428 = vmatpush.xpose.msra.mxu0 0.0
    %429 = vmatpush.xpose.msra.mxu0 0.0
    %430 = vmatpush.xpose.msra.mxu0 0.0
    %431 = vmatpush.xpose.msra.mxu0 %v414
    %432 = vmatmul.f32.gmra.mxu0 %v412
    %v433 = vpop.f32.mrf.mxu0
    %v434 = vadd.f32 0.0, %v433
    %435 = vdwg.mxu0
    %436 = vrot.lane.b32.xlu0 %v275, 120
    %v437 = vpop.permute.xlu0 %436
    %438 = vrot.lane.b32.xlu0 %v275, 88
    %v439 = vpop.permute.xlu0 %438
    %v440 = vsel %vm280, %v437, 0
    %v442 = vsel %vm280, %v439, 0
    %444 = vmatpush.xpose.msra.mxu0 0.0
    %445 = vmatpush.xpose.msra.mxu0 0.0
    %446 = vmatpush.xpose.msra.mxu0 0.0
    %447 = vmatpush.xpose.msra.mxu0 0.0
    %448 = vmatpush.xpose.msra.mxu0 0.0
    %449 = vmatpush.xpose.msra.mxu0 0.0
    %450 = vmatpush.xpose.msra.mxu0 0.0
    %451 = vmatpush.xpose.msra.mxu0 0.0
    %452 = vmatpush.xpose.msra.mxu0 0.0
    %453 = vmatpush.xpose.msra.mxu0 0.0
    %454 = vmatpush.xpose.msra.mxu0 0.0
    %455 = vmatpush.xpose.msra.mxu0 0.0
    %456 = vmatpush.xpose.msra.mxu0 0.0
    %457 = vmatpush.xpose.msra.mxu0 0.0
    %458 = vmatpush.xpose.msra.mxu0 0.0
    %459 = vmatpush.xpose.msra.mxu0 %v442
    %460 = vmatmul.f32.gmra.mxu0 %v440
    %v461 = vpop.f32.mrf.mxu0
    %v462 = vadd.f32 0.0, %v461
    %463 = vdwg.mxu0
    %v464 = vmul.f32 %v434, 0.35355338
    %v465 = vmul.f32 %v462, 0.35355338
    %v466 = vsel %vm280, %v464, -inf
    %467 = vmax.xlane.f32.xlu0 %v466
    %v468 = vpop.xlane.xlu0 %467
    %v469 = vsel %vm280, %v465, -inf
    %470 = vmax.xlane.f32.xlu0 %v469
    %v471 = vpop.xlane.xlu0 %470
    %v472 = vsub.f32 %v464, %v468
    %v473 = vsub.f32 %v465, %v471
    %v474 = vmul.f32 %v472, 1.442695
    %v475 = vpow.pop %v474
    %v476 = vmul.f32 %v473, 1.442695
    %v477 = vpow.pop %v476
    %v478 = vsel %vm280, %v475, 0.0
    %479 = vadd.xlane.f32.xlu0 %v478
    %v480 = vpop.xlane.xlu0 %479
    %v481 = vsel %vm280, %v477, 0.0
    %482 = vadd.xlane.f32.xlu0 %v481
    %v483 = vpop.xlane.xlu0 %482
    %v484 = vrcp.pop %v480
    %v485 = vrcp.pop %v483
    %v486 = vmul.f32 %v475, %v484
    %v487 = vmul.f32 %v477, %v485
    %488 = vrot.lane.b32.xlu0 %v272, 56
    %v489 = vpop.permute.xlu0 %488
    %v492 = vsel %vm280, %v486, 0
    %494 = vmatpush.msra.mxu0 0.0
    %495 = vmatpush.msra.mxu0 0.0
    %496 = vmatpush.msra.mxu0 0.0
    %497 = vmatpush.msra.mxu0 0.0
    %498 = vmatpush.msra.mxu0 0.0
    %499 = vmatpush.msra.mxu0 0.0
    %500 = vmatpush.msra.mxu0 0.0
    %501 = vmatpush.msra.mxu0 0.0
    %502 = vmatpush.msra.mxu0 0.0
    %503 = vmatpush.msra.mxu0 0.0
    %504 = vmatpush.msra.mxu0 0.0
    %505 = vmatpush.msra.mxu0 0.0
    %506 = vmatpush.msra.mxu0 0.0
    %507 = vmatpush.msra.mxu0 0.0
    %508 = vmatpush.msra.mxu0 0.0
    %509 = vmatpush.msra.mxu0 %v489
    %510 = vmatmul.f32.gmra.mxu0 %v492
    %v511 = vpop.f32.mrf.mxu0
    %v512 = vadd.f32 0.0, %v511
    %513 = vdwg.mxu0
    %514 = vrot.lane.b32.xlu0 %v275, 56
    %v515 = vpop.permute.xlu0 %514
    %v518 = vsel %vm280, %v487, 0
    %520 = vmatpush.msra.mxu0 0.0
    %521 = vmatpush.msra.mxu0 0.0
    %522 = vmatpush.msra.mxu0 0.0
    %523 = vmatpush.msra.mxu0 0.0
    %524 = vmatpush.msra.mxu0 0.0
    %525 = vmatpush.msra.mxu0 0.0
    %526 = vmatpush.msra.mxu0 0.0
    %527 = vmatpush.msra.mxu0 0.0
    %528 = vmatpush.msra.mxu0 0.0
    %529 = vmatpush.msra.mxu0 0.0
    %530 = vmatpush.msra.mxu0 0.0
    %531 = vmatpush.msra.mxu0 0.0
    %532 = vmatpush.msra.mxu0 0.0
    %533 = vmatpush.msra.mxu0 0.0
    %534 = vmatpush.msra.mxu0 0.0
    %535 = vmatpush.msra.mxu0 %v515
    %536 = vmatmul.f32.gmra.mxu0 %v518
    %v537 = vpop.f32.mrf.mxu0
    %v538 = vadd.f32 0.0, %v537
    %539 = vdwg.mxu0
    %540 = vrot.lane.b32.xlu0 %v272, 112
    %v541 = vpop.permute.xlu0 %540
    %542 = vrot.lane.b32.xlu0 %v272, 80
    %v543 = vpop.permute.xlu0 %542
    %v544 = vsel %vm280, %v541, 0
    %v546 = vsel %vm280, %v543, 0
    %548 = vmatpush.xpose.msra.mxu0 0.0
    %549 = vmatpush.xpose.msra.mxu0 0.0
    %550 = vmatpush.xpose.msra.mxu0 0.0
    %551 = vmatpush.xpose.msra.mxu0 0.0
    %552 = vmatpush.xpose.msra.mxu0 0.0
    %553 = vmatpush.xpose.msra.mxu0 0.0
    %554 = vmatpush.xpose.msra.mxu0 0.0
    %555 = vmatpush.xpose.msra.mxu0 0.0
    %556 = vmatpush.xpose.msra.mxu0 0.0
    %557 = vmatpush.xpose.msra.mxu0 0.0
    %558 = vmatpush.xpose.msra.mxu0 0.0
    %559 = vmatpush.xpose.msra.mxu0 0.0
    %560 = vmatpush.xpose.msra.mxu0 0.0
    %561 = vmatpush.xpose.msra.mxu0 0.0
    %562 = vmatpush.xpose.msra.mxu0 0.0
    %563 = vmatpush.xpose.msra.mxu0 %v546
    %564 = vmatmul.f32.gmra.mxu0 %v544
    %v565 = vpop.f32.mrf.mxu0
    %v566 = vadd.f32 0.0, %v565
    %567 = vdwg.mxu0
    %568 = vrot.lane.b32.xlu0 %v275, 112
    %v569 = vpop.permute.xlu0 %568
    %570 = vrot.lane.b32.xlu0 %v275, 80
    %v571 = vpop.permute.xlu0 %570
    %v572 = vsel %vm280, %v569, 0
    %v574 = vsel %vm280, %v571, 0
    %576 = vmatpush.xpose.msra.mxu0 0.0
    %577 = vmatpush.xpose.msra.mxu0 0.0
    %578 = vmatpush.xpose.msra.mxu0 0.0
    %579 = vmatpush.xpose.msra.mxu0 0.0
    %580 = vmatpush.xpose.msra.mxu0 0.0
    %581 = vmatpush.xpose.msra.mxu0 0.0
    %582 = vmatpush.xpose.msra.mxu0 0.0
    %583 = vmatpush.xpose.msra.mxu0 0.0
    %584 = vmatpush.xpose.msra.mxu0 0.0
    %585 = vmatpush.xpose.msra.mxu0 0.0
    %586 = vmatpush.xpose.msra.mxu0 0.0
    %587 = vmatpush.xpose.msra.mxu0 0.0
    %588 = vmatpush.xpose.msra.mxu0 0.0
    %589 = vmatpush.xpose.msra.mxu0 0.0
    %590 = vmatpush.xpose.msra.mxu0 0.0
    %591 = vmatpush.xpose.msra.mxu0 %v574
    %592 = vmatmul.f32.gmra.mxu0 %v572
    %v593 = vpop.f32.mrf.mxu0
    %v594 = vadd.f32 0.0, %v593
    %595 = vdwg.mxu0
    %v596 = vmul.f32 %v566, 0.35355338
    %v597 = vmul.f32 %v594, 0.35355338
    %v598 = vsel %vm280, %v596, -inf
    %599 = vmax.xlane.f32.xlu0 %v598
    %v600 = vpop.xlane.xlu0 %599
    %v601 = vsel %vm280, %v597, -inf
    %602 = vmax.xlane.f32.xlu0 %v601
    %v603 = vpop.xlane.xlu0 %602
    %v604 = vsub.f32 %v596, %v600
    %v605 = vsub.f32 %v597, %v603
    %v606 = vmul.f32 %v604, 1.442695
    %v607 = vpow.pop %v606
    %v608 = vmul.f32 %v605, 1.442695
    %v609 = vpow.pop %v608
    %v610 = vsel %vm280, %v607, 0.0
    %611 = vadd.xlane.f32.xlu0 %v610
    %v612 = vpop.xlane.xlu0 %611
    %v613 = vsel %vm280, %v609, 0.0
    %614 = vadd.xlane.f32.xlu0 %v613
    %v615 = vpop.xlane.xlu0 %614
    %v616 = vrcp.pop %v612
    %v617 = vrcp.pop %v615
    %v618 = vmul.f32 %v607, %v616
    %v619 = vmul.f32 %v609, %v617
    %620 = vrot.lane.b32.xlu0 %v272, 48
    %v621 = vpop.permute.xlu0 %620
    %v624 = vsel %vm280, %v618, 0
    %626 = vmatpush.msra.mxu0 0.0
    %627 = vmatpush.msra.mxu0 0.0
    %628 = vmatpush.msra.mxu0 0.0
    %629 = vmatpush.msra.mxu0 0.0
    %630 = vmatpush.msra.mxu0 0.0
    %631 = vmatpush.msra.mxu0 0.0
    %632 = vmatpush.msra.mxu0 0.0
    %633 = vmatpush.msra.mxu0 0.0
    %634 = vmatpush.msra.mxu0 0.0
    %635 = vmatpush.msra.mxu0 0.0
    %636 = vmatpush.msra.mxu0 0.0
    %637 = vmatpush.msra.mxu0 0.0
    %638 = vmatpush.msra.mxu0 0.0
    %639 = vmatpush.msra.mxu0 0.0
    %640 = vmatpush.msra.mxu0 0.0
    %641 = vmatpush.msra.mxu0 %v621
    %642 = vmatmul.f32.gmra.mxu0 %v624
    %v643 = vpop.f32.mrf.mxu0
    %v644 = vadd.f32 0.0, %v643
    %645 = vdwg.mxu0
    %646 = vrot.lane.b32.xlu0 %v275, 48
    %v647 = vpop.permute.xlu0 %646
    %v650 = vsel %vm280, %v619, 0
    %652 = vmatpush.msra.mxu0 0.0
    %653 = vmatpush.msra.mxu0 0.0
    %654 = vmatpush.msra.mxu0 0.0
    %655 = vmatpush.msra.mxu0 0.0
    %656 = vmatpush.msra.mxu0 0.0
    %657 = vmatpush.msra.mxu0 0.0
    %658 = vmatpush.msra.mxu0 0.0
    %659 = vmatpush.msra.mxu0 0.0
    %660 = vmatpush.msra.mxu0 0.0
    %661 = vmatpush.msra.mxu0 0.0
    %662 = vmatpush.msra.mxu0 0.0
    %663 = vmatpush.msra.mxu0 0.0
    %664 = vmatpush.msra.mxu0 0.0
    %665 = vmatpush.msra.mxu0 0.0
    %666 = vmatpush.msra.mxu0 0.0
    %667 = vmatpush.msra.mxu0 %v647
    %668 = vmatmul.f32.gmra.mxu0 %v650
    %v669 = vpop.f32.mrf.mxu0
    %v670 = vadd.f32 0.0, %v669
    %671 = vdwg.mxu0
    %672 = vrot.lane.b32.xlu0 %v272, 104
    %v673 = vpop.permute.xlu0 %672
    %674 = vrot.lane.b32.xlu0 %v272, 72
    %v675 = vpop.permute.xlu0 %674
    %v676 = vsel %vm280, %v673, 0
    %v678 = vsel %vm280, %v675, 0
    %680 = vmatpush.xpose.msra.mxu0 0.0
    %681 = vmatpush.xpose.msra.mxu0 0.0
    %682 = vmatpush.xpose.msra.mxu0 0.0
    %683 = vmatpush.xpose.msra.mxu0 0.0
    %684 = vmatpush.xpose.msra.mxu0 0.0
    %685 = vmatpush.xpose.msra.mxu0 0.0
    %686 = vmatpush.xpose.msra.mxu0 0.0
    %687 = vmatpush.xpose.msra.mxu0 0.0
    %688 = vmatpush.xpose.msra.mxu0 0.0
    %689 = vmatpush.xpose.msra.mxu0 0.0
    %690 = vmatpush.xpose.msra.mxu0 0.0
    %691 = vmatpush.xpose.msra.mxu0 0.0
    %692 = vmatpush.xpose.msra.mxu0 0.0
    %693 = vmatpush.xpose.msra.mxu0 0.0
    %694 = vmatpush.xpose.msra.mxu0 0.0
    %695 = vmatpush.xpose.msra.mxu0 %v678
    %696 = vmatmul.f32.gmra.mxu0 %v676
    %v697 = vpop.f32.mrf.mxu0
    %v698 = vadd.f32 0.0, %v697
    %699 = vdwg.mxu0
    %700 = vrot.lane.b32.xlu0 %v275, 104
    %v701 = vpop.permute.xlu0 %700
    %702 = vrot.lane.b32.xlu0 %v275, 72
    %v703 = vpop.permute.xlu0 %702
    %v704 = vsel %vm280, %v701, 0
    %v706 = vsel %vm280, %v703, 0
    %708 = vmatpush.xpose.msra.mxu0 0.0
    %709 = vmatpush.xpose.msra.mxu0 0.0
    %710 = vmatpush.xpose.msra.mxu0 0.0
    %711 = vmatpush.xpose.msra.mxu0 0.0
    %712 = vmatpush.xpose.msra.mxu0 0.0
    %713 = vmatpush.xpose.msra.mxu0 0.0
    %714 = vmatpush.xpose.msra.mxu0 0.0
    %715 = vmatpush.xpose.msra.mxu0 0.0
    %716 = vmatpush.xpose.msra.mxu0 0.0
    %717 = vmatpush.xpose.msra.mxu0 0.0
    %718 = vmatpush.xpose.msra.mxu0 0.0
    %719 = vmatpush.xpose.msra.mxu0 0.0
    %720 = vmatpush.xpose.msra.mxu0 0.0
    %721 = vmatpush.xpose.msra.mxu0 0.0
    %722 = vmatpush.xpose.msra.mxu0 0.0
    %723 = vmatpush.xpose.msra.mxu0 %v706
    %724 = vmatmul.f32.gmra.mxu0 %v704
    %v725 = vpop.f32.mrf.mxu0
    %v726 = vadd.f32 0.0, %v725
    %727 = vdwg.mxu0
    %v728 = vmul.f32 %v698, 0.35355338
    %v729 = vmul.f32 %v726, 0.35355338
    %v730 = vsel %vm280, %v728, -inf
    %731 = vmax.xlane.f32.xlu0 %v730
    %v732 = vpop.xlane.xlu0 %731
    %v733 = vsel %vm280, %v729, -inf
    %734 = vmax.xlane.f32.xlu0 %v733
    %v735 = vpop.xlane.xlu0 %734
    %v736 = vsub.f32 %v728, %v732
    %v737 = vsub.f32 %v729, %v735
    %v738 = vmul.f32 %v736, 1.442695
    %v739 = vpow.pop %v738
    %v740 = vmul.f32 %v737, 1.442695
    %v741 = vpow.pop %v740
    %v742 = vsel %vm280, %v739, 0.0
    %743 = vadd.xlane.f32.xlu0 %v742
    %v744 = vpop.xlane.xlu0 %743
    %v745 = vsel %vm280, %v741, 0.0
    %746 = vadd.xlane.f32.xlu0 %v745
    %v747 = vpop.xlane.xlu0 %746
    %v748 = vrcp.pop %v744
    %v749 = vrcp.pop %v747
    %v750 = vmul.f32 %v739, %v748
    %v751 = vmul.f32 %v741, %v749
    %752 = vrot.lane.b32.xlu0 %v272, 40
    %v753 = vpop.permute.xlu0 %752
    %v756 = vsel %vm280, %v750, 0
    %758 = vmatpush.msra.mxu0 0.0
    %759 = vmatpush.msra.mxu0 0.0
    %760 = vmatpush.msra.mxu0 0.0
    %761 = vmatpush.msra.mxu0 0.0
    %762 = vmatpush.msra.mxu0 0.0
    %763 = vmatpush.msra.mxu0 0.0
    %764 = vmatpush.msra.mxu0 0.0
    %765 = vmatpush.msra.mxu0 0.0
    %766 = vmatpush.msra.mxu0 0.0
    %767 = vmatpush.msra.mxu0 0.0
    %768 = vmatpush.msra.mxu0 0.0
    %769 = vmatpush.msra.mxu0 0.0
    %770 = vmatpush.msra.mxu0 0.0
    %771 = vmatpush.msra.mxu0 0.0
    %772 = vmatpush.msra.mxu0 0.0
    %773 = vmatpush.msra.mxu0 %v753
    %774 = vmatmul.f32.gmra.mxu0 %v756
    %v775 = vpop.f32.mrf.mxu0
    %v776 = vadd.f32 0.0, %v775
    %777 = vdwg.mxu0
    %778 = vrot.lane.b32.xlu0 %v275, 40
    %v779 = vpop.permute.xlu0 %778
    %v782 = vsel %vm280, %v751, 0
    %784 = vmatpush.msra.mxu0 0.0
    %785 = vmatpush.msra.mxu0 0.0
    %786 = vmatpush.msra.mxu0 0.0
    %787 = vmatpush.msra.mxu0 0.0
    %788 = vmatpush.msra.mxu0 0.0
    %789 = vmatpush.msra.mxu0 0.0
    %790 = vmatpush.msra.mxu0 0.0
    %791 = vmatpush.msra.mxu0 0.0
    %792 = vmatpush.msra.mxu0 0.0
    %793 = vmatpush.msra.mxu0 0.0
    %794 = vmatpush.msra.mxu0 0.0
    %795 = vmatpush.msra.mxu0 0.0
    %796 = vmatpush.msra.mxu0 0.0
    %797 = vmatpush.msra.mxu0 0.0
    %798 = vmatpush.msra.mxu0 0.0
    %799 = vmatpush.msra.mxu0 %v779
    %800 = vmatmul.f32.gmra.mxu0 %v782
    %v801 = vpop.f32.mrf.mxu0
    %v802 = vadd.f32 0.0, %v801
    %803 = vdwg.mxu0
    %806 = vrot.lane.b32.xlu0 %v512, 8
    %v807 = vpop.permute.xlu0 %806
    %808 = vrot.lane.b32.xlu0 %v538, 8
    %v809 = vpop.permute.xlu0 %808
    %814 = vrot.lane.b32.xlu0 %v644, 16
    %v815 = vpop.permute.xlu0 %814
    %816 = vrot.lane.b32.xlu0 %v670, 16
    %v817 = vpop.permute.xlu0 %816
    %822 = vrot.lane.b32.xlu0 %v776, 24
    %v823 = vpop.permute.xlu0 %822
    %824 = vrot.lane.b32.xlu0 %v802, 24
    %v825 = vpop.permute.xlu0 %824
    %v828 = vsel %vm280, %v380, %v807
    %v829 = vsel %vm280, %v406, %v809
    %vm830 = vcmask 130048
    %v831 = vsel %vm830, %v828, %v815
    %v832 = vsel %vm830, %v829, %v817
    %vm833 = vcmask 195584
    %v834 = vsel %vm833, %v831, %v823
    %v835 = vsel %vm833, %v832, %v825
    %v836 = vld [vmem:[#allocation5] sm:$0xff]
    %v837 = vld [vmem:[#allocation5 + $0x8] sm:$0xff]
    %v838 = vld [vmem:[#allocation5 + $0x10] sm:$0xff]
    %v839 = vld [vmem:[#allocation5 + $0x18] sm:$0xff]
    %v840 = vperm.slane %v241, 1
    %v842 = vsel %vm247, %v834, 0
    %v845 = vsel %vm247, %v835, 0
    %847 = vmatpush.msra.mxu0 0.0
    %848 = vmatpush.msra.mxu0 0.0
    %849 = vmatpush.msra.mxu0 0.0
    %850 = vmatpush.msra.mxu0 0.0
    %851 = vmatpush.msra.mxu0 0.0
    %852 = vmatpush.msra.mxu0 0.0
    %853 = vmatpush.msra.mxu0 0.0
    %854 = vmatpush.msra.mxu0 0.0
    %855 = vmatpush.msra.mxu0 0.0
    %856 = vmatpush.msra.mxu0 0.0
    %857 = vmatpush.msra.mxu0 0.0
    %858 = vmatpush.msra.mxu0 0.0
    %859 = vmatpush.msra.mxu0 %v839
    %860 = vmatpush.msra.mxu0 %v838
    %861 = vmatpush.msra.mxu0 %v837
    %862 = vmatpush.msra.mxu0 %v836
    %863 = vmatmul.f32.gmra.mxu0 %v842
    %v864 = vpop.f32.mrf.mxu0
    %v865 = vadd.f32 %v840, %v864
    %866 = vmatmul.f32.gmra.mxu0 %v845
    %v867 = vpop.f32.mrf.mxu0
    %v868 = vadd.f32 %v840, %v867
    %869 = vdwg.mxu0
    %v870 = vadd.f32 %v239, %v865
    %v871 = vadd.f32 %v240, %v868
    %v872 = vsel %vm247, %v870, 0.0
    %873 = vadd.xlane.f32.xlu0 %v872
    %v874 = vpop.xlane.xlu0 %873
    %v875 = vsel %vm247, %v871, 0.0
    %876 = vadd.xlane.f32.xlu0 %v875
    %v877 = vpop.xlane.xlu0 %876
    %v878 = vrcp.pop 32.0
    %v879 = vmul.f32 32.0, %v878
    %v880 = vsub.f32 1.0, %v879
    %v881 = vmul.f32 %v878, %v880
    %v882 = vadd.f32 %v878, %v881
    %vm883 = vweird.f32 %v878
    %v884 = vsel %vm883, %v878, %v882
    %v885 = vmul.f32 %v874, %v884
    %v886 = vmul.f32 %v877, %v884
    %v887 = vsub.f32 %v870, %v885
    %v888 = vsub.f32 %v871, %v886
    %v889 = vmul.f32 %v887, %v887
    %v890 = vmul.f32 %v888, %v888
    %v891 = vsel %vm247, %v889, 0.0
    %892 = vadd.xlane.f32.xlu0 %v891
    %v893 = vpop.xlane.xlu0 %892
    %v894 = vsel %vm247, %v890, 0.0
    %895 = vadd.xlane.f32.xlu0 %v894
    %v896 = vpop.xlane.xlu0 %895
    %v897 = vmul.f32 %v893, %v884
    %v898 = vmul.f32 %v896, %v884
    %v899 = vadd.f32 %v897, 1e-05
    %v900 = vadd.f32 %v898, 1e-05
    %v901 = vrsqrt.pop %v899
    %v902 = vmul.f32 %v901, %v899
    %v903 = vmul.f32 %v902, %v901
    %v904 = vmul.f32 0.5, %v903
    %v905 = vsub.f32 1.5, %v904
    %v906 = vmul.f32 %v901, %v905
    %vm907 = vweird.f32 %v899
    %vm908 = vweird.f32 %v901
    %vm909 = vmor %vm907, %vm908
    %v910 = vsel %vm909, %v901, %v906
    %v911 = vrsqrt.pop %v900
    %v912 = vmul.f32 %v911, %v900
    %v913 = vmul.f32 %v912, %v911
    %v914 = vmul.f32 0.5, %v913
    %v915 = vsub.f32 1.5, %v914
    %v916 = vmul.f32 %v911, %v915
    %vm917 = vweird.f32 %v900
    %vm918 = vweird.f32 %v911
    %vm919 = vmor %vm917, %vm918
    %v920 = vsel %vm919, %v911, %v916
    %v921 = vmul.f32 %v887, %v910
    %v922 = vmul.f32 %v888, %v920
    %v923 = vperm.slane %v241, 2
    %v924 = vmul.f32 %v921, %v923
    %v925 = vmul.f32 %v922, %v923
    %v926 = vperm.slane %v241, 3
    %v927 = vadd.f32 %v924, %v926
    %v928 = vadd.f32 %v925, %v926
    %v929 = vld [vmem:[#allocation7] sm:$0xff]
    %v930 = vld [vmem:[#allocation7 + $0x8] sm:$0xff]
    %v931 = vld [vmem:[#allocation7 + $0x10] sm:$0xff]
    %v932 = vld [vmem:[#allocation7 + $0x18] sm:$0xff]
    %v933 = vperm.slane %v241, 4
    %v935 = vsel %vm247, %v927, 0
    %v938 = vsel %vm247, %v928, 0
    %940 = vmatpush.msra.mxu0 0.0
    %941 = vmatpush.msra.mxu0 0.0
    %942 = vmatpush.msra.mxu0 0.0
    %943 = vmatpush.msra.mxu0 0.0
    %944 = vmatpush.msra.mxu0 0.0
    %945 = vmatpush.msra.mxu0 0.0
    %946 = vmatpush.msra.mxu0 0.0
    %947 = vmatpush.msra.mxu0 0.0
    %948 = vmatpush.msra.mxu0 0.0
    %949 = vmatpush.msra.mxu0 0.0
    %950 = vmatpush.msra.mxu0 0.0
    %951 = vmatpush.msra.mxu0 0.0
    %952 = vmatpush.msra.mxu0 %v932
    %953 = vmatpush.msra.mxu0 %v931
    %954 = vmatpush.msra.mxu0 %v930
    %955 = vmatpush.msra.mxu0 %v929
    %956 = vmatmul.f32.gmra.mxu0 %v935
    %v957 = vpop.f32.mrf.mxu0
    %v958 = vadd.f32 %v933, %v957
    %959 = vmatmul.f32.gmra.mxu0 %v938
    %v960 = vpop.f32.mrf.mxu0
    %v961 = vadd.f32 %v933, %v960
    %962 = vdwg.mxu0
    %v963 = vmul.f32 %v958, 0.5
    %v964 = vmul.f32 %v961, 0.5
    %v965 = vmul.f32 %v958, 0.044715
    %v966 = vmul.f32 %v961, 0.044715
    %v967 = vmul.f32 %v965, %v958
    %v968 = vmul.f32 %v966, %v961
    %v969 = vmul.f32 %v967, %v958
    %v970 = vmul.f32 %v968, %v961
    %v971 = vadd.f32 %v958, %v969
    %v972 = vadd.f32 %v961, %v970
    %v973 = vmul.f32 %v971, 0.7978846
    %v974 = vmul.f32 %v972, 0.7978846
    %v975 = vtanh.pop %v973
    %v976 = vtanh.pop %v974
    %v977 = vadd.f32 %v975, 1.0
    %v978 = vadd.f32 %v976, 1.0
    %v979 = vmul.f32 %v963, %v977
    %v980 = vmul.f32 %v964, %v978
    %v981 = vld [vmem:[%s4] sm:$0xff]
    %v982 = vld [vmem:[%s4 + $0x8] sm:$0xff]
    %v983 = vld [vmem:[%s4 + $0x10] sm:$0xff]
    %v984 = vld [vmem:[%s4 + $0x18] sm:$0xff]
    %v985 = vld [vmem:[%s4 + $0x20] sm:$0xff]
    %v986 = vld [vmem:[%s4 + $0x28] sm:$0xff]
    %v987 = vld [vmem:[%s4 + $0x30] sm:$0xff]
    %v988 = vld [vmem:[%s4 + $0x38] sm:$0xff]
    %v989 = vperm.slane %v241, 5
    %vm990 = vcmask 523264
    %v992 = vsel %vm990, %v979, 0
    %v995 = vsel %vm990, %v980, 0
    %997 = vmatpush.msra.mxu0 0.0
    %998 = vmatpush.msra.mxu0 0.0
    %999 = vmatpush.msra.mxu0 0.0
    %1000 = vmatpush.msra.mxu0 0.0
    %1001 = vmatpush.msra.mxu0 0.0
    %1002 = vmatpush.msra.mxu0 0.0
    %1003 = vmatpush.msra.mxu0 0.0
    %1004 = vmatpush.msra.mxu0 0.0
    %1005 = vmatpush.msra.mxu0 %v988
    %1006 = vmatpush.msra.mxu0 %v987
    %1007 = vmatpush.msra.mxu0 %v986
    %1008 = vmatpush.msra.mxu0 %v985
    %1009 = vmatpush.msra.mxu0 %v984
    %1010 = vmatpush.msra.mxu0 %v983
    %1011 = vmatpush.msra.mxu0 %v982
    %1012 = vmatpush.msra.mxu0 %v981
    %1013 = vmatmul.f32.gmra.mxu0 %v992
    %v1014 = vpop.f32.mrf.mxu0
    %v1015 = vadd.f32 %v989, %v1014
    %1016 = vmatmul.f32.gmra.mxu0 %v995
    %v1017 = vpop.f32.mrf.mxu0
    %v1018 = vadd.f32 %v989, %v1017
    %1019 = vdwg.mxu0
    %v1020 = vadd.f32 %v927, %v1015
    %v1021 = vadd.f32 %v928, %v1018
    %v1022 = vsel %vm247, %v1020, 0.0
    %1023 = vadd.xlane.f32.xlu0 %v1022
    %v1024 = vpop.xlane.xlu0 %1023
    %v1025 = vsel %vm247, %v1021, 0.0
    %1026 = vadd.xlane.f32.xlu0 %v1025
    %v1027 = vpop.xlane.xlu0 %1026
    %v1028 = vmul.f32 %v1024, %v884
    %v1029 = vmul.f32 %v1027, %v884
    %v1030 = vsub.f32 %v1020, %v1028
    %v1031 = vsub.f32 %v1021, %v1029
    %v1032 = vmul.f32 %v1030, %v1030
    %v1033 = vmul.f32 %v1031, %v1031
    %v1034 = vsel %vm247, %v1032, 0.0
    %1035 = vadd.xlane.f32.xlu0 %v1034
    %v1036 = vpop.xlane.xlu0 %1035
    %v1037 = vsel %vm247, %v1033, 0.0
    %1038 = vadd.xlane.f32.xlu0 %v1037
    %v1039 = vpop.xlane.xlu0 %1038
    %v1040 = vmul.f32 %v1036, %v884
    %v1041 = vmul.f32 %v1039, %v884
    %v1042 = vadd.f32 %v1040, 1e-05
    %v1043 = vadd.f32 %v1041, 1e-05
    %v1044 = vrsqrt.pop %v1042
    %v1045 = vmul.f32 %v1044, %v1042
    %v1046 = vmul.f32 %v1045, %v1044
    %v1047 = vmul.f32 0.5, %v1046
    %v1048 = vsub.f32 1.5, %v1047
    %v1049 = vmul.f32 %v1044, %v1048
    %vm1050 = vweird.f32 %v1042
    %vm1051 = vweird.f32 %v1044
    %vm1052 = vmor %vm1050, %vm1051
    %v1053 = vsel %vm1052, %v1044, %v1049
    %v1054 = vrsqrt.pop %v1043
    %v1055 = vmul.f32 %v1054, %v1043
    %v1056 = vmul.f32 %v1055, %v1054
    %v1057 = vmul.f32 0.5, %v1056
    %v1058 = vsub.f32 1.5, %v1057
    %v1059 = vmul.f32 %v1054, %v1058
    %vm1060 = vweird.f32 %v1043
    %vm1061 = vweird.f32 %v1054
    %vm1062 = vmor %vm1060, %vm1061
    %v1063 = vsel %vm1062, %v1054, %v1059
    %v1064 = vmul.f32 %v1030, %v1053
    %v1065 = vmul.f32 %v1031, %v1063
    %v1066 = vperm.slane %v241, 6
    %v1067 = vmul.f32 %v1064, %v1066
    %v1068 = vmul.f32 %v1065, %v1066
    %v1069 = vperm.slane %v241, 7
    %v1070 = vadd.f32 %v1067, %v1069
    %v1071 = vadd.f32 %v1068, %v1069
    %v1072 = vld [vmem:[#allocation14] sm:$0xff]
    %v1073 = vld [vmem:[#allocation10] sm:$0xff]
    %v1074 = vld [vmem:[#allocation10 + $0x8] sm:$0xff]
    %v1075 = vld [vmem:[#allocation10 + $0x10] sm:$0xff]
    %v1076 = vld [vmem:[#allocation10 + $0x18] sm:$0xff]
    %v1077 = vperm.slane %v1072, 0
    %v1079 = vsel %vm247, %v1070, 0
    %v1082 = vsel %vm247, %v1071, 0
    %1084 = vmatpush.msra.mxu0 0.0
    %1085 = vmatpush.msra.mxu0 0.0
    %1086 = vmatpush.msra.mxu0 0.0
    %1087 = vmatpush.msra.mxu0 0.0
    %1088 = vmatpush.msra.mxu0 0.0
    %1089 = vmatpush.msra.mxu0 0.0
    %1090 = vmatpush.msra.mxu0 0.0
    %1091 = vmatpush.msra.mxu0 0.0
    %1092 = vmatpush.msra.mxu0 0.0
    %1093 = vmatpush.msra.mxu0 0.0
    %1094 = vmatpush.msra.mxu0 0.0
    %1095 = vmatpush.msra.mxu0 0.0
    %1096 = vmatpush.msra.mxu0 %v1076
    %1097 = vmatpush.msra.mxu0 %v1075
    %1098 = vmatpush.msra.mxu0 %v1074
    %1099 = vmatpush.msra.mxu0 %v1073
    %1100 = vmatmul.f32.gmra.mxu0 %v1079
    %v1101 = vpop.f32.mrf.mxu0
    %v1102 = vadd.f32 %v1077, %v1101
    %1103 = vmatmul.f32.gmra.mxu0 %v1082
    %v1104 = vpop.f32.mrf.mxu0
    %v1105 = vadd.f32 %v1077, %v1104
    %1106 = vdwg.mxu0
    %1108 = vrot.lane.b32.xlu0 %v1102, 96
    %v1109 = vpop.permute.xlu0 %1108
    %v1110 = vsel %vm280, %v1102, 0
    %v1112 = vsel %vm280, %v1109, 0
    %1114 = vmatpush.xpose.msra.mxu0 0.0
    %1115 = vmatpush.xpose.msra.mxu0 0.0
    %1116 = vmatpush.xpose.msra.mxu0 0.0
    %1117 = vmatpush.xpose.msra.mxu0 0.0
    %1118 = vmatpush.xpose.msra.mxu0 0.0
    %1119 = vmatpush.xpose.msra.mxu0 0.0
    %1120 = vmatpush.xpose.msra.mxu0 0.0
    %1121 = vmatpush.xpose.msra.mxu0 0.0
    %1122 = vmatpush.xpose.msra.mxu0 0.0
    %1123 = vmatpush.xpose.msra.mxu0 0.0
    %1124 = vmatpush.xpose.msra.mxu0 0.0
    %1125 = vmatpush.xpose.msra.mxu0 0.0
    %1126 = vmatpush.xpose.msra.mxu0 0.0
    %1127 = vmatpush.xpose.msra.mxu0 0.0
    %1128 = vmatpush.xpose.msra.mxu0 0.0
    %1129 = vmatpush.xpose.msra.mxu0 %v1112
    %1130 = vmatmul.f32.gmra.mxu0 %v1110
    %v1131 = vpop.f32.mrf.mxu0
    %v1132 = vadd.f32 0.0, %v1131
    %1133 = vdwg.mxu0
    %1135 = vrot.lane.b32.xlu0 %v1105, 96
    %v1136 = vpop.permute.xlu0 %1135
    %v1137 = vsel %vm280, %v1105, 0
    %v1139 = vsel %vm280, %v1136, 0
    %1141 = vmatpush.xpose.msra.mxu0 0.0
    %1142 = vmatpush.xpose.msra.mxu0 0.0
    %1143 = vmatpush.xpose.msra.mxu0 0.0
    %1144 = vmatpush.xpose.msra.mxu0 0.0
    %1145 = vmatpush.xpose.msra.mxu0 0.0
    %1146 = vmatpush.xpose.msra.mxu0 0.0
    %1147 = vmatpush.xpose.msra.mxu0 0.0
    %1148 = vmatpush.xpose.msra.mxu0 0.0
    %1149 = vmatpush.xpose.msra.mxu0 0.0
    %1150 = vmatpush.xpose.msra.mxu0 0.0
    %1151 = vmatpush.xpose.msra.mxu0 0.0
    %1152 = vmatpush.xpose.msra.mxu0 0.0
    %1153 = vmatpush.xpose.msra.mxu0 0.0
    %1154 = vmatpush.xpose.msra.mxu0 0.0
    %1155 = vmatpush.xpose.msra.mxu0 0.0
    %1156 = vmatpush.xpose.msra.mxu0 %v1139
    %1157 = vmatmul.f32.gmra.mxu0 %v1137
    %v1158 = vpop.f32.mrf.mxu0
    %v1159 = vadd.f32 0.0, %v1158
    %1160 = vdwg.mxu0
    %v1161 = vmul.f32 %v1132, 0.35355338
    %v1162 = vmul.f32 %v1159, 0.35355338
    %v1163 = vsel %vm280, %v1161, -inf
    %1164 = vmax.xlane.f32.xlu0 %v1163
    %v1165 = vpop.xlane.xlu0 %1164
    %v1166 = vsel %vm280, %v1162, -inf
    %1167 = vmax.xlane.f32.xlu0 %v1166
    %v1168 = vpop.xlane.xlu0 %1167
    %v1169 = vsub.f32 %v1161, %v1165
    %v1170 = vsub.f32 %v1162, %v1168
    %v1171 = vmul.f32 %v1169, 1.442695
    %v1172 = vpow.pop %v1171
    %v1173 = vmul.f32 %v1170, 1.442695
    %v1174 = vpow.pop %v1173
    %v1175 = vsel %vm280, %v1172, 0.0
    %1176 = vadd.xlane.f32.xlu0 %v1175
    %v1177 = vpop.xlane.xlu0 %1176
    %v1178 = vsel %vm280, %v1174, 0.0
    %1179 = vadd.xlane.f32.xlu0 %v1178
    %v1180 = vpop.xlane.xlu0 %1179
    %v1181 = vrcp.pop %v1177
    %v1182 = vrcp.pop %v1180
    %v1183 = vmul.f32 %v1172, %v1181
    %v1184 = vmul.f32 %v1174, %v1182
    %1185 = vrot.lane.b32.xlu0 %v1102, 64
    %v1186 = vpop.permute.xlu0 %1185
    %v1189 = vsel %vm280, %v1183, 0
    %1191 = vmatpush.msra.mxu0 0.0
    %1192 = vmatpush.msra.mxu0 0.0
    %1193 = vmatpush.msra.mxu0 0.0
    %1194 = vmatpush.msra.mxu0 0.0
    %1195 = vmatpush.msra.mxu0 0.0
    %1196 = vmatpush.msra.mxu0 0.0
    %1197 = vmatpush.msra.mxu0 0.0
    %1198 = vmatpush.msra.mxu0 0.0
    %1199 = vmatpush.msra.mxu0 0.0
    %1200 = vmatpush.msra.mxu0 0.0
    %1201 = vmatpush.msra.mxu0 0.0
    %1202 = vmatpush.msra.mxu0 0.0
    %1203 = vmatpush.msra.mxu0 0.0
    %1204 = vmatpush.msra.mxu0 0.0
    %1205 = vmatpush.msra.mxu0 0.0
    %1206 = vmatpush.msra.mxu0 %v1186
    %1207 = vmatmul.f32.gmra.mxu0 %v1189
    %v1208 = vpop.f32.mrf.mxu0
    %v1209 = vadd.f32 0.0, %v1208
    %1210 = vdwg.mxu0
    %1211 = vrot.lane.b32.xlu0 %v1105, 64
    %v1212 = vpop.permute.xlu0 %1211
    %v1215 = vsel %vm280, %v1184, 0
    %1217 = vmatpush.msra.mxu0 0.0
    %1218 = vmatpush.msra.mxu0 0.0
    %1219 = vmatpush.msra.mxu0 0.0
    %1220 = vmatpush.msra.mxu0 0.0
    %1221 = vmatpush.msra.mxu0 0.0
    %1222 = vmatpush.msra.mxu0 0.0
    %1223 = vmatpush.msra.mxu0 0.0
    %1224 = vmatpush.msra.mxu0 0.0
    %1225 = vmatpush.msra.mxu0 0.0
    %1226 = vmatpush.msra.mxu0 0.0
    %1227 = vmatpush.msra.mxu0 0.0
    %1228 = vmatpush.msra.mxu0 0.0
    %1229 = vmatpush.msra.mxu0 0.0
    %1230 = vmatpush.msra.mxu0 0.0
    %1231 = vmatpush.msra.mxu0 0.0
    %1232 = vmatpush.msra.mxu0 %v1212
    %1233 = vmatmul.f32.gmra.mxu0 %v1215
    %v1234 = vpop.f32.mrf.mxu0
    %v1235 = vadd.f32 0.0, %v1234
    %1236 = vdwg.mxu0
    %1237 = vrot.lane.b32.xlu0 %v1102, 120
    %v1238 = vpop.permute.xlu0 %1237
    %1239 = vrot.lane.b32.xlu0 %v1102, 88
    %v1240 = vpop.permute.xlu0 %1239
    %v1241 = vsel %vm280, %v1238, 0
    %v1243 = vsel %vm280, %v1240, 0
    %1245 = vmatpush.xpose.msra.mxu0 0.0
    %1246 = vmatpush.xpose.msra.mxu0 0.0
    %1247 = vmatpush.xpose.msra.mxu0 0.0
    %1248 = vmatpush.xpose.msra.mxu0 0.0
    %1249 = vmatpush.xpose.msra.mxu0 0.0
    %1250 = vmatpush.xpose.msra.mxu0 0.0
    %1251 = vmatpush.xpose.msra.mxu0 0.0
    %1252 = vmatpush.xpose.msra.mxu0 0.0
    %1253 = vmatpush.xpose.msra.mxu0 0.0
    %1254 = vmatpush.xpose.msra.mxu0 0.0
    %1255 = vmatpush.xpose.msra.mxu0 0.0
    %1256 = vmatpush.xpose.msra.mxu0 0.0
    %1257 = vmatpush.xpose.msra.mxu0 0.0
    %1258 = vmatpush.xpose.msra.mxu0 0.0
    %1259 = vmatpush.xpose.msra.mxu0 0.0
    %1260 = vmatpush.xpose.msra.mxu0 %v1243
    %1261 = vmatmul.f32.gmra.mxu0 %v1241
    %v1262 = vpop.f32.mrf.mxu0
    %v1263 = vadd.f32 0.0, %v1262
    %1264 = vdwg.mxu0
    %1265 = vrot.lane.b32.xlu0 %v1105, 120
    %v1266 = vpop.permute.xlu0 %1265
    %1267 = vrot.lane.b32.xlu0 %v1105, 88
    %v1268 = vpop.permute.xlu0 %1267
    %v1269 = vsel %vm280, %v1266, 0
    %v1271 = vsel %vm280, %v1268, 0
    %1273 = vmatpush.xpose.msra.mxu0 0.0
    %1274 = vmatpush.xpose.msra.mxu0 0.0
    %1275 = vmatpush.xpose.msra.mxu0 0.0
    %1276 = vmatpush.xpose.msra.mxu0 0.0
    %1277 = vmatpush.xpose.msra.mxu0 0.0
    %1278 = vmatpush.xpose.msra.mxu0 0.0
    %1279 = vmatpush.xpose.msra.mxu0 0.0
    %1280 = vmatpush.xpose.msra.mxu0 0.0
    %1281 = vmatpush.xpose.msra.mxu0 0.0
    %1282 = vmatpush.xpose.msra.mxu0 0.0
    %1283 = vmatpush.xpose.msra.mxu0 0.0
    %1284 = vmatpush.xpose.msra.mxu0 0.0
    %1285 = vmatpush.xpose.msra.mxu0 0.0
    %1286 = vmatpush.xpose.msra.mxu0 0.0
    %1287 = vmatpush.xpose.msra.mxu0 0.0
    %1288 = vmatpush.xpose.msra.mxu0 %v1271
    %1289 = vmatmul.f32.gmra.mxu0 %v1269
    %v1290 = vpop.f32.mrf.mxu0
    %v1291 = vadd.f32 0.0, %v1290
    %1292 = vdwg.mxu0
    %v1293 = vmul.f32 %v1263, 0.35355338
    %v1294 = vmul.f32 %v1291, 0.35355338
    %v1295 = vsel %vm280, %v1293, -inf
    %1296 = vmax.xlane.f32.xlu0 %v1295
    %v1297 = vpop.xlane.xlu0 %1296
    %v1298 = vsel %vm280, %v1294, -inf
    %1299 = vmax.xlane.f32.xlu0 %v1298
    %v1300 = vpop.xlane.xlu0 %1299
    %v1301 = vsub.f32 %v1293, %v1297
    %v1302 = vsub.f32 %v1294, %v1300
    %v1303 = vmul.f32 %v1301, 1.442695
    %v1304 = vpow.pop %v1303
    %v1305 = vmul.f32 %v1302, 1.442695
    %v1306 = vpow.pop %v1305
    %v1307 = vsel %vm280, %v1304, 0.0
    %1308 = vadd.xlane.f32.xlu0 %v1307
    %v1309 = vpop.xlane.xlu0 %1308
    %v1310 = vsel %vm280, %v1306, 0.0
    %1311 = vadd.xlane.f32.xlu0 %v1310
    %v1312 = vpop.xlane.xlu0 %1311
    %v1313 = vrcp.pop %v1309
    %v1314 = vrcp.pop %v1312
    %v1315 = vmul.f32 %v1304, %v1313
    %v1316 = vmul.f32 %v1306, %v1314
    %1317 = vrot.lane.b32.xlu0 %v1102, 56
    %v1318 = vpop.permute.xlu0 %1317
    %v1321 = vsel %vm280, %v1315, 0
    %1323 = vmatpush.msra.mxu0 0.0
    %1324 = vmatpush.msra.mxu0 0.0
    %1325 = vmatpush.msra.mxu0 0.0
    %1326 = vmatpush.msra.mxu0 0.0
    %1327 = vmatpush.msra.mxu0 0.0
    %1328 = vmatpush.msra.mxu0 0.0
    %1329 = vmatpush.msra.mxu0 0.0
    %1330 = vmatpush.msra.mxu0 0.0
    %1331 = vmatpush.msra.mxu0 0.0
    %1332 = vmatpush.msra.mxu0 0.0
    %1333 = vmatpush.msra.mxu0 0.0
    %1334 = vmatpush.msra.mxu0 0.0
    %1335 = vmatpush.msra.mxu0 0.0
    %1336 = vmatpush.msra.mxu0 0.0
    %1337 = vmatpush.msra.mxu0 0.0
    %1338 = vmatpush.msra.mxu0 %v1318
    %1339 = vmatmul.f32.gmra.mxu0 %v1321
    %v1340 = vpop.f32.mrf.mxu0
    %v1341 = vadd.f32 0.0, %v1340
    %1342 = vdwg.mxu0
    %1343 = vrot.lane.b32.xlu0 %v1105, 56
    %v1344 = vpop.permute.xlu0 %1343
    %v1347 = vsel %vm280, %v1316, 0
    %1349 = vmatpush.msra.mxu0 0.0
    %1350 = vmatpush.msra.mxu0 0.0
    %1351 = vmatpush.msra.mxu0 0.0
    %1352 = vmatpush.msra.mxu0 0.0
    %1353 = vmatpush.msra.mxu0 0.0
    %1354 = vmatpush.msra.mxu0 0.0
    %1355 = vmatpush.msra.mxu0 0.0
    %1356 = vmatpush.msra.mxu0 0.0
    %1357 = vmatpush.msra.mxu0 0.0
    %1358 = vmatpush.msra.mxu0 0.0
    %1359 = vmatpush.msra.mxu0 0.0
    %1360 = vmatpush.msra.mxu0 0.0
    %1361 = vmatpush.msra.mxu0 0.0
    %1362 = vmatpush.msra.mxu0 0.0
    %1363 = vmatpush.msra.mxu0 0.0
    %1364 = vmatpush.msra.mxu0 %v1344
    %1365 = vmatmul.f32.gmra.mxu0 %v1347
    %v1366 = vpop.f32.mrf.mxu0
    %v1367 = vadd.f32 0.0, %v1366
    %1368 = vdwg.mxu0
    %1369 = vrot.lane.b32.xlu0 %v1102, 112
    %v1370 = vpop.permute.xlu0 %1369
    %1371 = vrot.lane.b32.xlu0 %v1102, 80
    %v1372 = vpop.permute.xlu0 %1371
    %v1373 = vsel %vm280, %v1370, 0
    %v1375 = vsel %vm280, %v1372, 0
    %1377 = vmatpush.xpose.msra.mxu0 0.0
    %1378 = vmatpush.xpose.msra.mxu0 0.0
    %1379 = vmatpush.xpose.msra.mxu0 0.0
    %1380 = vmatpush.xpose.msra.mxu0 0.0
    %1381 = vmatpush.xpose.msra.mxu0 0.0
    %1382 = vmatpush.xpose.msra.mxu0 0.0
    %1383 = vmatpush.xpose.msra.mxu0 0.0
    %1384 = vmatpush.xpose.msra.mxu0 0.0
    %1385 = vmatpush.xpose.msra.mxu0 0.0
    %1386 = vmatpush.xpose.msra.mxu0 0.0
    %1387 = vmatpush.xpose.msra.mxu0 0.0
    %1388 = vmatpush.xpose.msra.mxu0 0.0
    %1389 = vmatpush.xpose.msra.mxu0 0.0
    %1390 = vmatpush.xpose.msra.mxu0 0.0
    %1391 = vmatpush.xpose.msra.mxu0 0.0
    %1392 = vmatpush.xpose.msra.mxu0 %v1375
    %1393 = vmatmul.f32.gmra.mxu0 %v1373
    %v1394 = vpop.f32.mrf.mxu0
    %v1395 = vadd.f32 0.0, %v1394
    %1396 = vdwg.mxu0
    %1397 = vrot.lane.b32.xlu0 %v1105, 112
    %v1398 = vpop.permute.xlu0 %1397
    %1399 = vrot.lane.b32.xlu0 %v1105, 80
    %v1400 = vpop.permute.xlu0 %1399
    %v1401 = vsel %vm280, %v1398, 0
    %v1403 = vsel %vm280, %v1400, 0
    %1405 = vmatpush.xpose.msra.mxu0 0.0
    %1406 = vmatpush.xpose.msra.mxu0 0.0
    %1407 = vmatpush.xpose.msra.mxu0 0.0
    %1408 = vmatpush.xpose.msra.mxu0 0.0
    %1409 = vmatpush.xpose.msra.mxu0 0.0
    %1410 = vmatpush.xpose.msra.mxu0 0.0
    %1411 = vmatpush.xpose.msra.mxu0 0.0
    %1412 = vmatpush.xpose.msra.mxu0 0.0
    %1413 = vmatpush.xpose.msra.mxu0 0.0
    %1414 = vmatpush.xpose.msra.mxu0 0.0
    %1415 = vmatpush.xpose.msra.mxu0 0.0
    %1416 = vmatpush.xpose.msra.mxu0 0.0
    %1417 = vmatpush.xpose.msra.mxu0 0.0
    %1418 = vmatpush.xpose.msra.mxu0 0.0
    %1419 = vmatpush.xpose.msra.mxu0 0.0
    %1420 = vmatpush.xpose.msra.mxu0 %v1403
    %1421 = vmatmul.f32.gmra.mxu0 %v1401
    %v1422 = vpop.f32.mrf.mxu0
    %v1423 = vadd.f32 0.0, %v1422
    %1424 = vdwg.mxu0
    %v1425 = vmul.f32 %v1395, 0.35355338
    %v1426 = vmul.f32 %v1423, 0.35355338
    %v1427 = vsel %vm280, %v1425, -inf
    %1428 = vmax.xlane.f32.xlu0 %v1427
    %v1429 = vpop.xlane.xlu0 %1428
    %v1430 = vsel %vm280, %v1426, -inf
    %1431 = vmax.xlane.f32.xlu0 %v1430
    %v1432 = vpop.xlane.xlu0 %1431
    %v1433 = vsub.f32 %v1425, %v1429
    %v1434 = vsub.f32 %v1426, %v1432
    %v1435 = vmul.f32 %v1433, 1.442695
    %v1436 = vpow.pop %v1435
    %v1437 = vmul.f32 %v1434, 1.442695
    %v1438 = vpow.pop %v1437
    %v1439 = vsel %vm280, %v1436, 0.0
    %1440 = vadd.xlane.f32.xlu0 %v1439
    %v1441 = vpop.xlane.xlu0 %1440
    %v1442 = vsel %vm280, %v1438, 0.0
    %1443 = vadd.xlane.f32.xlu0 %v1442
    %v1444 = vpop.xlane.xlu0 %1443
    %v1445 = vrcp.pop %v1441
    %v1446 = vrcp.pop %v1444
    %v1447 = vmul.f32 %v1436, %v1445
    %v1448 = vmul.f32 %v1438, %v1446
    %1449 = vrot.lane.b32.xlu0 %v1102, 48
    %v1450 = vpop.permute.xlu0 %1449
    %v1453 = vsel %vm280, %v1447, 0
    %1455 = vmatpush.msra.mxu0 0.0
    %1456 = vmatpush.msra.mxu0 0.0
    %1457 = vmatpush.msra.mxu0 0.0
    %1458 = vmatpush.msra.mxu0 0.0
    %1459 = vmatpush.msra.mxu0 0.0
    %1460 = vmatpush.msra.mxu0 0.0
    %1461 = vmatpush.msra.mxu0 0.0
    %1462 = vmatpush.msra.mxu0 0.0
    %1463 = vmatpush.msra.mxu0 0.0
    %1464 = vmatpush.msra.mxu0 0.0
    %1465 = vmatpush.msra.mxu0 0.0
    %1466 = vmatpush.msra.mxu0 0.0
    %1467 = vmatpush.msra.mxu0 0.0
    %1468 = vmatpush.msra.mxu0 0.0
    %1469 = vmatpush.msra.mxu0 0.0
    %1470 = vmatpush.msra.mxu0 %v1450
    %1471 = vmatmul.f32.gmra.mxu0 %v1453
    %v1472 = vpop.f32.mrf.mxu0
    %v1473 = vadd.f32 0.0, %v1472
    %1474 = vdwg.mxu0
    %1475 = vrot.lane.b32.xlu0 %v1105, 48
    %v1476 = vpop.permute.xlu0 %1475
    %v1479 = vsel %vm280, %v1448, 0
    %1481 = vmatpush.msra.mxu0 0.0
    %1482 = vmatpush.msra.mxu0 0.0
    %1483 = vmatpush.msra.mxu0 0.0
    %1484 = vmatpush.msra.mxu0 0.0
    %1485 = vmatpush.msra.mxu0 0.0
    %1486 = vmatpush.msra.mxu0 0.0
    %1487 = vmatpush.msra.mxu0 0.0
    %1488 = vmatpush.msra.mxu0 0.0
    %1489 = vmatpush.msra.mxu0 0.0
    %1490 = vmatpush.msra.mxu0 0.0
    %1491 = vmatpush.msra.mxu0 0.0
    %1492 = vmatpush.msra.mxu0 0.0
    %1493 = vmatpush.msra.mxu0 0.0
    %1494 = vmatpush.msra.mxu0 0.0
    %1495 = vmatpush.msra.mxu0 0.0
    %1496 = vmatpush.msra.mxu0 %v1476
    %1497 = vmatmul.f32.gmra.mxu0 %v1479
    %v1498 = vpop.f32.mrf.mxu0
    %v1499 = vadd.f32 0.0, %v1498
    %1500 = vdwg.mxu0
    %1501 = vrot.lane.b32.xlu0 %v1102, 104
    %v1502 = vpop.permute.xlu0 %1501
    %1503 = vrot.lane.b32.xlu0 %v1102, 72
    %v1504 = vpop.permute.xlu0 %1503
    %v1505 = vsel %vm280, %v1502, 0
    %v1507 = vsel %vm280, %v1504, 0
    %1509 = vmatpush.xpose.msra.mxu0 0.0
    %1510 = vmatpush.xpose.msra.mxu0 0.0
    %1511 = vmatpush.xpose.msra.mxu0 0.0
    %1512 = vmatpush.xpose.msra.mxu0 0.0
    %1513 = vmatpush.xpose.msra.mxu0 0.0
    %1514 = vmatpush.xpose.msra.mxu0 0.0
    %1515 = vmatpush.xpose.msra.mxu0 0.0
    %1516 = vmatpush.xpose.msra.mxu0 0.0
    %1517 = vmatpush.xpose.msra.mxu0 0.0
    %1518 = vmatpush.xpose.msra.mxu0 0.0
    %1519 = vmatpush.xpose.msra.mxu0 0.0
    %1520 = vmatpush.xpose.msra.mxu0 0.0
    %1521 = vmatpush.xpose.msra.mxu0 0.0
    %1522 = vmatpush.xpose.msra.mxu0 0.0
    %1523 = vmatpush.xpose.msra.mxu0 0.0
    %1524 = vmatpush.xpose.msra.mxu0 %v1507
    %1525 = vmatmul.f32.gmra.mxu0 %v1505
    %v1526 = vpop.f32.mrf.mxu0
    %v1527 = vadd.f32 0.0, %v1526
    %1528 = vdwg.mxu0
    %1529 = vrot.lane.b32.xlu0 %v1105, 104
    %v1530 = vpop.permute.xlu0 %1529
    %1531 = vrot.lane.b32.xlu0 %v1105, 72
    %v1532 = vpop.permute.xlu0 %1531
    %v1533 = vsel %vm280, %v1530, 0
    %v1535 = vsel %vm280, %v1532, 0
    %1537 = vmatpush.xpose.msra.mxu0 0.0
    %1538 = vmatpush.xpose.msra.mxu0 0.0
    %1539 = vmatpush.xpose.msra.mxu0 0.0
    %1540 = vmatpush.xpose.msra.mxu0 0.0
    %1541 = vmatpush.xpose.msra.mxu0 0.0
    %1542 = vmatpush.xpose.msra.mxu0 0.0
    %1543 = vmatpush.xpose.msra.mxu0 0.0
    %1544 = vmatpush.xpose.msra.mxu0 0.0
    %1545 = vmatpush.xpose.msra.mxu0 0.0
    %1546 = vmatpush.xpose.msra.mxu0 0.0
    %1547 = vmatpush.xpose.msra.mxu0 0.0
    %1548 = vmatpush.xpose.msra.mxu0 0.0
    %1549 = vmatpush.xpose.msra.mxu0 0.0
    %1550 = vmatpush.xpose.msra.mxu0 0.0
    %1551 = vmatpush.xpose.msra.mxu0 0.0
    %1552 = vmatpush.xpose.msra.mxu0 %v1535
    %1553 = vmatmul.f32.gmra.mxu0 %v1533
    %v1554 = vpop.f32.mrf.mxu0
    %v1555 = vadd.f32 0.0, %v1554
    %1556 = vdwg.mxu0
    %v1557 = vmul.f32 %v1527, 0.35355338
    %v1558 = vmul.f32 %v1555, 0.35355338
    %v1559 = vsel %vm280, %v1557, -inf
    %1560 = vmax.xlane.f32.xlu0 %v1559
    %v1561 = vpop.xlane.xlu0 %1560
    %v1562 = vsel %vm280, %v1558, -inf
    %1563 = vmax.xlane.f32.xlu0 %v1562
    %v1564 = vpop.xlane.xlu0 %1563
    %v1565 = vsub.f32 %v1557, %v1561
    %v1566 = vsub.f32 %v1558, %v1564
    %v1567 = vmul.f32 %v1565, 1.442695
    %v1568 = vpow.pop %v1567
    %v1569 = vmul.f32 %v1566, 1.442695
    %v1570 = vpow.pop %v1569
    %v1571 = vsel %vm280, %v1568, 0.0
    %1572 = vadd.xlane.f32.xlu0 %v1571
    %v1573 = vpop.xlane.xlu0 %1572
    %v1574 = vsel %vm280, %v1570, 0.0
    %1575 = vadd.xlane.f32.xlu0 %v1574
    %v1576 = vpop.xlane.xlu0 %1575
    %v1577 = vrcp.pop %v1573
    %v1578 = vrcp.pop %v1576
    %v1579 = vmul.f32 %v1568, %v1577
    %v1580 = vmul.f32 %v1570, %v1578
    %1581 = vrot.lane.b32.xlu0 %v1102, 40
    %v1582 = vpop.permute.xlu0 %1581
    %v1585 = vsel %vm280, %v1579, 0
    %1587 = vmatpush.msra.mxu0 0.0
    %1588 = vmatpush.msra.mxu0 0.0
    %1589 = vmatpush.msra.mxu0 0.0
    %1590 = vmatpush.msra.mxu0 0.0
    %1591 = vmatpush.msra.mxu0 0.0
    %1592 = vmatpush.msra.mxu0 0.0
    %1593 = vmatpush.msra.mxu0 0.0
    %1594 = vmatpush.msra.mxu0 0.0
    %1595 = vmatpush.msra.mxu0 0.0
    %1596 = vmatpush.msra.mxu0 0.0
    %1597 = vmatpush.msra.mxu0 0.0
    %1598 = vmatpush.msra.mxu0 0.0
    %1599 = vmatpush.msra.mxu0 0.0
    %1600 = vmatpush.msra.mxu0 0.0
    %1601 = vmatpush.msra.mxu0 0.0
    %1602 = vmatpush.msra.mxu0 %v1582
    %1603 = vmatmul.f32.gmra.mxu0 %v1585
    %v1604 = vpop.f32.mrf.mxu0
    %v1605 = vadd.f32 0.0, %v1604
    %1606 = vdwg.mxu0
    %1607 = vrot.lane.b32.xlu0 %v1105, 40
    %v1608 = vpop.permute.xlu0 %1607
    %v1611 = vsel %vm280, %v1580, 0
    %1613 = vmatpush.msra.mxu0 0.0
    %1614 = vmatpush.msra.mxu0 0.0
    %1615 = vmatpush.msra.mxu0 0.0
    %1616 = vmatpush.msra.mxu0 0.0
    %1617 = vmatpush.msra.mxu0 0.0
    %1618 = vmatpush.msra.mxu0 0.0
    %1619 = vmatpush.msra.mxu0 0.0
    %1620 = vmatpush.msra.mxu0 0.0
    %1621 = vmatpush.msra.mxu0 0.0
    %1622 = vmatpush.msra.mxu0 0.0
    %1623 = vmatpush.msra.mxu0 0.0
    %1624 = vmatpush.msra.mxu0 0.0
    %1625 = vmatpush.msra.mxu0 0.0
    %1626 = vmatpush.msra.mxu0 0.0
    %1627 = vmatpush.msra.mxu0 0.0
    %1628 = vmatpush.msra.mxu0 %v1608
    %1629 = vmatmul.f32.gmra.mxu0 %v1611
    %v1630 = vpop.f32.mrf.mxu0
    %v1631 = vadd.f32 0.0, %v1630
    %1632 = vdwg.mxu0
    %1635 = vrot.lane.b32.xlu0 %v1341, 8
    %v1636 = vpop.permute.xlu0 %1635
    %1637 = vrot.lane.b32.xlu0 %v1367, 8
    %v1638 = vpop.permute.xlu0 %1637
    %1643 = vrot.lane.b32.xlu0 %v1473, 16
    %v1644 = vpop.permute.xlu0 %1643
    %1645 = vrot.lane.b32.xlu0 %v1499, 16
    %v1646 = vpop.permute.xlu0 %1645
    %1651 = vrot.lane.b32.xlu0 %v1605, 24
    %v1652 = vpop.permute.xlu0 %1651
    %1653 = vrot.lane.b32.xlu0 %v1631, 24
    %v1654 = vpop.permute.xlu0 %1653
    %v1657 = vsel %vm280, %v1209, %v1636
    %v1658 = vsel %vm280, %v1235, %v1638
    %v1659 = vsel %vm830, %v1657, %v1644
    %v1660 = vsel %vm830, %v1658, %v1646
    %v1661 = vsel %vm833, %v1659, %v1652
    %v1662 = vsel %vm833, %v1660, %v1654
    %v1663 = vld [vmem:[#allocation11] sm:$0xff]
    %v1664 = vld [vmem:[#allocation11 + $0x8] sm:$0xff]
    %v1665 = vld [vmem:[#allocation11 + $0x10] sm:$0xff]
    %v1666 = vld [vmem:[#allocation11 + $0x18] sm:$0xff]
    %v1667 = vperm.slane %v1072, 1
    %v1669 = vsel %vm247, %v1661, 0
    %v1672 = vsel %vm247, %v1662, 0
    %1674 = vmatpush.msra.mxu0 0.0
    %1675 = vmatpush.msra.mxu0 0.0
    %1676 = vmatpush.msra.mxu0 0.0
    %1677 = vmatpush.msra.mxu0 0.0
    %1678 = vmatpush.msra.mxu0 0.0
    %1679 = vmatpush.msra.mxu0 0.0
    %1680 = vmatpush.msra.mxu0 0.0
    %1681 = vmatpush.msra.mxu0 0.0
    %1682 = vmatpush.msra.mxu0 0.0
    %1683 = vmatpush.msra.mxu0 0.0
    %1684 = vmatpush.msra.mxu0 0.0
    %1685 = vmatpush.msra.mxu0 0.0
    %1686 = vmatpush.msra.mxu0 %v1666
    %1687 = vmatpush.msra.mxu0 %v1665
    %1688 = vmatpush.msra.mxu0 %v1664
    %1689 = vmatpush.msra.mxu0 %v1663
    %1690 = vmatmul.f32.gmra.mxu0 %v1669
    %v1691 = vpop.f32.mrf.mxu0
    %v1692 = vadd.f32 %v1667, %v1691
    %1693 = vmatmul.f32.gmra.mxu0 %v1672
    %v1694 = vpop.f32.mrf.mxu0
    %v1695 = vadd.f32 %v1667, %v1694
    %1696 = vdwg.mxu0
    %v1697 = vadd.f32 %v1070, %v1692
    %v1698 = vadd.f32 %v1071, %v1695
    %v1699 = vsel %vm247, %v1697, 0.0
    %1700 = vadd.xlane.f32.xlu0 %v1699
    %v1701 = vpop.xlane.xlu0 %1700
    %v1702 = vsel %vm247, %v1698, 0.0
    %1703 = vadd.xlane.f32.xlu0 %v1702
    %v1704 = vpop.xlane.xlu0 %1703
    %v1705 = vmul.f32 %v1701, %v884
    %v1706 = vmul.f32 %v1704, %v884
    %v1707 = vsub.f32 %v1697, %v1705
    %v1708 = vsub.f32 %v1698, %v1706
    %v1709 = vmul.f32 %v1707, %v1707
    %v1710 = vmul.f32 %v1708, %v1708
    %v1711 = vsel %vm247, %v1709, 0.0
    %1712 = vadd.xlane.f32.xlu0 %v1711
    %v1713 = vpop.xlane.xlu0 %1712
    %v1714 = vsel %vm247, %v1710, 0.0
    %1715 = vadd.xlane.f32.xlu0 %v1714
    %v1716 = vpop.xlane.xlu0 %1715
    %v1717 = vmul.f32 %v1713, %v884
    %v1718 = vmul.f32 %v1716, %v884
    %v1719 = vadd.f32 %v1717, 1e-05
    %v1720 = vadd.f32 %v1718, 1e-05
    %v1721 = vrsqrt.pop %v1719
    %v1722 = vmul.f32 %v1721, %v1719
    %v1723 = vmul.f32 %v1722, %v1721
    %v1724 = vmul.f32 0.5, %v1723
    %v1725 = vsub.f32 1.5, %v1724
    %v1726 = vmul.f32 %v1721, %v1725
    %vm1727 = vweird.f32 %v1719
    %vm1728 = vweird.f32 %v1721
    %vm1729 = vmor %vm1727, %vm1728
    %v1730 = vsel %vm1729, %v1721, %v1726
    %v1731 = vrsqrt.pop %v1720
    %v1732 = vmul.f32 %v1731, %v1720
    %v1733 = vmul.f32 %v1732, %v1731
    %v1734 = vmul.f32 0.5, %v1733
    %v1735 = vsub.f32 1.5, %v1734
    %v1736 = vmul.f32 %v1731, %v1735
    %vm1737 = vweird.f32 %v1720
    %vm1738 = vweird.f32 %v1731
    %vm1739 = vmor %vm1737, %vm1738
    %v1740 = vsel %vm1739, %v1731, %v1736
    %v1741 = vmul.f32 %v1707, %v1730
    %v1742 = vmul.f32 %v1708, %v1740
    %v1743 = vperm.slane %v1072, 2
    %v1744 = vmul.f32 %v1741, %v1743
    %v1745 = vmul.f32 %v1742, %v1743
    %v1746 = vperm.slane %v1072, 3
    %v1747 = vadd.f32 %v1744, %v1746
    %v1748 = vadd.f32 %v1745, %v1746
    %v1749 = vld [vmem:[#allocation13] sm:$0xff]
    %v1750 = vld [vmem:[#allocation13 + $0x8] sm:$0xff]
    %v1751 = vld [vmem:[#allocation13 + $0x10] sm:$0xff]
    %v1752 = vld [vmem:[#allocation13 + $0x18] sm:$0xff]
    %v1753 = vperm.slane %v1072, 4
    %v1755 = vsel %vm247, %v1747, 0
    %v1758 = vsel %vm247, %v1748, 0
    %1760 = vmatpush.msra.mxu0 0.0
    %1761 = vmatpush.msra.mxu0 0.0
    %1762 = vmatpush.msra.mxu0 0.0
    %1763 = vmatpush.msra.mxu0 0.0
    %1764 = vmatpush.msra.mxu0 0.0
    %1765 = vmatpush.msra.mxu0 0.0
    %1766 = vmatpush.msra.mxu0 0.0
    %1767 = vmatpush.msra.mxu0 0.0
    %1768 = vmatpush.msra.mxu0 0.0
    %1769 = vmatpush.msra.mxu0 0.0
    %1770 = vmatpush.msra.mxu0 0.0
    %1771 = vmatpush.msra.mxu0 0.0
    %1772 = vmatpush.msra.mxu0 %v1752
    %1773 = vmatpush.msra.mxu0 %v1751
    %1774 = vmatpush.msra.mxu0 %v1750
    %1775 = vmatpush.msra.mxu0 %v1749
    %1776 = vmatmul.f32.gmra.mxu0 %v1755
    %v1777 = vpop.f32.mrf.mxu0
    %v1778 = vadd.f32 %v1753, %v1777
    %1779 = vmatmul.f32.gmra.mxu0 %v1758
    %v1780 = vpop.f32.mrf.mxu0
    %v1781 = vadd.f32 %v1753, %v1780
    %1782 = vdwg.mxu0
    %v1783 = vmul.f32 %v1778, 0.5
    %v1784 = vmul.f32 %v1781, 0.5
    %v1785 = vmul.f32 %v1778, 0.044715
    %v1786 = vmul.f32 %v1781, 0.044715
    %v1787 = vmul.f32 %v1785, %v1778
    %v1788 = vmul.f32 %v1786, %v1781
    %v1789 = vmul.f32 %v1787, %v1778
    %v1790 = vmul.f32 %v1788, %v1781
    %v1791 = vadd.f32 %v1778, %v1789
    %v1792 = vadd.f32 %v1781, %v1790
    %v1793 = vmul.f32 %v1791, 0.7978846
    %v1794 = vmul.f32 %v1792, 0.7978846
    %v1795 = vtanh.pop %v1793
    %v1796 = vtanh.pop %v1794
    %v1797 = vadd.f32 %v1795, 1.0
    %v1798 = vadd.f32 %v1796, 1.0
    %v1799 = vmul.f32 %v1783, %v1797
    %v1800 = vmul.f32 %v1784, %v1798
    %v1801 = vld [vmem:[%s9] sm:$0xff]
    %v1802 = vld [vmem:[%s9 + $0x8] sm:$0xff]
    %v1803 = vld [vmem:[%s9 + $0x10] sm:$0xff]
    %v1804 = vld [vmem:[%s9 + $0x18] sm:$0xff]
    %v1805 = vld [vmem:[%s9 + $0x20] sm:$0xff]
    %v1806 = vld [vmem:[%s9 + $0x28] sm:$0xff]
    %v1807 = vld [vmem:[%s9 + $0x30] sm:$0xff]
    %v1808 = vld [vmem:[%s9 + $0x38] sm:$0xff]
    %v1809 = vperm.slane %v1072, 5
    %v1811 = vsel %vm990, %v1799, 0
    %v1814 = vsel %vm990, %v1800, 0
    %1816 = vmatpush.msra.mxu0 0.0
    %1817 = vmatpush.msra.mxu0 0.0
    %1818 = vmatpush.msra.mxu0 0.0
    %1819 = vmatpush.msra.mxu0 0.0
    %1820 = vmatpush.msra.mxu0 0.0
    %1821 = vmatpush.msra.mxu0 0.0
    %1822 = vmatpush.msra.mxu0 0.0
    %1823 = vmatpush.msra.mxu0 0.0
    %1824 = vmatpush.msra.mxu0 %v1808
    %1825 = vmatpush.msra.mxu0 %v1807
    %1826 = vmatpush.msra.mxu0 %v1806
    %1827 = vmatpush.msra.mxu0 %v1805
    %1828 = vmatpush.msra.mxu0 %v1804
    %1829 = vmatpush.msra.mxu0 %v1803
    %1830 = vmatpush.msra.mxu0 %v1802
    %1831 = vmatpush.msra.mxu0 %v1801
    %1832 = vmatmul.f32.gmra.mxu0 %v1811
    %v1833 = vpop.f32.mrf.mxu0
    %v1834 = vadd.f32 %v1809, %v1833
    %1835 = vmatmul.f32.gmra.mxu0 %v1814
    %v1836 = vpop.f32.mrf.mxu0
    %v1837 = vadd.f32 %v1809, %v1836
    %1838 = vdwg.mxu0
    %v1839 = vadd.f32 %v1747, %v1834
    %v1840 = vadd.f32 %v1748, %v1837
    %v1841 = vsel %vm247, %v1839, 0.0
    %1842 = vadd.xlane.f32.xlu0 %v1841
    %v1843 = vpop.xlane.xlu0 %1842
    %v1844 = vsel %vm247, %v1840, 0.0
    %1845 = vadd.xlane.f32.xlu0 %v1844
    %v1846 = vpop.xlane.xlu0 %1845
    %v1847 = vmul.f32 %v1843, %v884
    %v1848 = vmul.f32 %v1846, %v884
    %v1849 = vsub.f32 %v1839, %v1847
    %v1850 = vsub.f32 %v1840, %v1848
    %v1851 = vmul.f32 %v1849, %v1849
    %v1852 = vmul.f32 %v1850, %v1850
    %v1853 = vsel %vm247, %v1851, 0.0
    %1854 = vadd.xlane.f32.xlu0 %v1853
    %v1855 = vpop.xlane.xlu0 %1854
    %v1856 = vsel %vm247, %v1852, 0.0
    %1857 = vadd.xlane.f32.xlu0 %v1856
    %v1858 = vpop.xlane.xlu0 %1857
    %v1859 = vmul.f32 %v1855, %v884
    %v1860 = vmul.f32 %v1858, %v884
    %v1861 = vadd.f32 %v1859, 1e-05
    %v1862 = vadd.f32 %v1860, 1e-05
    %v1863 = vrsqrt.pop %v1861
    %v1864 = vmul.f32 %v1863, %v1861
    %v1865 = vmul.f32 %v1864, %v1863
    %v1866 = vmul.f32 0.5, %v1865
    %v1867 = vsub.f32 1.5, %v1866
    %v1868 = vmul.f32 %v1863, %v1867
    %vm1869 = vweird.f32 %v1861
    %vm1870 = vweird.f32 %v1863
    %vm1871 = vmor %vm1869, %vm1870
    %v1872 = vsel %vm1871, %v1863, %v1868
    %v1873 = vrsqrt.pop %v1862
    %v1874 = vmul.f32 %v1873, %v1862
    %v1875 = vmul.f32 %v1874, %v1873
    %v1876 = vmul.f32 0.5, %v1875
    %v1877 = vsub.f32 1.5, %v1876
    %v1878 = vmul.f32 %v1873, %v1877
    %vm1879 = vweird.f32 %v1862
    %vm1880 = vweird.f32 %v1873
    %vm1881 = vmor %vm1879, %vm1880
    %v1882 = vsel %vm1881, %v1873, %v1878
    %v1883 = vmul.f32 %v1849, %v1872
    %v1884 = vmul.f32 %v1850, %v1882
    %v1885 = vperm.slane %v1072, 6
    %v1886 = vmul.f32 %v1883, %v1885
    %v1887 = vmul.f32 %v1884, %v1885
    %v1888 = vperm.slane %v1072, 7
    %v1889 = vadd.f32 %v1886, %v1888
    %v1890 = vadd.f32 %v1887, %v1888
    %v1891 = vld [vmem:[#allocation19] sm:$0xff]
    %v1892 = vld [vmem:[#allocation19 + $0x8] sm:$0xff]
    %v1893 = vld [vmem:[#allocation16] sm:$0xff]
    %v1894 = vld [vmem:[#allocation16 + $0x8] sm:$0xff]
    %v1895 = vld [vmem:[#allocation16 + $0x10] sm:$0xff]
    %v1896 = vld [vmem:[#allocation16 + $0x18] sm:$0xff]
    %v1897 = vld [vmem:[#allocation16 + $0x20] sm:$0xff]
    %v1898 = vld [vmem:[#allocation16 + $0x28] sm:$0xff]
    %v1899 = vld [vmem:[#allocation16 + $0x30] sm:$0xff]
    %v1900 = vld [vmem:[#allocation16 + $0x38] sm:$0xff]
    %v1901 = vld [vmem:[#allocation16 + $0x40] sm:$0xff]
    %v1902 = vld [vmem:[#allocation16 + $0x48] sm:$0xff]
    %v1903 = vld [vmem:[#allocation16 + $0x50] sm:$0xff]
    %v1904 = vld [vmem:[#allocation16 + $0x58] sm:$0xff]
    %v1905 = vld [vmem:[#allocation16 + $0x60] sm:$0xff]
    %v1906 = vld [vmem:[#allocation16 + $0x68] sm:$0xff]
    %v1907 = vld [vmem:[#allocation16 + $0x70] sm:$0xff]
    %v1908 = vld [vmem:[#allocation16 + $0x78] sm:$0xff]
    %v1909 = vld [vmem:[#allocation16 + $0x80] sm:$0xff]
    %v1910 = vld [vmem:[#allocation16 + $0x88] sm:$0xff]
    %v1911 = vld [vmem:[#allocation16 + $0x90] sm:$0xff]
    %v1912 = vld [vmem:[#allocation16 + $0x98] sm:$0xff]
    %v1913 = vld [vmem:[#allocation16 + $0xa0] sm:$0xff]
    %v1914 = vld [vmem:[#allocation16 + $0xa8] sm:$0xff]
    %v1915 = vld [vmem:[#allocation16 + $0xb0] sm:$0xff]
    %v1916 = vld [vmem:[#allocation16 + $0xb8] sm:$0xff]
    %v1917 = vld [vmem:[#allocation16 + $0xc0] sm:$0xff]
    %v1918 = vld [vmem:[#allocation16 + $0xc8] sm:$0xff]
    %v1919 = vld [vmem:[#allocation16 + $0xd0] sm:$0xff]
    %v1920 = vld [vmem:[#allocation16 + $0xd8] sm:$0xff]
    %v1921 = vld [vmem:[#allocation16 + $0xe0] sm:$0xff]
    %v1922 = vld [vmem:[#allocation16 + $0xe8] sm:$0xff]
    %v1923 = vld [vmem:[#allocation16 + $0xf0] sm:$0xff]
    %v1924 = vld [vmem:[#allocation16 + $0xf8] sm:$0xff]
    %v1927 = vperm.slane %v1891, 0
    %v1928 = vperm.slane %v1891, 2
    %v1929 = vperm.slane %v1891, 4
    %v1930 = vperm.slane %v1891, 6
    %v1931 = vperm.slane %v1892, 0
    %v1932 = vperm.slane %v1892, 2
    %v1933 = vperm.slane %v1892, 4
    %v1934 = vperm.slane %v1892, 6
    %v1943 = vperm.slane %v1927, 0
    %v1944 = vperm.slane %v1928, 0
    %v1945 = vperm.slane %v1929, 0
    %v1946 = vperm.slane %v1930, 0
    %v1947 = vperm.slane %v1931, 0
    %v1948 = vperm.slane %v1932, 0
    %v1949 = vperm.slane %v1933, 0
    %v1950 = vperm.slane %v1934, 0
    %v1952 = vsel %vm247, %v1889, 0
    %v1955 = vsel %vm247, %v1890, 0
    %1957 = vmatpush.msra.mxu0 0.0
    %1958 = vmatpush.msra.mxu0 0.0
    %1959 = vmatpush.msra.mxu0 0.0
    %1960 = vmatpush.msra.mxu0 0.0
    %1961 = vmatpush.msra.mxu0 0.0
    %1962 = vmatpush.msra.mxu0 0.0
    %1963 = vmatpush.msra.mxu0 0.0
    %1964 = vmatpush.msra.mxu0 0.0
    %1965 = vmatpush.msra.mxu0 0.0
    %1966 = vmatpush.msra.mxu0 0.0
    %1967 = vmatpush.msra.mxu0 0.0
    %1968 = vmatpush.msra.mxu0 0.0
    %1969 = vmatpush.msra.mxu0 %v1917
    %1970 = vmatpush.msra.mxu0 %v1909
    %1971 = vmatpush.msra.mxu0 %v1901
    %1972 = vmatpush.msra.mxu0 %v1893
    %1973 = vmatmul.f32.gmra.mxu0 %v1952
    %v1974 = vpop.f32.mrf.mxu0
    %v1975 = vadd.f32 %v1943, %v1974
    %1976 = vmatmul.f32.gmra.mxu0 %v1955
    %v1977 = vpop.f32.mrf.mxu0
    %v1978 = vadd.f32 %v1943, %v1977
    %1979 = vdwg.mxu0
    %1980 = vmatpush.msra.mxu0 0.0
    %1981 = vmatpush.msra.mxu0 0.0
    %1982 = vmatpush.msra.mxu0 0.0
    %1983 = vmatpush.msra.mxu0 0.0
    %1984 = vmatpush.msra.mxu0 0.0
    %1985 = vmatpush.msra.mxu0 0.0
    %1986 = vmatpush.msra.mxu0 0.0
    %1987 = vmatpush.msra.mxu0 0.0
    %1988 = vmatpush.msra.mxu0 0.0
    %1989 = vmatpush.msra.mxu0 0.0
    %1990 = vmatpush.msra.mxu0 0.0
    %1991 = vmatpush.msra.mxu0 0.0
    %1992 = vmatpush.msra.mxu0 %v1918
    %1993 = vmatpush.msra.mxu0 %v1910
    %1994 = vmatpush.msra.mxu0 %v1902
    %1995 = vmatpush.msra.mxu0 %v1894
    %1996 = vmatmul.f32.gmra.mxu0 %v1952
    %v1997 = vpop.f32.mrf.mxu0
    %v1998 = vadd.f32 %v1944, %v1997
    %1999 = vmatmul.f32.gmra.mxu0 %v1955
    %v2000 = vpop.f32.mrf.mxu0
    %v2001 = vadd.f32 %v1944, %v2000
    %2002 = vdwg.mxu0
    %2003 = vmatpush.msra.mxu0 0.0
    %2004 = vmatpush.msra.mxu0 0.0
    %2005 = vmatpush.msra.mxu0 0.0
    %2006 = vmatpush.msra.mxu0 0.0
    %2007 = vmatpush.msra.mxu0 0.0
    %2008 = vmatpush.msra.mxu0 0.0
    %2009 = vmatpush.msra.mxu0 0.0
    %2010 = vmatpush.msra.mxu0 0.0
    %2011 = vmatpush.msra.mxu0 0.0
    %2012 = vmatpush.msra.mxu0 0.0
    %2013 = vmatpush.msra.mxu0 0.0
    %2014 = vmatpush.msra.mxu0 0.0
    %2015 = vmatpush.msra.mxu0 %v1919
    %2016 = vmatpush.msra.mxu0 %v1911
    %2017 = vmatpush.msra.mxu0 %v1903
    %2018 = vmatpush.msra.mxu0 %v1895
    %2019 = vmatmul.f32.gmra.mxu0 %v1952
    %v2020 = vpop.f32.mrf.mxu0
    %v2021 = vadd.f32 %v1945, %v2020
    %2022 = vmatmul.f32.gmra.mxu0 %v1955
    %v2023 = vpop.f32.mrf.mxu0
    %v2024 = vadd.f32 %v1945, %v2023
    %2025 = vdwg.mxu0
    %2026 = vmatpush.msra.mxu0 0.0
    %2027 = vmatpush.msra.mxu0 0.0
    %2028 = vmatpush.msra.mxu0 0.0
    %2029 = vmatpush.msra.mxu0 0.0
    %2030 = vmatpush.msra.mxu0 0.0
    %2031 = vmatpush.msra.mxu0 0.0
    %2032 = vmatpush.msra.mxu0 0.0
    %2033 = vmatpush.msra.mxu0 0.0
    %2034 = vmatpush.msra.mxu0 0.0
    %2035 = vmatpush.msra.mxu0 0.0
    %2036 = vmatpush.msra.mxu0 0.0
    %2037 = vmatpush.msra.mxu0 0.0
    %2038 = vmatpush.msra.mxu0 %v1920
    %2039 = vmatpush.msra.mxu0 %v1912
    %2040 = vmatpush.msra.mxu0 %v1904
    %2041 = vmatpush.msra.mxu0 %v1896
    %2042 = vmatmul.f32.gmra.mxu0 %v1952
    %v2043 = vpop.f32.mrf.mxu0
    %v2044 = vadd.f32 %v1946, %v2043
    %2045 = vmatmul.f32.gmra.mxu0 %v1955
    %v2046 = vpop.f32.mrf.mxu0
    %v2047 = vadd.f32 %v1946, %v2046
    %2048 = vdwg.mxu0
    %2049 = vmatpush.msra.mxu0 0.0
    %2050 = vmatpush.msra.mxu0 0.0
    %2051 = vmatpush.msra.mxu0 0.0
    %2052 = vmatpush.msra.mxu0 0.0
    %2053 = vmatpush.msra.mxu0 0.0
    %2054 = vmatpush.msra.mxu0 0.0
    %2055 = vmatpush.msra.mxu0 0.0
    %2056 = vmatpush.msra.mxu0 0.0
    %2057 = vmatpush.msra.mxu0 0.0
    %2058 = vmatpush.msra.mxu0 0.0
    %2059 = vmatpush.msra.mxu0 0.0
    %2060 = vmatpush.msra.mxu0 0.0
    %2061 = vmatpush.msra.mxu0 %v1921
    %2062 = vmatpush.msra.mxu0 %v1913
    %2063 = vmatpush.msra.mxu0 %v1905
    %2064 = vmatpush.msra.mxu0 %v1897
    %2065 = vmatmul.f32.gmra.mxu0 %v1952
    %v2066 = vpop.f32.mrf.mxu0
    %v2067 = vadd.f32 %v1947, %v2066
    %2068 = vmatmul.f32.gmra.mxu0 %v1955
    %v2069 = vpop.f32.mrf.mxu0
    %v2070 = vadd.f32 %v1947, %v2069
    %2071 = vdwg.mxu0
    %2072 = vmatpush.msra.mxu0 0.0
    %2073 = vmatpush.msra.mxu0 0.0
    %2074 = vmatpush.msra.mxu0 0.0
    %2075 = vmatpush.msra.mxu0 0.0
    %2076 = vmatpush.msra.mxu0 0.0
    %2077 = vmatpush.msra.mxu0 0.0
    %2078 = vmatpush.msra.mxu0 0.0
    %2079 = vmatpush.msra.mxu0 0.0
    %2080 = vmatpush.msra.mxu0 0.0
    %2081 = vmatpush.msra.mxu0 0.0
    %2082 = vmatpush.msra.mxu0 0.0
    %2083 = vmatpush.msra.mxu0 0.0
    %2084 = vmatpush.msra.mxu0 %v1922
    %2085 = vmatpush.msra.mxu0 %v1914
    %2086 = vmatpush.msra.mxu0 %v1906
    %2087 = vmatpush.msra.mxu0 %v1898
    %2088 = vmatmul.f32.gmra.mxu0 %v1952
    %v2089 = vpop.f32.mrf.mxu0
    %v2090 = vadd.f32 %v1948, %v2089
    %2091 = vmatmul.f32.gmra.mxu0 %v1955
    %v2092 = vpop.f32.mrf.mxu0
    %v2093 = vadd.f32 %v1948, %v2092
    %2094 = vdwg.mxu0
    %2095 = vmatpush.msra.mxu0 0.0
    %2096 = vmatpush.msra.mxu0 0.0
    %2097 = vmatpush.msra.mxu0 0.0
    %2098 = vmatpush.msra.mxu0 0.0
    %2099 = vmatpush.msra.mxu0 0.0
    %2100 = vmatpush.msra.mxu0 0.0
    %2101 = vmatpush.msra.mxu0 0.0
    %2102 = vmatpush.msra.mxu0 0.0
    %2103 = vmatpush.msra.mxu0 0.0
    %2104 = vmatpush.msra.mxu0 0.0
    %2105 = vmatpush.msra.mxu0 0.0
    %2106 = vmatpush.msra.mxu0 0.0
    %2107 = vmatpush.msra.mxu0 %v1923
    %2108 = vmatpush.msra.mxu0 %v1915
    %2109 = vmatpush.msra.mxu0 %v1907
    %2110 = vmatpush.msra.mxu0 %v1899
    %2111 = vmatmul.f32.gmra.mxu0 %v1952
    %v2112 = vpop.f32.mrf.mxu0
    %v2113 = vadd.f32 %v1949, %v2112
    %2114 = vmatmul.f32.gmra.mxu0 %v1955
    %v2115 = vpop.f32.mrf.mxu0
    %v2116 = vadd.f32 %v1949, %v2115
    %2117 = vdwg.mxu0
    %2118 = vmatpush.msra.mxu0 0.0
    %2119 = vmatpush.msra.mxu0 0.0
    %2120 = vmatpush.msra.mxu0 0.0
    %2121 = vmatpush.msra.mxu0 0.0
    %2122 = vmatpush.msra.mxu0 0.0
    %2123 = vmatpush.msra.mxu0 0.0
    %2124 = vmatpush.msra.mxu0 0.0
    %2125 = vmatpush.msra.mxu0 0.0
    %2126 = vmatpush.msra.mxu0 0.0
    %2127 = vmatpush.msra.mxu0 0.0
    %2128 = vmatpush.msra.mxu0 0.0
    %2129 = vmatpush.msra.mxu0 0.0
    %2130 = vmatpush.msra.mxu0 %v1924
    %2131 = vmatpush.msra.mxu0 %v1916
    %2132 = vmatpush.msra.mxu0 %v1908
    %2133 = vmatpush.msra.mxu0 %v1900
    %2134 = vmatmul.f32.gmra.mxu0 %v1952
    %v2135 = vpop.f32.mrf.mxu0
    %v2136 = vadd.f32 %v1950, %v2135
    %2137 = vmatmul.f32.gmra.mxu0 %v1955
    %v2138 = vpop.f32.mrf.mxu0
    %v2139 = vadd.f32 %v1950, %v2138
    %2140 = vdwg.mxu0
    %v2141 = vld [vmem:[#allocation17] sm:$0xff]
    %v2142 = vld [vmem:[#allocation17 + $0x8] sm:$0xff]
    %v2143 = vld [vmem:[#allocation17 + $0x10] sm:$0xff]
    %v2144 = vld [vmem:[#allocation17 + $0x18] sm:$0xff]
    %v2145 = vld [vmem:[#allocation17 + $0x20] sm:$0xff]
    %v2146 = vld [vmem:[#allocation17 + $0x28] sm:$0xff]
    %v2147 = vld [vmem:[#allocation17 + $0x30] sm:$0xff]
    %v2148 = vld [vmem:[#allocation17 + $0x38] sm:$0xff]
    %v2149 = vld [vmem:[#allocation17 + $0x40] sm:$0xff]
    %v2150 = vld [vmem:[#allocation17 + $0x48] sm:$0xff]
    %v2151 = vld [vmem:[#allocation17 + $0x50] sm:$0xff]
    %v2152 = vld [vmem:[#allocation17 + $0x58] sm:$0xff]
    %v2153 = vld [vmem:[#allocation17 + $0x60] sm:$0xff]
    %v2154 = vld [vmem:[#allocation17 + $0x68] sm:$0xff]
    %v2155 = vld [vmem:[#allocation17 + $0x70] sm:$0xff]
    %v2156 = vld [vmem:[#allocation17 + $0x78] sm:$0xff]
    %v2157 = vld [vmem:[#allocation17 + $0x80] sm:$0xff]
    %v2158 = vld [vmem:[#allocation17 + $0x88] sm:$0xff]
    %v2159 = vld [vmem:[#allocation17 + $0x90] sm:$0xff]
    %v2160 = vld [vmem:[#allocation17 + $0x98] sm:$0xff]
    %v2161 = vld [vmem:[#allocation17 + $0xa0] sm:$0xff]
    %v2162 = vld [vmem:[#allocation17 + $0xa8] sm:$0xff]
    %v2163 = vld [vmem:[#allocation17 + $0xb0] sm:$0xff]
    %v2164 = vld [vmem:[#allocation17 + $0xb8] sm:$0xff]
    %v2165 = vld [vmem:[#allocation17 + $0xc0] sm:$0xff]
    %v2166 = vld [vmem:[#allocation17 + $0xc8] sm:$0xff]
    %v2167 = vld [vmem:[#allocation17 + $0xd0] sm:$0xff]
    %v2168 = vld [vmem:[#allocation17 + $0xd8] sm:$0xff]
    %v2169 = vld [vmem:[#allocation17 + $0xe0] sm:$0xff]
    %v2170 = vld [vmem:[#allocation17 + $0xe8] sm:$0xff]
    %v2171 = vld [vmem:[#allocation17 + $0xf0] sm:$0xff]
    %v2172 = vld [vmem:[#allocation17 + $0xf8] sm:$0xff]
    %v2173 = vld [vmem:[#allocation17 + $0x100] sm:$0xff]
    %v2174 = vld [vmem:[#allocation17 + $0x108] sm:$0xff]
    %v2175 = vld [vmem:[#allocation17 + $0x110] sm:$0xff]
    %v2176 = vld [vmem:[#allocation17 + $0x118] sm:$0xff]
    %v2177 = vld [vmem:[#allocation17 + $0x120] sm:$0xff]
    %v2178 = vld [vmem:[#allocation17 + $0x128] sm:$0xff]
    %v2179 = vld [vmem:[#allocation17 + $0x130] sm:$0xff]
    %v2180 = vld [vmem:[#allocation17 + $0x138] sm:$0xff]
    %v2181 = vld [vmem:[#allocation17 + $0x140] sm:$0xff]
    %v2182 = vld [vmem:[#allocation17 + $0x148] sm:$0xff]
    %v2183 = vld [vmem:[#allocation17 + $0x150] sm:$0xff]
    %v2184 = vld [vmem:[#allocation17 + $0x158] sm:$0xff]
    %v2185 = vld [vmem:[#allocation17 + $0x160] sm:$0xff]
    %v2186 = vld [vmem:[#allocation17 + $0x168] sm:$0xff]
    %v2187 = vld [vmem:[#allocation17 + $0x170] sm:$0xff]
    %v2188 = vld [vmem:[#allocation17 + $0x178] sm:$0xff]
    %v2189 = vld [vmem:[#allocation17 + $0x180] sm:$0xff]
    %v2190 = vld [vmem:[#allocation17 + $0x188] sm:$0xff]
    %v2191 = vld [vmem:[#allocation17 + $0x190] sm:$0xff]
    %v2192 = vld [vmem:[#allocation17 + $0x198] sm:$0xff]
    %v2193 = vld [vmem:[#allocation17 + $0x1a0] sm:$0xff]
    %v2194 = vld [vmem:[#allocation17 + $0x1a8] sm:$0xff]
    %v2195 = vld [vmem:[#allocation17 + $0x1b0] sm:$0xff]
    %v2196 = vld [vmem:[#allocation17 + $0x1b8] sm:$0xff]
    %v2197 = vld [vmem:[#allocation17 + $0x1c0] sm:$0xff]
    %v2198 = vld [vmem:[#allocation17 + $0x1c8] sm:$0xff]
    %v2199 = vld [vmem:[#allocation17 + $0x1d0] sm:$0xff]
    %v2200 = vld [vmem:[#allocation17 + $0x1d8] sm:$0xff]
    %v2201 = vld [vmem:[#allocation17 + $0x1e0] sm:$0xff]
    %v2202 = vld [vmem:[#allocation17 + $0x1e8] sm:$0xff]
    %v2203 = vld [vmem:[#allocation17 + $0x1f0] sm:$0xff]
    %v2204 = vld [vmem:[#allocation17 + $0x1f8] sm:$0xff]
    %v2205 = vld [vmem:[#allocation17 + $0x200] sm:$0xff]
    %v2206 = vld [vmem:[#allocation17 + $0x208] sm:$0xff]
    %v2207 = vld [vmem:[#allocation17 + $0x210] sm:$0xff]
    %v2208 = vld [vmem:[#allocation17 + $0x218] sm:$0xff]
    %v2209 = vld [vmem:[#allocation17 + $0x220] sm:$0xff]
    %v2210 = vld [vmem:[#allocation17 + $0x228] sm:$0xff]
    %v2211 = vld [vmem:[#allocation17 + $0x230] sm:$0xff]
    %v2212 = vld [vmem:[#allocation17 + $0x238] sm:$0xff]
    %v2213 = vld [vmem:[#allocation17 + $0x240] sm:$0xff]
    %v2214 = vld [vmem:[#allocation17 + $0x248] sm:$0xff]
    %v2215 = vld [vmem:[#allocation17 + $0x250] sm:$0xff]
    %v2216 = vld [vmem:[#allocation17 + $0x258] sm:$0xff]
    %v2217 = vld [vmem:[#allocation17 + $0x260] sm:$0xff]
    %v2218 = vld [vmem:[#allocation17 + $0x268] sm:$0xff]
    %v2219 = vld [vmem:[#allocation17 + $0x270] sm:$0xff]
    %v2220 = vld [vmem:[#allocation17 + $0x278] sm:$0xff]
    %v2221 = vld [vmem:[#allocation17 + $0x280] sm:$0xff]
    %v2222 = vld [vmem:[#allocation17 + $0x288] sm:$0xff]
    %v2223 = vld [vmem:[#allocation17 + $0x290] sm:$0xff]
    %v2224 = vld [vmem:[#allocation17 + $0x298] sm:$0xff]
    %v2225 = vld [vmem:[#allocation17 + $0x2a0] sm:$0xff]
    %v2226 = vld [vmem:[#allocation17 + $0x2a8] sm:$0xff]
    %v2227 = vld [vmem:[#allocation17 + $0x2b0] sm:$0xff]
    %v2228 = vld [vmem:[#allocation17 + $0x2b8] sm:$0xff]
    %v2229 = vld [vmem:[#allocation17 + $0x2c0] sm:$0xff]
    %v2230 = vld [vmem:[#allocation17 + $0x2c8] sm:$0xff]
    %v2231 = vld [vmem:[#allocation17 + $0x2d0] sm:$0xff]
    %v2232 = vld [vmem:[#allocation17 + $0x2d8] sm:$0xff]
    %v2233 = vld [vmem:[#allocation17 + $0x2e0] sm:$0xff]
    %v2234 = vld [vmem:[#allocation17 + $0x2e8] sm:$0xff]
    %v2235 = vld [vmem:[#allocation17 + $0x2f0] sm:$0xff]
    %v2236 = vld [vmem:[#allocation17 + $0x2f8] sm:$0xff]
    %v2237 = vld [vmem:[#allocation17 + $0x300] sm:$0xff]
    %v2238 = vld [vmem:[#allocation17 + $0x308] sm:$0xff]
    %v2239 = vld [vmem:[#allocation17 + $0x310] sm:$0xff]
    %v2240 = vld [vmem:[#allocation17 + $0x318] sm:$0xff]
    %v2241 = vld [vmem:[#allocation17 + $0x320] sm:$0xff]
    %v2242 = vld [vmem:[#allocation17 + $0x328] sm:$0xff]
    %v2243 = vld [vmem:[#allocation17 + $0x330] sm:$0xff]
    %v2244 = vld [vmem:[#allocation17 + $0x338] sm:$0xff]
    %v2245 = vld [vmem:[#allocation17 + $0x340] sm:$0xff]
    %v2246 = vld [vmem:[#allocation17 + $0x348] sm:$0xff]
    %v2247 = vld [vmem:[#allocation17 + $0x350] sm:$0xff]
    %v2248 = vld [vmem:[#allocation17 + $0x358] sm:$0xff]
    %v2249 = vld [vmem:[#allocation17 + $0x360] sm:$0xff]
    %v2250 = vld [vmem:[#allocation17 + $0x368] sm:$0xff]
    %v2251 = vld [vmem:[#allocation17 + $0x370] sm:$0xff]
    %v2252 = vld [vmem:[#allocation17 + $0x378] sm:$0xff]
    %v2253 = vld [vmem:[#allocation17 + $0x380] sm:$0xff]
    %v2254 = vld [vmem:[#allocation17 + $0x388] sm:$0xff]
    %v2255 = vld [vmem:[#allocation17 + $0x390] sm:$0xff]
    %v2256 = vld [vmem:[#allocation17 + $0x398] sm:$0xff]
    %v2257 = vld [vmem:[#allocation17 + $0x3a0] sm:$0xff]
    %v2258 = vld [vmem:[#allocation17 + $0x3a8] sm:$0xff]
    %v2259 = vld [vmem:[#allocation17 + $0x3b0] sm:$0xff]
    %v2260 = vld [vmem:[#allocation17 + $0x3b8] sm:$0xff]
    %v2261 = vld [vmem:[#allocation17 + $0x3c0] sm:$0xff]
    %v2262 = vld [vmem:[#allocation17 + $0x3c8] sm:$0xff]
    %v2263 = vld [vmem:[#allocation17 + $0x3d0] sm:$0xff]
    %v2264 = vld [vmem:[#allocation17 + $0x3d8] sm:$0xff]
    %v2265 = vld [vmem:[#allocation17 + $0x3e0] sm:$0xff]
    %v2266 = vld [vmem:[#allocation17 + $0x3e8] sm:$0xff]
    %v2267 = vld [vmem:[#allocation17 + $0x3f0] sm:$0xff]
    %v2268 = vld [vmem:[#allocation17 + $0x3f8] sm:$0xff]
    %v2269 = vld [vmem:[#allocation17 + $0x400] sm:$0xff]
    %v2270 = vld [vmem:[#allocation17 + $0x408] sm:$0xff]
    %v2271 = vld [vmem:[#allocation17 + $0x410] sm:$0xff]
    %v2272 = vld [vmem:[#allocation17 + $0x418] sm:$0xff]
    %v2273 = vld [vmem:[#allocation17 + $0x420] sm:$0xff]
    %v2274 = vld [vmem:[#allocation17 + $0x428] sm:$0xff]
    %v2275 = vld [vmem:[#allocation17 + $0x430] sm:$0xff]
    %v2276 = vld [vmem:[#allocation17 + $0x438] sm:$0xff]
    %v2277 = vld [vmem:[#allocation17 + $0x440] sm:$0xff]
    %v2278 = vld [vmem:[#allocation17 + $0x448] sm:$0xff]
    %v2279 = vld [vmem:[#allocation17 + $0x450] sm:$0xff]
    %v2280 = vld [vmem:[#allocation17 + $0x458] sm:$0xff]
    %v2281 = vld [vmem:[#allocation17 + $0x460] sm:$0xff]
    %v2282 = vld [vmem:[#allocation17 + $0x468] sm:$0xff]
    %v2283 = vld [vmem:[#allocation17 + $0x470] sm:$0xff]
    %v2284 = vld [vmem:[#allocation17 + $0x478] sm:$0xff]
    %v2285 = vld [vmem:[#allocation17 + $0x480] sm:$0xff]
    %v2286 = vld [vmem:[#allocation17 + $0x488] sm:$0xff]
    %v2287 = vld [vmem:[#allocation17 + $0x490] sm:$0xff]
    %v2288 = vld [vmem:[#allocation17 + $0x498] sm:$0xff]
    %v2289 = vld [vmem:[#allocation17 + $0x4a0] sm:$0xff]
    %v2290 = vld [vmem:[#allocation17 + $0x4a8] sm:$0xff]
    %v2291 = vld [vmem:[#allocation17 + $0x4b0] sm:$0xff]
    %v2292 = vld [vmem:[#allocation17 + $0x4b8] sm:$0xff]
    %v2293 = vld [vmem:[#allocation17 + $0x4c0] sm:$0xff]
    %v2294 = vld [vmem:[#allocation17 + $0x4c8] sm:$0xff]
    %v2295 = vld [vmem:[#allocation17 + $0x4d0] sm:$0xff]
    %v2296 = vld [vmem:[#allocation17 + $0x4d8] sm:$0xff]
    %v2297 = vld [vmem:[#allocation17 + $0x4e0] sm:$0xff]
    %v2298 = vld [vmem:[#allocation17 + $0x4e8] sm:$0xff]
    %v2299 = vld [vmem:[#allocation17 + $0x4f0] sm:$0xff]
    %v2300 = vld [vmem:[#allocation17 + $0x4f8] sm:$0xff]
    %v2301 = vld [vmem:[#allocation17 + $0x500] sm:$0xff]
    %v2302 = vld [vmem:[#allocation17 + $0x508] sm:$0xff]
    %v2303 = vld [vmem:[#allocation17 + $0x510] sm:$0xff]
    %v2304 = vld [vmem:[#allocation17 + $0x518] sm:$0xff]
    %v2305 = vld [vmem:[#allocation17 + $0x520] sm:$0xff]
    %v2306 = vld [vmem:[#allocation17 + $0x528] sm:$0xff]
    %v2307 = vld [vmem:[#allocation17 + $0x530] sm:$0xff]
    %v2308 = vld [vmem:[#allocation17 + $0x538] sm:$0xff]
    %v2309 = vld [vmem:[#allocation17 + $0x540] sm:$0xff]
    %v2310 = vld [vmem:[#allocation17 + $0x548] sm:$0xff]
    %v2311 = vld [vmem:[#allocation17 + $0x550] sm:$0xff]
    %v2312 = vld [vmem:[#allocation17 + $0x558] sm:$0xff]
    %v2313 = vld [vmem:[#allocation17 + $0x560] sm:$0xff]
    %v2314 = vld [vmem:[#allocation17 + $0x568] sm:$0xff]
    %v2315 = vld [vmem:[#allocation17 + $0x570] sm:$0xff]
    %v2316 = vld [vmem:[#allocation17 + $0x578] sm:$0xff]
    %v2317 = vld [vmem:[#allocation17 + $0x580] sm:$0xff]
    %v2318 = vld [vmem:[#allocation17 + $0x588] sm:$0xff]
    %v2319 = vld [vmem:[#allocation17 + $0x590] sm:$0xff]
    %v2320 = vld [vmem:[#allocation17 + $0x598] sm:$0xff]
    %v2321 = vld [vmem:[#allocation17 + $0x5a0] sm:$0xff]
    %v2322 = vld [vmem:[#allocation17 + $0x5a8] sm:$0xff]
    %v2323 = vld [vmem:[#allocation17 + $0x5b0] sm:$0xff]
    %v2324 = vld [vmem:[#allocation17 + $0x5b8] sm:$0xff]
    %v2325 = vld [vmem:[#allocation17 + $0x5c0] sm:$0xff]
    %v2326 = vld [vmem:[#allocation17 + $0x5c8] sm:$0xff]
    %v2327 = vld [vmem:[#allocation17 + $0x5d0] sm:$0xff]
    %v2328 = vld [vmem:[#allocation17 + $0x5d8] sm:$0xff]
    %v2329 = vld [vmem:[#allocation17 + $0x5e0] sm:$0xff]
    %v2330 = vld [vmem:[#allocation17 + $0x5e8] sm:$0xff]
    %v2331 = vld [vmem:[#allocation17 + $0x5f0] sm:$0xff]
    %v2332 = vld [vmem:[#allocation17 + $0x5f8] sm:$0xff]
    %v2333 = vld [vmem:[#allocation17 + $0x600] sm:$0xff]
    %v2334 = vld [vmem:[#allocation17 + $0x608] sm:$0xff]
    %v2335 = vld [vmem:[#allocation17 + $0x610] sm:$0xff]
    %v2336 = vld [vmem:[#allocation17 + $0x618] sm:$0xff]
    %v2337 = vld [vmem:[#allocation17 + $0x620] sm:$0xff]
    %v2338 = vld [vmem:[#allocation17 + $0x628] sm:$0xff]
    %v2339 = vld [vmem:[#allocation17 + $0x630] sm:$0xff]
    %v2340 = vld [vmem:[#allocation17 + $0x638] sm:$0xff]
    %v2341 = vld [vmem:[#allocation17 + $0x640] sm:$0xff]
    %v2342 = vld [vmem:[#allocation17 + $0x648] sm:$0xff]
    %v2343 = vld [vmem:[#allocation17 + $0x650] sm:$0xff]
    %v2344 = vld [vmem:[#allocation17 + $0x658] sm:$0xff]
    %v2345 = vld [vmem:[#allocation17 + $0x660] sm:$0xff]
    %v2346 = vld [vmem:[#allocation17 + $0x668] sm:$0xff]
    %v2347 = vld [vmem:[#allocation17 + $0x670] sm:$0xff]
    %v2348 = vld [vmem:[#allocation17 + $0x678] sm:$0xff]
    %v2349 = vld [vmem:[#allocation17 + $0x680] sm:$0xff]
    %v2350 = vld [vmem:[#allocation17 + $0x688] sm:$0xff]
    %v2351 = vld [vmem:[#allocation17 + $0x690] sm:$0xff]
    %v2352 = vld [vmem:[#allocation17 + $0x698] sm:$0xff]
    %v2353 = vld [vmem:[#allocation17 + $0x6a0] sm:$0xff]
    %v2354 = vld [vmem:[#allocation17 + $0x6a8] sm:$0xff]
    %v2355 = vld [vmem:[#allocation17 + $0x6b0] sm:$0xff]
    %v2356 = vld [vmem:[#allocation17 + $0x6b8] sm:$0xff]
    %v2357 = vld [vmem:[#allocation17 + $0x6c0] sm:$0xff]
    %v2358 = vld [vmem:[#allocation17 + $0x6c8] sm:$0xff]
    %v2359 = vld [vmem:[#allocation17 + $0x6d0] sm:$0xff]
    %v2360 = vld [vmem:[#allocation17 + $0x6d8] sm:$0xff]
    %v2361 = vld [vmem:[#allocation17 + $0x6e0] sm:$0xff]
    %v2362 = vld [vmem:[#allocation17 + $0x6e8] sm:$0xff]
    %v2363 = vld [vmem:[#allocation17 + $0x6f0] sm:$0xff]
    %v2364 = vld [vmem:[#allocation17 + $0x6f8] sm:$0xff]
    %v2365 = vld [vmem:[#allocation17 + $0x700] sm:$0xff]
    %v2366 = vld [vmem:[#allocation17 + $0x708] sm:$0xff]
    %v2367 = vld [vmem:[#allocation17 + $0x710] sm:$0xff]
    %v2368 = vld [vmem:[#allocation17 + $0x718] sm:$0xff]
    %v2369 = vld [vmem:[#allocation17 + $0x720] sm:$0xff]
    %v2370 = vld [vmem:[#allocation17 + $0x728] sm:$0xff]
    %v2371 = vld [vmem:[#allocation17 + $0x730] sm:$0xff]
    %v2372 = vld [vmem:[#allocation17 + $0x738] sm:$0xff]
    %v2373 = vld [vmem:[#allocation17 + $0x740] sm:$0xff]
    %v2374 = vld [vmem:[#allocation17 + $0x748] sm:$0xff]
    %v2375 = vld [vmem:[#allocation17 + $0x750] sm:$0xff]
    %v2376 = vld [vmem:[#allocation17 + $0x758] sm:$0xff]
    %v2377 = vld [vmem:[#allocation17 + $0x760] sm:$0xff]
    %v2378 = vld [vmem:[#allocation17 + $0x768] sm:$0xff]
    %v2379 = vld [vmem:[#allocation17 + $0x770] sm:$0xff]
    %v2380 = vld [vmem:[#allocation17 + $0x778] sm:$0xff]
    %v2381 = vld [vmem:[#allocation17 + $0x780] sm:$0xff]
    %v2382 = vld [vmem:[#allocation17 + $0x788] sm:$0xff]
    %v2383 = vld [vmem:[#allocation17 + $0x790] sm:$0xff]
    %v2384 = vld [vmem:[#allocation17 + $0x798] sm:$0xff]
    %v2385 = vld [vmem:[#allocation17 + $0x7a0] sm:$0xff]
    %v2386 = vld [vmem:[#allocation17 + $0x7a8] sm:$0xff]
    %v2387 = vld [vmem:[#allocation17 + $0x7b0] sm:$0xff]
    %v2388 = vld [vmem:[#allocation17 + $0x7b8] sm:$0xff]
    %v2389 = vld [vmem:[#allocation17 + $0x7c0] sm:$0xff]
    %v2390 = vld [vmem:[#allocation17 + $0x7c8] sm:$0xff]
    %v2391 = vld [vmem:[#allocation17 + $0x7d0] sm:$0xff]
    %v2392 = vld [vmem:[#allocation17 + $0x7d8] sm:$0xff]
    %v2393 = vld [vmem:[#allocation17 + $0x7e0] sm:$0xff]
    %v2394 = vld [vmem:[#allocation17 + $0x7e8] sm:$0xff]
    %v2395 = vld [vmem:[#allocation17 + $0x7f0] sm:$0xff]
    %v2396 = vld [vmem:[#allocation17 + $0x7f8] sm:$0xff]
    %v2397 = vld [vmem:[#allocation17 + $0x800] sm:$0xff]
    %v2398 = vld [vmem:[#allocation17 + $0x808] sm:$0xff]
    %v2399 = vld [vmem:[#allocation17 + $0x810] sm:$0xff]
    %v2400 = vld [vmem:[#allocation17 + $0x818] sm:$0xff]
    %v2401 = vld [vmem:[#allocation17 + $0x820] sm:$0xff]
    %v2402 = vld [vmem:[#allocation17 + $0x828] sm:$0xff]
    %v2403 = vld [vmem:[#allocation17 + $0x830] sm:$0xff]
    %v2404 = vld [vmem:[#allocation17 + $0x838] sm:$0xff]
    %v2405 = vld [vmem:[#allocation17 + $0x840] sm:$0xff]
    %v2406 = vld [vmem:[#allocation17 + $0x848] sm:$0xff]
    %v2407 = vld [vmem:[#allocation17 + $0x850] sm:$0xff]
    %v2408 = vld [vmem:[#allocation17 + $0x858] sm:$0xff]
    %v2409 = vld [vmem:[#allocation17 + $0x860] sm:$0xff]
    %v2410 = vld [vmem:[#allocation17 + $0x868] sm:$0xff]
    %v2411 = vld [vmem:[#allocation17 + $0x870] sm:$0xff]
    %v2412 = vld [vmem:[#allocation17 + $0x878] sm:$0xff]
    %v2413 = vld [vmem:[#allocation17 + $0x880] sm:$0xff]
    %v2414 = vld [vmem:[#allocation17 + $0x888] sm:$0xff]
    %v2415 = vld [vmem:[#allocation17 + $0x890] sm:$0xff]
    %v2416 = vld [vmem:[#allocation17 + $0x898] sm:$0xff]
    %v2417 = vld [vmem:[#allocation17 + $0x8a0] sm:$0xff]
    %v2418 = vld [vmem:[#allocation17 + $0x8a8] sm:$0xff]
    %v2419 = vld [vmem:[#allocation17 + $0x8b0] sm:$0xff]
    %v2420 = vld [vmem:[#allocation17 + $0x8b8] sm:$0xff]
    %v2421 = vld [vmem:[#allocation17 + $0x8c0] sm:$0xff]
    %v2422 = vld [vmem:[#allocation17 + $0x8c8] sm:$0xff]
    %v2423 = vld [vmem:[#allocation17 + $0x8d0] sm:$0xff]
    %v2424 = vld [vmem:[#allocation17 + $0x8d8] sm:$0xff]
    %v2425 = vld [vmem:[#allocation17 + $0x8e0] sm:$0xff]
    %v2426 = vld [vmem:[#allocation17 + $0x8e8] sm:$0xff]
    %v2427 = vld [vmem:[#allocation17 + $0x8f0] sm:$0xff]
    %v2428 = vld [vmem:[#allocation17 + $0x8f8] sm:$0xff]
    %v2429 = vld [vmem:[#allocation17 + $0x900] sm:$0xff]
    %v2430 = vld [vmem:[#allocation17 + $0x908] sm:$0xff]
    %v2431 = vld [vmem:[#allocation17 + $0x910] sm:$0xff]
    %v2432 = vld [vmem:[#allocation17 + $0x918] sm:$0xff]
    %v2433 = vld [vmem:[#allocation17 + $0x920] sm:$0xff]
    %v2434 = vld [vmem:[#allocation17 + $0x928] sm:$0xff]
    %v2435 = vld [vmem:[#allocation17 + $0x930] sm:$0xff]
    %v2436 = vld [vmem:[#allocation17 + $0x938] sm:$0xff]
    %v2437 = vld [vmem:[#allocation17 + $0x940] sm:$0xff]
    %v2438 = vld [vmem:[#allocation17 + $0x948] sm:$0xff]
    %v2439 = vld [vmem:[#allocation17 + $0x950] sm:$0xff]
    %v2440 = vld [vmem:[#allocation17 + $0x958] sm:$0xff]
    %v2441 = vld [vmem:[#allocation17 + $0x960] sm:$0xff]
    %v2442 = vld [vmem:[#allocation17 + $0x968] sm:$0xff]
    %v2443 = vld [vmem:[#allocation17 + $0x970] sm:$0xff]
    %v2444 = vld [vmem:[#allocation17 + $0x978] sm:$0xff]
    %v2445 = vld [vmem:[#allocation17 + $0x980] sm:$0xff]
    %v2446 = vld [vmem:[#allocation17 + $0x988] sm:$0xff]
    %v2447 = vld [vmem:[#allocation17 + $0x990] sm:$0xff]
    %v2448 = vld [vmem:[#allocation17 + $0x998] sm:$0xff]
    %v2449 = vld [vmem:[#allocation17 + $0x9a0] sm:$0xff]
    %v2450 = vld [vmem:[#allocation17 + $0x9a8] sm:$0xff]
    %v2451 = vld [vmem:[#allocation17 + $0x9b0] sm:$0xff]
    %v2452 = vld [vmem:[#allocation17 + $0x9b8] sm:$0xff]
    %v2453 = vld [vmem:[#allocation17 + $0x9c0] sm:$0xff]
    %v2454 = vld [vmem:[#allocation17 + $0x9c8] sm:$0xff]
    %v2455 = vld [vmem:[#allocation17 + $0x9d0] sm:$0xff]
    %v2456 = vld [vmem:[#allocation17 + $0x9d8] sm:$0xff]
    %v2457 = vld [vmem:[#allocation17 + $0x9e0] sm:$0xff]
    %v2458 = vld [vmem:[#allocation17 + $0x9e8] sm:$0xff]
    %v2459 = vld [vmem:[#allocation17 + $0x9f0] sm:$0xff]
    %v2460 = vld [vmem:[#allocation17 + $0x9f8] sm:$0xff]
    %v2461 = vperm.slane %v1891, 1
    %v2462 = vperm.slane %v1891, 3
    %v2463 = vperm.slane %v1891, 5
    %v2464 = vperm.slane %v1891, 7
    %v2465 = vperm.slane %v1892, 1
    %v2466 = vperm.slane %v1892, 3
    %v2467 = vperm.slane %v1892, 5
    %v2468 = vperm.slane %v1892, 7
    %v2477 = vperm.slane %v2461, 1
    %v2478 = vperm.slane %v2462, 1
    %v2479 = vperm.slane %v2463, 1
    %v2480 = vperm.slane %v2464, 1
    %v2481 = vperm.slane %v2465, 1
    %v2482 = vperm.slane %v2466, 1
    %v2483 = vperm.slane %v2467, 1
    %v2484 = vperm.slane %v2468, 1
    %v2486 = vsel %vm990, 0.0, 0
    %2488 = vmatpush.msra.mxu0 %v2261
    %2489 = vmatpush.msra.mxu0 %v2253
    %2490 = vmatpush.msra.mxu0 %v2245
    %2491 = vmatpush.msra.mxu0 %v2237
    %2492 = vmatpush.msra.mxu0 %v2229
    %2493 = vmatpush.msra.mxu0 %v2221
    %2494 = vmatpush.msra.mxu0 %v2213
    %2495 = vmatpush.msra.mxu0 %v2205
    %2496 = vmatpush.msra.mxu0 %v2197
    %2497 = vmatpush.msra.mxu0 %v2189
    %2498 = vmatpush.msra.mxu0 %v2181
    %2499 = vmatpush.msra.mxu0 %v2173
    %2500 = vmatpush.msra.mxu0 %v2165
    %2501 = vmatpush.msra.mxu0 %v2157
    %2502 = vmatpush.msra.mxu0 %v2149
    %2503 = vmatpush.msra.mxu0 %v2141
    %2504 = vmatmul.f32.gmra.mxu0 0.0
    %v2505 = vpop.f32.mrf.mxu0
    %v2506 = vadd.f32 %v2477, %v2505
    %2507 = vdwg.mxu0
    %2508 = vmatpush.msra.mxu0 %v2389
    %2509 = vmatpush.msra.mxu0 %v2381
    %2510 = vmatpush.msra.mxu0 %v2373
    %2511 = vmatpush.msra.mxu0 %v2365
    %2512 = vmatpush.msra.mxu0 %v2357
    %2513 = vmatpush.msra.mxu0 %v2349
    %2514 = vmatpush.msra.mxu0 %v2341
    %2515 = vmatpush.msra.mxu0 %v2333
    %2516 = vmatpush.msra.mxu0 %v2325
    %2517 = vmatpush.msra.mxu0 %v2317
    %2518 = vmatpush.msra.mxu0 %v2309
    %2519 = vmatpush.msra.mxu0 %v2301
    %2520 = vmatpush.msra.mxu0 %v2293
    %2521 = vmatpush.msra.mxu0 %v2285
    %2522 = vmatpush.msra.mxu0 %v2277
    %2523 = vmatpush.msra.mxu0 %v2269
    %2524 = vmatmul.f32.gmra.mxu0 0.0
    %v2525 = vpop.f32.mrf.mxu0
    %v2526 = vadd.f32 %v2506, %v2525
    %2527 = vdwg.mxu0
    %2528 = vmatpush.msra.mxu0 0.0
    %2529 = vmatpush.msra.mxu0 0.0
    %2530 = vmatpush.msra.mxu0 0.0
    %2531 = vmatpush.msra.mxu0 0.0
    %2532 = vmatpush.msra.mxu0 0.0
    %2533 = vmatpush.msra.mxu0 0.0
    %2534 = vmatpush.msra.mxu0 0.0
    %2535 = vmatpush.msra.mxu0 0.0
    %2536 = vmatpush.msra.mxu0 %v2453
    %2537 = vmatpush.msra.mxu0 %v2445
    %2538 = vmatpush.msra.mxu0 %v2437
    %2539 = vmatpush.msra.mxu0 %v2429
    %2540 = vmatpush.msra.mxu0 %v2421
    %2541 = vmatpush.msra.mxu0 %v2413
    %2542 = vmatpush.msra.mxu0 %v2405
    %2543 = vmatpush.msra.mxu0 %v2397
    %2544 = vmatmul.f32.gmra.mxu0 %v2486
    %v2545 = vpop.f32.mrf.mxu0
    %v2546 = vadd.f32 %v2526, %v2545
    %2547 = vdwg.mxu0
    %2548 = vmatpush.msra.mxu0 %v2262
    %2549 = vmatpush.msra.mxu0 %v2254
    %2550 = vmatpush.msra.mxu0 %v2246
    %2551 = vmatpush.msra.mxu0 %v2238
    %2552 = vmatpush.msra.mxu0 %v2230
    %2553 = vmatpush.msra.mxu0 %v2222
    %2554 = vmatpush.msra.mxu0 %v2214
    %2555 = vmatpush.msra.mxu0 %v2206
    %2556 = vmatpush.msra.mxu0 %v2198
    %2557 = vmatpush.msra.mxu0 %v2190
    %2558 = vmatpush.msra.mxu0 %v2182
    %2559 = vmatpush.msra.mxu0 %v2174
    %2560 = vmatpush.msra.mxu0 %v2166
    %2561 = vmatpush.msra.mxu0 %v2158
    %2562 = vmatpush.msra.mxu0 %v2150
    %2563 = vmatpush.msra.mxu0 %v2142
    %2564 = vmatmul.f32.gmra.mxu0 0.0
    %v2565 = vpop.f32.mrf.mxu0
    %v2566 = vadd.f32 %v2478, %v2565
    %2567 = vdwg.mxu0
    %2568 = vmatpush.msra.mxu0 %v2390
    %2569 = vmatpush.msra.mxu0 %v2382
    %2570 = vmatpush.msra.mxu0 %v2374
    %2571 = vmatpush.msra.mxu0 %v2366
    %2572 = vmatpush.msra.mxu0 %v2358
    %2573 = vmatpush.msra.mxu0 %v2350
    %2574 = vmatpush.msra.mxu0 %v2342
    %2575 = vmatpush.msra.mxu0 %v2334
    %2576 = vmatpush.msra.mxu0 %v2326
    %2577 = vmatpush.msra.mxu0 %v2318
    %2578 = vmatpush.msra.mxu0 %v2310
    %2579 = vmatpush.msra.mxu0 %v2302
    %2580 = vmatpush.msra.mxu0 %v2294
    %2581 = vmatpush.msra.mxu0 %v2286
    %2582 = vmatpush.msra.mxu0 %v2278
    %2583 = vmatpush.msra.mxu0 %v2270
    %2584 = vmatmul.f32.gmra.mxu0 0.0
    %v2585 = vpop.f32.mrf.mxu0
    %v2586 = vadd.f32 %v2566, %v2585
    %2587 = vdwg.mxu0
    %2588 = vmatpush.msra.mxu0 0.0
    %2589 = vmatpush.msra.mxu0 0.0
    %2590 = vmatpush.msra.mxu0 0.0
    %2591 = vmatpush.msra.mxu0 0.0
    %2592 = vmatpush.msra.mxu0 0.0
    %2593 = vmatpush.msra.mxu0 0.0
    %2594 = vmatpush.msra.mxu0 0.0
    %2595 = vmatpush.msra.mxu0 0.0
    %2596 = vmatpush.msra.mxu0 %v2454
    %2597 = vmatpush.msra.mxu0 %v2446
    %2598 = vmatpush.msra.mxu0 %v2438
    %2599 = vmatpush.msra.mxu0 %v2430
    %2600 = vmatpush.msra.mxu0 %v2422
    %2601 = vmatpush.msra.mxu0 %v2414
    %2602 = vmatpush.msra.mxu0 %v2406
    %2603 = vmatpush.msra.mxu0 %v2398
    %2604 = vmatmul.f32.gmra.mxu0 %v2486
    %v2605 = vpop.f32.mrf.mxu0
    %v2606 = vadd.f32 %v2586, %v2605
    %2607 = vdwg.mxu0
    %2608 = vmatpush.msra.mxu0 %v2263
    %2609 = vmatpush.msra.mxu0 %v2255
    %2610 = vmatpush.msra.mxu0 %v2247
    %2611 = vmatpush.msra.mxu0 %v2239
    %2612 = vmatpush.msra.mxu0 %v2231
    %2613 = vmatpush.msra.mxu0 %v2223
    %2614 = vmatpush.msra.mxu0 %v2215
    %2615 = vmatpush.msra.mxu0 %v2207
    %2616 = vmatpush.msra.mxu0 %v2199
    %2617 = vmatpush.msra.mxu0 %v2191
    %2618 = vmatpush.msra.mxu0 %v2183
    %2619 = vmatpush.msra.mxu0 %v2175
    %2620 = vmatpush.msra.mxu0 %v2167
    %2621 = vmatpush.msra.mxu0 %v2159
    %2622 = vmatpush.msra.mxu0 %v2151
    %2623 = vmatpush.msra.mxu0 %v2143
    %2624 = vmatmul.f32.gmra.mxu0 0.0
    %v2625 = vpop.f32.mrf.mxu0
    %v2626 = vadd.f32 %v2479, %v2625
    %2627 = vdwg.mxu0
    %2628 = vmatpush.msra.mxu0 %v2391
    %2629 = vmatpush.msra.mxu0 %v2383
    %2630 = vmatpush.msra.mxu0 %v2375
    %2631 = vmatpush.msra.mxu0 %v2367
    %2632 = vmatpush.msra.mxu0 %v2359
    %2633 = vmatpush.msra.mxu0 %v2351
    %2634 = vmatpush.msra.mxu0 %v2343
    %2635 = vmatpush.msra.mxu0 %v2335
    %2636 = vmatpush.msra.mxu0 %v2327
    %2637 = vmatpush.msra.mxu0 %v2319
    %2638 = vmatpush.msra.mxu0 %v2311
    %2639 = vmatpush.msra.mxu0 %v2303
    %2640 = vmatpush.msra.mxu0 %v2295
    %2641 = vmatpush.msra.mxu0 %v2287
    %2642 = vmatpush.msra.mxu0 %v2279
    %2643 = vmatpush.msra.mxu0 %v2271
    %2644 = vmatmul.f32.gmra.mxu0 0.0
    %v2645 = vpop.f32.mrf.mxu0
    %v2646 = vadd.f32 %v2626, %v2645
    %2647 = vdwg.mxu0
    %2648 = vmatpush.msra.mxu0 0.0
    %2649 = vmatpush.msra.mxu0 0.0
    %2650 = vmatpush.msra.mxu0 0.0
    %2651 = vmatpush.msra.mxu0 0.0
    %2652 = vmatpush.msra.mxu0 0.0
    %2653 = vmatpush.msra.mxu0 0.0
    %2654 = vmatpush.msra.mxu0 0.0
    %2655 = vmatpush.msra.mxu0 0.0
    %2656 = vmatpush.msra.mxu0 %v2455
    %2657 = vmatpush.msra.mxu0 %v2447
    %2658 = vmatpush.msra.mxu0 %v2439
    %2659 = vmatpush.msra.mxu0 %v2431
    %2660 = vmatpush.msra.mxu0 %v2423
    %2661 = vmatpush.msra.mxu0 %v2415
    %2662 = vmatpush.msra.mxu0 %v2407
    %2663 = vmatpush.msra.mxu0 %v2399
    %2664 = vmatmul.f32.gmra.mxu0 %v2486
    %v2665 = vpop.f32.mrf.mxu0
    %v2666 = vadd.f32 %v2646, %v2665
    %2667 = vdwg.mxu0
    %2668 = vmatpush.msra.mxu0 %v2264
    %2669 = vmatpush.msra.mxu0 %v2256
    %2670 = vmatpush.msra.mxu0 %v2248
    %2671 = vmatpush.msra.mxu0 %v2240
    %2672 = vmatpush.msra.mxu0 %v2232
    %2673 = vmatpush.msra.mxu0 %v2224
    %2674 = vmatpush.msra.mxu0 %v2216
    %2675 = vmatpush.msra.mxu0 %v2208
    %2676 = vmatpush.msra.mxu0 %v2200
    %2677 = vmatpush.msra.mxu0 %v2192
    %2678 = vmatpush.msra.mxu0 %v2184
    %2679 = vmatpush.msra.mxu0 %v2176
    %2680 = vmatpush.msra.mxu0 %v2168
    %2681 = vmatpush.msra.mxu0 %v2160
    %2682 = vmatpush.msra.mxu0 %v2152
    %2683 = vmatpush.msra.mxu0 %v2144
    %2684 = vmatmul.f32.gmra.mxu0 0.0
    %v2685 = vpop.f32.mrf.mxu0
    %v2686 = vadd.f32 %v2480, %v2685
    %2687 = vdwg.mxu0
    %2688 = vmatpush.msra.mxu0 %v2392
    %2689 = vmatpush.msra.mxu0 %v2384
    %2690 = vmatpush.msra.mxu0 %v2376
    %2691 = vmatpush.msra.mxu0 %v2368
    %2692 = vmatpush.msra.mxu0 %v2360
    %2693 = vmatpush.msra.mxu0 %v2352
    %2694 = vmatpush.msra.mxu0 %v2344
    %2695 = vmatpush.msra.mxu0 %v2336
    %2696 = vmatpush.msra.mxu0 %v2328
    %2697 = vmatpush.msra.mxu0 %v2320
    %2698 = vmatpush.msra.mxu0 %v2312
    %2699 = vmatpush.msra.mxu0 %v2304
    %2700 = vmatpush.msra.mxu0 %v2296
    %2701 = vmatpush.msra.mxu0 %v2288
    %2702 = vmatpush.msra.mxu0 %v2280
    %2703 = vmatpush.msra.mxu0 %v2272
    %2704 = vmatmul.f32.gmra.mxu0 0.0
    %v2705 = vpop.f32.mrf.mxu0
    %v2706 = vadd.f32 %v2686, %v2705
    %2707 = vdwg.mxu0
    %2708 = vmatpush.msra.mxu0 0.0
    %2709 = vmatpush.msra.mxu0 0.0
    %2710 = vmatpush.msra.mxu0 0.0
    %2711 = vmatpush.msra.mxu0 0.0
    %2712 = vmatpush.msra.mxu0 0.0
    %2713 = vmatpush.msra.mxu0 0.0
    %2714 = vmatpush.msra.mxu0 0.0
    %2715 = vmatpush.msra.mxu0 0.0
    %2716 = vmatpush.msra.mxu0 %v2456
    %2717 = vmatpush.msra.mxu0 %v2448
    %2718 = vmatpush.msra.mxu0 %v2440
    %2719 = vmatpush.msra.mxu0 %v2432
    %2720 = vmatpush.msra.mxu0 %v2424
    %2721 = vmatpush.msra.mxu0 %v2416
    %2722 = vmatpush.msra.mxu0 %v2408
    %2723 = vmatpush.msra.mxu0 %v2400
    %2724 = vmatmul.f32.gmra.mxu0 %v2486
    %v2725 = vpop.f32.mrf.mxu0
    %v2726 = vadd.f32 %v2706, %v2725
    %2727 = vdwg.mxu0
    %2728 = vmatpush.msra.mxu0 %v2265
    %2729 = vmatpush.msra.mxu0 %v2257
    %2730 = vmatpush.msra.mxu0 %v2249
    %2731 = vmatpush.msra.mxu0 %v2241
    %2732 = vmatpush.msra.mxu0 %v2233
    %2733 = vmatpush.msra.mxu0 %v2225
    %2734 = vmatpush.msra.mxu0 %v2217
    %2735 = vmatpush.msra.mxu0 %v2209
    %2736 = vmatpush.msra.mxu0 %v2201
    %2737 = vmatpush.msra.mxu0 %v2193
    %2738 = vmatpush.msra.mxu0 %v2185
    %2739 = vmatpush.msra.mxu0 %v2177
    %2740 = vmatpush.msra.mxu0 %v2169
    %2741 = vmatpush.msra.mxu0 %v2161
    %2742 = vmatpush.msra.mxu0 %v2153
    %2743 = vmatpush.msra.mxu0 %v2145
    %2744 = vmatmul.f32.gmra.mxu0 0.0
    %v2745 = vpop.f32.mrf.mxu0
    %v2746 = vadd.f32 %v2481, %v2745
    %2747 = vdwg.mxu0
    %2748 = vmatpush.msra.mxu0 %v2393
    %2749 = vmatpush.msra.mxu0 %v2385
    %2750 = vmatpush.msra.mxu0 %v2377
    %2751 = vmatpush.msra.mxu0 %v2369
    %2752 = vmatpush.msra.mxu0 %v2361
    %2753 = vmatpush.msra.mxu0 %v2353
    %2754 = vmatpush.msra.mxu0 %v2345
    %2755 = vmatpush.msra.mxu0 %v2337
    %2756 = vmatpush.msra.mxu0 %v2329
    %2757 = vmatpush.msra.mxu0 %v2321
    %2758 = vmatpush.msra.mxu0 %v2313
    %2759 = vmatpush.msra.mxu0 %v2305
    %2760 = vmatpush.msra.mxu0 %v2297
    %2761 = vmatpush.msra.mxu0 %v2289
    %2762 = vmatpush.msra.mxu0 %v2281
    %2763 = vmatpush.msra.mxu0 %v2273
    %2764 = vmatmul.f32.gmra.mxu0 0.0
    %v2765 = vpop.f32.mrf.mxu0
    %v2766 = vadd.f32 %v2746, %v2765
    %2767 = vdwg.mxu0
    %2768 = vmatpush.msra.mxu0 0.0
    %2769 = vmatpush.msra.mxu0 0.0
    %2770 = vmatpush.msra.mxu0 0.0
    %2771 = vmatpush.msra.mxu0 0.0
    %2772 = vmatpush.msra.mxu0 0.0
    %2773 = vmatpush.msra.mxu0 0.0
    %2774 = vmatpush.msra.mxu0 0.0
    %2775 = vmatpush.msra.mxu0 0.0
    %2776 = vmatpush.msra.mxu0 %v2457
    %2777 = vmatpush.msra.mxu0 %v2449
    %2778 = vmatpush.msra.mxu0 %v2441
    %2779 = vmatpush.msra.mxu0 %v2433
    %2780 = vmatpush.msra.mxu0 %v2425
    %2781 = vmatpush.msra.mxu0 %v2417
    %2782 = vmatpush.msra.mxu0 %v2409
    %2783 = vmatpush.msra.mxu0 %v2401
    %2784 = vmatmul.f32.gmra.mxu0 %v2486
    %v2785 = vpop.f32.mrf.mxu0
    %v2786 = vadd.f32 %v2766, %v2785
    %2787 = vdwg.mxu0
    %2788 = vmatpush.msra.mxu0 %v2266
    %2789 = vmatpush.msra.mxu0 %v2258
    %2790 = vmatpush.msra.mxu0 %v2250
    %2791 = vmatpush.msra.mxu0 %v2242
    %2792 = vmatpush.msra.mxu0 %v2234
    %2793 = vmatpush.msra.mxu0 %v2226
    %2794 = vmatpush.msra.mxu0 %v2218
    %2795 = vmatpush.msra.mxu0 %v2210
    %2796 = vmatpush.msra.mxu0 %v2202
    %2797 = vmatpush.msra.mxu0 %v2194
    %2798 = vmatpush.msra.mxu0 %v2186
    %2799 = vmatpush.msra.mxu0 %v2178
    %2800 = vmatpush.msra.mxu0 %v2170
    %2801 = vmatpush.msra.mxu0 %v2162
    %2802 = vmatpush.msra.mxu0 %v2154
    %2803 = vmatpush.msra.mxu0 %v2146
    %2804 = vmatmul.f32.gmra.mxu0 0.0
    %v2805 = vpop.f32.mrf.mxu0
    %v2806 = vadd.f32 %v2482, %v2805
    %2807 = vdwg.mxu0
    %2808 = vmatpush.msra.mxu0 %v2394
    %2809 = vmatpush.msra.mxu0 %v2386
    %2810 = vmatpush.msra.mxu0 %v2378
    %2811 = vmatpush.msra.mxu0 %v2370
    %2812 = vmatpush.msra.mxu0 %v2362
    %2813 = vmatpush.msra.mxu0 %v2354
    %2814 = vmatpush.msra.mxu0 %v2346
    %2815 = vmatpush.msra.mxu0 %v2338
    %2816 = vmatpush.msra.mxu0 %v2330
    %2817 = vmatpush.msra.mxu0 %v2322
    %2818 = vmatpush.msra.mxu0 %v2314
    %2819 = vmatpush.msra.mxu0 %v2306
    %2820 = vmatpush.msra.mxu0 %v2298
    %2821 = vmatpush.msra.mxu0 %v2290
    %2822 = vmatpush.msra.mxu0 %v2282
    %2823 = vmatpush.msra.mxu0 %v2274
    %2824 = vmatmul.f32.gmra.mxu0 0.0
    %v2825 = vpop.f32.mrf.mxu0
    %v2826 = vadd.f32 %v2806, %v2825
    %2827 = vdwg.mxu0
    %2828 = vmatpush.msra.mxu0 0.0
    %2829 = vmatpush.msra.mxu0 0.0
    %2830 = vmatpush.msra.mxu0 0.0
    %2831 = vmatpush.msra.mxu0 0.0
    %2832 = vmatpush.msra.mxu0 0.0
    %2833 = vmatpush.msra.mxu0 0.0
    %2834 = vmatpush.msra.mxu0 0.0
    %2835 = vmatpush.msra.mxu0 0.0
    %2836 = vmatpush.msra.mxu0 %v2458
    %2837 = vmatpush.msra.mxu0 %v2450
    %2838 = vmatpush.msra.mxu0 %v2442
    %2839 = vmatpush.msra.mxu0 %v2434
    %2840 = vmatpush.msra.mxu0 %v2426
    %2841 = vmatpush.msra.mxu0 %v2418
    %2842 = vmatpush.msra.mxu0 %v2410
    %2843 = vmatpush.msra.mxu0 %v2402
    %2844 = vmatmul.f32.gmra.mxu0 %v2486
    %v2845 = vpop.f32.mrf.mxu0
    %v2846 = vadd.f32 %v2826, %v2845
    %2847 = vdwg.mxu0
    %2848 = vmatpush.msra.mxu0 %v2267
    %2849 = vmatpush.msra.mxu0 %v2259
    %2850 = vmatpush.msra.mxu0 %v2251
    %2851 = vmatpush.msra.mxu0 %v2243
    %2852 = vmatpush.msra.mxu0 %v2235
    %2853 = vmatpush.msra.mxu0 %v2227
    %2854 = vmatpush.msra.mxu0 %v2219
    %2855 = vmatpush.msra.mxu0 %v2211
    %2856 = vmatpush.msra.mxu0 %v2203
    %2857 = vmatpush.msra.mxu0 %v2195
    %2858 = vmatpush.msra.mxu0 %v2187
    %2859 = vmatpush.msra.mxu0 %v2179
    %2860 = vmatpush.msra.mxu0 %v2171
    %2861 = vmatpush.msra.mxu0 %v2163
    %2862 = vmatpush.msra.mxu0 %v2155
    %2863 = vmatpush.msra.mxu0 %v2147
    %2864 = vmatmul.f32.gmra.mxu0 0.0
    %v2865 = vpop.f32.mrf.mxu0
    %v2866 = vadd.f32 %v2483, %v2865
    %2867 = vdwg.mxu0
    %2868 = vmatpush.msra.mxu0 %v2395
    %2869 = vmatpush.msra.mxu0 %v2387
    %2870 = vmatpush.msra.mxu0 %v2379
    %2871 = vmatpush.msra.mxu0 %v2371
    %2872 = vmatpush.msra.mxu0 %v2363
    %2873 = vmatpush.msra.mxu0 %v2355
    %2874 = vmatpush.msra.mxu0 %v2347
    %2875 = vmatpush.msra.mxu0 %v2339
    %2876 = vmatpush.msra.mxu0 %v2331
    %2877 = vmatpush.msra.mxu0 %v2323
    %2878 = vmatpush.msra.mxu0 %v2315
    %2879 = vmatpush.msra.mxu0 %v2307
    %2880 = vmatpush.msra.mxu0 %v2299
    %2881 = vmatpush.msra.mxu0 %v2291
    %2882 = vmatpush.msra.mxu0 %v2283
    %2883 = vmatpush.msra.mxu0 %v2275
    %2884 = vmatmul.f32.gmra.mxu0 0.0
    %v2885 = vpop.f32.mrf.mxu0
    %v2886 = vadd.f32 %v2866, %v2885
    %2887 = vdwg.mxu0
    %2888 = vmatpush.msra.mxu0 0.0
    %2889 = vmatpush.msra.mxu0 0.0
    %2890 = vmatpush.msra.mxu0 0.0
    %2891 = vmatpush.msra.mxu0 0.0
    %2892 = vmatpush.msra.mxu0 0.0
    %2893 = vmatpush.msra.mxu0 0.0
    %2894 = vmatpush.msra.mxu0 0.0
    %2895 = vmatpush.msra.mxu0 0.0
    %2896 = vmatpush.msra.mxu0 %v2459
    %2897 = vmatpush.msra.mxu0 %v2451
    %2898 = vmatpush.msra.mxu0 %v2443
    %2899 = vmatpush.msra.mxu0 %v2435
    %2900 = vmatpush.msra.mxu0 %v2427
    %2901 = vmatpush.msra.mxu0 %v2419
    %2902 = vmatpush.msra.mxu0 %v2411
    %2903 = vmatpush.msra.mxu0 %v2403
    %2904 = vmatmul.f32.gmra.mxu0 %v2486
    %v2905 = vpop.f32.mrf.mxu0
    %v2906 = vadd.f32 %v2886, %v2905
    %2907 = vdwg.mxu0
    %2908 = vmatpush.msra.mxu0 %v2268
    %2909 = vmatpush.msra.mxu0 %v2260
    %2910 = vmatpush.msra.mxu0 %v2252
    %2911 = vmatpush.msra.mxu0 %v2244
    %2912 = vmatpush.msra.mxu0 %v2236
    %2913 = vmatpush.msra.mxu0 %v2228
    %2914 = vmatpush.msra.mxu0 %v2220
    %2915 = vmatpush.msra.mxu0 %v2212
    %2916 = vmatpush.msra.mxu0 %v2204
    %2917 = vmatpush.msra.mxu0 %v2196
    %2918 = vmatpush.msra.mxu0 %v2188
    %2919 = vmatpush.msra.mxu0 %v2180
    %2920 = vmatpush.msra.mxu0 %v2172
    %2921 = vmatpush.msra.mxu0 %v2164
    %2922 = vmatpush.msra.mxu0 %v2156
    %2923 = vmatpush.msra.mxu0 %v2148
    %2924 = vmatmul.f32.gmra.mxu0 0.0
    %v2925 = vpop.f32.mrf.mxu0
    %v2926 = vadd.f32 %v2484, %v2925
    %2927 = vdwg.mxu0
    %2928 = vmatpush.msra.mxu0 %v2396
    %2929 = vmatpush.msra.mxu0 %v2388
    %2930 = vmatpush.msra.mxu0 %v2380
    %2931 = vmatpush.msra.mxu0 %v2372
    %2932 = vmatpush.msra.mxu0 %v2364
    %2933 = vmatpush.msra.mxu0 %v2356
    %2934 = vmatpush.msra.mxu0 %v2348
    %2935 = vmatpush.msra.mxu0 %v2340
    %2936 = vmatpush.msra.mxu0 %v2332
    %2937 = vmatpush.msra.mxu0 %v2324
    %2938 = vmatpush.msra.mxu0 %v2316
    %2939 = vmatpush.msra.mxu0 %v2308
    %2940 = vmatpush.msra.mxu0 %v2300
    %2941 = vmatpush.msra.mxu0 %v2292
    %2942 = vmatpush.msra.mxu0 %v2284
    %2943 = vmatpush.msra.mxu0 %v2276
    %2944 = vmatmul.f32.gmra.mxu0 0.0
    %v2945 = vpop.f32.mrf.mxu0
    %v2946 = vadd.f32 %v2926, %v2945
    %2947 = vdwg.mxu0
    %2948 = vmatpush.msra.mxu0 0.0
    %2949 = vmatpush.msra.mxu0 0.0
    %2950 = vmatpush.msra.mxu0 0.0
    %2951 = vmatpush.msra.mxu0 0.0
    %2952 = vmatpush.msra.mxu0 0.0
    %2953 = vmatpush.msra.mxu0 0.0
    %2954 = vmatpush.msra.mxu0 0.0
    %2955 = vmatpush.msra.mxu0 0.0
    %2956 = vmatpush.msra.mxu0 %v2460
    %2957 = vmatpush.msra.mxu0 %v2452
    %2958 = vmatpush.msra.mxu0 %v2444
    %2959 = vmatpush.msra.mxu0 %v2436
    %2960 = vmatpush.msra.mxu0 %v2428
    %2961 = vmatpush.msra.mxu0 %v2420
    %2962 = vmatpush.msra.mxu0 %v2412
    %2963 = vmatpush.msra.mxu0 %v2404
    %2964 = vmatmul.f32.gmra.mxu0 %v2486
    %v2965 = vpop.f32.mrf.mxu0
    %v2966 = vadd.f32 %v2946, %v2965
    %2967 = vdwg.mxu0
    %v2971 = vrot.slane %v2546, 1
    %v2972 = vrot.slane %v2606, 1
    %v2973 = vrot.slane %v2666, 1
    %v2980 = vadd.f32 %v1975, %v2546
    %v2981 = vadd.f32 %v1998, %v2606
    %v2982 = vadd.f32 %v2021, %v2666
    %v2983 = vadd.f32 %v1978, %v2971
    %v2984 = vadd.f32 %v2001, %v2972
    %v2985 = vadd.f32 %v2024, %v2973
    %v2986 = vsub.f32 0.0, %v2980
    %v2987 = vsub.f32 0.0, %v2981
    %v2988 = vsub.f32 0.0, %v2982
    %v2989 = vsub.f32 0.0, %v2983
    %v2990 = vsub.f32 0.0, %v2984
    %v2991 = vsub.f32 0.0, %v2985
    %v2992 = vmul.f32 %v2986, 1.442695
    %v2993 = vpow.pop %v2992
    %v2994 = vmul.f32 %v2987, 1.442695
    %v2995 = vpow.pop %v2994
    %v2996 = vmul.f32 %v2988, 1.442695
    %v2997 = vpow.pop %v2996
    %v2998 = vmul.f32 %v2989, 1.442695
    %v2999 = vpow.pop %v2998
    %v3000 = vmul.f32 %v2990, 1.442695
    %v3001 = vpow.pop %v3000
    %v3002 = vmul.f32 %v2991, 1.442695
    %v3003 = vpow.pop %v3002
    %v3004 = vadd.f32 %v2993, 1.0
    %v3005 = vadd.f32 %v2995, 1.0
    %v3006 = vadd.f32 %v2997, 1.0
    %v3007 = vadd.f32 %v2999, 1.0
    %v3008 = vadd.f32 %v3001, 1.0
    %v3009 = vadd.f32 %v3003, 1.0
    %v3010 = vrcp.pop %v3004
    %v3011 = vmul.f32 %v3004, %v3010
    %v3012 = vsub.f32 1.0, %v3011
    %v3013 = vmul.f32 %v3010, %v3012
    %v3014 = vadd.f32 %v3010, %v3013
    %vm3015 = vweird.f32 %v3004
    %vm3016 = vweird.f32 %v3010
    %vm3017 = vmor %vm3015, %vm3016
    %v3018 = vsel %vm3017, %v3010, %v3014
    %v3019 = vand.u32 2147483647, %v3004
    %vm3020 = vcmp.eq.f32.partialorder %v3019, 8.507059e+37
    %v3021 = vand.u32 %v3004, 2147483648
    %v3022 = vor.u32 1.1754944e-38, %v3021
    %v3023 = vsel %vm3020, %v3022, %v3018
    %v3024 = vmul.f32 1.0, %v3023
    %v3025 = vrcp.pop %v3005
    %v3026 = vmul.f32 %v3005, %v3025
    %v3027 = vsub.f32 1.0, %v3026
    %v3028 = vmul.f32 %v3025, %v3027
    %v3029 = vadd.f32 %v3025, %v3028
    %vm3030 = vweird.f32 %v3005
    %vm3031 = vweird.f32 %v3025
    %vm3032 = vmor %vm3030, %vm3031
    %v3033 = vsel %vm3032, %v3025, %v3029
    %v3034 = vand.u32 2147483647, %v3005
    %vm3035 = vcmp.eq.f32.partialorder %v3034, 8.507059e+37
    %v3036 = vand.u32 %v3005, 2147483648
    %v3037 = vor.u32 1.1754944e-38, %v3036
    %v3038 = vsel %vm3035, %v3037, %v3033
    %v3039 = vmul.f32 1.0, %v3038
    %v3040 = vrcp.pop %v3006
    %v3041 = vmul.f32 %v3006, %v3040
    %v3042 = vsub.f32 1.0, %v3041
    %v3043 = vmul.f32 %v3040, %v3042
    %v3044 = vadd.f32 %v3040, %v3043
    %vm3045 = vweird.f32 %v3006
    %vm3046 = vweird.f32 %v3040
    %vm3047 = vmor %vm3045, %vm3046
    %v3048 = vsel %vm3047, %v3040, %v3044
    %v3049 = vand.u32 2147483647, %v3006
    %vm3050 = vcmp.eq.f32.partialorder %v3049, 8.507059e+37
    %v3051 = vand.u32 %v3006, 2147483648
    %v3052 = vor.u32 1.1754944e-38, %v3051
    %v3053 = vsel %vm3050, %v3052, %v3048
    %v3054 = vmul.f32 1.0, %v3053
    %v3055 = vrcp.pop %v3007
    %v3056 = vmul.f32 %v3007, %v3055
    %v3057 = vsub.f32 1.0, %v3056
    %v3058 = vmul.f32 %v3055, %v3057
    %v3059 = vadd.f32 %v3055, %v3058
    %vm3060 = vweird.f32 %v3007
    %vm3061 = vweird.f32 %v3055
    %vm3062 = vmor %vm3060, %vm3061
    %v3063 = vsel %vm3062, %v3055, %v3059
    %v3064 = vand.u32 2147483647, %v3007
    %vm3065 = vcmp.eq.f32.partialorder %v3064, 8.507059e+37
    %v3066 = vand.u32 %v3007, 2147483648
    %v3067 = vor.u32 1.1754944e-38, %v3066
    %v3068 = vsel %vm3065, %v3067, %v3063
    %v3069 = vmul.f32 1.0, %v3068
    %v3070 = vrcp.pop %v3008
    %v3071 = vmul.f32 %v3008, %v3070
    %v3072 = vsub.f32 1.0, %v3071
    %v3073 = vmul.f32 %v3070, %v3072
    %v3074 = vadd.f32 %v3070, %v3073
    %vm3075 = vweird.f32 %v3008
    %vm3076 = vweird.f32 %v3070
    %vm3077 = vmor %vm3075, %vm3076
    %v3078 = vsel %vm3077, %v3070, %v3074
    %v3079 = vand.u32 2147483647, %v3008
    %vm3080 = vcmp.eq.f32.partialorder %v3079, 8.507059e+37
    %v3081 = vand.u32 %v3008, 2147483648
    %v3082 = vor.u32 1.1754944e-38, %v3081
    %v3083 = vsel %vm3080, %v3082, %v3078
    %v3084 = vmul.f32 1.0, %v3083
    %v3085 = vrcp.pop %v3009
    %v3086 = vmul.f32 %v3009, %v3085
    %v3087 = vsub.f32 1.0, %v3086
    %v3088 = vmul.f32 %v3085, %v3087
    %v3089 = vadd.f32 %v3085, %v3088
    %vm3090 = vweird.f32 %v3009
    %vm3091 = vweird.f32 %v3085
    %vm3092 = vmor %vm3090, %vm3091
    %v3093 = vsel %vm3092, %v3085, %v3089
    %v3094 = vand.u32 2147483647, %v3009
    %vm3095 = vcmp.eq.f32.partialorder %v3094, 8.507059e+37
    %v3096 = vand.u32 %v3009, 2147483648
    %v3097 = vor.u32 1.1754944e-38, %v3096
    %v3098 = vsel %vm3095, %v3097, %v3093
    %v3099 = vmul.f32 1.0, %v3098
    %v3102 = vrot.slane %v2726, 1
    %v3103 = vrot.slane %v2786, 1
    %v3108 = vadd.f32 %v2044, %v2726
    %v3109 = vadd.f32 %v2067, %v2786
    %v3110 = vadd.f32 %v2047, %v3102
    %v3111 = vadd.f32 %v2070, %v3103
    %v3112 = vsub.f32 0.0, %v3108
    %v3113 = vsub.f32 0.0, %v3109
    %v3114 = vsub.f32 0.0, %v3110
    %v3115 = vsub.f32 0.0, %v3111
    %v3116 = vmul.f32 %v3112, 1.442695
    %v3117 = vpow.pop %v3116
    %v3118 = vmul.f32 %v3113, 1.442695
    %v3119 = vpow.pop %v3118
    %v3120 = vmul.f32 %v3114, 1.442695
    %v3121 = vpow.pop %v3120
    %v3122 = vmul.f32 %v3115, 1.442695
    %v3123 = vpow.pop %v3122
    %v3124 = vadd.f32 %v3117, 1.0
    %v3125 = vadd.f32 %v3119, 1.0
    %v3126 = vadd.f32 %v3121, 1.0
    %v3127 = vadd.f32 %v3123, 1.0
    %v3128 = vrcp.pop %v3124
    %v3129 = vmul.f32 %v3124, %v3128
    %v3130 = vsub.f32 1.0, %v3129
    %v3131 = vmul.f32 %v3128, %v3130
    %v3132 = vadd.f32 %v3128, %v3131
    %vm3133 = vweird.f32 %v3124
    %vm3134 = vweird.f32 %v3128
    %vm3135 = vmor %vm3133, %vm3134
    %v3136 = vsel %vm3135, %v3128, %v3132
    %v3137 = vand.u32 2147483647, %v3124
    %vm3138 = vcmp.eq.f32.partialorder %v3137, 8.507059e+37
    %v3139 = vand.u32 %v3124, 2147483648
    %v3140 = vor.u32 1.1754944e-38, %v3139
    %v3141 = vsel %vm3138, %v3140, %v3136
    %v3142 = vmul.f32 1.0, %v3141
    %v3143 = vrcp.pop %v3125
    %v3144 = vmul.f32 %v3125, %v3143
    %v3145 = vsub.f32 1.0, %v3144
    %v3146 = vmul.f32 %v3143, %v3145
    %v3147 = vadd.f32 %v3143, %v3146
    %vm3148 = vweird.f32 %v3125
    %vm3149 = vweird.f32 %v3143
    %vm3150 = vmor %vm3148, %vm3149
    %v3151 = vsel %vm3150, %v3143, %v3147
    %v3152 = vand.u32 2147483647, %v3125
    %vm3153 = vcmp.eq.f32.partialorder %v3152, 8.507059e+37
    %v3154 = vand.u32 %v3125, 2147483648
    %v3155 = vor.u32 1.1754944e-38, %v3154
    %v3156 = vsel %vm3153, %v3155, %v3151
    %v3157 = vmul.f32 1.0, %v3156
    %v3158 = vrcp.pop %v3126
    %v3159 = vmul.f32 %v3126, %v3158
    %v3160 = vsub.f32 1.0, %v3159
    %v3161 = vmul.f32 %v3158, %v3160
    %v3162 = vadd.f32 %v3158, %v3161
    %vm3163 = vweird.f32 %v3126
    %vm3164 = vweird.f32 %v3158
    %vm3165 = vmor %vm3163, %vm3164
    %v3166 = vsel %vm3165, %v3158, %v3162
    %v3167 = vand.u32 2147483647, %v3126
    %vm3168 = vcmp.eq.f32.partialorder %v3167, 8.507059e+37
    %v3169 = vand.u32 %v3126, 2147483648
    %v3170 = vor.u32 1.1754944e-38, %v3169
    %v3171 = vsel %vm3168, %v3170, %v3166
    %v3172 = vmul.f32 1.0, %v3171
    %v3173 = vrcp.pop %v3127
    %v3174 = vmul.f32 %v3127, %v3173
    %v3175 = vsub.f32 1.0, %v3174
    %v3176 = vmul.f32 %v3173, %v3175
    %v3177 = vadd.f32 %v3173, %v3176
    %vm3178 = vweird.f32 %v3127
    %vm3179 = vweird.f32 %v3173
    %vm3180 = vmor %vm3178, %vm3179
    %v3181 = vsel %vm3180, %v3173, %v3177
    %v3182 = vand.u32 2147483647, %v3127
    %vm3183 = vcmp.eq.f32.partialorder %v3182, 8.507059e+37
    %v3184 = vand.u32 %v3127, 2147483648
    %v3185 = vor.u32 1.1754944e-38, %v3184
    %v3186 = vsel %vm3183, %v3185, %v3181
    %v3187 = vmul.f32 1.0, %v3186
    %v3191 = vrot.slane %v2846, 1
    %v3192 = vrot.slane %v2906, 1
    %v3193 = vrot.slane %v2966, 1
    %v3200 = vmul.f32 %v3024, %v2846
    %v3201 = vmul.f32 %v3039, %v2906
    %v3202 = vmul.f32 %v3054, %v2966
    %v3203 = vmul.f32 %v3069, %v3191
    %v3204 = vmul.f32 %v3084, %v3192
    %v3205 = vmul.f32 %v3099, %v3193
    %v3206 = vadd.f32 %v2090, %v3200
    %v3207 = vadd.f32 %v2113, %v3201
    %v3208 = vadd.f32 %v2136, %v3202
    %v3209 = vadd.f32 %v2093, %v3203
    %v3210 = vadd.f32 %v2116, %v3204
    %v3211 = vadd.f32 %v2139, %v3205
    %v3212 = vtanh.pop %v3206
    %v3213 = vtanh.pop %v3207
    %v3214 = vtanh.pop %v3208
    %v3215 = vtanh.pop %v3209
    %v3216 = vtanh.pop %v3210
    %v3217 = vtanh.pop %v3211
    %v3218 = vsub.f32 1.0, %v3054
    %v3219 = vsub.f32 1.0, %v3142
    %v3220 = vsub.f32 1.0, %v3157
    %v3221 = vsub.f32 1.0, %v3099
    %v3222 = vsub.f32 1.0, %v3172
    %v3223 = vsub.f32 1.0, %v3187
    %3230 = vrot.lane.b32.xlu0 %v3212, 64
    %v3231 = vpop.permute.xlu0 %3230
    %3232 = vrot.lane.b32.xlu0 %v3213, 64
    %v3233 = vpop.permute.xlu0 %3232
    %3234 = vrot.lane.b32.xlu0 %v3214, 64
    %v3235 = vpop.permute.xlu0 %3234
    %3236 = vrot.lane.b32.xlu0 %v3215, 64
    %v3237 = vpop.permute.xlu0 %3236
    %3238 = vrot.lane.b32.xlu0 %v3216, 64
    %v3239 = vpop.permute.xlu0 %3238
    %3240 = vrot.lane.b32.xlu0 %v3217, 64
    %v3241 = vpop.permute.xlu0 %3240
    %v3242 = vsel %vm990, %v3231, %v3233
    %v3243 = vsel %vm990, %v3233, %v3235
    %v3244 = vsel %vm990, %v3237, %v3239
    %v3245 = vsel %vm990, %v3239, %v3241
    %v3252 = vmul.f32 %v3218, %v3231
    %v3253 = vmul.f32 %v3219, %v3242
    %v3254 = vmul.f32 %v3220, %v3243
    %v3255 = vmul.f32 %v3221, %v3237
    %v3256 = vmul.f32 %v3222, %v3244
    %v3257 = vmul.f32 %v3223, %v3245
    %v3258 = vmul.f32 %v3054, 0.0
    %v3259 = vmul.f32 %v3142, 0.0
    %v3260 = vmul.f32 %v3157, 0.0
    %v3261 = vmul.f32 %v3099, 0.0
    %v3262 = vmul.f32 %v3172, 0.0
    %v3263 = vmul.f32 %v3187, 0.0
    %v3264 = vadd.f32 %v3252, %v3258
    %v3265 = vadd.f32 %v3253, %v3259
    %v3266 = vadd.f32 %v3254, %v3260
    %v3267 = vadd.f32 %v3255, %v3261
    %v3268 = vadd.f32 %v3256, %v3262
    %v3269 = vadd.f32 %v3257, %v3263
    %v3276 = vrot.slane %v3267, 7
    %vm3277 = vcmask 1041409
    %v3278 = vsel %vm3277, %v3276, %v3264
    %v3279 = vrot.slane %v3268, 7
    %v3280 = vsel %vm3277, %v3279, %v3265
    %v3281 = vrot.slane %v3269, 7
    %v3282 = vsel %vm3277, %v3281, %v3266
    %3283 = vrot.lane.b32.xlu0 %v3278, 64
    %v3284 = vpop.permute.xlu0 %3283
    %3285 = vrot.lane.b32.xlu0 %v3280, 64
    %v3286 = vpop.permute.xlu0 %3285
    %3287 = vrot.lane.b32.xlu0 %v3282, 64
    %v3288 = vpop.permute.xlu0 %3287
    %v3289 = vsel %vm990, %v3284, %v3286
    %v3290 = vsel %vm990, %v3286, %v3288
    %v3293 = vsel %vm990, %v3288, 0
    %3295 = vmatpush.msra.mxu0 %v2261
    %3296 = vmatpush.msra.mxu0 %v2253
    %3297 = vmatpush.msra.mxu0 %v2245
    %3298 = vmatpush.msra.mxu0 %v2237
    %3299 = vmatpush.msra.mxu0 %v2229
    %3300 = vmatpush.msra.mxu0 %v2221
    %3301 = vmatpush.msra.mxu0 %v2213
    %3302 = vmatpush.msra.mxu0 %v2205
    %3303 = vmatpush.msra.mxu0 %v2197
    %3304 = vmatpush.msra.mxu0 %v2189
    %3305 = vmatpush.msra.mxu0 %v2181
    %3306 = vmatpush.msra.mxu0 %v2173
    %3307 = vmatpush.msra.mxu0 %v2165
    %3308 = vmatpush.msra.mxu0 %v2157
    %3309 = vmatpush.msra.mxu0 %v2149
    %3310 = vmatpush.msra.mxu0 %v2141
    %3311 = vmatmul.f32.gmra.mxu0 %v3289
    %v3312 = vpop.f32.mrf.mxu0
    %v3313 = vadd.f32 %v2477, %v3312
    %3314 = vdwg.mxu0
    %3315 = vmatpush.msra.mxu0 %v2389
    %3316 = vmatpush.msra.mxu0 %v2381
    %3317 = vmatpush.msra.mxu0 %v2373
    %3318 = vmatpush.msra.mxu0 %v2365
    %3319 = vmatpush.msra.mxu0 %v2357
    %3320 = vmatpush.msra.mxu0 %v2349
    %3321 = vmatpush.msra.mxu0 %v2341
    %3322 = vmatpush.msra.mxu0 %v2333
    %3323 = vmatpush.msra.mxu0 %v2325
    %3324 = vmatpush.msra.mxu0 %v2317
    %3325 = vmatpush.msra.mxu0 %v2309
    %3326 = vmatpush.msra.mxu0 %v2301
    %3327 = vmatpush.msra.mxu0 %v2293
    %3328 = vmatpush.msra.mxu0 %v2285
    %3329 = vmatpush.msra.mxu0 %v2277
    %3330 = vmatpush.msra.mxu0 %v2269
    %3331 = vmatmul.f32.gmra.mxu0 %v3290
    %v3332 = vpop.f32.mrf.mxu0
    %v3333 = vadd.f32 %v3313, %v3332
    %3334 = vdwg.mxu0
    %3335 = vmatpush.msra.mxu0 0.0
    %3336 = vmatpush.msra.mxu0 0.0
    %3337 = vmatpush.msra.mxu0 0.0
    %3338 = vmatpush.msra.mxu0 0.0
    %3339 = vmatpush.msra.mxu0 0.0
    %3340 = vmatpush.msra.mxu0 0.0
    %3341 = vmatpush.msra.mxu0 0.0
    %3342 = vmatpush.msra.mxu0 0.0
    %3343 = vmatpush.msra.mxu0 %v2453
    %3344 = vmatpush.msra.mxu0 %v2445
    %3345 = vmatpush.msra.mxu0 %v2437
    %3346 = vmatpush.msra.mxu0 %v2429
    %3347 = vmatpush.msra.mxu0 %v2421
    %3348 = vmatpush.msra.mxu0 %v2413
    %3349 = vmatpush.msra.mxu0 %v2405
    %3350 = vmatpush.msra.mxu0 %v2397
    %3351 = vmatmul.f32.gmra.mxu0 %v3293
    %v3352 = vpop.f32.mrf.mxu0
    %v3353 = vadd.f32 %v3333, %v3352
    %3354 = vdwg.mxu0
    %3355 = vmatpush.msra.mxu0 %v2262
    %3356 = vmatpush.msra.mxu0 %v2254
    %3357 = vmatpush.msra.mxu0 %v2246
    %3358 = vmatpush.msra.mxu0 %v2238
    %3359 = vmatpush.msra.mxu0 %v2230
    %3360 = vmatpush.msra.mxu0 %v2222
    %3361 = vmatpush.msra.mxu0 %v2214
    %3362 = vmatpush.msra.mxu0 %v2206
    %3363 = vmatpush.msra.mxu0 %v2198
    %3364 = vmatpush.msra.mxu0 %v2190
    %3365 = vmatpush.msra.mxu0 %v2182
    %3366 = vmatpush.msra.mxu0 %v2174
    %3367 = vmatpush.msra.mxu0 %v2166
    %3368 = vmatpush.msra.mxu0 %v2158
    %3369 = vmatpush.msra.mxu0 %v2150
    %3370 = vmatpush.msra.mxu0 %v2142
    %3371 = vmatmul.f32.gmra.mxu0 %v3289
    %v3372 = vpop.f32.mrf.mxu0
    %v3373 = vadd.f32 %v2478, %v3372
    %3374 = vdwg.mxu0
    %3375 = vmatpush.msra.mxu0 %v2390
    %3376 = vmatpush.msra.mxu0 %v2382
    %3377 = vmatpush.msra.mxu0 %v2374
    %3378 = vmatpush.msra.mxu0 %v2366
    %3379 = vmatpush.msra.mxu0 %v2358
    %3380 = vmatpush.msra.mxu0 %v2350
    %3381 = vmatpush.msra.mxu0 %v2342
    %3382 = vmatpush.msra.mxu0 %v2334
    %3383 = vmatpush.msra.mxu0 %v2326
    %3384 = vmatpush.msra.mxu0 %v2318
    %3385 = vmatpush.msra.mxu0 %v2310
    %3386 = vmatpush.msra.mxu0 %v2302
    %3387 = vmatpush.msra.mxu0 %v2294
    %3388 = vmatpush.msra.mxu0 %v2286
    %3389 = vmatpush.msra.mxu0 %v2278
    %3390 = vmatpush.msra.mxu0 %v2270
    %3391 = vmatmul.f32.gmra.mxu0 %v3290
    %v3392 = vpop.f32.mrf.mxu0
    %v3393 = vadd.f32 %v3373, %v3392
    %3394 = vdwg.mxu0
    %3395 = vmatpush.msra.mxu0 0.0
    %3396 = vmatpush.msra.mxu0 0.0
    %3397 = vmatpush.msra.mxu0 0.0
    %3398 = vmatpush.msra.mxu0 0.0
    %3399 = vmatpush.msra.mxu0 0.0
    %3400 = vmatpush.msra.mxu0 0.0
    %3401 = vmatpush.msra.mxu0 0.0
    %3402 = vmatpush.msra.mxu0 0.0
    %3403 = vmatpush.msra.mxu0 %v2454
    %3404 = vmatpush.msra.mxu0 %v2446
    %3405 = vmatpush.msra.mxu0 %v2438
    %3406 = vmatpush.msra.mxu0 %v2430
    %3407 = vmatpush.msra.mxu0 %v2422
    %3408 = vmatpush.msra.mxu0 %v2414
    %3409 = vmatpush.msra.mxu0 %v2406
    %3410 = vmatpush.msra.mxu0 %v2398
    %3411 = vmatmul.f32.gmra.mxu0 %v3293
    %v3412 = vpop.f32.mrf.mxu0
    %v3413 = vadd.f32 %v3393, %v3412
    %3414 = vdwg.mxu0
    %3415 = vmatpush.msra.mxu0 %v2263
    %3416 = vmatpush.msra.mxu0 %v2255
    %3417 = vmatpush.msra.mxu0 %v2247
    %3418 = vmatpush.msra.mxu0 %v2239
    %3419 = vmatpush.msra.mxu0 %v2231
    %3420 = vmatpush.msra.mxu0 %v2223
    %3421 = vmatpush.msra.mxu0 %v2215
    %3422 = vmatpush.msra.mxu0 %v2207
    %3423 = vmatpush.msra.mxu0 %v2199
    %3424 = vmatpush.msra.mxu0 %v2191
    %3425 = vmatpush.msra.mxu0 %v2183
    %3426 = vmatpush.msra.mxu0 %v2175
    %3427 = vmatpush.msra.mxu0 %v2167
    %3428 = vmatpush.msra.mxu0 %v2159
    %3429 = vmatpush.msra.mxu0 %v2151
    %3430 = vmatpush.msra.mxu0 %v2143
    %3431 = vmatmul.f32.gmra.mxu0 %v3289
    %v3432 = vpop.f32.mrf.mxu0
    %v3433 = vadd.f32 %v2479, %v3432
    %3434 = vdwg.mxu0
    %3435 = vmatpush.msra.mxu0 %v2391
    %3436 = vmatpush.msra.mxu0 %v2383
    %3437 = vmatpush.msra.mxu0 %v2375
    %3438 = vmatpush.msra.mxu0 %v2367
    %3439 = vmatpush.msra.mxu0 %v2359
    %3440 = vmatpush.msra.mxu0 %v2351
    %3441 = vmatpush.msra.mxu0 %v2343
    %3442 = vmatpush.msra.mxu0 %v2335
    %3443 = vmatpush.msra.mxu0 %v2327
    %3444 = vmatpush.msra.mxu0 %v2319
    %3445 = vmatpush.msra.mxu0 %v2311
    %3446 = vmatpush.msra.mxu0 %v2303
    %3447 = vmatpush.msra.mxu0 %v2295
    %3448 = vmatpush.msra.mxu0 %v2287
    %3449 = vmatpush.msra.mxu0 %v2279
    %3450 = vmatpush.msra.mxu0 %v2271
    %3451 = vmatmul.f32.gmra.mxu0 %v3290
    %v3452 = vpop.f32.mrf.mxu0
    %v3453 = vadd.f32 %v3433, %v3452
    %3454 = vdwg.mxu0
    %3455 = vmatpush.msra.mxu0 0.0
    %3456 = vmatpush.msra.mxu0 0.0
    %3457 = vmatpush.msra.mxu0 0.0
    %3458 = vmatpush.msra.mxu0 0.0
    %3459 = vmatpush.msra.mxu0 0.0
    %3460 = vmatpush.msra.mxu0 0.0
    %3461 = vmatpush.msra.mxu0 0.0
    %3462 = vmatpush.msra.mxu0 0.0
    %3463 = vmatpush.msra.mxu0 %v2455
    %3464 = vmatpush.msra.mxu0 %v2447
    %3465 = vmatpush.msra.mxu0 %v2439
    %3466 = vmatpush.msra.mxu0 %v2431
    %3467 = vmatpush.msra.mxu0 %v2423
    %3468 = vmatpush.msra.mxu0 %v2415
    %3469 = vmatpush.msra.mxu0 %v2407
    %3470 = vmatpush.msra.mxu0 %v2399
    %3471 = vmatmul.f32.gmra.mxu0 %v3293
    %v3472 = vpop.f32.mrf.mxu0
    %v3473 = vadd.f32 %v3453, %v3472
    %3474 = vdwg.mxu0
    %3475 = vmatpush.msra.mxu0 %v2264
    %3476 = vmatpush.msra.mxu0 %v2256
    %3477 = vmatpush.msra.mxu0 %v2248
    %3478 = vmatpush.msra.mxu0 %v2240
    %3479 = vmatpush.msra.mxu0 %v2232
    %3480 = vmatpush.msra.mxu0 %v2224
    %3481 = vmatpush.msra.mxu0 %v2216
    %3482 = vmatpush.msra.mxu0 %v2208
    %3483 = vmatpush.msra.mxu0 %v2200
    %3484 = vmatpush.msra.mxu0 %v2192
    %3485 = vmatpush.msra.mxu0 %v2184
    %3486 = vmatpush.msra.mxu0 %v2176
    %3487 = vmatpush.msra.mxu0 %v2168
    %3488 = vmatpush.msra.mxu0 %v2160
    %3489 = vmatpush.msra.mxu0 %v2152
    %3490 = vmatpush.msra.mxu0 %v2144
    %3491 = vmatmul.f32.gmra.mxu0 %v3289
    %v3492 = vpop.f32.mrf.mxu0
    %v3493 = vadd.f32 %v2480, %v3492
    %3494 = vdwg.mxu0
    %3495 = vmatpush.msra.mxu0 %v2392
    %3496 = vmatpush.msra.mxu0 %v2384
    %3497 = vmatpush.msra.mxu0 %v2376
    %3498 = vmatpush.msra.mxu0 %v2368
    %3499 = vmatpush.msra.mxu0 %v2360
    %3500 = vmatpush.msra.mxu0 %v2352
    %3501 = vmatpush.msra.mxu0 %v2344
    %3502 = vmatpush.msra.mxu0 %v2336
    %3503 = vmatpush.msra.mxu0 %v2328
    %3504 = vmatpush.msra.mxu0 %v2320
    %3505 = vmatpush.msra.mxu0 %v2312
    %3506 = vmatpush.msra.mxu0 %v2304
    %3507 = vmatpush.msra.mxu0 %v2296
    %3508 = vmatpush.msra.mxu0 %v2288
    %3509 = vmatpush.msra.mxu0 %v2280
    %3510 = vmatpush.msra.mxu0 %v2272
    %3511 = vmatmul.f32.gmra.mxu0 %v3290
    %v3512 = vpop.f32.mrf.mxu0
    %v3513 = vadd.f32 %v3493, %v3512
    %3514 = vdwg.mxu0
    %3515 = vmatpush.msra.mxu0 0.0
    %3516 = vmatpush.msra.mxu0 0.0
    %3517 = vmatpush.msra.mxu0 0.0
    %3518 = vmatpush.msra.mxu0 0.0
    %3519 = vmatpush.msra.mxu0 0.0
    %3520 = vmatpush.msra.mxu0 0.0
    %3521 = vmatpush.msra.mxu0 0.0
    %3522 = vmatpush.msra.mxu0 0.0
    %3523 = vmatpush.msra.mxu0 %v2456
    %3524 = vmatpush.msra.mxu0 %v2448
    %3525 = vmatpush.msra.mxu0 %v2440
    %3526 = vmatpush.msra.mxu0 %v2432
    %3527 = vmatpush.msra.mxu0 %v2424
    %3528 = vmatpush.msra.mxu0 %v2416
    %3529 = vmatpush.msra.mxu0 %v2408
    %3530 = vmatpush.msra.mxu0 %v2400
    %3531 = vmatmul.f32.gmra.mxu0 %v3293
    %v3532 = vpop.f32.mrf.mxu0
    %v3533 = vadd.f32 %v3513, %v3532
    %3534 = vdwg.mxu0
    %3535 = vmatpush.msra.mxu0 %v2265
    %3536 = vmatpush.msra.mxu0 %v2257
    %3537 = vmatpush.msra.mxu0 %v2249
    %3538 = vmatpush.msra.mxu0 %v2241
    %3539 = vmatpush.msra.mxu0 %v2233
    %3540 = vmatpush.msra.mxu0 %v2225
    %3541 = vmatpush.msra.mxu0 %v2217
    %3542 = vmatpush.msra.mxu0 %v2209
    %3543 = vmatpush.msra.mxu0 %v2201
    %3544 = vmatpush.msra.mxu0 %v2193
    %3545 = vmatpush.msra.mxu0 %v2185
    %3546 = vmatpush.msra.mxu0 %v2177
    %3547 = vmatpush.msra.mxu0 %v2169
    %3548 = vmatpush.msra.mxu0 %v2161
    %3549 = vmatpush.msra.mxu0 %v2153
    %3550 = vmatpush.msra.mxu0 %v2145
    %3551 = vmatmul.f32.gmra.mxu0 %v3289
    %v3552 = vpop.f32.mrf.mxu0
    %v3553 = vadd.f32 %v2481, %v3552
    %3554 = vdwg.mxu0
    %3555 = vmatpush.msra.mxu0 %v2393
    %3556 = vmatpush.msra.mxu0 %v2385
    %3557 = vmatpush.msra.mxu0 %v2377
    %3558 = vmatpush.msra.mxu0 %v2369
    %3559 = vmatpush.msra.mxu0 %v2361
    %3560 = vmatpush.msra.mxu0 %v2353
    %3561 = vmatpush.msra.mxu0 %v2345
    %3562 = vmatpush.msra.mxu0 %v2337
    %3563 = vmatpush.msra.mxu0 %v2329
    %3564 = vmatpush.msra.mxu0 %v2321
    %3565 = vmatpush.msra.mxu0 %v2313
    %3566 = vmatpush.msra.mxu0 %v2305
    %3567 = vmatpush.msra.mxu0 %v2297
    %3568 = vmatpush.msra.mxu0 %v2289
    %3569 = vmatpush.msra.mxu0 %v2281
    %3570 = vmatpush.msra.mxu0 %v2273
    %3571 = vmatmul.f32.gmra.mxu0 %v3290
    %v3572 = vpop.f32.mrf.mxu0
    %v3573 = vadd.f32 %v3553, %v3572
    %3574 = vdwg.mxu0
    %3575 = vmatpush.msra.mxu0 0.0
    %3576 = vmatpush.msra.mxu0 0.0
    %3577 = vmatpush.msra.mxu0 0.0
    %3578 = vmatpush.msra.mxu0 0.0
    %3579 = vmatpush.msra.mxu0 0.0
    %3580 = vmatpush.msra.mxu0 0.0
    %3581 = vmatpush.msra.mxu0 0.0
    %3582 = vmatpush.msra.mxu0 0.0
    %3583 = vmatpush.msra.mxu0 %v2457
    %3584 = vmatpush.msra.mxu0 %v2449
    %3585 = vmatpush.msra.mxu0 %v2441
    %3586 = vmatpush.msra.mxu0 %v2433
    %3587 = vmatpush.msra.mxu0 %v2425
    %3588 = vmatpush.msra.mxu0 %v2417
    %3589 = vmatpush.msra.mxu0 %v2409
    %3590 = vmatpush.msra.mxu0 %v2401
    %3591 = vmatmul.f32.gmra.mxu0 %v3293
    %v3592 = vpop.f32.mrf.mxu0
    %v3593 = vadd.f32 %v3573, %v3592
    %3594 = vdwg.mxu0
    %3595 = vmatpush.msra.mxu0 %v2266
    %3596 = vmatpush.msra.mxu0 %v2258
    %3597 = vmatpush.msra.mxu0 %v2250
    %3598 = vmatpush.msra.mxu0 %v2242
    %3599 = vmatpush.msra.mxu0 %v2234
    %3600 = vmatpush.msra.mxu0 %v2226
    %3601 = vmatpush.msra.mxu0 %v2218
    %3602 = vmatpush.msra.mxu0 %v2210
    %3603 = vmatpush.msra.mxu0 %v2202
    %3604 = vmatpush.msra.mxu0 %v2194
    %3605 = vmatpush.msra.mxu0 %v2186
    %3606 = vmatpush.msra.mxu0 %v2178
    %3607 = vmatpush.msra.mxu0 %v2170
    %3608 = vmatpush.msra.mxu0 %v2162
    %3609 = vmatpush.msra.mxu0 %v2154
    %3610 = vmatpush.msra.mxu0 %v2146
    %3611 = vmatmul.f32.gmra.mxu0 %v3289
    %v3612 = vpop.f32.mrf.mxu0
    %v3613 = vadd.f32 %v2482, %v3612
    %3614 = vdwg.mxu0
    %3615 = vmatpush.msra.mxu0 %v2394
    %3616 = vmatpush.msra.mxu0 %v2386
    %3617 = vmatpush.msra.mxu0 %v2378
    %3618 = vmatpush.msra.mxu0 %v2370
    %3619 = vmatpush.msra.mxu0 %v2362
    %3620 = vmatpush.msra.mxu0 %v2354
    %3621 = vmatpush.msra.mxu0 %v2346
    %3622 = vmatpush.msra.mxu0 %v2338
    %3623 = vmatpush.msra.mxu0 %v2330
    %3624 = vmatpush.msra.mxu0 %v2322
    %3625 = vmatpush.msra.mxu0 %v2314
    %3626 = vmatpush.msra.mxu0 %v2306
    %3627 = vmatpush.msra.mxu0 %v2298
    %3628 = vmatpush.msra.mxu0 %v2290
    %3629 = vmatpush.msra.mxu0 %v2282
    %3630 = vmatpush.msra.mxu0 %v2274
    %3631 = vmatmul.f32.gmra.mxu0 %v3290
    %v3632 = vpop.f32.mrf.mxu0
    %v3633 = vadd.f32 %v3613, %v3632
    %3634 = vdwg.mxu0
    %3635 = vmatpush.msra.mxu0 0.0
    %3636 = vmatpush.msra.mxu0 0.0
    %3637 = vmatpush.msra.mxu0 0.0
    %3638 = vmatpush.msra.mxu0 0.0
    %3639 = vmatpush.msra.mxu0 0.0
    %3640 = vmatpush.msra.mxu0 0.0
    %3641 = vmatpush.msra.mxu0 0.0
    %3642 = vmatpush.msra.mxu0 0.0
    %3643 = vmatpush.msra.mxu0 %v2458
    %3644 = vmatpush.msra.mxu0 %v2450
    %3645 = vmatpush.msra.mxu0 %v2442
    %3646 = vmatpush.msra.mxu0 %v2434
    %3647 = vmatpush.msra.mxu0 %v2426
    %3648 = vmatpush.msra.mxu0 %v2418
    %3649 = vmatpush.msra.mxu0 %v2410
    %3650 = vmatpush.msra.mxu0 %v2402
    %3651 = vmatmul.f32.gmra.mxu0 %v3293
    %v3652 = vpop.f32.mrf.mxu0
    %v3653 = vadd.f32 %v3633, %v3652
    %3654 = vdwg.mxu0
    %3655 = vmatpush.msra.mxu0 %v2267
    %3656 = vmatpush.msra.mxu0 %v2259
    %3657 = vmatpush.msra.mxu0 %v2251
    %3658 = vmatpush.msra.mxu0 %v2243
    %3659 = vmatpush.msra.mxu0 %v2235
    %3660 = vmatpush.msra.mxu0 %v2227
    %3661 = vmatpush.msra.mxu0 %v2219
    %3662 = vmatpush.msra.mxu0 %v2211
    %3663 = vmatpush.msra.mxu0 %v2203
    %3664 = vmatpush.msra.mxu0 %v2195
    %3665 = vmatpush.msra.mxu0 %v2187
    %3666 = vmatpush.msra.mxu0 %v2179
    %3667 = vmatpush.msra.mxu0 %v2171
    %3668 = vmatpush.msra.mxu0 %v2163
    %3669 = vmatpush.msra.mxu0 %v2155
    %3670 = vmatpush.msra.mxu0 %v2147
    %3671 = vmatmul.f32.gmra.mxu0 %v3289
    %v3672 = vpop.f32.mrf.mxu0
    %v3673 = vadd.f32 %v2483, %v3672
    %3674 = vdwg.mxu0
    %3675 = vmatpush.msra.mxu0 %v2395
    %3676 = vmatpush.msra.mxu0 %v2387
    %3677 = vmatpush.msra.mxu0 %v2379
    %3678 = vmatpush.msra.mxu0 %v2371
    %3679 = vmatpush.msra.mxu0 %v2363
    %3680 = vmatpush.msra.mxu0 %v2355
    %3681 = vmatpush.msra.mxu0 %v2347
    %3682 = vmatpush.msra.mxu0 %v2339
    %3683 = vmatpush.msra.mxu0 %v2331
    %3684 = vmatpush.msra.mxu0 %v2323
    %3685 = vmatpush.msra.mxu0 %v2315
    %3686 = vmatpush.msra.mxu0 %v2307
    %3687 = vmatpush.msra.mxu0 %v2299
    %3688 = vmatpush.msra.mxu0 %v2291
    %3689 = vmatpush.msra.mxu0 %v2283
    %3690 = vmatpush.msra.mxu0 %v2275
    %3691 = vmatmul.f32.gmra.mxu0 %v3290
    %v3692 = vpop.f32.mrf.mxu0
    %v3693 = vadd.f32 %v3673, %v3692
    %3694 = vdwg.mxu0
    %3695 = vmatpush.msra.mxu0 0.0
    %3696 = vmatpush.msra.mxu0 0.0
    %3697 = vmatpush.msra.mxu0 0.0
    %3698 = vmatpush.msra.mxu0 0.0
    %3699 = vmatpush.msra.mxu0 0.0
    %3700 = vmatpush.msra.mxu0 0.0
    %3701 = vmatpush.msra.mxu0 0.0
    %3702 = vmatpush.msra.mxu0 0.0
    %3703 = vmatpush.msra.mxu0 %v2459
    %3704 = vmatpush.msra.mxu0 %v2451
    %3705 = vmatpush.msra.mxu0 %v2443
    %3706 = vmatpush.msra.mxu0 %v2435
    %3707 = vmatpush.msra.mxu0 %v2427
    %3708 = vmatpush.msra.mxu0 %v2419
    %3709 = vmatpush.msra.mxu0 %v2411
    %3710 = vmatpush.msra.mxu0 %v2403
    %3711 = vmatmul.f32.gmra.mxu0 %v3293
    %v3712 = vpop.f32.mrf.mxu0
    %v3713 = vadd.f32 %v3693, %v3712
    %3714 = vdwg.mxu0
    %3715 = vmatpush.msra.mxu0 %v2268
    %3716 = vmatpush.msra.mxu0 %v2260
    %3717 = vmatpush.msra.mxu0 %v2252
    %3718 = vmatpush.msra.mxu0 %v2244
    %3719 = vmatpush.msra.mxu0 %v2236
    %3720 = vmatpush.msra.mxu0 %v2228
    %3721 = vmatpush.msra.mxu0 %v2220
    %3722 = vmatpush.msra.mxu0 %v2212
    %3723 = vmatpush.msra.mxu0 %v2204
    %3724 = vmatpush.msra.mxu0 %v2196
    %3725 = vmatpush.msra.mxu0 %v2188
    %3726 = vmatpush.msra.mxu0 %v2180
    %3727 = vmatpush.msra.mxu0 %v2172
    %3728 = vmatpush.msra.mxu0 %v2164
    %3729 = vmatpush.msra.mxu0 %v2156
    %3730 = vmatpush.msra.mxu0 %v2148
    %3731 = vmatmul.f32.gmra.mxu0 %v3289
    %v3732 = vpop.f32.mrf.mxu0
    %v3733 = vadd.f32 %v2484, %v3732
    %3734 = vdwg.mxu0
    %3735 = vmatpush.msra.mxu0 %v2396
    %3736 = vmatpush.msra.mxu0 %v2388
    %3737 = vmatpush.msra.mxu0 %v2380
    %3738 = vmatpush.msra.mxu0 %v2372
    %3739 = vmatpush.msra.mxu0 %v2364
    %3740 = vmatpush.msra.mxu0 %v2356
    %3741 = vmatpush.msra.mxu0 %v2348
    %3742 = vmatpush.msra.mxu0 %v2340
    %3743 = vmatpush.msra.mxu0 %v2332
    %3744 = vmatpush.msra.mxu0 %v2324
    %3745 = vmatpush.msra.mxu0 %v2316
    %3746 = vmatpush.msra.mxu0 %v2308
    %3747 = vmatpush.msra.mxu0 %v2300
    %3748 = vmatpush.msra.mxu0 %v2292
    %3749 = vmatpush.msra.mxu0 %v2284
    %3750 = vmatpush.msra.mxu0 %v2276
    %3751 = vmatmul.f32.gmra.mxu0 %v3290
    %v3752 = vpop.f32.mrf.mxu0
    %v3753 = vadd.f32 %v3733, %v3752
    %3754 = vdwg.mxu0
    %3755 = vmatpush.msra.mxu0 0.0
    %3756 = vmatpush.msra.mxu0 0.0
    %3757 = vmatpush.msra.mxu0 0.0
    %3758 = vmatpush.msra.mxu0 0.0
    %3759 = vmatpush.msra.mxu0 0.0
    %3760 = vmatpush.msra.mxu0 0.0
    %3761 = vmatpush.msra.mxu0 0.0
    %3762 = vmatpush.msra.mxu0 0.0
    %3763 = vmatpush.msra.mxu0 %v2460
    %3764 = vmatpush.msra.mxu0 %v2452
    %3765 = vmatpush.msra.mxu0 %v2444
    %3766 = vmatpush.msra.mxu0 %v2436
    %3767 = vmatpush.msra.mxu0 %v2428
    %3768 = vmatpush.msra.mxu0 %v2420
    %3769 = vmatpush.msra.mxu0 %v2412
    %3770 = vmatpush.msra.mxu0 %v2404
    %3771 = vmatmul.f32.gmra.mxu0 %v3293
    %v3772 = vpop.f32.mrf.mxu0
    %v3773 = vadd.f32 %v3753, %v3772
    %3774 = vdwg.mxu0
    %v3778 = vrot.slane %v3353, 7
    %v3779 = vrot.slane %v3413, 7
    %v3780 = vrot.slane %v3473, 7
    %v3787 = vadd.f32 %v1975, %v3778
    %v3788 = vadd.f32 %v1998, %v3779
    %v3789 = vadd.f32 %v2021, %v3780
    %v3790 = vadd.f32 %v1978, %v3353
    %v3791 = vadd.f32 %v2001, %v3413
    %v3792 = vadd.f32 %v2024, %v3473
    %v3793 = vsub.f32 0.0, %v3787
    %v3794 = vsub.f32 0.0, %v3788
    %v3795 = vsub.f32 0.0, %v3789
    %v3796 = vsub.f32 0.0, %v3790
    %v3797 = vsub.f32 0.0, %v3791
    %v3798 = vsub.f32 0.0, %v3792
    %v3799 = vmul.f32 %v3793, 1.442695
    %v3800 = vpow.pop %v3799
    %v3801 = vmul.f32 %v3794, 1.442695
    %v3802 = vpow.pop %v3801
    %v3803 = vmul.f32 %v3795, 1.442695
    %v3804 = vpow.pop %v3803
    %v3805 = vmul.f32 %v3796, 1.442695
    %v3806 = vpow.pop %v3805
    %v3807 = vmul.f32 %v3797, 1.442695
    %v3808 = vpow.pop %v3807
    %v3809 = vmul.f32 %v3798, 1.442695
    %v3810 = vpow.pop %v3809
    %v3811 = vadd.f32 %v3800, 1.0
    %v3812 = vadd.f32 %v3802, 1.0
    %v3813 = vadd.f32 %v3804, 1.0
    %v3814 = vadd.f32 %v3806, 1.0
    %v3815 = vadd.f32 %v3808, 1.0
    %v3816 = vadd.f32 %v3810, 1.0
    %v3817 = vrcp.pop %v3811
    %v3818 = vmul.f32 %v3811, %v3817
    %v3819 = vsub.f32 1.0, %v3818
    %v3820 = vmul.f32 %v3817, %v3819
    %v3821 = vadd.f32 %v3817, %v3820
    %vm3822 = vweird.f32 %v3811
    %vm3823 = vweird.f32 %v3817
    %vm3824 = vmor %vm3822, %vm3823
    %v3825 = vsel %vm3824, %v3817, %v3821
    %v3826 = vand.u32 2147483647, %v3811
    %vm3827 = vcmp.eq.f32.partialorder %v3826, 8.507059e+37
    %v3828 = vand.u32 %v3811, 2147483648
    %v3829 = vor.u32 1.1754944e-38, %v3828
    %v3830 = vsel %vm3827, %v3829, %v3825
    %v3831 = vmul.f32 1.0, %v3830
    %v3832 = vrcp.pop %v3812
    %v3833 = vmul.f32 %v3812, %v3832
    %v3834 = vsub.f32 1.0, %v3833
    %v3835 = vmul.f32 %v3832, %v3834
    %v3836 = vadd.f32 %v3832, %v3835
    %vm3837 = vweird.f32 %v3812
    %vm3838 = vweird.f32 %v3832
    %vm3839 = vmor %vm3837, %vm3838
    %v3840 = vsel %vm3839, %v3832, %v3836
    %v3841 = vand.u32 2147483647, %v3812
    %vm3842 = vcmp.eq.f32.partialorder %v3841, 8.507059e+37
    %v3843 = vand.u32 %v3812, 2147483648
    %v3844 = vor.u32 1.1754944e-38, %v3843
    %v3845 = vsel %vm3842, %v3844, %v3840
    %v3846 = vmul.f32 1.0, %v3845
    %v3847 = vrcp.pop %v3813
    %v3848 = vmul.f32 %v3813, %v3847
    %v3849 = vsub.f32 1.0, %v3848
    %v3850 = vmul.f32 %v3847, %v3849
    %v3851 = vadd.f32 %v3847, %v3850
    %vm3852 = vweird.f32 %v3813
    %vm3853 = vweird.f32 %v3847
    %vm3854 = vmor %vm3852, %vm3853
    %v3855 = vsel %vm3854, %v3847, %v3851
    %v3856 = vand.u32 2147483647, %v3813
    %vm3857 = vcmp.eq.f32.partialorder %v3856, 8.507059e+37
    %v3858 = vand.u32 %v3813, 2147483648
    %v3859 = vor.u32 1.1754944e-38, %v3858
    %v3860 = vsel %vm3857, %v3859, %v3855
    %v3861 = vmul.f32 1.0, %v3860
    %v3862 = vrcp.pop %v3814
    %v3863 = vmul.f32 %v3814, %v3862
    %v3864 = vsub.f32 1.0, %v3863
    %v3865 = vmul.f32 %v3862, %v3864
    %v3866 = vadd.f32 %v3862, %v3865
    %vm3867 = vweird.f32 %v3814
    %vm3868 = vweird.f32 %v3862
    %vm3869 = vmor %vm3867, %vm3868
    %v3870 = vsel %vm3869, %v3862, %v3866
    %v3871 = vand.u32 2147483647, %v3814
    %vm3872 = vcmp.eq.f32.partialorder %v3871, 8.507059e+37
    %v3873 = vand.u32 %v3814, 2147483648
    %v3874 = vor.u32 1.1754944e-38, %v3873
    %v3875 = vsel %vm3872, %v3874, %v3870
    %v3876 = vmul.f32 1.0, %v3875
    %v3877 = vrcp.pop %v3815
    %v3878 = vmul.f32 %v3815, %v3877
    %v3879 = vsub.f32 1.0, %v3878
    %v3880 = vmul.f32 %v3877, %v3879
    %v3881 = vadd.f32 %v3877, %v3880
    %vm3882 = vweird.f32 %v3815
    %vm3883 = vweird.f32 %v3877
    %vm3884 = vmor %vm3882, %vm3883
    %v3885 = vsel %vm3884, %v3877, %v3881
    %v3886 = vand.u32 2147483647, %v3815
    %vm3887 = vcmp.eq.f32.partialorder %v3886, 8.507059e+37
    %v3888 = vand.u32 %v3815, 2147483648
    %v3889 = vor.u32 1.1754944e-38, %v3888
    %v3890 = vsel %vm3887, %v3889, %v3885
    %v3891 = vmul.f32 1.0, %v3890
    %v3892 = vrcp.pop %v3816
    %v3893 = vmul.f32 %v3816, %v3892
    %v3894 = vsub.f32 1.0, %v3893
    %v3895 = vmul.f32 %v3892, %v3894
    %v3896 = vadd.f32 %v3892, %v3895
    %vm3897 = vweird.f32 %v3816
    %vm3898 = vweird.f32 %v3892
    %vm3899 = vmor %vm3897, %vm3898
    %v3900 = vsel %vm3899, %v3892, %v3896
    %v3901 = vand.u32 2147483647, %v3816
    %vm3902 = vcmp.eq.f32.partialorder %v3901, 8.507059e+37
    %v3903 = vand.u32 %v3816, 2147483648
    %v3904 = vor.u32 1.1754944e-38, %v3903
    %v3905 = vsel %vm3902, %v3904, %v3900
    %v3906 = vmul.f32 1.0, %v3905
    %v3909 = vrot.slane %v3533, 7
    %v3910 = vrot.slane %v3593, 7
    %v3915 = vadd.f32 %v2044, %v3909
    %v3916 = vadd.f32 %v2067, %v3910
    %v3917 = vadd.f32 %v2047, %v3533
    %v3918 = vadd.f32 %v2070, %v3593
    %v3919 = vsub.f32 0.0, %v3915
    %v3920 = vsub.f32 0.0, %v3916
    %v3921 = vsub.f32 0.0, %v3917
    %v3922 = vsub.f32 0.0, %v3918
    %v3923 = vmul.f32 %v3919, 1.442695
    %v3924 = vpow.pop %v3923
    %v3925 = vmul.f32 %v3920, 1.442695
    %v3926 = vpow.pop %v3925
    %v3927 = vmul.f32 %v3921, 1.442695
    %v3928 = vpow.pop %v3927
    %v3929 = vmul.f32 %v3922, 1.442695
    %v3930 = vpow.pop %v3929
    %v3931 = vadd.f32 %v3924, 1.0
    %v3932 = vadd.f32 %v3926, 1.0
    %v3933 = vadd.f32 %v3928, 1.0
    %v3934 = vadd.f32 %v3930, 1.0
    %v3935 = vrcp.pop %v3931
    %v3936 = vmul.f32 %v3931, %v3935
    %v3937 = vsub.f32 1.0, %v3936
    %v3938 = vmul.f32 %v3935, %v3937
    %v3939 = vadd.f32 %v3935, %v3938
    %vm3940 = vweird.f32 %v3931
    %vm3941 = vweird.f32 %v3935
    %vm3942 = vmor %vm3940, %vm3941
    %v3943 = vsel %vm3942, %v3935, %v3939
    %v3944 = vand.u32 2147483647, %v3931
    %vm3945 = vcmp.eq.f32.partialorder %v3944, 8.507059e+37
    %v3946 = vand.u32 %v3931, 2147483648
    %v3947 = vor.u32 1.1754944e-38, %v3946
    %v3948 = vsel %vm3945, %v3947, %v3943
    %v3949 = vmul.f32 1.0, %v3948
    %v3950 = vrcp.pop %v3932
    %v3951 = vmul.f32 %v3932, %v3950
    %v3952 = vsub.f32 1.0, %v3951
    %v3953 = vmul.f32 %v3950, %v3952
    %v3954 = vadd.f32 %v3950, %v3953
    %vm3955 = vweird.f32 %v3932
    %vm3956 = vweird.f32 %v3950
    %vm3957 = vmor %vm3955, %vm3956
    %v3958 = vsel %vm3957, %v3950, %v3954
    %v3959 = vand.u32 2147483647, %v3932
    %vm3960 = vcmp.eq.f32.partialorder %v3959, 8.507059e+37
    %v3961 = vand.u32 %v3932, 2147483648
    %v3962 = vor.u32 1.1754944e-38, %v3961
    %v3963 = vsel %vm3960, %v3962, %v3958
    %v3964 = vmul.f32 1.0, %v3963
    %v3965 = vrcp.pop %v3933
    %v3966 = vmul.f32 %v3933, %v3965
    %v3967 = vsub.f32 1.0, %v3966
    %v3968 = vmul.f32 %v3965, %v3967
    %v3969 = vadd.f32 %v3965, %v3968
    %vm3970 = vweird.f32 %v3933
    %vm3971 = vweird.f32 %v3965
    %vm3972 = vmor %vm3970, %vm3971
    %v3973 = vsel %vm3972, %v3965, %v3969
    %v3974 = vand.u32 2147483647, %v3933
    %vm3975 = vcmp.eq.f32.partialorder %v3974, 8.507059e+37
    %v3976 = vand.u32 %v3933, 2147483648
    %v3977 = vor.u32 1.1754944e-38, %v3976
    %v3978 = vsel %vm3975, %v3977, %v3973
    %v3979 = vmul.f32 1.0, %v3978
    %v3980 = vrcp.pop %v3934
    %v3981 = vmul.f32 %v3934, %v3980
    %v3982 = vsub.f32 1.0, %v3981
    %v3983 = vmul.f32 %v3980, %v3982
    %v3984 = vadd.f32 %v3980, %v3983
    %vm3985 = vweird.f32 %v3934
    %vm3986 = vweird.f32 %v3980
    %vm3987 = vmor %vm3985, %vm3986
    %v3988 = vsel %vm3987, %v3980, %v3984
    %v3989 = vand.u32 2147483647, %v3934
    %vm3990 = vcmp.eq.f32.partialorder %v3989, 8.507059e+37
    %v3991 = vand.u32 %v3934, 2147483648
    %v3992 = vor.u32 1.1754944e-38, %v3991
    %v3993 = vsel %vm3990, %v3992, %v3988
    %v3994 = vmul.f32 1.0, %v3993
    %v3998 = vrot.slane %v3653, 7
    %v3999 = vrot.slane %v3713, 7
    %v4000 = vrot.slane %v3773, 7
    %v4007 = vmul.f32 %v3831, %v3998
    %v4008 = vmul.f32 %v3846, %v3999
    %v4009 = vmul.f32 %v3861, %v4000
    %v4010 = vmul.f32 %v3876, %v3653
    %v4011 = vmul.f32 %v3891, %v3713
    %v4012 = vmul.f32 %v3906, %v3773
    %v4013 = vadd.f32 %v2090, %v4007
    %v4014 = vadd.f32 %v2113, %v4008
    %v4015 = vadd.f32 %v2136, %v4009
    %v4016 = vadd.f32 %v2093, %v4010
    %v4017 = vadd.f32 %v2116, %v4011
    %v4018 = vadd.f32 %v2139, %v4012
    %v4019 = vtanh.pop %v4013
    %v4020 = vtanh.pop %v4014
    %v4021 = vtanh.pop %v4015
    %v4022 = vtanh.pop %v4016
    %v4023 = vtanh.pop %v4017
    %v4024 = vtanh.pop %v4018
    %v4025 = vsub.f32 1.0, %v3861
    %v4026 = vsub.f32 1.0, %v3949
    %v4027 = vsub.f32 1.0, %v3964
    %v4028 = vsub.f32 1.0, %v3906
    %v4029 = vsub.f32 1.0, %v3979
    %v4030 = vsub.f32 1.0, %v3994
    %4037 = vrot.lane.b32.xlu0 %v4019, 64
    %v4038 = vpop.permute.xlu0 %4037
    %4039 = vrot.lane.b32.xlu0 %v4020, 64
    %v4040 = vpop.permute.xlu0 %4039
    %4041 = vrot.lane.b32.xlu0 %v4021, 64
    %v4042 = vpop.permute.xlu0 %4041
    %4043 = vrot.lane.b32.xlu0 %v4022, 64
    %v4044 = vpop.permute.xlu0 %4043
    %4045 = vrot.lane.b32.xlu0 %v4023, 64
    %v4046 = vpop.permute.xlu0 %4045
    %4047 = vrot.lane.b32.xlu0 %v4024, 64
    %v4048 = vpop.permute.xlu0 %4047
    %v4049 = vsel %vm990, %v4038, %v4040
    %v4050 = vsel %vm990, %v4040, %v4042
    %v4051 = vsel %vm990, %v4044, %v4046
    %v4052 = vsel %vm990, %v4046, %v4048
    %v4059 = vmul.f32 %v4025, %v4038
    %v4060 = vmul.f32 %v4026, %v4049
    %v4061 = vmul.f32 %v4027, %v4050
    %v4062 = vmul.f32 %v4028, %v4044
    %v4063 = vmul.f32 %v4029, %v4051
    %v4064 = vmul.f32 %v4030, %v4052
    %v4065 = vrot.slane %v3264, 7
    %v4066 = vrot.slane %v3265, 7
    %v4067 = vrot.slane %v3266, 7
    %v4074 = vmul.f32 %v3861, %v4065
    %v4075 = vmul.f32 %v3949, %v4066
    %v4076 = vmul.f32 %v3964, %v4067
    %v4077 = vmul.f32 %v3906, %v3276
    %v4078 = vmul.f32 %v3979, %v3279
    %v4079 = vmul.f32 %v3994, %v3281
    %v4080 = vadd.f32 %v4059, %v4074
    %v4081 = vadd.f32 %v4060, %v4075
    %v4082 = vadd.f32 %v4061, %v4076
    %v4083 = vadd.f32 %v4062, %v4077
    %v4084 = vadd.f32 %v4063, %v4078
    %v4085 = vadd.f32 %v4064, %v4079
    %v4092 = vrot.slane %v4080, 1
    %v4093 = vsel %vm3277, %v4083, %v4092
    %v4094 = vrot.slane %v4081, 1
    %v4095 = vsel %vm3277, %v4084, %v4094
    %v4096 = vrot.slane %v4082, 1
    %v4097 = vsel %vm3277, %v4085, %v4096
    %4098 = vrot.lane.b32.xlu0 %v4093, 64
    %v4099 = vpop.permute.xlu0 %4098
    %4100 = vrot.lane.b32.xlu0 %v4095, 64
    %v4101 = vpop.permute.xlu0 %4100
    %4102 = vrot.lane.b32.xlu0 %v4097, 64
    %v4103 = vpop.permute.xlu0 %4102
    %v4104 = vsel %vm990, %v4099, %v4101
    %v4105 = vsel %vm990, %v4101, %v4103
    %v4108 = vsel %vm990, %v4103, 0
    %4110 = vmatpush.msra.mxu0 %v2261
    %4111 = vmatpush.msra.mxu0 %v2253
    %4112 = vmatpush.msra.mxu0 %v2245
    %4113 = vmatpush.msra.mxu0 %v2237
    %4114 = vmatpush.msra.mxu0 %v2229
    %4115 = vmatpush.msra.mxu0 %v2221
    %4116 = vmatpush.msra.mxu0 %v2213
    %4117 = vmatpush.msra.mxu0 %v2205
    %4118 = vmatpush.msra.mxu0 %v2197
    %4119 = vmatpush.msra.mxu0 %v2189
    %4120 = vmatpush.msra.mxu0 %v2181
    %4121 = vmatpush.msra.mxu0 %v2173
    %4122 = vmatpush.msra.mxu0 %v2165
    %4123 = vmatpush.msra.mxu0 %v2157
    %4124 = vmatpush.msra.mxu0 %v2149
    %4125 = vmatpush.msra.mxu0 %v2141
    %4126 = vmatmul.f32.gmra.mxu0 %v4104
    %v4127 = vpop.f32.mrf.mxu0
    %v4128 = vadd.f32 %v2477, %v4127
    %4129 = vdwg.mxu0
    %4130 = vmatpush.msra.mxu0 %v2389
    %4131 = vmatpush.msra.mxu0 %v2381
    %4132 = vmatpush.msra.mxu0 %v2373
    %4133 = vmatpush.msra.mxu0 %v2365
    %4134 = vmatpush.msra.mxu0 %v2357
    %4135 = vmatpush.msra.mxu0 %v2349
    %4136 = vmatpush.msra.mxu0 %v2341
    %4137 = vmatpush.msra.mxu0 %v2333
    %4138 = vmatpush.msra.mxu0 %v2325
    %4139 = vmatpush.msra.mxu0 %v2317
    %4140 = vmatpush.msra.mxu0 %v2309
    %4141 = vmatpush.msra.mxu0 %v2301
    %4142 = vmatpush.msra.mxu0 %v2293
    %4143 = vmatpush.msra.mxu0 %v2285
    %4144 = vmatpush.msra.mxu0 %v2277
    %4145 = vmatpush.msra.mxu0 %v2269
    %4146 = vmatmul.f32.gmra.mxu0 %v4105
    %v4147 = vpop.f32.mrf.mxu0
    %v4148 = vadd.f32 %v4128, %v4147
    %4149 = vdwg.mxu0
    %4150 = vmatpush.msra.mxu0 0.0
    %4151 = vmatpush.msra.mxu0 0.0
    %4152 = vmatpush.msra.mxu0 0.0
    %4153 = vmatpush.msra.mxu0 0.0
    %4154 = vmatpush.msra.mxu0 0.0
    %4155 = vmatpush.msra.mxu0 0.0
    %4156 = vmatpush.msra.mxu0 0.0
    %4157 = vmatpush.msra.mxu0 0.0
    %4158 = vmatpush.msra.mxu0 %v2453
    %4159 = vmatpush.msra.mxu0 %v2445
    %4160 = vmatpush.msra.mxu0 %v2437
    %4161 = vmatpush.msra.mxu0 %v2429
    %4162 = vmatpush.msra.mxu0 %v2421
    %4163 = vmatpush.msra.mxu0 %v2413
    %4164 = vmatpush.msra.mxu0 %v2405
    %4165 = vmatpush.msra.mxu0 %v2397
    %4166 = vmatmul.f32.gmra.mxu0 %v4108
    %v4167 = vpop.f32.mrf.mxu0
    %v4168 = vadd.f32 %v4148, %v4167
    %4169 = vdwg.mxu0
    %4170 = vmatpush.msra.mxu0 %v2262
    %4171 = vmatpush.msra.mxu0 %v2254
    %4172 = vmatpush.msra.mxu0 %v2246
    %4173 = vmatpush.msra.mxu0 %v2238
    %4174 = vmatpush.msra.mxu0 %v2230
    %4175 = vmatpush.msra.mxu0 %v2222
    %4176 = vmatpush.msra.mxu0 %v2214
    %4177 = vmatpush.msra.mxu0 %v2206
    %4178 = vmatpush.msra.mxu0 %v2198
    %4179 = vmatpush.msra.mxu0 %v2190
    %4180 = vmatpush.msra.mxu0 %v2182
    %4181 = vmatpush.msra.mxu0 %v2174
    %4182 = vmatpush.msra.mxu0 %v2166
    %4183 = vmatpush.msra.mxu0 %v2158
    %4184 = vmatpush.msra.mxu0 %v2150
    %4185 = vmatpush.msra.mxu0 %v2142
    %4186 = vmatmul.f32.gmra.mxu0 %v4104
    %v4187 = vpop.f32.mrf.mxu0
    %v4188 = vadd.f32 %v2478, %v4187
    %4189 = vdwg.mxu0
    %4190 = vmatpush.msra.mxu0 %v2390
    %4191 = vmatpush.msra.mxu0 %v2382
    %4192 = vmatpush.msra.mxu0 %v2374
    %4193 = vmatpush.msra.mxu0 %v2366
    %4194 = vmatpush.msra.mxu0 %v2358
    %4195 = vmatpush.msra.mxu0 %v2350
    %4196 = vmatpush.msra.mxu0 %v2342
    %4197 = vmatpush.msra.mxu0 %v2334
    %4198 = vmatpush.msra.mxu0 %v2326
    %4199 = vmatpush.msra.mxu0 %v2318
    %4200 = vmatpush.msra.mxu0 %v2310
    %4201 = vmatpush.msra.mxu0 %v2302
    %4202 = vmatpush.msra.mxu0 %v2294
    %4203 = vmatpush.msra.mxu0 %v2286
    %4204 = vmatpush.msra.mxu0 %v2278
    %4205 = vmatpush.msra.mxu0 %v2270
    %4206 = vmatmul.f32.gmra.mxu0 %v4105
    %v4207 = vpop.f32.mrf.mxu0
    %v4208 = vadd.f32 %v4188, %v4207
    %4209 = vdwg.mxu0
    %4210 = vmatpush.msra.mxu0 0.0
    %4211 = vmatpush.msra.mxu0 0.0
    %4212 = vmatpush.msra.mxu0 0.0
    %4213 = vmatpush.msra.mxu0 0.0
    %4214 = vmatpush.msra.mxu0 0.0
    %4215 = vmatpush.msra.mxu0 0.0
    %4216 = vmatpush.msra.mxu0 0.0
    %4217 = vmatpush.msra.mxu0 0.0
    %4218 = vmatpush.msra.mxu0 %v2454
    %4219 = vmatpush.msra.mxu0 %v2446
    %4220 = vmatpush.msra.mxu0 %v2438
    %4221 = vmatpush.msra.mxu0 %v2430
    %4222 = vmatpush.msra.mxu0 %v2422
    %4223 = vmatpush.msra.mxu0 %v2414
    %4224 = vmatpush.msra.mxu0 %v2406
    %4225 = vmatpush.msra.mxu0 %v2398
    %4226 = vmatmul.f32.gmra.mxu0 %v4108
    %v4227 = vpop.f32.mrf.mxu0
    %v4228 = vadd.f32 %v4208, %v4227
    %4229 = vdwg.mxu0
    %4230 = vmatpush.msra.mxu0 %v2263
    %4231 = vmatpush.msra.mxu0 %v2255
    %4232 = vmatpush.msra.mxu0 %v2247
    %4233 = vmatpush.msra.mxu0 %v2239
    %4234 = vmatpush.msra.mxu0 %v2231
    %4235 = vmatpush.msra.mxu0 %v2223
    %4236 = vmatpush.msra.mxu0 %v2215
    %4237 = vmatpush.msra.mxu0 %v2207
    %4238 = vmatpush.msra.mxu0 %v2199
    %4239 = vmatpush.msra.mxu0 %v2191
    %4240 = vmatpush.msra.mxu0 %v2183
    %4241 = vmatpush.msra.mxu0 %v2175
    %4242 = vmatpush.msra.mxu0 %v2167
    %4243 = vmatpush.msra.mxu0 %v2159
    %4244 = vmatpush.msra.mxu0 %v2151
    %4245 = vmatpush.msra.mxu0 %v2143
    %4246 = vmatmul.f32.gmra.mxu0 %v4104
    %v4247 = vpop.f32.mrf.mxu0
    %v4248 = vadd.f32 %v2479, %v4247
    %4249 = vdwg.mxu0
    %4250 = vmatpush.msra.mxu0 %v2391
    %4251 = vmatpush.msra.mxu0 %v2383
    %4252 = vmatpush.msra.mxu0 %v2375
    %4253 = vmatpush.msra.mxu0 %v2367
    %4254 = vmatpush.msra.mxu0 %v2359
    %4255 = vmatpush.msra.mxu0 %v2351
    %4256 = vmatpush.msra.mxu0 %v2343
    %4257 = vmatpush.msra.mxu0 %v2335
    %4258 = vmatpush.msra.mxu0 %v2327
    %4259 = vmatpush.msra.mxu0 %v2319
    %4260 = vmatpush.msra.mxu0 %v2311
    %4261 = vmatpush.msra.mxu0 %v2303
    %4262 = vmatpush.msra.mxu0 %v2295
    %4263 = vmatpush.msra.mxu0 %v2287
    %4264 = vmatpush.msra.mxu0 %v2279
    %4265 = vmatpush.msra.mxu0 %v2271
    %4266 = vmatmul.f32.gmra.mxu0 %v4105
    %v4267 = vpop.f32.mrf.mxu0
    %v4268 = vadd.f32 %v4248, %v4267
    %4269 = vdwg.mxu0
    %4270 = vmatpush.msra.mxu0 0.0
    %4271 = vmatpush.msra.mxu0 0.0
    %4272 = vmatpush.msra.mxu0 0.0
    %4273 = vmatpush.msra.mxu0 0.0
    %4274 = vmatpush.msra.mxu0 0.0
    %4275 = vmatpush.msra.mxu0 0.0
    %4276 = vmatpush.msra.mxu0 0.0
    %4277 = vmatpush.msra.mxu0 0.0
    %4278 = vmatpush.msra.mxu0 %v2455
    %4279 = vmatpush.msra.mxu0 %v2447
    %4280 = vmatpush.msra.mxu0 %v2439
    %4281 = vmatpush.msra.mxu0 %v2431
    %4282 = vmatpush.msra.mxu0 %v2423
    %4283 = vmatpush.msra.mxu0 %v2415
    %4284 = vmatpush.msra.mxu0 %v2407
    %4285 = vmatpush.msra.mxu0 %v2399
    %4286 = vmatmul.f32.gmra.mxu0 %v4108
    %v4287 = vpop.f32.mrf.mxu0
    %v4288 = vadd.f32 %v4268, %v4287
    %4289 = vdwg.mxu0
    %4290 = vmatpush.msra.mxu0 %v2264
    %4291 = vmatpush.msra.mxu0 %v2256
    %4292 = vmatpush.msra.mxu0 %v2248
    %4293 = vmatpush.msra.mxu0 %v2240
    %4294 = vmatpush.msra.mxu0 %v2232
    %4295 = vmatpush.msra.mxu0 %v2224
    %4296 = vmatpush.msra.mxu0 %v2216
    %4297 = vmatpush.msra.mxu0 %v2208
    %4298 = vmatpush.msra.mxu0 %v2200
    %4299 = vmatpush.msra.mxu0 %v2192
    %4300 = vmatpush.msra.mxu0 %v2184
    %4301 = vmatpush.msra.mxu0 %v2176
    %4302 = vmatpush.msra.mxu0 %v2168
    %4303 = vmatpush.msra.mxu0 %v2160
    %4304 = vmatpush.msra.mxu0 %v2152
    %4305 = vmatpush.msra.mxu0 %v2144
    %4306 = vmatmul.f32.gmra.mxu0 %v4104
    %v4307 = vpop.f32.mrf.mxu0
    %v4308 = vadd.f32 %v2480, %v4307
    %4309 = vdwg.mxu0
    %4310 = vmatpush.msra.mxu0 %v2392
    %4311 = vmatpush.msra.mxu0 %v2384
    %4312 = vmatpush.msra.mxu0 %v2376
    %4313 = vmatpush.msra.mxu0 %v2368
    %4314 = vmatpush.msra.mxu0 %v2360
    %4315 = vmatpush.msra.mxu0 %v2352
    %4316 = vmatpush.msra.mxu0 %v2344
    %4317 = vmatpush.msra.mxu0 %v2336
    %4318 = vmatpush.msra.mxu0 %v2328
    %4319 = vmatpush.msra.mxu0 %v2320
    %4320 = vmatpush.msra.mxu0 %v2312
    %4321 = vmatpush.msra.mxu0 %v2304
    %4322 = vmatpush.msra.mxu0 %v2296
    %4323 = vmatpush.msra.mxu0 %v2288
    %4324 = vmatpush.msra.mxu0 %v2280
    %4325 = vmatpush.msra.mxu0 %v2272
    %4326 = vmatmul.f32.gmra.mxu0 %v4105
    %v4327 = vpop.f32.mrf.mxu0
    %v4328 = vadd.f32 %v4308, %v4327
    %4329 = vdwg.mxu0
    %4330 = vmatpush.msra.mxu0 0.0
    %4331 = vmatpush.msra.mxu0 0.0
    %4332 = vmatpush.msra.mxu0 0.0
    %4333 = vmatpush.msra.mxu0 0.0
    %4334 = vmatpush.msra.mxu0 0.0
    %4335 = vmatpush.msra.mxu0 0.0
    %4336 = vmatpush.msra.mxu0 0.0
    %4337 = vmatpush.msra.mxu0 0.0
    %4338 = vmatpush.msra.mxu0 %v2456
    %4339 = vmatpush.msra.mxu0 %v2448
    %4340 = vmatpush.msra.mxu0 %v2440
    %4341 = vmatpush.msra.mxu0 %v2432
    %4342 = vmatpush.msra.mxu0 %v2424
    %4343 = vmatpush.msra.mxu0 %v2416
    %4344 = vmatpush.msra.mxu0 %v2408
    %4345 = vmatpush.msra.mxu0 %v2400
    %4346 = vmatmul.f32.gmra.mxu0 %v4108
    %v4347 = vpop.f32.mrf.mxu0
    %v4348 = vadd.f32 %v4328, %v4347
    %4349 = vdwg.mxu0
    %4350 = vmatpush.msra.mxu0 %v2265
    %4351 = vmatpush.msra.mxu0 %v2257
    %4352 = vmatpush.msra.mxu0 %v2249
    %4353 = vmatpush.msra.mxu0 %v2241
    %4354 = vmatpush.msra.mxu0 %v2233
    %4355 = vmatpush.msra.mxu0 %v2225
    %4356 = vmatpush.msra.mxu0 %v2217
    %4357 = vmatpush.msra.mxu0 %v2209
    %4358 = vmatpush.msra.mxu0 %v2201
    %4359 = vmatpush.msra.mxu0 %v2193
    %4360 = vmatpush.msra.mxu0 %v2185
    %4361 = vmatpush.msra.mxu0 %v2177
    %4362 = vmatpush.msra.mxu0 %v2169
    %4363 = vmatpush.msra.mxu0 %v2161
    %4364 = vmatpush.msra.mxu0 %v2153
    %4365 = vmatpush.msra.mxu0 %v2145
    %4366 = vmatmul.f32.gmra.mxu0 %v4104
    %v4367 = vpop.f32.mrf.mxu0
    %v4368 = vadd.f32 %v2481, %v4367
    %4369 = vdwg.mxu0
    %4370 = vmatpush.msra.mxu0 %v2393
    %4371 = vmatpush.msra.mxu0 %v2385
    %4372 = vmatpush.msra.mxu0 %v2377
    %4373 = vmatpush.msra.mxu0 %v2369
    %4374 = vmatpush.msra.mxu0 %v2361
    %4375 = vmatpush.msra.mxu0 %v2353
    %4376 = vmatpush.msra.mxu0 %v2345
    %4377 = vmatpush.msra.mxu0 %v2337
    %4378 = vmatpush.msra.mxu0 %v2329
    %4379 = vmatpush.msra.mxu0 %v2321
    %4380 = vmatpush.msra.mxu0 %v2313
    %4381 = vmatpush.msra.mxu0 %v2305
    %4382 = vmatpush.msra.mxu0 %v2297
    %4383 = vmatpush.msra.mxu0 %v2289
    %4384 = vmatpush.msra.mxu0 %v2281
    %4385 = vmatpush.msra.mxu0 %v2273
    %4386 = vmatmul.f32.gmra.mxu0 %v4105
    %v4387 = vpop.f32.mrf.mxu0
    %v4388 = vadd.f32 %v4368, %v4387
    %4389 = vdwg.mxu0
    %4390 = vmatpush.msra.mxu0 0.0
    %4391 = vmatpush.msra.mxu0 0.0
    %4392 = vmatpush.msra.mxu0 0.0
    %4393 = vmatpush.msra.mxu0 0.0
    %4394 = vmatpush.msra.mxu0 0.0
    %4395 = vmatpush.msra.mxu0 0.0
    %4396 = vmatpush.msra.mxu0 0.0
    %4397 = vmatpush.msra.mxu0 0.0
    %4398 = vmatpush.msra.mxu0 %v2457
    %4399 = vmatpush.msra.mxu0 %v2449
    %4400 = vmatpush.msra.mxu0 %v2441
    %4401 = vmatpush.msra.mxu0 %v2433
    %4402 = vmatpush.msra.mxu0 %v2425
    %4403 = vmatpush.msra.mxu0 %v2417
    %4404 = vmatpush.msra.mxu0 %v2409
    %4405 = vmatpush.msra.mxu0 %v2401
    %4406 = vmatmul.f32.gmra.mxu0 %v4108
    %v4407 = vpop.f32.mrf.mxu0
    %v4408 = vadd.f32 %v4388, %v4407
    %4409 = vdwg.mxu0
    %4410 = vmatpush.msra.mxu0 %v2266
    %4411 = vmatpush.msra.mxu0 %v2258
    %4412 = vmatpush.msra.mxu0 %v2250
    %4413 = vmatpush.msra.mxu0 %v2242
    %4414 = vmatpush.msra.mxu0 %v2234
    %4415 = vmatpush.msra.mxu0 %v2226
    %4416 = vmatpush.msra.mxu0 %v2218
    %4417 = vmatpush.msra.mxu0 %v2210
    %4418 = vmatpush.msra.mxu0 %v2202
    %4419 = vmatpush.msra.mxu0 %v2194
    %4420 = vmatpush.msra.mxu0 %v2186
    %4421 = vmatpush.msra.mxu0 %v2178
    %4422 = vmatpush.msra.mxu0 %v2170
    %4423 = vmatpush.msra.mxu0 %v2162
    %4424 = vmatpush.msra.mxu0 %v2154
    %4425 = vmatpush.msra.mxu0 %v2146
    %4426 = vmatmul.f32.gmra.mxu0 %v4104
    %v4427 = vpop.f32.mrf.mxu0
    %v4428 = vadd.f32 %v2482, %v4427
    %4429 = vdwg.mxu0
    %4430 = vmatpush.msra.mxu0 %v2394
    %4431 = vmatpush.msra.mxu0 %v2386
    %4432 = vmatpush.msra.mxu0 %v2378
    %4433 = vmatpush.msra.mxu0 %v2370
    %4434 = vmatpush.msra.mxu0 %v2362
    %4435 = vmatpush.msra.mxu0 %v2354
    %4436 = vmatpush.msra.mxu0 %v2346
    %4437 = vmatpush.msra.mxu0 %v2338
    %4438 = vmatpush.msra.mxu0 %v2330
    %4439 = vmatpush.msra.mxu0 %v2322
    %4440 = vmatpush.msra.mxu0 %v2314
    %4441 = vmatpush.msra.mxu0 %v2306
    %4442 = vmatpush.msra.mxu0 %v2298
    %4443 = vmatpush.msra.mxu0 %v2290
    %4444 = vmatpush.msra.mxu0 %v2282
    %4445 = vmatpush.msra.mxu0 %v2274
    %4446 = vmatmul.f32.gmra.mxu0 %v4105
    %v4447 = vpop.f32.mrf.mxu0
    %v4448 = vadd.f32 %v4428, %v4447
    %4449 = vdwg.mxu0
    %4450 = vmatpush.msra.mxu0 0.0
    %4451 = vmatpush.msra.mxu0 0.0
    %4452 = vmatpush.msra.mxu0 0.0
    %4453 = vmatpush.msra.mxu0 0.0
    %4454 = vmatpush.msra.mxu0 0.0
    %4455 = vmatpush.msra.mxu0 0.0
    %4456 = vmatpush.msra.mxu0 0.0
    %4457 = vmatpush.msra.mxu0 0.0
    %4458 = vmatpush.msra.mxu0 %v2458
    %4459 = vmatpush.msra.mxu0 %v2450
    %4460 = vmatpush.msra.mxu0 %v2442
    %4461 = vmatpush.msra.mxu0 %v2434
    %4462 = vmatpush.msra.mxu0 %v2426
    %4463 = vmatpush.msra.mxu0 %v2418
    %4464 = vmatpush.msra.mxu0 %v2410
    %4465 = vmatpush.msra.mxu0 %v2402
    %4466 = vmatmul.f32.gmra.mxu0 %v4108
    %v4467 = vpop.f32.mrf.mxu0
    %v4468 = vadd.f32 %v4448, %v4467
    %4469 = vdwg.mxu0
    %4470 = vmatpush.msra.mxu0 %v2267
    %4471 = vmatpush.msra.mxu0 %v2259
    %4472 = vmatpush.msra.mxu0 %v2251
    %4473 = vmatpush.msra.mxu0 %v2243
    %4474 = vmatpush.msra.mxu0 %v2235
    %4475 = vmatpush.msra.mxu0 %v2227
    %4476 = vmatpush.msra.mxu0 %v2219
    %4477 = vmatpush.msra.mxu0 %v2211
    %4478 = vmatpush.msra.mxu0 %v2203
    %4479 = vmatpush.msra.mxu0 %v2195
    %4480 = vmatpush.msra.mxu0 %v2187
    %4481 = vmatpush.msra.mxu0 %v2179
    %4482 = vmatpush.msra.mxu0 %v2171
    %4483 = vmatpush.msra.mxu0 %v2163
    %4484 = vmatpush.msra.mxu0 %v2155
    %4485 = vmatpush.msra.mxu0 %v2147
    %4486 = vmatmul.f32.gmra.mxu0 %v4104
    %v4487 = vpop.f32.mrf.mxu0
    %v4488 = vadd.f32 %v2483, %v4487
    %4489 = vdwg.mxu0
    %4490 = vmatpush.msra.mxu0 %v2395
    %4491 = vmatpush.msra.mxu0 %v2387
    %4492 = vmatpush.msra.mxu0 %v2379
    %4493 = vmatpush.msra.mxu0 %v2371
    %4494 = vmatpush.msra.mxu0 %v2363
    %4495 = vmatpush.msra.mxu0 %v2355
    %4496 = vmatpush.msra.mxu0 %v2347
    %4497 = vmatpush.msra.mxu0 %v2339
    %4498 = vmatpush.msra.mxu0 %v2331
    %4499 = vmatpush.msra.mxu0 %v2323
    %4500 = vmatpush.msra.mxu0 %v2315
    %4501 = vmatpush.msra.mxu0 %v2307
    %4502 = vmatpush.msra.mxu0 %v2299
    %4503 = vmatpush.msra.mxu0 %v2291
    %4504 = vmatpush.msra.mxu0 %v2283
    %4505 = vmatpush.msra.mxu0 %v2275
    %4506 = vmatmul.f32.gmra.mxu0 %v4105
    %v4507 = vpop.f32.mrf.mxu0
    %v4508 = vadd.f32 %v4488, %v4507
    %4509 = vdwg.mxu0
    %4510 = vmatpush.msra.mxu0 0.0
    %4511 = vmatpush.msra.mxu0 0.0
    %4512 = vmatpush.msra.mxu0 0.0
    %4513 = vmatpush.msra.mxu0 0.0
    %4514 = vmatpush.msra.mxu0 0.0
    %4515 = vmatpush.msra.mxu0 0.0
    %4516 = vmatpush.msra.mxu0 0.0
    %4517 = vmatpush.msra.mxu0 0.0
    %4518 = vmatpush.msra.mxu0 %v2459
    %4519 = vmatpush.msra.mxu0 %v2451
    %4520 = vmatpush.msra.mxu0 %v2443
    %4521 = vmatpush.msra.mxu0 %v2435
    %4522 = vmatpush.msra.mxu0 %v2427
    %4523 = vmatpush.msra.mxu0 %v2419
    %4524 = vmatpush.msra.mxu0 %v2411
    %4525 = vmatpush.msra.mxu0 %v2403
    %4526 = vmatmul.f32.gmra.mxu0 %v4108
    %v4527 = vpop.f32.mrf.mxu0
    %v4528 = vadd.f32 %v4508, %v4527
    %4529 = vdwg.mxu0
    %4530 = vmatpush.msra.mxu0 %v2268
    %4531 = vmatpush.msra.mxu0 %v2260
    %4532 = vmatpush.msra.mxu0 %v2252
    %4533 = vmatpush.msra.mxu0 %v2244
    %4534 = vmatpush.msra.mxu0 %v2236
    %4535 = vmatpush.msra.mxu0 %v2228
    %4536 = vmatpush.msra.mxu0 %v2220
    %4537 = vmatpush.msra.mxu0 %v2212
    %4538 = vmatpush.msra.mxu0 %v2204
    %4539 = vmatpush.msra.mxu0 %v2196
    %4540 = vmatpush.msra.mxu0 %v2188
    %4541 = vmatpush.msra.mxu0 %v2180
    %4542 = vmatpush.msra.mxu0 %v2172
    %4543 = vmatpush.msra.mxu0 %v2164
    %4544 = vmatpush.msra.mxu0 %v2156
    %4545 = vmatpush.msra.mxu0 %v2148
    %4546 = vmatmul.f32.gmra.mxu0 %v4104
    %v4547 = vpop.f32.mrf.mxu0
    %v4548 = vadd.f32 %v2484, %v4547
    %4549 = vdwg.mxu0
    %4550 = vmatpush.msra.mxu0 %v2396
    %4551 = vmatpush.msra.mxu0 %v2388
    %4552 = vmatpush.msra.mxu0 %v2380
    %4553 = vmatpush.msra.mxu0 %v2372
    %4554 = vmatpush.msra.mxu0 %v2364
    %4555 = vmatpush.msra.mxu0 %v2356
    %4556 = vmatpush.msra.mxu0 %v2348
    %4557 = vmatpush.msra.mxu0 %v2340
    %4558 = vmatpush.msra.mxu0 %v2332
    %4559 = vmatpush.msra.mxu0 %v2324
    %4560 = vmatpush.msra.mxu0 %v2316
    %4561 = vmatpush.msra.mxu0 %v2308
    %4562 = vmatpush.msra.mxu0 %v2300
    %4563 = vmatpush.msra.mxu0 %v2292
    %4564 = vmatpush.msra.mxu0 %v2284
    %4565 = vmatpush.msra.mxu0 %v2276
    %4566 = vmatmul.f32.gmra.mxu0 %v4105
    %v4567 = vpop.f32.mrf.mxu0
    %v4568 = vadd.f32 %v4548, %v4567
    %4569 = vdwg.mxu0
    %4570 = vmatpush.msra.mxu0 0.0
    %4571 = vmatpush.msra.mxu0 0.0
    %4572 = vmatpush.msra.mxu0 0.0
    %4573 = vmatpush.msra.mxu0 0.0
    %4574 = vmatpush.msra.mxu0 0.0
    %4575 = vmatpush.msra.mxu0 0.0
    %4576 = vmatpush.msra.mxu0 0.0
    %4577 = vmatpush.msra.mxu0 0.0
    %4578 = vmatpush.msra.mxu0 %v2460
    %4579 = vmatpush.msra.mxu0 %v2452
    %4580 = vmatpush.msra.mxu0 %v2444
    %4581 = vmatpush.msra.mxu0 %v2436
    %4582 = vmatpush.msra.mxu0 %v2428
    %4583 = vmatpush.msra.mxu0 %v2420
    %4584 = vmatpush.msra.mxu0 %v2412
    %4585 = vmatpush.msra.mxu0 %v2404
    %4586 = vmatmul.f32.gmra.mxu0 %v4108
    %v4587 = vpop.f32.mrf.mxu0
    %v4588 = vadd.f32 %v4568, %v4587
    %4589 = vdwg.mxu0
    %v4593 = vrot.slane %v4168, 6
    %v4594 = vrot.slane %v4228, 6
    %v4595 = vrot.slane %v4288, 6
    %v4596 = vrot.slane %v4168, 7
    %v4597 = vrot.slane %v4228, 7
    %v4598 = vrot.slane %v4288, 7
    %v4605 = vadd.f32 %v1975, %v4593
    %v4606 = vadd.f32 %v1998, %v4594
    %v4607 = vadd.f32 %v2021, %v4595
    %v4608 = vadd.f32 %v1978, %v4596
    %v4609 = vadd.f32 %v2001, %v4597
    %v4610 = vadd.f32 %v2024, %v4598
    %v4611 = vsub.f32 0.0, %v4605
    %v4612 = vsub.f32 0.0, %v4606
    %v4613 = vsub.f32 0.0, %v4607
    %v4614 = vsub.f32 0.0, %v4608
    %v4615 = vsub.f32 0.0, %v4609
    %v4616 = vsub.f32 0.0, %v4610
    %v4617 = vmul.f32 %v4611, 1.442695
    %v4618 = vpow.pop %v4617
    %v4619 = vmul.f32 %v4612, 1.442695
    %v4620 = vpow.pop %v4619
    %v4621 = vmul.f32 %v4613, 1.442695
    %v4622 = vpow.pop %v4621
    %v4623 = vmul.f32 %v4614, 1.442695
    %v4624 = vpow.pop %v4623
    %v4625 = vmul.f32 %v4615, 1.442695
    %v4626 = vpow.pop %v4625
    %v4627 = vmul.f32 %v4616, 1.442695
    %v4628 = vpow.pop %v4627
    %v4629 = vadd.f32 %v4618, 1.0
    %v4630 = vadd.f32 %v4620, 1.0
    %v4631 = vadd.f32 %v4622, 1.0
    %v4632 = vadd.f32 %v4624, 1.0
    %v4633 = vadd.f32 %v4626, 1.0
    %v4634 = vadd.f32 %v4628, 1.0
    %v4635 = vrcp.pop %v4629
    %v4636 = vmul.f32 %v4629, %v4635
    %v4637 = vsub.f32 1.0, %v4636
    %v4638 = vmul.f32 %v4635, %v4637
    %v4639 = vadd.f32 %v4635, %v4638
    %vm4640 = vweird.f32 %v4629
    %vm4641 = vweird.f32 %v4635
    %vm4642 = vmor %vm4640, %vm4641
    %v4643 = vsel %vm4642, %v4635, %v4639
    %v4644 = vand.u32 2147483647, %v4629
    %vm4645 = vcmp.eq.f32.partialorder %v4644, 8.507059e+37
    %v4646 = vand.u32 %v4629, 2147483648
    %v4647 = vor.u32 1.1754944e-38, %v4646
    %v4648 = vsel %vm4645, %v4647, %v4643
    %v4649 = vmul.f32 1.0, %v4648
    %v4650 = vrcp.pop %v4630
    %v4651 = vmul.f32 %v4630, %v4650
    %v4652 = vsub.f32 1.0, %v4651
    %v4653 = vmul.f32 %v4650, %v4652
    %v4654 = vadd.f32 %v4650, %v4653
    %vm4655 = vweird.f32 %v4630
    %vm4656 = vweird.f32 %v4650
    %vm4657 = vmor %vm4655, %vm4656
    %v4658 = vsel %vm4657, %v4650, %v4654
    %v4659 = vand.u32 2147483647, %v4630
    %vm4660 = vcmp.eq.f32.partialorder %v4659, 8.507059e+37
    %v4661 = vand.u32 %v4630, 2147483648
    %v4662 = vor.u32 1.1754944e-38, %v4661
    %v4663 = vsel %vm4660, %v4662, %v4658
    %v4664 = vmul.f32 1.0, %v4663
    %v4665 = vrcp.pop %v4631
    %v4666 = vmul.f32 %v4631, %v4665
    %v4667 = vsub.f32 1.0, %v4666
    %v4668 = vmul.f32 %v4665, %v4667
    %v4669 = vadd.f32 %v4665, %v4668
    %vm4670 = vweird.f32 %v4631
    %vm4671 = vweird.f32 %v4665
    %vm4672 = vmor %vm4670, %vm4671
    %v4673 = vsel %vm4672, %v4665, %v4669
    %v4674 = vand.u32 2147483647, %v4631
    %vm4675 = vcmp.eq.f32.partialorder %v4674, 8.507059e+37
    %v4676 = vand.u32 %v4631, 2147483648
    %v4677 = vor.u32 1.1754944e-38, %v4676
    %v4678 = vsel %vm4675, %v4677, %v4673
    %v4679 = vmul.f32 1.0, %v4678
    %v4680 = vrcp.pop %v4632
    %v4681 = vmul.f32 %v4632, %v4680
    %v4682 = vsub.f32 1.0, %v4681
    %v4683 = vmul.f32 %v4680, %v4682
    %v4684 = vadd.f32 %v4680, %v4683
    %vm4685 = vweird.f32 %v4632
    %vm4686 = vweird.f32 %v4680
    %vm4687 = vmor %vm4685, %vm4686
    %v4688 = vsel %vm4687, %v4680, %v4684
    %v4689 = vand.u32 2147483647, %v4632
    %vm4690 = vcmp.eq.f32.partialorder %v4689, 8.507059e+37
    %v4691 = vand.u32 %v4632, 2147483648
    %v4692 = vor.u32 1.1754944e-38, %v4691
    %v4693 = vsel %vm4690, %v4692, %v4688
    %v4694 = vmul.f32 1.0, %v4693
    %v4695 = vrcp.pop %v4633
    %v4696 = vmul.f32 %v4633, %v4695
    %v4697 = vsub.f32 1.0, %v4696
    %v4698 = vmul.f32 %v4695, %v4697
    %v4699 = vadd.f32 %v4695, %v4698
    %vm4700 = vweird.f32 %v4633
    %vm4701 = vweird.f32 %v4695
    %vm4702 = vmor %vm4700, %vm4701
    %v4703 = vsel %vm4702, %v4695, %v4699
    %v4704 = vand.u32 2147483647, %v4633
    %vm4705 = vcmp.eq.f32.partialorder %v4704, 8.507059e+37
    %v4706 = vand.u32 %v4633, 2147483648
    %v4707 = vor.u32 1.1754944e-38, %v4706
    %v4708 = vsel %vm4705, %v4707, %v4703
    %v4709 = vmul.f32 1.0, %v4708
    %v4710 = vrcp.pop %v4634
    %v4711 = vmul.f32 %v4634, %v4710
    %v4712 = vsub.f32 1.0, %v4711
    %v4713 = vmul.f32 %v4710, %v4712
    %v4714 = vadd.f32 %v4710, %v4713
    %vm4715 = vweird.f32 %v4634
    %vm4716 = vweird.f32 %v4710
    %vm4717 = vmor %vm4715, %vm4716
    %v4718 = vsel %vm4717, %v4710, %v4714
    %v4719 = vand.u32 2147483647, %v4634
    %vm4720 = vcmp.eq.f32.partialorder %v4719, 8.507059e+37
    %v4721 = vand.u32 %v4634, 2147483648
    %v4722 = vor.u32 1.1754944e-38, %v4721
    %v4723 = vsel %vm4720, %v4722, %v4718
    %v4724 = vmul.f32 1.0, %v4723
    %v4727 = vrot.slane %v4348, 6
    %v4728 = vrot.slane %v4408, 6
    %v4729 = vrot.slane %v4348, 7
    %v4730 = vrot.slane %v4408, 7
    %v4735 = vadd.f32 %v2044, %v4727
    %v4736 = vadd.f32 %v2067, %v4728
    %v4737 = vadd.f32 %v2047, %v4729
    %v4738 = vadd.f32 %v2070, %v4730
    %v4739 = vsub.f32 0.0, %v4735
    %v4740 = vsub.f32 0.0, %v4736
    %v4741 = vsub.f32 0.0, %v4737
    %v4742 = vsub.f32 0.0, %v4738
    %v4743 = vmul.f32 %v4739, 1.442695
    %v4744 = vpow.pop %v4743
    %v4745 = vmul.f32 %v4740, 1.442695
    %v4746 = vpow.pop %v4745
    %v4747 = vmul.f32 %v4741, 1.442695
    %v4748 = vpow.pop %v4747
    %v4749 = vmul.f32 %v4742, 1.442695
    %v4750 = vpow.pop %v4749
    %v4751 = vadd.f32 %v4744, 1.0
    %v4752 = vadd.f32 %v4746, 1.0
    %v4753 = vadd.f32 %v4748, 1.0
    %v4754 = vadd.f32 %v4750, 1.0
    %v4755 = vrcp.pop %v4751
    %v4756 = vmul.f32 %v4751, %v4755
    %v4757 = vsub.f32 1.0, %v4756
    %v4758 = vmul.f32 %v4755, %v4757
    %v4759 = vadd.f32 %v4755, %v4758
    %vm4760 = vweird.f32 %v4751
    %vm4761 = vweird.f32 %v4755
    %vm4762 = vmor %vm4760, %vm4761
    %v4763 = vsel %vm4762, %v4755, %v4759
    %v4764 = vand.u32 2147483647, %v4751
    %vm4765 = vcmp.eq.f32.partialorder %v4764, 8.507059e+37
    %v4766 = vand.u32 %v4751, 2147483648
    %v4767 = vor.u32 1.1754944e-38, %v4766
    %v4768 = vsel %vm4765, %v4767, %v4763
    %v4769 = vmul.f32 1.0, %v4768
    %v4770 = vrcp.pop %v4752
    %v4771 = vmul.f32 %v4752, %v4770
    %v4772 = vsub.f32 1.0, %v4771
    %v4773 = vmul.f32 %v4770, %v4772
    %v4774 = vadd.f32 %v4770, %v4773
    %vm4775 = vweird.f32 %v4752
    %vm4776 = vweird.f32 %v4770
    %vm4777 = vmor %vm4775, %vm4776
    %v4778 = vsel %vm4777, %v4770, %v4774
    %v4779 = vand.u32 2147483647, %v4752
    %vm4780 = vcmp.eq.f32.partialorder %v4779, 8.507059e+37
    %v4781 = vand.u32 %v4752, 2147483648
    %v4782 = vor.u32 1.1754944e-38, %v4781
    %v4783 = vsel %vm4780, %v4782, %v4778
    %v4784 = vmul.f32 1.0, %v4783
    %v4785 = vrcp.pop %v4753
    %v4786 = vmul.f32 %v4753, %v4785
    %v4787 = vsub.f32 1.0, %v4786
    %v4788 = vmul.f32 %v4785, %v4787
    %v4789 = vadd.f32 %v4785, %v4788
    %vm4790 = vweird.f32 %v4753
    %vm4791 = vweird.f32 %v4785
    %vm4792 = vmor %vm4790, %vm4791
    %v4793 = vsel %vm4792, %v4785, %v4789
    %v4794 = vand.u32 2147483647, %v4753
    %vm4795 = vcmp.eq.f32.partialorder %v4794, 8.507059e+37
    %v4796 = vand.u32 %v4753, 2147483648
    %v4797 = vor.u32 1.1754944e-38, %v4796
    %v4798 = vsel %vm4795, %v4797, %v4793
    %v4799 = vmul.f32 1.0, %v4798
    %v4800 = vrcp.pop %v4754
    %v4801 = vmul.f32 %v4754, %v4800
    %v4802 = vsub.f32 1.0, %v4801
    %v4803 = vmul.f32 %v4800, %v4802
    %v4804 = vadd.f32 %v4800, %v4803
    %vm4805 = vweird.f32 %v4754
    %vm4806 = vweird.f32 %v4800
    %vm4807 = vmor %vm4805, %vm4806
    %v4808 = vsel %vm4807, %v4800, %v4804
    %v4809 = vand.u32 2147483647, %v4754
    %vm4810 = vcmp.eq.f32.partialorder %v4809, 8.507059e+37
    %v4811 = vand.u32 %v4754, 2147483648
    %v4812 = vor.u32 1.1754944e-38, %v4811
    %v4813 = vsel %vm4810, %v4812, %v4808
    %v4814 = vmul.f32 1.0, %v4813
    %v4818 = vrot.slane %v4468, 6
    %v4819 = vrot.slane %v4528, 6
    %v4820 = vrot.slane %v4588, 6
    %v4821 = vrot.slane %v4468, 7
    %v4822 = vrot.slane %v4528, 7
    %v4823 = vrot.slane %v4588, 7
    %v4830 = vmul.f32 %v4649, %v4818
    %v4831 = vmul.f32 %v4664, %v4819
    %v4832 = vmul.f32 %v4679, %v4820
    %v4833 = vmul.f32 %v4694, %v4821
    %v4834 = vmul.f32 %v4709, %v4822
    %v4835 = vmul.f32 %v4724, %v4823
    %v4836 = vadd.f32 %v2090, %v4830
    %v4837 = vadd.f32 %v2113, %v4831
    %v4838 = vadd.f32 %v2136, %v4832
    %v4839 = vadd.f32 %v2093, %v4833
    %v4840 = vadd.f32 %v2116, %v4834
    %v4841 = vadd.f32 %v2139, %v4835
    %v4842 = vtanh.pop %v4836
    %v4843 = vtanh.pop %v4837
    %v4844 = vtanh.pop %v4838
    %v4845 = vtanh.pop %v4839
    %v4846 = vtanh.pop %v4840
    %v4847 = vtanh.pop %v4841
    %v4848 = vsub.f32 1.0, %v4679
    %v4849 = vsub.f32 1.0, %v4769
    %v4850 = vsub.f32 1.0, %v4784
    %v4851 = vsub.f32 1.0, %v4724
    %v4852 = vsub.f32 1.0, %v4799
    %v4853 = vsub.f32 1.0, %v4814
    %4860 = vrot.lane.b32.xlu0 %v4842, 64
    %v4861 = vpop.permute.xlu0 %4860
    %4862 = vrot.lane.b32.xlu0 %v4843, 64
    %v4863 = vpop.permute.xlu0 %4862
    %4864 = vrot.lane.b32.xlu0 %v4844, 64
    %v4865 = vpop.permute.xlu0 %4864
    %4866 = vrot.lane.b32.xlu0 %v4845, 64
    %v4867 = vpop.permute.xlu0 %4866
    %4868 = vrot.lane.b32.xlu0 %v4846, 64
    %v4869 = vpop.permute.xlu0 %4868
    %4870 = vrot.lane.b32.xlu0 %v4847, 64
    %v4871 = vpop.permute.xlu0 %4870
    %v4872 = vsel %vm990, %v4861, %v4863
    %v4873 = vsel %vm990, %v4863, %v4865
    %v4874 = vsel %vm990, %v4867, %v4869
    %v4875 = vsel %vm990, %v4869, %v4871
    %v4882 = vmul.f32 %v4848, %v4861
    %v4883 = vmul.f32 %v4849, %v4872
    %v4884 = vmul.f32 %v4850, %v4873
    %v4885 = vmul.f32 %v4851, %v4867
    %v4886 = vmul.f32 %v4852, %v4874
    %v4887 = vmul.f32 %v4853, %v4875
    %v4888 = vrot.slane %v4080, 7
    %v4889 = vrot.slane %v4081, 7
    %v4890 = vrot.slane %v4082, 7
    %v4891 = vrot.slane %v4083, 7
    %v4892 = vrot.slane %v4084, 7
    %v4893 = vrot.slane %v4085, 7
    %v4900 = vmul.f32 %v4679, %v4888
    %v4901 = vmul.f32 %v4769, %v4889
    %v4902 = vmul.f32 %v4784, %v4890
    %v4903 = vmul.f32 %v4724, %v4891
    %v4904 = vmul.f32 %v4799, %v4892
    %v4905 = vmul.f32 %v4814, %v4893
    %v4906 = vadd.f32 %v4882, %v4900
    %v4907 = vadd.f32 %v4883, %v4901
    %v4908 = vadd.f32 %v4884, %v4902
    %v4909 = vadd.f32 %v4885, %v4903
    %v4910 = vadd.f32 %v4886, %v4904
    %v4911 = vadd.f32 %v4887, %v4905
    %v4918 = vrot.slane %v4906, 2
    %v4919 = vrot.slane %v4909, 1
    %v4920 = vsel %vm3277, %v4919, %v4918
    %v4921 = vrot.slane %v4907, 2
    %v4922 = vrot.slane %v4910, 1
    %v4923 = vsel %vm3277, %v4922, %v4921
    %v4924 = vrot.slane %v4908, 2
    %v4925 = vrot.slane %v4911, 1
    %v4926 = vsel %vm3277, %v4925, %v4924
    %4927 = vrot.lane.b32.xlu0 %v4920, 64
    %v4928 = vpop.permute.xlu0 %4927
    %4929 = vrot.lane.b32.xlu0 %v4923, 64
    %v4930 = vpop.permute.xlu0 %4929
    %4931 = vrot.lane.b32.xlu0 %v4926, 64
    %v4932 = vpop.permute.xlu0 %4931
    %v4933 = vsel %vm990, %v4928, %v4930
    %v4934 = vsel %vm990, %v4930, %v4932
    %v4937 = vsel %vm990, %v4932, 0
    %4939 = vmatpush.msra.mxu0 %v2261
    %4940 = vmatpush.msra.mxu0 %v2253
    %4941 = vmatpush.msra.mxu0 %v2245
    %4942 = vmatpush.msra.mxu0 %v2237
    %4943 = vmatpush.msra.mxu0 %v2229
    %4944 = vmatpush.msra.mxu0 %v2221
    %4945 = vmatpush.msra.mxu0 %v2213
    %4946 = vmatpush.msra.mxu0 %v2205
    %4947 = vmatpush.msra.mxu0 %v2197
    %4948 = vmatpush.msra.mxu0 %v2189
    %4949 = vmatpush.msra.mxu0 %v2181
    %4950 = vmatpush.msra.mxu0 %v2173
    %4951 = vmatpush.msra.mxu0 %v2165
    %4952 = vmatpush.msra.mxu0 %v2157
    %4953 = vmatpush.msra.mxu0 %v2149
    %4954 = vmatpush.msra.mxu0 %v2141
    %4955 = vmatmul.f32.gmra.mxu0 %v4933
    %v4956 = vpop.f32.mrf.mxu0
    %v4957 = vadd.f32 %v2477, %v4956
    %4958 = vdwg.mxu0
    %4959 = vmatpush.msra.mxu0 %v2389
    %4960 = vmatpush.msra.mxu0 %v2381
    %4961 = vmatpush.msra.mxu0 %v2373
    %4962 = vmatpush.msra.mxu0 %v2365
    %4963 = vmatpush.msra.mxu0 %v2357
    %4964 = vmatpush.msra.mxu0 %v2349
    %4965 = vmatpush.msra.mxu0 %v2341
    %4966 = vmatpush.msra.mxu0 %v2333
    %4967 = vmatpush.msra.mxu0 %v2325
    %4968 = vmatpush.msra.mxu0 %v2317
    %4969 = vmatpush.msra.mxu0 %v2309
    %4970 = vmatpush.msra.mxu0 %v2301
    %4971 = vmatpush.msra.mxu0 %v2293
    %4972 = vmatpush.msra.mxu0 %v2285
    %4973 = vmatpush.msra.mxu0 %v2277
    %4974 = vmatpush.msra.mxu0 %v2269
    %4975 = vmatmul.f32.gmra.mxu0 %v4934
    %v4976 = vpop.f32.mrf.mxu0
    %v4977 = vadd.f32 %v4957, %v4976
    %4978 = vdwg.mxu0
    %4979 = vmatpush.msra.mxu0 0.0
    %4980 = vmatpush.msra.mxu0 0.0
    %4981 = vmatpush.msra.mxu0 0.0
    %4982 = vmatpush.msra.mxu0 0.0
    %4983 = vmatpush.msra.mxu0 0.0
    %4984 = vmatpush.msra.mxu0 0.0
    %4985 = vmatpush.msra.mxu0 0.0
    %4986 = vmatpush.msra.mxu0 0.0
    %4987 = vmatpush.msra.mxu0 %v2453
    %4988 = vmatpush.msra.mxu0 %v2445
    %4989 = vmatpush.msra.mxu0 %v2437
    %4990 = vmatpush.msra.mxu0 %v2429
    %4991 = vmatpush.msra.mxu0 %v2421
    %4992 = vmatpush.msra.mxu0 %v2413
    %4993 = vmatpush.msra.mxu0 %v2405
    %4994 = vmatpush.msra.mxu0 %v2397
    %4995 = vmatmul.f32.gmra.mxu0 %v4937
    %v4996 = vpop.f32.mrf.mxu0
    %v4997 = vadd.f32 %v4977, %v4996
    %4998 = vdwg.mxu0
    %4999 = vmatpush.msra.mxu0 %v2262
    %5000 = vmatpush.msra.mxu0 %v2254
    %5001 = vmatpush.msra.mxu0 %v2246
    %5002 = vmatpush.msra.mxu0 %v2238
    %5003 = vmatpush.msra.mxu0 %v2230
    %5004 = vmatpush.msra.mxu0 %v2222
    %5005 = vmatpush.msra.mxu0 %v2214
    %5006 = vmatpush.msra.mxu0 %v2206
    %5007 = vmatpush.msra.mxu0 %v2198
    %5008 = vmatpush.msra.mxu0 %v2190
    %5009 = vmatpush.msra.mxu0 %v2182
    %5010 = vmatpush.msra.mxu0 %v2174
    %5011 = vmatpush.msra.mxu0 %v2166
    %5012 = vmatpush.msra.mxu0 %v2158
    %5013 = vmatpush.msra.mxu0 %v2150
    %5014 = vmatpush.msra.mxu0 %v2142
    %5015 = vmatmul.f32.gmra.mxu0 %v4933
    %v5016 = vpop.f32.mrf.mxu0
    %v5017 = vadd.f32 %v2478, %v5016
    %5018 = vdwg.mxu0
    %5019 = vmatpush.msra.mxu0 %v2390
    %5020 = vmatpush.msra.mxu0 %v2382
    %5021 = vmatpush.msra.mxu0 %v2374
    %5022 = vmatpush.msra.mxu0 %v2366
    %5023 = vmatpush.msra.mxu0 %v2358
    %5024 = vmatpush.msra.mxu0 %v2350
    %5025 = vmatpush.msra.mxu0 %v2342
    %5026 = vmatpush.msra.mxu0 %v2334
    %5027 = vmatpush.msra.mxu0 %v2326
    %5028 = vmatpush.msra.mxu0 %v2318
    %5029 = vmatpush.msra.mxu0 %v2310
    %5030 = vmatpush.msra.mxu0 %v2302
    %5031 = vmatpush.msra.mxu0 %v2294
    %5032 = vmatpush.msra.mxu0 %v2286
    %5033 = vmatpush.msra.mxu0 %v2278
    %5034 = vmatpush.msra.mxu0 %v2270
    %5035 = vmatmul.f32.gmra.mxu0 %v4934
    %v5036 = vpop.f32.mrf.mxu0
    %v5037 = vadd.f32 %v5017, %v5036
    %5038 = vdwg.mxu0
    %5039 = vmatpush.msra.mxu0 0.0
    %5040 = vmatpush.msra.mxu0 0.0
    %5041 = vmatpush.msra.mxu0 0.0
    %5042 = vmatpush.msra.mxu0 0.0
    %5043 = vmatpush.msra.mxu0 0.0
    %5044 = vmatpush.msra.mxu0 0.0
    %5045 = vmatpush.msra.mxu0 0.0
    %5046 = vmatpush.msra.mxu0 0.0
    %5047 = vmatpush.msra.mxu0 %v2454
    %5048 = vmatpush.msra.mxu0 %v2446
    %5049 = vmatpush.msra.mxu0 %v2438
    %5050 = vmatpush.msra.mxu0 %v2430
    %5051 = vmatpush.msra.mxu0 %v2422
    %5052 = vmatpush.msra.mxu0 %v2414
    %5053 = vmatpush.msra.mxu0 %v2406
    %5054 = vmatpush.msra.mxu0 %v2398
    %5055 = vmatmul.f32.gmra.mxu0 %v4937
    %v5056 = vpop.f32.mrf.mxu0
    %v5057 = vadd.f32 %v5037, %v5056
    %5058 = vdwg.mxu0
    %5059 = vmatpush.msra.mxu0 %v2263
    %5060 = vmatpush.msra.mxu0 %v2255
    %5061 = vmatpush.msra.mxu0 %v2247
    %5062 = vmatpush.msra.mxu0 %v2239
    %5063 = vmatpush.msra.mxu0 %v2231
    %5064 = vmatpush.msra.mxu0 %v2223
    %5065 = vmatpush.msra.mxu0 %v2215
    %5066 = vmatpush.msra.mxu0 %v2207
    %5067 = vmatpush.msra.mxu0 %v2199
    %5068 = vmatpush.msra.mxu0 %v2191
    %5069 = vmatpush.msra.mxu0 %v2183
    %5070 = vmatpush.msra.mxu0 %v2175
    %5071 = vmatpush.msra.mxu0 %v2167
    %5072 = vmatpush.msra.mxu0 %v2159
    %5073 = vmatpush.msra.mxu0 %v2151
    %5074 = vmatpush.msra.mxu0 %v2143
    %5075 = vmatmul.f32.gmra.mxu0 %v4933
    %v5076 = vpop.f32.mrf.mxu0
    %v5077 = vadd.f32 %v2479, %v5076
    %5078 = vdwg.mxu0
    %5079 = vmatpush.msra.mxu0 %v2391
    %5080 = vmatpush.msra.mxu0 %v2383
    %5081 = vmatpush.msra.mxu0 %v2375
    %5082 = vmatpush.msra.mxu0 %v2367
    %5083 = vmatpush.msra.mxu0 %v2359
    %5084 = vmatpush.msra.mxu0 %v2351
    %5085 = vmatpush.msra.mxu0 %v2343
    %5086 = vmatpush.msra.mxu0 %v2335
    %5087 = vmatpush.msra.mxu0 %v2327
    %5088 = vmatpush.msra.mxu0 %v2319
    %5089 = vmatpush.msra.mxu0 %v2311
    %5090 = vmatpush.msra.mxu0 %v2303
    %5091 = vmatpush.msra.mxu0 %v2295
    %5092 = vmatpush.msra.mxu0 %v2287
    %5093 = vmatpush.msra.mxu0 %v2279
    %5094 = vmatpush.msra.mxu0 %v2271
    %5095 = vmatmul.f32.gmra.mxu0 %v4934
    %v5096 = vpop.f32.mrf.mxu0
    %v5097 = vadd.f32 %v5077, %v5096
    %5098 = vdwg.mxu0
    %5099 = vmatpush.msra.mxu0 0.0
    %5100 = vmatpush.msra.mxu0 0.0
    %5101 = vmatpush.msra.mxu0 0.0
    %5102 = vmatpush.msra.mxu0 0.0
    %5103 = vmatpush.msra.mxu0 0.0
    %5104 = vmatpush.msra.mxu0 0.0
    %5105 = vmatpush.msra.mxu0 0.0
    %5106 = vmatpush.msra.mxu0 0.0
    %5107 = vmatpush.msra.mxu0 %v2455
    %5108 = vmatpush.msra.mxu0 %v2447
    %5109 = vmatpush.msra.mxu0 %v2439
    %5110 = vmatpush.msra.mxu0 %v2431
    %5111 = vmatpush.msra.mxu0 %v2423
    %5112 = vmatpush.msra.mxu0 %v2415
    %5113 = vmatpush.msra.mxu0 %v2407
    %5114 = vmatpush.msra.mxu0 %v2399
    %5115 = vmatmul.f32.gmra.mxu0 %v4937
    %v5116 = vpop.f32.mrf.mxu0
    %v5117 = vadd.f32 %v5097, %v5116
    %5118 = vdwg.mxu0
    %5119 = vmatpush.msra.mxu0 %v2264
    %5120 = vmatpush.msra.mxu0 %v2256
    %5121 = vmatpush.msra.mxu0 %v2248
    %5122 = vmatpush.msra.mxu0 %v2240
    %5123 = vmatpush.msra.mxu0 %v2232
    %5124 = vmatpush.msra.mxu0 %v2224
    %5125 = vmatpush.msra.mxu0 %v2216
    %5126 = vmatpush.msra.mxu0 %v2208
    %5127 = vmatpush.msra.mxu0 %v2200
    %5128 = vmatpush.msra.mxu0 %v2192
    %5129 = vmatpush.msra.mxu0 %v2184
    %5130 = vmatpush.msra.mxu0 %v2176
    %5131 = vmatpush.msra.mxu0 %v2168
    %5132 = vmatpush.msra.mxu0 %v2160
    %5133 = vmatpush.msra.mxu0 %v2152
    %5134 = vmatpush.msra.mxu0 %v2144
    %5135 = vmatmul.f32.gmra.mxu0 %v4933
    %v5136 = vpop.f32.mrf.mxu0
    %v5137 = vadd.f32 %v2480, %v5136
    %5138 = vdwg.mxu0
    %5139 = vmatpush.msra.mxu0 %v2392
    %5140 = vmatpush.msra.mxu0 %v2384
    %5141 = vmatpush.msra.mxu0 %v2376
    %5142 = vmatpush.msra.mxu0 %v2368
    %5143 = vmatpush.msra.mxu0 %v2360
    %5144 = vmatpush.msra.mxu0 %v2352
    %5145 = vmatpush.msra.mxu0 %v2344
    %5146 = vmatpush.msra.mxu0 %v2336
    %5147 = vmatpush.msra.mxu0 %v2328
    %5148 = vmatpush.msra.mxu0 %v2320
    %5149 = vmatpush.msra.mxu0 %v2312
    %5150 = vmatpush.msra.mxu0 %v2304
    %5151 = vmatpush.msra.mxu0 %v2296
    %5152 = vmatpush.msra.mxu0 %v2288
    %5153 = vmatpush.msra.mxu0 %v2280
    %5154 = vmatpush.msra.mxu0 %v2272
    %5155 = vmatmul.f32.gmra.mxu0 %v4934
    %v5156 = vpop.f32.mrf.mxu0
    %v5157 = vadd.f32 %v5137, %v5156
    %5158 = vdwg.mxu0
    %5159 = vmatpush.msra.mxu0 0.0
    %5160 = vmatpush.msra.mxu0 0.0
    %5161 = vmatpush.msra.mxu0 0.0
    %5162 = vmatpush.msra.mxu0 0.0
    %5163 = vmatpush.msra.mxu0 0.0
    %5164 = vmatpush.msra.mxu0 0.0
    %5165 = vmatpush.msra.mxu0 0.0
    %5166 = vmatpush.msra.mxu0 0.0
    %5167 = vmatpush.msra.mxu0 %v2456
    %5168 = vmatpush.msra.mxu0 %v2448
    %5169 = vmatpush.msra.mxu0 %v2440
    %5170 = vmatpush.msra.mxu0 %v2432
    %5171 = vmatpush.msra.mxu0 %v2424
    %5172 = vmatpush.msra.mxu0 %v2416
    %5173 = vmatpush.msra.mxu0 %v2408
    %5174 = vmatpush.msra.mxu0 %v2400
    %5175 = vmatmul.f32.gmra.mxu0 %v4937
    %v5176 = vpop.f32.mrf.mxu0
    %v5177 = vadd.f32 %v5157, %v5176
    %5178 = vdwg.mxu0
    %5179 = vmatpush.msra.mxu0 %v2265
    %5180 = vmatpush.msra.mxu0 %v2257
    %5181 = vmatpush.msra.mxu0 %v2249
    %5182 = vmatpush.msra.mxu0 %v2241
    %5183 = vmatpush.msra.mxu0 %v2233
    %5184 = vmatpush.msra.mxu0 %v2225
    %5185 = vmatpush.msra.mxu0 %v2217
    %5186 = vmatpush.msra.mxu0 %v2209
    %5187 = vmatpush.msra.mxu0 %v2201
    %5188 = vmatpush.msra.mxu0 %v2193
    %5189 = vmatpush.msra.mxu0 %v2185
    %5190 = vmatpush.msra.mxu0 %v2177
    %5191 = vmatpush.msra.mxu0 %v2169
    %5192 = vmatpush.msra.mxu0 %v2161
    %5193 = vmatpush.msra.mxu0 %v2153
    %5194 = vmatpush.msra.mxu0 %v2145
    %5195 = vmatmul.f32.gmra.mxu0 %v4933
    %v5196 = vpop.f32.mrf.mxu0
    %v5197 = vadd.f32 %v2481, %v5196
    %5198 = vdwg.mxu0
    %5199 = vmatpush.msra.mxu0 %v2393
    %5200 = vmatpush.msra.mxu0 %v2385
    %5201 = vmatpush.msra.mxu0 %v2377
    %5202 = vmatpush.msra.mxu0 %v2369
    %5203 = vmatpush.msra.mxu0 %v2361
    %5204 = vmatpush.msra.mxu0 %v2353
    %5205 = vmatpush.msra.mxu0 %v2345
    %5206 = vmatpush.msra.mxu0 %v2337
    %5207 = vmatpush.msra.mxu0 %v2329
    %5208 = vmatpush.msra.mxu0 %v2321
    %5209 = vmatpush.msra.mxu0 %v2313
    %5210 = vmatpush.msra.mxu0 %v2305
    %5211 = vmatpush.msra.mxu0 %v2297
    %5212 = vmatpush.msra.mxu0 %v2289
    %5213 = vmatpush.msra.mxu0 %v2281
    %5214 = vmatpush.msra.mxu0 %v2273
    %5215 = vmatmul.f32.gmra.mxu0 %v4934
    %v5216 = vpop.f32.mrf.mxu0
    %v5217 = vadd.f32 %v5197, %v5216
    %5218 = vdwg.mxu0
    %5219 = vmatpush.msra.mxu0 0.0
    %5220 = vmatpush.msra.mxu0 0.0
    %5221 = vmatpush.msra.mxu0 0.0
    %5222 = vmatpush.msra.mxu0 0.0
    %5223 = vmatpush.msra.mxu0 0.0
    %5224 = vmatpush.msra.mxu0 0.0
    %5225 = vmatpush.msra.mxu0 0.0
    %5226 = vmatpush.msra.mxu0 0.0
    %5227 = vmatpush.msra.mxu0 %v2457
    %5228 = vmatpush.msra.mxu0 %v2449
    %5229 = vmatpush.msra.mxu0 %v2441
    %5230 = vmatpush.msra.mxu0 %v2433
    %5231 = vmatpush.msra.mxu0 %v2425
    %5232 = vmatpush.msra.mxu0 %v2417
    %5233 = vmatpush.msra.mxu0 %v2409
    %5234 = vmatpush.msra.mxu0 %v2401
    %5235 = vmatmul.f32.gmra.mxu0 %v4937
    %v5236 = vpop.f32.mrf.mxu0
    %v5237 = vadd.f32 %v5217, %v5236
    %5238 = vdwg.mxu0
    %5239 = vmatpush.msra.mxu0 %v2266
    %5240 = vmatpush.msra.mxu0 %v2258
    %5241 = vmatpush.msra.mxu0 %v2250
    %5242 = vmatpush.msra.mxu0 %v2242
    %5243 = vmatpush.msra.mxu0 %v2234
    %5244 = vmatpush.msra.mxu0 %v2226
    %5245 = vmatpush.msra.mxu0 %v2218
    %5246 = vmatpush.msra.mxu0 %v2210
    %5247 = vmatpush.msra.mxu0 %v2202
    %5248 = vmatpush.msra.mxu0 %v2194
    %5249 = vmatpush.msra.mxu0 %v2186
    %5250 = vmatpush.msra.mxu0 %v2178
    %5251 = vmatpush.msra.mxu0 %v2170
    %5252 = vmatpush.msra.mxu0 %v2162
    %5253 = vmatpush.msra.mxu0 %v2154
    %5254 = vmatpush.msra.mxu0 %v2146
    %5255 = vmatmul.f32.gmra.mxu0 %v4933
    %v5256 = vpop.f32.mrf.mxu0
    %v5257 = vadd.f32 %v2482, %v5256
    %5258 = vdwg.mxu0
    %5259 = vmatpush.msra.mxu0 %v2394
    %5260 = vmatpush.msra.mxu0 %v2386
    %5261 = vmatpush.msra.mxu0 %v2378
    %5262 = vmatpush.msra.mxu0 %v2370
    %5263 = vmatpush.msra.mxu0 %v2362
    %5264 = vmatpush.msra.mxu0 %v2354
    %5265 = vmatpush.msra.mxu0 %v2346
    %5266 = vmatpush.msra.mxu0 %v2338
    %5267 = vmatpush.msra.mxu0 %v2330
    %5268 = vmatpush.msra.mxu0 %v2322
    %5269 = vmatpush.msra.mxu0 %v2314
    %5270 = vmatpush.msra.mxu0 %v2306
    %5271 = vmatpush.msra.mxu0 %v2298
    %5272 = vmatpush.msra.mxu0 %v2290
    %5273 = vmatpush.msra.mxu0 %v2282
    %5274 = vmatpush.msra.mxu0 %v2274
    %5275 = vmatmul.f32.gmra.mxu0 %v4934
    %v5276 = vpop.f32.mrf.mxu0
    %v5277 = vadd.f32 %v5257, %v5276
    %5278 = vdwg.mxu0
    %5279 = vmatpush.msra.mxu0 0.0
    %5280 = vmatpush.msra.mxu0 0.0
    %5281 = vmatpush.msra.mxu0 0.0
    %5282 = vmatpush.msra.mxu0 0.0
    %5283 = vmatpush.msra.mxu0 0.0
    %5284 = vmatpush.msra.mxu0 0.0
    %5285 = vmatpush.msra.mxu0 0.0
    %5286 = vmatpush.msra.mxu0 0.0
    %5287 = vmatpush.msra.mxu0 %v2458
    %5288 = vmatpush.msra.mxu0 %v2450
    %5289 = vmatpush.msra.mxu0 %v2442
    %5290 = vmatpush.msra.mxu0 %v2434
    %5291 = vmatpush.msra.mxu0 %v2426
    %5292 = vmatpush.msra.mxu0 %v2418
    %5293 = vmatpush.msra.mxu0 %v2410
    %5294 = vmatpush.msra.mxu0 %v2402
    %5295 = vmatmul.f32.gmra.mxu0 %v4937
    %v5296 = vpop.f32.mrf.mxu0
    %v5297 = vadd.f32 %v5277, %v5296
    %5298 = vdwg.mxu0
    %5299 = vmatpush.msra.mxu0 %v2267
    %5300 = vmatpush.msra.mxu0 %v2259
    %5301 = vmatpush.msra.mxu0 %v2251
    %5302 = vmatpush.msra.mxu0 %v2243
    %5303 = vmatpush.msra.mxu0 %v2235
    %5304 = vmatpush.msra.mxu0 %v2227
    %5305 = vmatpush.msra.mxu0 %v2219
    %5306 = vmatpush.msra.mxu0 %v2211
    %5307 = vmatpush.msra.mxu0 %v2203
    %5308 = vmatpush.msra.mxu0 %v2195
    %5309 = vmatpush.msra.mxu0 %v2187
    %5310 = vmatpush.msra.mxu0 %v2179
    %5311 = vmatpush.msra.mxu0 %v2171
    %5312 = vmatpush.msra.mxu0 %v2163
    %5313 = vmatpush.msra.mxu0 %v2155
    %5314 = vmatpush.msra.mxu0 %v2147
    %5315 = vmatmul.f32.gmra.mxu0 %v4933
    %v5316 = vpop.f32.mrf.mxu0
    %v5317 = vadd.f32 %v2483, %v5316
    %5318 = vdwg.mxu0
    %5319 = vmatpush.msra.mxu0 %v2395
    %5320 = vmatpush.msra.mxu0 %v2387
    %5321 = vmatpush.msra.mxu0 %v2379
    %5322 = vmatpush.msra.mxu0 %v2371
    %5323 = vmatpush.msra.mxu0 %v2363
    %5324 = vmatpush.msra.mxu0 %v2355
    %5325 = vmatpush.msra.mxu0 %v2347
    %5326 = vmatpush.msra.mxu0 %v2339
    %5327 = vmatpush.msra.mxu0 %v2331
    %5328 = vmatpush.msra.mxu0 %v2323
    %5329 = vmatpush.msra.mxu0 %v2315
    %5330 = vmatpush.msra.mxu0 %v2307
    %5331 = vmatpush.msra.mxu0 %v2299
    %5332 = vmatpush.msra.mxu0 %v2291
    %5333 = vmatpush.msra.mxu0 %v2283
    %5334 = vmatpush.msra.mxu0 %v2275
    %5335 = vmatmul.f32.gmra.mxu0 %v4934
    %v5336 = vpop.f32.mrf.mxu0
    %v5337 = vadd.f32 %v5317, %v5336
    %5338 = vdwg.mxu0
    %5339 = vmatpush.msra.mxu0 0.0
    %5340 = vmatpush.msra.mxu0 0.0
    %5341 = vmatpush.msra.mxu0 0.0
    %5342 = vmatpush.msra.mxu0 0.0
    %5343 = vmatpush.msra.mxu0 0.0
    %5344 = vmatpush.msra.mxu0 0.0
    %5345 = vmatpush.msra.mxu0 0.0
    %5346 = vmatpush.msra.mxu0 0.0
    %5347 = vmatpush.msra.mxu0 %v2459
    %5348 = vmatpush.msra.mxu0 %v2451
    %5349 = vmatpush.msra.mxu0 %v2443
    %5350 = vmatpush.msra.mxu0 %v2435
    %5351 = vmatpush.msra.mxu0 %v2427
    %5352 = vmatpush.msra.mxu0 %v2419
    %5353 = vmatpush.msra.mxu0 %v2411
    %5354 = vmatpush.msra.mxu0 %v2403
    %5355 = vmatmul.f32.gmra.mxu0 %v4937
    %v5356 = vpop.f32.mrf.mxu0
    %v5357 = vadd.f32 %v5337, %v5356
    %5358 = vdwg.mxu0
    %5359 = vmatpush.msra.mxu0 %v2268
    %5360 = vmatpush.msra.mxu0 %v2260
    %5361 = vmatpush.msra.mxu0 %v2252
    %5362 = vmatpush.msra.mxu0 %v2244
    %5363 = vmatpush.msra.mxu0 %v2236
    %5364 = vmatpush.msra.mxu0 %v2228
    %5365 = vmatpush.msra.mxu0 %v2220
    %5366 = vmatpush.msra.mxu0 %v2212
    %5367 = vmatpush.msra.mxu0 %v2204
    %5368 = vmatpush.msra.mxu0 %v2196
    %5369 = vmatpush.msra.mxu0 %v2188
    %5370 = vmatpush.msra.mxu0 %v2180
    %5371 = vmatpush.msra.mxu0 %v2172
    %5372 = vmatpush.msra.mxu0 %v2164
    %5373 = vmatpush.msra.mxu0 %v2156
    %5374 = vmatpush.msra.mxu0 %v2148
    %5375 = vmatmul.f32.gmra.mxu0 %v4933
    %v5376 = vpop.f32.mrf.mxu0
    %v5377 = vadd.f32 %v2484, %v5376
    %5378 = vdwg.mxu0
    %5379 = vmatpush.msra.mxu0 %v2396
    %5380 = vmatpush.msra.mxu0 %v2388
    %5381 = vmatpush.msra.mxu0 %v2380
    %5382 = vmatpush.msra.mxu0 %v2372
    %5383 = vmatpush.msra.mxu0 %v2364
    %5384 = vmatpush.msra.mxu0 %v2356
    %5385 = vmatpush.msra.mxu0 %v2348
    %5386 = vmatpush.msra.mxu0 %v2340
    %5387 = vmatpush.msra.mxu0 %v2332
    %5388 = vmatpush.msra.mxu0 %v2324
    %5389 = vmatpush.msra.mxu0 %v2316
    %5390 = vmatpush.msra.mxu0 %v2308
    %5391 = vmatpush.msra.mxu0 %v2300
    %5392 = vmatpush.msra.mxu0 %v2292
    %5393 = vmatpush.msra.mxu0 %v2284
    %5394 = vmatpush.msra.mxu0 %v2276
    %5395 = vmatmul.f32.gmra.mxu0 %v4934
    %v5396 = vpop.f32.mrf.mxu0
    %v5397 = vadd.f32 %v5377, %v5396
    %5398 = vdwg.mxu0
    %5399 = vmatpush.msra.mxu0 0.0
    %5400 = vmatpush.msra.mxu0 0.0
    %5401 = vmatpush.msra.mxu0 0.0
    %5402 = vmatpush.msra.mxu0 0.0
    %5403 = vmatpush.msra.mxu0 0.0
    %5404 = vmatpush.msra.mxu0 0.0
    %5405 = vmatpush.msra.mxu0 0.0
    %5406 = vmatpush.msra.mxu0 0.0
    %5407 = vmatpush.msra.mxu0 %v2460
    %5408 = vmatpush.msra.mxu0 %v2452
    %5409 = vmatpush.msra.mxu0 %v2444
    %5410 = vmatpush.msra.mxu0 %v2436
    %5411 = vmatpush.msra.mxu0 %v2428
    %5412 = vmatpush.msra.mxu0 %v2420
    %5413 = vmatpush.msra.mxu0 %v2412
    %5414 = vmatpush.msra.mxu0 %v2404
    %5415 = vmatmul.f32.gmra.mxu0 %v4937
    %v5416 = vpop.f32.mrf.mxu0
    %v5417 = vadd.f32 %v5397, %v5416
    %5418 = vdwg.mxu0
    %v5422 = vrot.slane %v4997, 5
    %v5423 = vrot.slane %v5057, 5
    %v5424 = vrot.slane %v5117, 5
    %v5425 = vrot.slane %v4997, 6
    %v5426 = vrot.slane %v5057, 6
    %v5427 = vrot.slane %v5117, 6
    %v5434 = vadd.f32 %v1975, %v5422
    %v5435 = vadd.f32 %v1998, %v5423
    %v5436 = vadd.f32 %v2021, %v5424
    %v5437 = vadd.f32 %v1978, %v5425
    %v5438 = vadd.f32 %v2001, %v5426
    %v5439 = vadd.f32 %v2024, %v5427
    %v5440 = vsub.f32 0.0, %v5434
    %v5441 = vsub.f32 0.0, %v5435
    %v5442 = vsub.f32 0.0, %v5436
    %v5443 = vsub.f32 0.0, %v5437
    %v5444 = vsub.f32 0.0, %v5438
    %v5445 = vsub.f32 0.0, %v5439
    %v5446 = vmul.f32 %v5440, 1.442695
    %v5447 = vpow.pop %v5446
    %v5448 = vmul.f32 %v5441, 1.442695
    %v5449 = vpow.pop %v5448
    %v5450 = vmul.f32 %v5442, 1.442695
    %v5451 = vpow.pop %v5450
    %v5452 = vmul.f32 %v5443, 1.442695
    %v5453 = vpow.pop %v5452
    %v5454 = vmul.f32 %v5444, 1.442695
    %v5455 = vpow.pop %v5454
    %v5456 = vmul.f32 %v5445, 1.442695
    %v5457 = vpow.pop %v5456
    %v5458 = vadd.f32 %v5447, 1.0
    %v5459 = vadd.f32 %v5449, 1.0
    %v5460 = vadd.f32 %v5451, 1.0
    %v5461 = vadd.f32 %v5453, 1.0
    %v5462 = vadd.f32 %v5455, 1.0
    %v5463 = vadd.f32 %v5457, 1.0
    %v5464 = vrcp.pop %v5458
    %v5465 = vmul.f32 %v5458, %v5464
    %v5466 = vsub.f32 1.0, %v5465
    %v5467 = vmul.f32 %v5464, %v5466
    %v5468 = vadd.f32 %v5464, %v5467
    %vm5469 = vweird.f32 %v5458
    %vm5470 = vweird.f32 %v5464
    %vm5471 = vmor %vm5469, %vm5470
    %v5472 = vsel %vm5471, %v5464, %v5468
    %v5473 = vand.u32 2147483647, %v5458
    %vm5474 = vcmp.eq.f32.partialorder %v5473, 8.507059e+37
    %v5475 = vand.u32 %v5458, 2147483648
    %v5476 = vor.u32 1.1754944e-38, %v5475
    %v5477 = vsel %vm5474, %v5476, %v5472
    %v5478 = vmul.f32 1.0, %v5477
    %v5479 = vrcp.pop %v5459
    %v5480 = vmul.f32 %v5459, %v5479
    %v5481 = vsub.f32 1.0, %v5480
    %v5482 = vmul.f32 %v5479, %v5481
    %v5483 = vadd.f32 %v5479, %v5482
    %vm5484 = vweird.f32 %v5459
    %vm5485 = vweird.f32 %v5479
    %vm5486 = vmor %vm5484, %vm5485
    %v5487 = vsel %vm5486, %v5479, %v5483
    %v5488 = vand.u32 2147483647, %v5459
    %vm5489 = vcmp.eq.f32.partialorder %v5488, 8.507059e+37
    %v5490 = vand.u32 %v5459, 2147483648
    %v5491 = vor.u32 1.1754944e-38, %v5490
    %v5492 = vsel %vm5489, %v5491, %v5487
    %v5493 = vmul.f32 1.0, %v5492
    %v5494 = vrcp.pop %v5460
    %v5495 = vmul.f32 %v5460, %v5494
    %v5496 = vsub.f32 1.0, %v5495
    %v5497 = vmul.f32 %v5494, %v5496
    %v5498 = vadd.f32 %v5494, %v5497
    %vm5499 = vweird.f32 %v5460
    %vm5500 = vweird.f32 %v5494
    %vm5501 = vmor %vm5499, %vm5500
    %v5502 = vsel %vm5501, %v5494, %v5498
    %v5503 = vand.u32 2147483647, %v5460
    %vm5504 = vcmp.eq.f32.partialorder %v5503, 8.507059e+37
    %v5505 = vand.u32 %v5460, 2147483648
    %v5506 = vor.u32 1.1754944e-38, %v5505
    %v5507 = vsel %vm5504, %v5506, %v5502
    %v5508 = vmul.f32 1.0, %v5507
    %v5509 = vrcp.pop %v5461
    %v5510 = vmul.f32 %v5461, %v5509
    %v5511 = vsub.f32 1.0, %v5510
    %v5512 = vmul.f32 %v5509, %v5511
    %v5513 = vadd.f32 %v5509, %v5512
    %vm5514 = vweird.f32 %v5461
    %vm5515 = vweird.f32 %v5509
    %vm5516 = vmor %vm5514, %vm5515
    %v5517 = vsel %vm5516, %v5509, %v5513
    %v5518 = vand.u32 2147483647, %v5461
    %vm5519 = vcmp.eq.f32.partialorder %v5518, 8.507059e+37
    %v5520 = vand.u32 %v5461, 2147483648
    %v5521 = vor.u32 1.1754944e-38, %v5520
    %v5522 = vsel %vm5519, %v5521, %v5517
    %v5523 = vmul.f32 1.0, %v5522
    %v5524 = vrcp.pop %v5462
    %v5525 = vmul.f32 %v5462, %v5524
    %v5526 = vsub.f32 1.0, %v5525
    %v5527 = vmul.f32 %v5524, %v5526
    %v5528 = vadd.f32 %v5524, %v5527
    %vm5529 = vweird.f32 %v5462
    %vm5530 = vweird.f32 %v5524
    %vm5531 = vmor %vm5529, %vm5530
    %v5532 = vsel %vm5531, %v5524, %v5528
    %v5533 = vand.u32 2147483647, %v5462
    %vm5534 = vcmp.eq.f32.partialorder %v5533, 8.507059e+37
    %v5535 = vand.u32 %v5462, 2147483648
    %v5536 = vor.u32 1.1754944e-38, %v5535
    %v5537 = vsel %vm5534, %v5536, %v5532
    %v5538 = vmul.f32 1.0, %v5537
    %v5539 = vrcp.pop %v5463
    %v5540 = vmul.f32 %v5463, %v5539
    %v5541 = vsub.f32 1.0, %v5540
    %v5542 = vmul.f32 %v5539, %v5541
    %v5543 = vadd.f32 %v5539, %v5542
    %vm5544 = vweird.f32 %v5463
    %vm5545 = vweird.f32 %v5539
    %vm5546 = vmor %vm5544, %vm5545
    %v5547 = vsel %vm5546, %v5539, %v5543
    %v5548 = vand.u32 2147483647, %v5463
    %vm5549 = vcmp.eq.f32.partialorder %v5548, 8.507059e+37
    %v5550 = vand.u32 %v5463, 2147483648
    %v5551 = vor.u32 1.1754944e-38, %v5550
    %v5552 = vsel %vm5549, %v5551, %v5547
    %v5553 = vmul.f32 1.0, %v5552
    %v5556 = vrot.slane %v5177, 5
    %v5557 = vrot.slane %v5237, 5
    %v5558 = vrot.slane %v5177, 6
    %v5559 = vrot.slane %v5237, 6
    %v5564 = vadd.f32 %v2044, %v5556
    %v5565 = vadd.f32 %v2067, %v5557
    %v5566 = vadd.f32 %v2047, %v5558
    %v5567 = vadd.f32 %v2070, %v5559
    %v5568 = vsub.f32 0.0, %v5564
    %v5569 = vsub.f32 0.0, %v5565
    %v5570 = vsub.f32 0.0, %v5566
    %v5571 = vsub.f32 0.0, %v5567
    %v5572 = vmul.f32 %v5568, 1.442695
    %v5573 = vpow.pop %v5572
    %v5574 = vmul.f32 %v5569, 1.442695
    %v5575 = vpow.pop %v5574
    %v5576 = vmul.f32 %v5570, 1.442695
    %v5577 = vpow.pop %v5576
    %v5578 = vmul.f32 %v5571, 1.442695
    %v5579 = vpow.pop %v5578
    %v5580 = vadd.f32 %v5573, 1.0
    %v5581 = vadd.f32 %v5575, 1.0
    %v5582 = vadd.f32 %v5577, 1.0
    %v5583 = vadd.f32 %v5579, 1.0
    %v5584 = vrcp.pop %v5580
    %v5585 = vmul.f32 %v5580, %v5584
    %v5586 = vsub.f32 1.0, %v5585
    %v5587 = vmul.f32 %v5584, %v5586
    %v5588 = vadd.f32 %v5584, %v5587
    %vm5589 = vweird.f32 %v5580
    %vm5590 = vweird.f32 %v5584
    %vm5591 = vmor %vm5589, %vm5590
    %v5592 = vsel %vm5591, %v5584, %v5588
    %v5593 = vand.u32 2147483647, %v5580
    %vm5594 = vcmp.eq.f32.partialorder %v5593, 8.507059e+37
    %v5595 = vand.u32 %v5580, 2147483648
    %v5596 = vor.u32 1.1754944e-38, %v5595
    %v5597 = vsel %vm5594, %v5596, %v5592
    %v5598 = vmul.f32 1.0, %v5597
    %v5599 = vrcp.pop %v5581
    %v5600 = vmul.f32 %v5581, %v5599
    %v5601 = vsub.f32 1.0, %v5600
    %v5602 = vmul.f32 %v5599, %v5601
    %v5603 = vadd.f32 %v5599, %v5602
    %vm5604 = vweird.f32 %v5581
    %vm5605 = vweird.f32 %v5599
    %vm5606 = vmor %vm5604, %vm5605
    %v5607 = vsel %vm5606, %v5599, %v5603
    %v5608 = vand.u32 2147483647, %v5581
    %vm5609 = vcmp.eq.f32.partialorder %v5608, 8.507059e+37
    %v5610 = vand.u32 %v5581, 2147483648
    %v5611 = vor.u32 1.1754944e-38, %v5610
    %v5612 = vsel %vm5609, %v5611, %v5607
    %v5613 = vmul.f32 1.0, %v5612
    %v5614 = vrcp.pop %v5582
    %v5615 = vmul.f32 %v5582, %v5614
    %v5616 = vsub.f32 1.0, %v5615
    %v5617 = vmul.f32 %v5614, %v5616
    %v5618 = vadd.f32 %v5614, %v5617
    %vm5619 = vweird.f32 %v5582
    %vm5620 = vweird.f32 %v5614
    %vm5621 = vmor %vm5619, %vm5620
    %v5622 = vsel %vm5621, %v5614, %v5618
    %v5623 = vand.u32 2147483647, %v5582
    %vm5624 = vcmp.eq.f32.partialorder %v5623, 8.507059e+37
    %v5625 = vand.u32 %v5582, 2147483648
    %v5626 = vor.u32 1.1754944e-38, %v5625
    %v5627 = vsel %vm5624, %v5626, %v5622
    %v5628 = vmul.f32 1.0, %v5627
    %v5629 = vrcp.pop %v5583
    %v5630 = vmul.f32 %v5583, %v5629
    %v5631 = vsub.f32 1.0, %v5630
    %v5632 = vmul.f32 %v5629, %v5631
    %v5633 = vadd.f32 %v5629, %v5632
    %vm5634 = vweird.f32 %v5583
    %vm5635 = vweird.f32 %v5629
    %vm5636 = vmor %vm5634, %vm5635
    %v5637 = vsel %vm5636, %v5629, %v5633
    %v5638 = vand.u32 2147483647, %v5583
    %vm5639 = vcmp.eq.f32.partialorder %v5638, 8.507059e+37
    %v5640 = vand.u32 %v5583, 2147483648
    %v5641 = vor.u32 1.1754944e-38, %v5640
    %v5642 = vsel %vm5639, %v5641, %v5637
    %v5643 = vmul.f32 1.0, %v5642
    %v5647 = vrot.slane %v5297, 5
    %v5648 = vrot.slane %v5357, 5
    %v5649 = vrot.slane %v5417, 5
    %v5650 = vrot.slane %v5297, 6
    %v5651 = vrot.slane %v5357, 6
    %v5652 = vrot.slane %v5417, 6
    %v5659 = vmul.f32 %v5478, %v5647
    %v5660 = vmul.f32 %v5493, %v5648
    %v5661 = vmul.f32 %v5508, %v5649
    %v5662 = vmul.f32 %v5523, %v5650
    %v5663 = vmul.f32 %v5538, %v5651
    %v5664 = vmul.f32 %v5553, %v5652
    %v5665 = vadd.f32 %v2090, %v5659
    %v5666 = vadd.f32 %v2113, %v5660
    %v5667 = vadd.f32 %v2136, %v5661
    %v5668 = vadd.f32 %v2093, %v5662
    %v5669 = vadd.f32 %v2116, %v5663
    %v5670 = vadd.f32 %v2139, %v5664
    %v5671 = vtanh.pop %v5665
    %v5672 = vtanh.pop %v5666
    %v5673 = vtanh.pop %v5667
    %v5674 = vtanh.pop %v5668
    %v5675 = vtanh.pop %v5669
    %v5676 = vtanh.pop %v5670
    %v5677 = vsub.f32 1.0, %v5508
    %v5678 = vsub.f32 1.0, %v5598
    %v5679 = vsub.f32 1.0, %v5613
    %v5680 = vsub.f32 1.0, %v5553
    %v5681 = vsub.f32 1.0, %v5628
    %v5682 = vsub.f32 1.0, %v5643
    %5689 = vrot.lane.b32.xlu0 %v5671, 64
    %v5690 = vpop.permute.xlu0 %5689
    %5691 = vrot.lane.b32.xlu0 %v5672, 64
    %v5692 = vpop.permute.xlu0 %5691
    %5693 = vrot.lane.b32.xlu0 %v5673, 64
    %v5694 = vpop.permute.xlu0 %5693
    %5695 = vrot.lane.b32.xlu0 %v5674, 64
    %v5696 = vpop.permute.xlu0 %5695
    %5697 = vrot.lane.b32.xlu0 %v5675, 64
    %v5698 = vpop.permute.xlu0 %5697
    %5699 = vrot.lane.b32.xlu0 %v5676, 64
    %v5700 = vpop.permute.xlu0 %5699
    %v5701 = vsel %vm990, %v5690, %v5692
    %v5702 = vsel %vm990, %v5692, %v5694
    %v5703 = vsel %vm990, %v5696, %v5698
    %v5704 = vsel %vm990, %v5698, %v5700
    %v5711 = vmul.f32 %v5677, %v5690
    %v5712 = vmul.f32 %v5678, %v5701
    %v5713 = vmul.f32 %v5679, %v5702
    %v5714 = vmul.f32 %v5680, %v5696
    %v5715 = vmul.f32 %v5681, %v5703
    %v5716 = vmul.f32 %v5682, %v5704
    %v5717 = vrot.slane %v4906, 7
    %v5718 = vrot.slane %v4907, 7
    %v5719 = vrot.slane %v4908, 7
    %v5720 = vrot.slane %v4909, 7
    %v5721 = vrot.slane %v4910, 7
    %v5722 = vrot.slane %v4911, 7
    %v5729 = vmul.f32 %v5508, %v5717
    %v5730 = vmul.f32 %v5598, %v5718
    %v5731 = vmul.f32 %v5613, %v5719
    %v5732 = vmul.f32 %v5553, %v5720
    %v5733 = vmul.f32 %v5628, %v5721
    %v5734 = vmul.f32 %v5643, %v5722
    %v5735 = vadd.f32 %v5711, %v5729
    %v5736 = vadd.f32 %v5712, %v5730
    %v5737 = vadd.f32 %v5713, %v5731
    %v5738 = vadd.f32 %v5714, %v5732
    %v5739 = vadd.f32 %v5715, %v5733
    %v5740 = vadd.f32 %v5716, %v5734
    %v5747 = vrot.slane %v5735, 3
    %v5748 = vrot.slane %v5738, 2
    %v5749 = vsel %vm3277, %v5748, %v5747
    %v5750 = vrot.slane %v5736, 3
    %v5751 = vrot.slane %v5739, 2
    %v5752 = vsel %vm3277, %v5751, %v5750
    %v5753 = vrot.slane %v5737, 3
    %v5754 = vrot.slane %v5740, 2
    %v5755 = vsel %vm3277, %v5754, %v5753
    %5756 = vrot.lane.b32.xlu0 %v5749, 64
    %v5757 = vpop.permute.xlu0 %5756
    %5758 = vrot.lane.b32.xlu0 %v5752, 64
    %v5759 = vpop.permute.xlu0 %5758
    %5760 = vrot.lane.b32.xlu0 %v5755, 64
    %v5761 = vpop.permute.xlu0 %5760
    %v5762 = vsel %vm990, %v5757, %v5759
    %v5763 = vsel %vm990, %v5759, %v5761
    %v5766 = vsel %vm990, %v5761, 0
    %5768 = vmatpush.msra.mxu0 %v2261
    %5769 = vmatpush.msra.mxu0 %v2253
    %5770 = vmatpush.msra.mxu0 %v2245
    %5771 = vmatpush.msra.mxu0 %v2237
    %5772 = vmatpush.msra.mxu0 %v2229
    %5773 = vmatpush.msra.mxu0 %v2221
    %5774 = vmatpush.msra.mxu0 %v2213
    %5775 = vmatpush.msra.mxu0 %v2205
    %5776 = vmatpush.msra.mxu0 %v2197
    %5777 = vmatpush.msra.mxu0 %v2189
    %5778 = vmatpush.msra.mxu0 %v2181
    %5779 = vmatpush.msra.mxu0 %v2173
    %5780 = vmatpush.msra.mxu0 %v2165
    %5781 = vmatpush.msra.mxu0 %v2157
    %5782 = vmatpush.msra.mxu0 %v2149
    %5783 = vmatpush.msra.mxu0 %v2141
    %5784 = vmatmul.f32.gmra.mxu0 %v5762
    %v5785 = vpop.f32.mrf.mxu0
    %v5786 = vadd.f32 %v2477, %v5785
    %5787 = vdwg.mxu0
    %5788 = vmatpush.msra.mxu0 %v2389
    %5789 = vmatpush.msra.mxu0 %v2381
    %5790 = vmatpush.msra.mxu0 %v2373
    %5791 = vmatpush.msra.mxu0 %v2365
    %5792 = vmatpush.msra.mxu0 %v2357
    %5793 = vmatpush.msra.mxu0 %v2349
    %5794 = vmatpush.msra.mxu0 %v2341
    %5795 = vmatpush.msra.mxu0 %v2333
    %5796 = vmatpush.msra.mxu0 %v2325
    %5797 = vmatpush.msra.mxu0 %v2317
    %5798 = vmatpush.msra.mxu0 %v2309
    %5799 = vmatpush.msra.mxu0 %v2301
    %5800 = vmatpush.msra.mxu0 %v2293
    %5801 = vmatpush.msra.mxu0 %v2285
    %5802 = vmatpush.msra.mxu0 %v2277
    %5803 = vmatpush.msra.mxu0 %v2269
    %5804 = vmatmul.f32.gmra.mxu0 %v5763
    %v5805 = vpop.f32.mrf.mxu0
    %v5806 = vadd.f32 %v5786, %v5805
    %5807 = vdwg.mxu0
    %5808 = vmatpush.msra.mxu0 0.0
    %5809 = vmatpush.msra.mxu0 0.0
    %5810 = vmatpush.msra.mxu0 0.0
    %5811 = vmatpush.msra.mxu0 0.0
    %5812 = vmatpush.msra.mxu0 0.0
    %5813 = vmatpush.msra.mxu0 0.0
    %5814 = vmatpush.msra.mxu0 0.0
    %5815 = vmatpush.msra.mxu0 0.0
    %5816 = vmatpush.msra.mxu0 %v2453
    %5817 = vmatpush.msra.mxu0 %v2445
    %5818 = vmatpush.msra.mxu0 %v2437
    %5819 = vmatpush.msra.mxu0 %v2429
    %5820 = vmatpush.msra.mxu0 %v2421
    %5821 = vmatpush.msra.mxu0 %v2413
    %5822 = vmatpush.msra.mxu0 %v2405
    %5823 = vmatpush.msra.mxu0 %v2397
    %5824 = vmatmul.f32.gmra.mxu0 %v5766
    %v5825 = vpop.f32.mrf.mxu0
    %v5826 = vadd.f32 %v5806, %v5825
    %5827 = vdwg.mxu0
    %5828 = vmatpush.msra.mxu0 %v2262
    %5829 = vmatpush.msra.mxu0 %v2254
    %5830 = vmatpush.msra.mxu0 %v2246
    %5831 = vmatpush.msra.mxu0 %v2238
    %5832 = vmatpush.msra.mxu0 %v2230
    %5833 = vmatpush.msra.mxu0 %v2222
    %5834 = vmatpush.msra.mxu0 %v2214
    %5835 = vmatpush.msra.mxu0 %v2206
    %5836 = vmatpush.msra.mxu0 %v2198
    %5837 = vmatpush.msra.mxu0 %v2190
    %5838 = vmatpush.msra.mxu0 %v2182
    %5839 = vmatpush.msra.mxu0 %v2174
    %5840 = vmatpush.msra.mxu0 %v2166
    %5841 = vmatpush.msra.mxu0 %v2158
    %5842 = vmatpush.msra.mxu0 %v2150
    %5843 = vmatpush.msra.mxu0 %v2142
    %5844 = vmatmul.f32.gmra.mxu0 %v5762
    %v5845 = vpop.f32.mrf.mxu0
    %v5846 = vadd.f32 %v2478, %v5845
    %5847 = vdwg.mxu0
    %5848 = vmatpush.msra.mxu0 %v2390
    %5849 = vmatpush.msra.mxu0 %v2382
    %5850 = vmatpush.msra.mxu0 %v2374
    %5851 = vmatpush.msra.mxu0 %v2366
    %5852 = vmatpush.msra.mxu0 %v2358
    %5853 = vmatpush.msra.mxu0 %v2350
    %5854 = vmatpush.msra.mxu0 %v2342
    %5855 = vmatpush.msra.mxu0 %v2334
    %5856 = vmatpush.msra.mxu0 %v2326
    %5857 = vmatpush.msra.mxu0 %v2318
    %5858 = vmatpush.msra.mxu0 %v2310
    %5859 = vmatpush.msra.mxu0 %v2302
    %5860 = vmatpush.msra.mxu0 %v2294
    %5861 = vmatpush.msra.mxu0 %v2286
    %5862 = vmatpush.msra.mxu0 %v2278
    %5863 = vmatpush.msra.mxu0 %v2270
    %5864 = vmatmul.f32.gmra.mxu0 %v5763
    %v5865 = vpop.f32.mrf.mxu0
    %v5866 = vadd.f32 %v5846, %v5865
    %5867 = vdwg.mxu0
    %5868 = vmatpush.msra.mxu0 0.0
    %5869 = vmatpush.msra.mxu0 0.0
    %5870 = vmatpush.msra.mxu0 0.0
    %5871 = vmatpush.msra.mxu0 0.0
    %5872 = vmatpush.msra.mxu0 0.0
    %5873 = vmatpush.msra.mxu0 0.0
    %5874 = vmatpush.msra.mxu0 0.0
    %5875 = vmatpush.msra.mxu0 0.0
    %5876 = vmatpush.msra.mxu0 %v2454
    %5877 = vmatpush.msra.mxu0 %v2446
    %5878 = vmatpush.msra.mxu0 %v2438
    %5879 = vmatpush.msra.mxu0 %v2430
    %5880 = vmatpush.msra.mxu0 %v2422
    %5881 = vmatpush.msra.mxu0 %v2414
    %5882 = vmatpush.msra.mxu0 %v2406
    %5883 = vmatpush.msra.mxu0 %v2398
    %5884 = vmatmul.f32.gmra.mxu0 %v5766
    %v5885 = vpop.f32.mrf.mxu0
    %v5886 = vadd.f32 %v5866, %v5885
    %5887 = vdwg.mxu0
    %5888 = vmatpush.msra.mxu0 %v2263
    %5889 = vmatpush.msra.mxu0 %v2255
    %5890 = vmatpush.msra.mxu0 %v2247
    %5891 = vmatpush.msra.mxu0 %v2239
    %5892 = vmatpush.msra.mxu0 %v2231
    %5893 = vmatpush.msra.mxu0 %v2223
    %5894 = vmatpush.msra.mxu0 %v2215
    %5895 = vmatpush.msra.mxu0 %v2207
    %5896 = vmatpush.msra.mxu0 %v2199
    %5897 = vmatpush.msra.mxu0 %v2191
    %5898 = vmatpush.msra.mxu0 %v2183
    %5899 = vmatpush.msra.mxu0 %v2175
    %5900 = vmatpush.msra.mxu0 %v2167
    %5901 = vmatpush.msra.mxu0 %v2159
    %5902 = vmatpush.msra.mxu0 %v2151
    %5903 = vmatpush.msra.mxu0 %v2143
    %5904 = vmatmul.f32.gmra.mxu0 %v5762
    %v5905 = vpop.f32.mrf.mxu0
    %v5906 = vadd.f32 %v2479, %v5905
    %5907 = vdwg.mxu0
    %5908 = vmatpush.msra.mxu0 %v2391
    %5909 = vmatpush.msra.mxu0 %v2383
    %5910 = vmatpush.msra.mxu0 %v2375
    %5911 = vmatpush.msra.mxu0 %v2367
    %5912 = vmatpush.msra.mxu0 %v2359
    %5913 = vmatpush.msra.mxu0 %v2351
    %5914 = vmatpush.msra.mxu0 %v2343
    %5915 = vmatpush.msra.mxu0 %v2335
    %5916 = vmatpush.msra.mxu0 %v2327
    %5917 = vmatpush.msra.mxu0 %v2319
    %5918 = vmatpush.msra.mxu0 %v2311
    %5919 = vmatpush.msra.mxu0 %v2303
    %5920 = vmatpush.msra.mxu0 %v2295
    %5921 = vmatpush.msra.mxu0 %v2287
    %5922 = vmatpush.msra.mxu0 %v2279
    %5923 = vmatpush.msra.mxu0 %v2271
    %5924 = vmatmul.f32.gmra.mxu0 %v5763
    %v5925 = vpop.f32.mrf.mxu0
    %v5926 = vadd.f32 %v5906, %v5925
    %5927 = vdwg.mxu0
    %5928 = vmatpush.msra.mxu0 0.0
    %5929 = vmatpush.msra.mxu0 0.0
    %5930 = vmatpush.msra.mxu0 0.0
    %5931 = vmatpush.msra.mxu0 0.0
    %5932 = vmatpush.msra.mxu0 0.0
    %5933 = vmatpush.msra.mxu0 0.0
    %5934 = vmatpush.msra.mxu0 0.0
    %5935 = vmatpush.msra.mxu0 0.0
    %5936 = vmatpush.msra.mxu0 %v2455
    %5937 = vmatpush.msra.mxu0 %v2447
    %5938 = vmatpush.msra.mxu0 %v2439
    %5939 = vmatpush.msra.mxu0 %v2431
    %5940 = vmatpush.msra.mxu0 %v2423
    %5941 = vmatpush.msra.mxu0 %v2415
    %5942 = vmatpush.msra.mxu0 %v2407
    %5943 = vmatpush.msra.mxu0 %v2399
    %5944 = vmatmul.f32.gmra.mxu0 %v5766
    %v5945 = vpop.f32.mrf.mxu0
    %v5946 = vadd.f32 %v5926, %v5945
    %5947 = vdwg.mxu0
    %5948 = vmatpush.msra.mxu0 %v2264
    %5949 = vmatpush.msra.mxu0 %v2256
    %5950 = vmatpush.msra.mxu0 %v2248
    %5951 = vmatpush.msra.mxu0 %v2240
    %5952 = vmatpush.msra.mxu0 %v2232
    %5953 = vmatpush.msra.mxu0 %v2224
    %5954 = vmatpush.msra.mxu0 %v2216
    %5955 = vmatpush.msra.mxu0 %v2208
    %5956 = vmatpush.msra.mxu0 %v2200
    %5957 = vmatpush.msra.mxu0 %v2192
    %5958 = vmatpush.msra.mxu0 %v2184
    %5959 = vmatpush.msra.mxu0 %v2176
    %5960 = vmatpush.msra.mxu0 %v2168
    %5961 = vmatpush.msra.mxu0 %v2160
    %5962 = vmatpush.msra.mxu0 %v2152
    %5963 = vmatpush.msra.mxu0 %v2144
    %5964 = vmatmul.f32.gmra.mxu0 %v5762
    %v5965 = vpop.f32.mrf.mxu0
    %v5966 = vadd.f32 %v2480, %v5965
    %5967 = vdwg.mxu0
    %5968 = vmatpush.msra.mxu0 %v2392
    %5969 = vmatpush.msra.mxu0 %v2384
    %5970 = vmatpush.msra.mxu0 %v2376
    %5971 = vmatpush.msra.mxu0 %v2368
    %5972 = vmatpush.msra.mxu0 %v2360
    %5973 = vmatpush.msra.mxu0 %v2352
    %5974 = vmatpush.msra.mxu0 %v2344
    %5975 = vmatpush.msra.mxu0 %v2336
    %5976 = vmatpush.msra.mxu0 %v2328
    %5977 = vmatpush.msra.mxu0 %v2320
    %5978 = vmatpush.msra.mxu0 %v2312
    %5979 = vmatpush.msra.mxu0 %v2304
    %5980 = vmatpush.msra.mxu0 %v2296
    %5981 = vmatpush.msra.mxu0 %v2288
    %5982 = vmatpush.msra.mxu0 %v2280
    %5983 = vmatpush.msra.mxu0 %v2272
    %5984 = vmatmul.f32.gmra.mxu0 %v5763
    %v5985 = vpop.f32.mrf.mxu0
    %v5986 = vadd.f32 %v5966, %v5985
    %5987 = vdwg.mxu0
    %5988 = vmatpush.msra.mxu0 0.0
    %5989 = vmatpush.msra.mxu0 0.0
    %5990 = vmatpush.msra.mxu0 0.0
    %5991 = vmatpush.msra.mxu0 0.0
    %5992 = vmatpush.msra.mxu0 0.0
    %5993 = vmatpush.msra.mxu0 0.0
    %5994 = vmatpush.msra.mxu0 0.0
    %5995 = vmatpush.msra.mxu0 0.0
    %5996 = vmatpush.msra.mxu0 %v2456
    %5997 = vmatpush.msra.mxu0 %v2448
    %5998 = vmatpush.msra.mxu0 %v2440
    %5999 = vmatpush.msra.mxu0 %v2432
    %6000 = vmatpush.msra.mxu0 %v2424
    %6001 = vmatpush.msra.mxu0 %v2416
    %6002 = vmatpush.msra.mxu0 %v2408
    %6003 = vmatpush.msra.mxu0 %v2400
    %6004 = vmatmul.f32.gmra.mxu0 %v5766
    %v6005 = vpop.f32.mrf.mxu0
    %v6006 = vadd.f32 %v5986, %v6005
    %6007 = vdwg.mxu0
    %6008 = vmatpush.msra.mxu0 %v2265
    %6009 = vmatpush.msra.mxu0 %v2257
    %6010 = vmatpush.msra.mxu0 %v2249
    %6011 = vmatpush.msra.mxu0 %v2241
    %6012 = vmatpush.msra.mxu0 %v2233
    %6013 = vmatpush.msra.mxu0 %v2225
    %6014 = vmatpush.msra.mxu0 %v2217
    %6015 = vmatpush.msra.mxu0 %v2209
    %6016 = vmatpush.msra.mxu0 %v2201
    %6017 = vmatpush.msra.mxu0 %v2193
    %6018 = vmatpush.msra.mxu0 %v2185
    %6019 = vmatpush.msra.mxu0 %v2177
    %6020 = vmatpush.msra.mxu0 %v2169
    %6021 = vmatpush.msra.mxu0 %v2161
    %6022 = vmatpush.msra.mxu0 %v2153
    %6023 = vmatpush.msra.mxu0 %v2145
    %6024 = vmatmul.f32.gmra.mxu0 %v5762
    %v6025 = vpop.f32.mrf.mxu0
    %v6026 = vadd.f32 %v2481, %v6025
    %6027 = vdwg.mxu0
    %6028 = vmatpush.msra.mxu0 %v2393
    %6029 = vmatpush.msra.mxu0 %v2385
    %6030 = vmatpush.msra.mxu0 %v2377
    %6031 = vmatpush.msra.mxu0 %v2369
    %6032 = vmatpush.msra.mxu0 %v2361
    %6033 = vmatpush.msra.mxu0 %v2353
    %6034 = vmatpush.msra.mxu0 %v2345
    %6035 = vmatpush.msra.mxu0 %v2337
    %6036 = vmatpush.msra.mxu0 %v2329
    %6037 = vmatpush.msra.mxu0 %v2321
    %6038 = vmatpush.msra.mxu0 %v2313
    %6039 = vmatpush.msra.mxu0 %v2305
    %6040 = vmatpush.msra.mxu0 %v2297
    %6041 = vmatpush.msra.mxu0 %v2289
    %6042 = vmatpush.msra.mxu0 %v2281
    %6043 = vmatpush.msra.mxu0 %v2273
    %6044 = vmatmul.f32.gmra.mxu0 %v5763
    %v6045 = vpop.f32.mrf.mxu0
    %v6046 = vadd.f32 %v6026, %v6045
    %6047 = vdwg.mxu0
    %6048 = vmatpush.msra.mxu0 0.0
    %6049 = vmatpush.msra.mxu0 0.0
    %6050 = vmatpush.msra.mxu0 0.0
    %6051 = vmatpush.msra.mxu0 0.0
    %6052 = vmatpush.msra.mxu0 0.0
    %6053 = vmatpush.msra.mxu0 0.0
    %6054 = vmatpush.msra.mxu0 0.0
    %6055 = vmatpush.msra.mxu0 0.0
    %6056 = vmatpush.msra.mxu0 %v2457
    %6057 = vmatpush.msra.mxu0 %v2449
    %6058 = vmatpush.msra.mxu0 %v2441
    %6059 = vmatpush.msra.mxu0 %v2433
    %6060 = vmatpush.msra.mxu0 %v2425
    %6061 = vmatpush.msra.mxu0 %v2417
    %6062 = vmatpush.msra.mxu0 %v2409
    %6063 = vmatpush.msra.mxu0 %v2401
    %6064 = vmatmul.f32.gmra.mxu0 %v5766
    %v6065 = vpop.f32.mrf.mxu0
    %v6066 = vadd.f32 %v6046, %v6065
    %6067 = vdwg.mxu0
    %6068 = vmatpush.msra.mxu0 %v2266
    %6069 = vmatpush.msra.mxu0 %v2258
    %6070 = vmatpush.msra.mxu0 %v2250
    %6071 = vmatpush.msra.mxu0 %v2242
    %6072 = vmatpush.msra.mxu0 %v2234
    %6073 = vmatpush.msra.mxu0 %v2226
    %6074 = vmatpush.msra.mxu0 %v2218
    %6075 = vmatpush.msra.mxu0 %v2210
    %6076 = vmatpush.msra.mxu0 %v2202
    %6077 = vmatpush.msra.mxu0 %v2194
    %6078 = vmatpush.msra.mxu0 %v2186
    %6079 = vmatpush.msra.mxu0 %v2178
    %6080 = vmatpush.msra.mxu0 %v2170
    %6081 = vmatpush.msra.mxu0 %v2162
    %6082 = vmatpush.msra.mxu0 %v2154
    %6083 = vmatpush.msra.mxu0 %v2146
    %6084 = vmatmul.f32.gmra.mxu0 %v5762
    %v6085 = vpop.f32.mrf.mxu0
    %v6086 = vadd.f32 %v2482, %v6085
    %6087 = vdwg.mxu0
    %6088 = vmatpush.msra.mxu0 %v2394
    %6089 = vmatpush.msra.mxu0 %v2386
    %6090 = vmatpush.msra.mxu0 %v2378
    %6091 = vmatpush.msra.mxu0 %v2370
    %6092 = vmatpush.msra.mxu0 %v2362
    %6093 = vmatpush.msra.mxu0 %v2354
    %6094 = vmatpush.msra.mxu0 %v2346
    %6095 = vmatpush.msra.mxu0 %v2338
    %6096 = vmatpush.msra.mxu0 %v2330
    %6097 = vmatpush.msra.mxu0 %v2322
    %6098 = vmatpush.msra.mxu0 %v2314
    %6099 = vmatpush.msra.mxu0 %v2306
    %6100 = vmatpush.msra.mxu0 %v2298
    %6101 = vmatpush.msra.mxu0 %v2290
    %6102 = vmatpush.msra.mxu0 %v2282
    %6103 = vmatpush.msra.mxu0 %v2274
    %6104 = vmatmul.f32.gmra.mxu0 %v5763
    %v6105 = vpop.f32.mrf.mxu0
    %v6106 = vadd.f32 %v6086, %v6105
    %6107 = vdwg.mxu0
    %6108 = vmatpush.msra.mxu0 0.0
    %6109 = vmatpush.msra.mxu0 0.0
    %6110 = vmatpush.msra.mxu0 0.0
    %6111 = vmatpush.msra.mxu0 0.0
    %6112 = vmatpush.msra.mxu0 0.0
    %6113 = vmatpush.msra.mxu0 0.0
    %6114 = vmatpush.msra.mxu0 0.0
    %6115 = vmatpush.msra.mxu0 0.0
    %6116 = vmatpush.msra.mxu0 %v2458
    %6117 = vmatpush.msra.mxu0 %v2450
    %6118 = vmatpush.msra.mxu0 %v2442
    %6119 = vmatpush.msra.mxu0 %v2434
    %6120 = vmatpush.msra.mxu0 %v2426
    %6121 = vmatpush.msra.mxu0 %v2418
    %6122 = vmatpush.msra.mxu0 %v2410
    %6123 = vmatpush.msra.mxu0 %v2402
    %6124 = vmatmul.f32.gmra.mxu0 %v5766
    %v6125 = vpop.f32.mrf.mxu0
    %v6126 = vadd.f32 %v6106, %v6125
    %6127 = vdwg.mxu0
    %6128 = vmatpush.msra.mxu0 %v2267
    %6129 = vmatpush.msra.mxu0 %v2259
    %6130 = vmatpush.msra.mxu0 %v2251
    %6131 = vmatpush.msra.mxu0 %v2243
    %6132 = vmatpush.msra.mxu0 %v2235
    %6133 = vmatpush.msra.mxu0 %v2227
    %6134 = vmatpush.msra.mxu0 %v2219
    %6135 = vmatpush.msra.mxu0 %v2211
    %6136 = vmatpush.msra.mxu0 %v2203
    %6137 = vmatpush.msra.mxu0 %v2195
    %6138 = vmatpush.msra.mxu0 %v2187
    %6139 = vmatpush.msra.mxu0 %v2179
    %6140 = vmatpush.msra.mxu0 %v2171
    %6141 = vmatpush.msra.mxu0 %v2163
    %6142 = vmatpush.msra.mxu0 %v2155
    %6143 = vmatpush.msra.mxu0 %v2147
    %6144 = vmatmul.f32.gmra.mxu0 %v5762
    %v6145 = vpop.f32.mrf.mxu0
    %v6146 = vadd.f32 %v2483, %v6145
    %6147 = vdwg.mxu0
    %6148 = vmatpush.msra.mxu0 %v2395
    %6149 = vmatpush.msra.mxu0 %v2387
    %6150 = vmatpush.msra.mxu0 %v2379
    %6151 = vmatpush.msra.mxu0 %v2371
    %6152 = vmatpush.msra.mxu0 %v2363
    %6153 = vmatpush.msra.mxu0 %v2355
    %6154 = vmatpush.msra.mxu0 %v2347
    %6155 = vmatpush.msra.mxu0 %v2339
    %6156 = vmatpush.msra.mxu0 %v2331
    %6157 = vmatpush.msra.mxu0 %v2323
    %6158 = vmatpush.msra.mxu0 %v2315
    %6159 = vmatpush.msra.mxu0 %v2307
    %6160 = vmatpush.msra.mxu0 %v2299
    %6161 = vmatpush.msra.mxu0 %v2291
    %6162 = vmatpush.msra.mxu0 %v2283
    %6163 = vmatpush.msra.mxu0 %v2275
    %6164 = vmatmul.f32.gmra.mxu0 %v5763
    %v6165 = vpop.f32.mrf.mxu0
    %v6166 = vadd.f32 %v6146, %v6165
    %6167 = vdwg.mxu0
    %6168 = vmatpush.msra.mxu0 0.0
    %6169 = vmatpush.msra.mxu0 0.0
    %6170 = vmatpush.msra.mxu0 0.0
    %6171 = vmatpush.msra.mxu0 0.0
    %6172 = vmatpush.msra.mxu0 0.0
    %6173 = vmatpush.msra.mxu0 0.0
    %6174 = vmatpush.msra.mxu0 0.0
    %6175 = vmatpush.msra.mxu0 0.0
    %6176 = vmatpush.msra.mxu0 %v2459
    %6177 = vmatpush.msra.mxu0 %v2451
    %6178 = vmatpush.msra.mxu0 %v2443
    %6179 = vmatpush.msra.mxu0 %v2435
    %6180 = vmatpush.msra.mxu0 %v2427
    %6181 = vmatpush.msra.mxu0 %v2419
    %6182 = vmatpush.msra.mxu0 %v2411
    %6183 = vmatpush.msra.mxu0 %v2403
    %6184 = vmatmul.f32.gmra.mxu0 %v5766
    %v6185 = vpop.f32.mrf.mxu0
    %v6186 = vadd.f32 %v6166, %v6185
    %6187 = vdwg.mxu0
    %6188 = vmatpush.msra.mxu0 %v2268
    %6189 = vmatpush.msra.mxu0 %v2260
    %6190 = vmatpush.msra.mxu0 %v2252
    %6191 = vmatpush.msra.mxu0 %v2244
    %6192 = vmatpush.msra.mxu0 %v2236
    %6193 = vmatpush.msra.mxu0 %v2228
    %6194 = vmatpush.msra.mxu0 %v2220
    %6195 = vmatpush.msra.mxu0 %v2212
    %6196 = vmatpush.msra.mxu0 %v2204
    %6197 = vmatpush.msra.mxu0 %v2196
    %6198 = vmatpush.msra.mxu0 %v2188
    %6199 = vmatpush.msra.mxu0 %v2180
    %6200 = vmatpush.msra.mxu0 %v2172
    %6201 = vmatpush.msra.mxu0 %v2164
    %6202 = vmatpush.msra.mxu0 %v2156
    %6203 = vmatpush.msra.mxu0 %v2148
    %6204 = vmatmul.f32.gmra.mxu0 %v5762
    %v6205 = vpop.f32.mrf.mxu0
    %v6206 = vadd.f32 %v2484, %v6205
    %6207 = vdwg.mxu0
    %6208 = vmatpush.msra.mxu0 %v2396
    %6209 = vmatpush.msra.mxu0 %v2388
    %6210 = vmatpush.msra.mxu0 %v2380
    %6211 = vmatpush.msra.mxu0 %v2372
    %6212 = vmatpush.msra.mxu0 %v2364
    %6213 = vmatpush.msra.mxu0 %v2356
    %6214 = vmatpush.msra.mxu0 %v2348
    %6215 = vmatpush.msra.mxu0 %v2340
    %6216 = vmatpush.msra.mxu0 %v2332
    %6217 = vmatpush.msra.mxu0 %v2324
    %6218 = vmatpush.msra.mxu0 %v2316
    %6219 = vmatpush.msra.mxu0 %v2308
    %6220 = vmatpush.msra.mxu0 %v2300
    %6221 = vmatpush.msra.mxu0 %v2292
    %6222 = vmatpush.msra.mxu0 %v2284
    %6223 = vmatpush.msra.mxu0 %v2276
    %6224 = vmatmul.f32.gmra.mxu0 %v5763
    %v6225 = vpop.f32.mrf.mxu0
    %v6226 = vadd.f32 %v6206, %v6225
    %6227 = vdwg.mxu0
    %6228 = vmatpush.msra.mxu0 0.0
    %6229 = vmatpush.msra.mxu0 0.0
    %6230 = vmatpush.msra.mxu0 0.0
    %6231 = vmatpush.msra.mxu0 0.0
    %6232 = vmatpush.msra.mxu0 0.0
    %6233 = vmatpush.msra.mxu0 0.0
    %6234 = vmatpush.msra.mxu0 0.0
    %6235 = vmatpush.msra.mxu0 0.0
    %6236 = vmatpush.msra.mxu0 %v2460
    %6237 = vmatpush.msra.mxu0 %v2452
    %6238 = vmatpush.msra.mxu0 %v2444
    %6239 = vmatpush.msra.mxu0 %v2436
    %6240 = vmatpush.msra.mxu0 %v2428
    %6241 = vmatpush.msra.mxu0 %v2420
    %6242 = vmatpush.msra.mxu0 %v2412
    %6243 = vmatpush.msra.mxu0 %v2404
    %6244 = vmatmul.f32.gmra.mxu0 %v5766
    %v6245 = vpop.f32.mrf.mxu0
    %v6246 = vadd.f32 %v6226, %v6245
    %6247 = vdwg.mxu0
    %v6251 = vrot.slane %v5826, 4
    %v6252 = vrot.slane %v5886, 4
    %v6253 = vrot.slane %v5946, 4
    %v6254 = vrot.slane %v5826, 5
    %v6255 = vrot.slane %v5886, 5
    %v6256 = vrot.slane %v5946, 5
    %v6263 = vadd.f32 %v1975, %v6251
    %v6264 = vadd.f32 %v1998, %v6252
    %v6265 = vadd.f32 %v2021, %v6253
    %v6266 = vadd.f32 %v1978, %v6254
    %v6267 = vadd.f32 %v2001, %v6255
    %v6268 = vadd.f32 %v2024, %v6256
    %v6269 = vsub.f32 0.0, %v6263
    %v6270 = vsub.f32 0.0, %v6264
    %v6271 = vsub.f32 0.0, %v6265
    %v6272 = vsub.f32 0.0, %v6266
    %v6273 = vsub.f32 0.0, %v6267
    %v6274 = vsub.f32 0.0, %v6268
    %v6275 = vmul.f32 %v6269, 1.442695
    %v6276 = vpow.pop %v6275
    %v6277 = vmul.f32 %v6270, 1.442695
    %v6278 = vpow.pop %v6277
    %v6279 = vmul.f32 %v6271, 1.442695
    %v6280 = vpow.pop %v6279
    %v6281 = vmul.f32 %v6272, 1.442695
    %v6282 = vpow.pop %v6281
    %v6283 = vmul.f32 %v6273, 1.442695
    %v6284 = vpow.pop %v6283
    %v6285 = vmul.f32 %v6274, 1.442695
    %v6286 = vpow.pop %v6285
    %v6287 = vadd.f32 %v6276, 1.0
    %v6288 = vadd.f32 %v6278, 1.0
    %v6289 = vadd.f32 %v6280, 1.0
    %v6290 = vadd.f32 %v6282, 1.0
    %v6291 = vadd.f32 %v6284, 1.0
    %v6292 = vadd.f32 %v6286, 1.0
    %v6293 = vrcp.pop %v6287
    %v6294 = vmul.f32 %v6287, %v6293
    %v6295 = vsub.f32 1.0, %v6294
    %v6296 = vmul.f32 %v6293, %v6295
    %v6297 = vadd.f32 %v6293, %v6296
    %vm6298 = vweird.f32 %v6287
    %vm6299 = vweird.f32 %v6293
    %vm6300 = vmor %vm6298, %vm6299
    %v6301 = vsel %vm6300, %v6293, %v6297
    %v6302 = vand.u32 2147483647, %v6287
    %vm6303 = vcmp.eq.f32.partialorder %v6302, 8.507059e+37
    %v6304 = vand.u32 %v6287, 2147483648
    %v6305 = vor.u32 1.1754944e-38, %v6304
    %v6306 = vsel %vm6303, %v6305, %v6301
    %v6307 = vmul.f32 1.0, %v6306
    %v6308 = vrcp.pop %v6288
    %v6309 = vmul.f32 %v6288, %v6308
    %v6310 = vsub.f32 1.0, %v6309
    %v6311 = vmul.f32 %v6308, %v6310
    %v6312 = vadd.f32 %v6308, %v6311
    %vm6313 = vweird.f32 %v6288
    %vm6314 = vweird.f32 %v6308
    %vm6315 = vmor %vm6313, %vm6314
    %v6316 = vsel %vm6315, %v6308, %v6312
    %v6317 = vand.u32 2147483647, %v6288
    %vm6318 = vcmp.eq.f32.partialorder %v6317, 8.507059e+37
    %v6319 = vand.u32 %v6288, 2147483648
    %v6320 = vor.u32 1.1754944e-38, %v6319
    %v6321 = vsel %vm6318, %v6320, %v6316
    %v6322 = vmul.f32 1.0, %v6321
    %v6323 = vrcp.pop %v6289
    %v6324 = vmul.f32 %v6289, %v6323
    %v6325 = vsub.f32 1.0, %v6324
    %v6326 = vmul.f32 %v6323, %v6325
    %v6327 = vadd.f32 %v6323, %v6326
    %vm6328 = vweird.f32 %v6289
    %vm6329 = vweird.f32 %v6323
    %vm6330 = vmor %vm6328, %vm6329
    %v6331 = vsel %vm6330, %v6323, %v6327
    %v6332 = vand.u32 2147483647, %v6289
    %vm6333 = vcmp.eq.f32.partialorder %v6332, 8.507059e+37
    %v6334 = vand.u32 %v6289, 2147483648
    %v6335 = vor.u32 1.1754944e-38, %v6334
    %v6336 = vsel %vm6333, %v6335, %v6331
    %v6337 = vmul.f32 1.0, %v6336
    %v6338 = vrcp.pop %v6290
    %v6339 = vmul.f32 %v6290, %v6338
    %v6340 = vsub.f32 1.0, %v6339
    %v6341 = vmul.f32 %v6338, %v6340
    %v6342 = vadd.f32 %v6338, %v6341
    %vm6343 = vweird.f32 %v6290
    %vm6344 = vweird.f32 %v6338
    %vm6345 = vmor %vm6343, %vm6344
    %v6346 = vsel %vm6345, %v6338, %v6342
    %v6347 = vand.u32 2147483647, %v6290
    %vm6348 = vcmp.eq.f32.partialorder %v6347, 8.507059e+37
    %v6349 = vand.u32 %v6290, 2147483648
    %v6350 = vor.u32 1.1754944e-38, %v6349
    %v6351 = vsel %vm6348, %v6350, %v6346
    %v6352 = vmul.f32 1.0, %v6351
    %v6353 = vrcp.pop %v6291
    %v6354 = vmul.f32 %v6291, %v6353
    %v6355 = vsub.f32 1.0, %v6354
    %v6356 = vmul.f32 %v6353, %v6355
    %v6357 = vadd.f32 %v6353, %v6356
    %vm6358 = vweird.f32 %v6291
    %vm6359 = vweird.f32 %v6353
    %vm6360 = vmor %vm6358, %vm6359
    %v6361 = vsel %vm6360, %v6353, %v6357
    %v6362 = vand.u32 2147483647, %v6291
    %vm6363 = vcmp.eq.f32.partialorder %v6362, 8.507059e+37
    %v6364 = vand.u32 %v6291, 2147483648
    %v6365 = vor.u32 1.1754944e-38, %v6364
    %v6366 = vsel %vm6363, %v6365, %v6361
    %v6367 = vmul.f32 1.0, %v6366
    %v6368 = vrcp.pop %v6292
    %v6369 = vmul.f32 %v6292, %v6368
    %v6370 = vsub.f32 1.0, %v6369
    %v6371 = vmul.f32 %v6368, %v6370
    %v6372 = vadd.f32 %v6368, %v6371
    %vm6373 = vweird.f32 %v6292
    %vm6374 = vweird.f32 %v6368
    %vm6375 = vmor %vm6373, %vm6374
    %v6376 = vsel %vm6375, %v6368, %v6372
    %v6377 = vand.u32 2147483647, %v6292
    %vm6378 = vcmp.eq.f32.partialorder %v6377, 8.507059e+37
    %v6379 = vand.u32 %v6292, 2147483648
    %v6380 = vor.u32 1.1754944e-38, %v6379
    %v6381 = vsel %vm6378, %v6380, %v6376
    %v6382 = vmul.f32 1.0, %v6381
    %v6385 = vrot.slane %v6006, 4
    %v6386 = vrot.slane %v6066, 4
    %v6387 = vrot.slane %v6006, 5
    %v6388 = vrot.slane %v6066, 5
    %v6393 = vadd.f32 %v2044, %v6385
    %v6394 = vadd.f32 %v2067, %v6386
    %v6395 = vadd.f32 %v2047, %v6387
    %v6396 = vadd.f32 %v2070, %v6388
    %v6397 = vsub.f32 0.0, %v6393
    %v6398 = vsub.f32 0.0, %v6394
    %v6399 = vsub.f32 0.0, %v6395
    %v6400 = vsub.f32 0.0, %v6396
    %v6401 = vmul.f32 %v6397, 1.442695
    %v6402 = vpow.pop %v6401
    %v6403 = vmul.f32 %v6398, 1.442695
    %v6404 = vpow.pop %v6403
    %v6405 = vmul.f32 %v6399, 1.442695
    %v6406 = vpow.pop %v6405
    %v6407 = vmul.f32 %v6400, 1.442695
    %v6408 = vpow.pop %v6407
    %v6409 = vadd.f32 %v6402, 1.0
    %v6410 = vadd.f32 %v6404, 1.0
    %v6411 = vadd.f32 %v6406, 1.0
    %v6412 = vadd.f32 %v6408, 1.0
    %v6413 = vrcp.pop %v6409
    %v6414 = vmul.f32 %v6409, %v6413
    %v6415 = vsub.f32 1.0, %v6414
    %v6416 = vmul.f32 %v6413, %v6415
    %v6417 = vadd.f32 %v6413, %v6416
    %vm6418 = vweird.f32 %v6409
    %vm6419 = vweird.f32 %v6413
    %vm6420 = vmor %vm6418, %vm6419
    %v6421 = vsel %vm6420, %v6413, %v6417
    %v6422 = vand.u32 2147483647, %v6409
    %vm6423 = vcmp.eq.f32.partialorder %v6422, 8.507059e+37
    %v6424 = vand.u32 %v6409, 2147483648
    %v6425 = vor.u32 1.1754944e-38, %v6424
    %v6426 = vsel %vm6423, %v6425, %v6421
    %v6427 = vmul.f32 1.0, %v6426
    %v6428 = vrcp.pop %v6410
    %v6429 = vmul.f32 %v6410, %v6428
    %v6430 = vsub.f32 1.0, %v6429
    %v6431 = vmul.f32 %v6428, %v6430
    %v6432 = vadd.f32 %v6428, %v6431
    %vm6433 = vweird.f32 %v6410
    %vm6434 = vweird.f32 %v6428
    %vm6435 = vmor %vm6433, %vm6434
    %v6436 = vsel %vm6435, %v6428, %v6432
    %v6437 = vand.u32 2147483647, %v6410
    %vm6438 = vcmp.eq.f32.partialorder %v6437, 8.507059e+37
    %v6439 = vand.u32 %v6410, 2147483648
    %v6440 = vor.u32 1.1754944e-38, %v6439
    %v6441 = vsel %vm6438, %v6440, %v6436
    %v6442 = vmul.f32 1.0, %v6441
    %v6443 = vrcp.pop %v6411
    %v6444 = vmul.f32 %v6411, %v6443
    %v6445 = vsub.f32 1.0, %v6444
    %v6446 = vmul.f32 %v6443, %v6445
    %v6447 = vadd.f32 %v6443, %v6446
    %vm6448 = vweird.f32 %v6411
    %vm6449 = vweird.f32 %v6443
    %vm6450 = vmor %vm6448, %vm6449
    %v6451 = vsel %vm6450, %v6443, %v6447
    %v6452 = vand.u32 2147483647, %v6411
    %vm6453 = vcmp.eq.f32.partialorder %v6452, 8.507059e+37
    %v6454 = vand.u32 %v6411, 2147483648
    %v6455 = vor.u32 1.1754944e-38, %v6454
    %v6456 = vsel %vm6453, %v6455, %v6451
    %v6457 = vmul.f32 1.0, %v6456
    %v6458 = vrcp.pop %v6412
    %v6459 = vmul.f32 %v6412, %v6458
    %v6460 = vsub.f32 1.0, %v6459
    %v6461 = vmul.f32 %v6458, %v6460
    %v6462 = vadd.f32 %v6458, %v6461
    %vm6463 = vweird.f32 %v6412
    %vm6464 = vweird.f32 %v6458
    %vm6465 = vmor %vm6463, %vm6464
    %v6466 = vsel %vm6465, %v6458, %v6462
    %v6467 = vand.u32 2147483647, %v6412
    %vm6468 = vcmp.eq.f32.partialorder %v6467, 8.507059e+37
    %v6469 = vand.u32 %v6412, 2147483648
    %v6470 = vor.u32 1.1754944e-38, %v6469
    %v6471 = vsel %vm6468, %v6470, %v6466
    %v6472 = vmul.f32 1.0, %v6471
    %v6476 = vrot.slane %v6126, 4
    %v6477 = vrot.slane %v6186, 4
    %v6478 = vrot.slane %v6246, 4
    %v6479 = vrot.slane %v6126, 5
    %v6480 = vrot.slane %v6186, 5
    %v6481 = vrot.slane %v6246, 5
    %v6488 = vmul.f32 %v6307, %v6476
    %v6489 = vmul.f32 %v6322, %v6477
    %v6490 = vmul.f32 %v6337, %v6478
    %v6491 = vmul.f32 %v6352, %v6479
    %v6492 = vmul.f32 %v6367, %v6480
    %v6493 = vmul.f32 %v6382, %v6481
    %v6494 = vadd.f32 %v2090, %v6488
    %v6495 = vadd.f32 %v2113, %v6489
    %v6496 = vadd.f32 %v2136, %v6490
    %v6497 = vadd.f32 %v2093, %v6491
    %v6498 = vadd.f32 %v2116, %v6492
    %v6499 = vadd.f32 %v2139, %v6493
    %v6500 = vtanh.pop %v6494
    %v6501 = vtanh.pop %v6495
    %v6502 = vtanh.pop %v6496
    %v6503 = vtanh.pop %v6497
    %v6504 = vtanh.pop %v6498
    %v6505 = vtanh.pop %v6499
    %v6506 = vsub.f32 1.0, %v6337
    %v6507 = vsub.f32 1.0, %v6427
    %v6508 = vsub.f32 1.0, %v6442
    %v6509 = vsub.f32 1.0, %v6382
    %v6510 = vsub.f32 1.0, %v6457
    %v6511 = vsub.f32 1.0, %v6472
    %6518 = vrot.lane.b32.xlu0 %v6500, 64
    %v6519 = vpop.permute.xlu0 %6518
    %6520 = vrot.lane.b32.xlu0 %v6501, 64
    %v6521 = vpop.permute.xlu0 %6520
    %6522 = vrot.lane.b32.xlu0 %v6502, 64
    %v6523 = vpop.permute.xlu0 %6522
    %6524 = vrot.lane.b32.xlu0 %v6503, 64
    %v6525 = vpop.permute.xlu0 %6524
    %6526 = vrot.lane.b32.xlu0 %v6504, 64
    %v6527 = vpop.permute.xlu0 %6526
    %6528 = vrot.lane.b32.xlu0 %v6505, 64
    %v6529 = vpop.permute.xlu0 %6528
    %v6530 = vsel %vm990, %v6519, %v6521
    %v6531 = vsel %vm990, %v6521, %v6523
    %v6532 = vsel %vm990, %v6525, %v6527
    %v6533 = vsel %vm990, %v6527, %v6529
    %v6540 = vmul.f32 %v6506, %v6519
    %v6541 = vmul.f32 %v6507, %v6530
    %v6542 = vmul.f32 %v6508, %v6531
    %v6543 = vmul.f32 %v6509, %v6525
    %v6544 = vmul.f32 %v6510, %v6532
    %v6545 = vmul.f32 %v6511, %v6533
    %v6546 = vrot.slane %v5735, 7
    %v6547 = vrot.slane %v5736, 7
    %v6548 = vrot.slane %v5737, 7
    %v6549 = vrot.slane %v5738, 7
    %v6550 = vrot.slane %v5739, 7
    %v6551 = vrot.slane %v5740, 7
    %v6558 = vmul.f32 %v6337, %v6546
    %v6559 = vmul.f32 %v6427, %v6547
    %v6560 = vmul.f32 %v6442, %v6548
    %v6561 = vmul.f32 %v6382, %v6549
    %v6562 = vmul.f32 %v6457, %v6550
    %v6563 = vmul.f32 %v6472, %v6551
    %v6564 = vadd.f32 %v6540, %v6558
    %v6565 = vadd.f32 %v6541, %v6559
    %v6566 = vadd.f32 %v6542, %v6560
    %v6567 = vadd.f32 %v6543, %v6561
    %v6568 = vadd.f32 %v6544, %v6562
    %v6569 = vadd.f32 %v6545, %v6563
    %v6576 = vrot.slane %v6564, 4
    %v6577 = vrot.slane %v6567, 3
    %v6578 = vsel %vm3277, %v6577, %v6576
    %v6579 = vrot.slane %v6565, 4
    %v6580 = vrot.slane %v6568, 3
    %v6581 = vsel %vm3277, %v6580, %v6579
    %v6582 = vrot.slane %v6566, 4
    %v6583 = vrot.slane %v6569, 3
    %v6584 = vsel %vm3277, %v6583, %v6582
    %6585 = vrot.lane.b32.xlu0 %v6578, 64
    %v6586 = vpop.permute.xlu0 %6585
    %6587 = vrot.lane.b32.xlu0 %v6581, 64
    %v6588 = vpop.permute.xlu0 %6587
    %6589 = vrot.lane.b32.xlu0 %v6584, 64
    %v6590 = vpop.permute.xlu0 %6589
    %v6591 = vsel %vm990, %v6586, %v6588
    %v6592 = vsel %vm990, %v6588, %v6590
    %v6595 = vsel %vm990, %v6590, 0
    %6597 = vmatpush.msra.mxu0 %v2261
    %6598 = vmatpush.msra.mxu0 %v2253
    %6599 = vmatpush.msra.mxu0 %v2245
    %6600 = vmatpush.msra.mxu0 %v2237
    %6601 = vmatpush.msra.mxu0 %v2229
    %6602 = vmatpush.msra.mxu0 %v2221
    %6603 = vmatpush.msra.mxu0 %v2213
    %6604 = vmatpush.msra.mxu0 %v2205
    %6605 = vmatpush.msra.mxu0 %v2197
    %6606 = vmatpush.msra.mxu0 %v2189
    %6607 = vmatpush.msra.mxu0 %v2181
    %6608 = vmatpush.msra.mxu0 %v2173
    %6609 = vmatpush.msra.mxu0 %v2165
    %6610 = vmatpush.msra.mxu0 %v2157
    %6611 = vmatpush.msra.mxu0 %v2149
    %6612 = vmatpush.msra.mxu0 %v2141
    %6613 = vmatmul.f32.gmra.mxu0 %v6591
    %v6614 = vpop.f32.mrf.mxu0
    %v6615 = vadd.f32 %v2477, %v6614
    %6616 = vdwg.mxu0
    %6617 = vmatpush.msra.mxu0 %v2389
    %6618 = vmatpush.msra.mxu0 %v2381
    %6619 = vmatpush.msra.mxu0 %v2373
    %6620 = vmatpush.msra.mxu0 %v2365
    %6621 = vmatpush.msra.mxu0 %v2357
    %6622 = vmatpush.msra.mxu0 %v2349
    %6623 = vmatpush.msra.mxu0 %v2341
    %6624 = vmatpush.msra.mxu0 %v2333
    %6625 = vmatpush.msra.mxu0 %v2325
    %6626 = vmatpush.msra.mxu0 %v2317
    %6627 = vmatpush.msra.mxu0 %v2309
    %6628 = vmatpush.msra.mxu0 %v2301
    %6629 = vmatpush.msra.mxu0 %v2293
    %6630 = vmatpush.msra.mxu0 %v2285
    %6631 = vmatpush.msra.mxu0 %v2277
    %6632 = vmatpush.msra.mxu0 %v2269
    %6633 = vmatmul.f32.gmra.mxu0 %v6592
    %v6634 = vpop.f32.mrf.mxu0
    %v6635 = vadd.f32 %v6615, %v6634
    %6636 = vdwg.mxu0
    %6637 = vmatpush.msra.mxu0 0.0
    %6638 = vmatpush.msra.mxu0 0.0
    %6639 = vmatpush.msra.mxu0 0.0
    %6640 = vmatpush.msra.mxu0 0.0
    %6641 = vmatpush.msra.mxu0 0.0
    %6642 = vmatpush.msra.mxu0 0.0
    %6643 = vmatpush.msra.mxu0 0.0
    %6644 = vmatpush.msra.mxu0 0.0
    %6645 = vmatpush.msra.mxu0 %v2453
    %6646 = vmatpush.msra.mxu0 %v2445
    %6647 = vmatpush.msra.mxu0 %v2437
    %6648 = vmatpush.msra.mxu0 %v2429
    %6649 = vmatpush.msra.mxu0 %v2421
    %6650 = vmatpush.msra.mxu0 %v2413
    %6651 = vmatpush.msra.mxu0 %v2405
    %6652 = vmatpush.msra.mxu0 %v2397
    %6653 = vmatmul.f32.gmra.mxu0 %v6595
    %v6654 = vpop.f32.mrf.mxu0
    %v6655 = vadd.f32 %v6635, %v6654
    %6656 = vdwg.mxu0
    %6657 = vmatpush.msra.mxu0 %v2262
    %6658 = vmatpush.msra.mxu0 %v2254
    %6659 = vmatpush.msra.mxu0 %v2246
    %6660 = vmatpush.msra.mxu0 %v2238
    %6661 = vmatpush.msra.mxu0 %v2230
    %6662 = vmatpush.msra.mxu0 %v2222
    %6663 = vmatpush.msra.mxu0 %v2214
    %6664 = vmatpush.msra.mxu0 %v2206
    %6665 = vmatpush.msra.mxu0 %v2198
    %6666 = vmatpush.msra.mxu0 %v2190
    %6667 = vmatpush.msra.mxu0 %v2182
    %6668 = vmatpush.msra.mxu0 %v2174
    %6669 = vmatpush.msra.mxu0 %v2166
    %6670 = vmatpush.msra.mxu0 %v2158
    %6671 = vmatpush.msra.mxu0 %v2150
    %6672 = vmatpush.msra.mxu0 %v2142
    %6673 = vmatmul.f32.gmra.mxu0 %v6591
    %v6674 = vpop.f32.mrf.mxu0
    %v6675 = vadd.f32 %v2478, %v6674
    %6676 = vdwg.mxu0
    %6677 = vmatpush.msra.mxu0 %v2390
    %6678 = vmatpush.msra.mxu0 %v2382
    %6679 = vmatpush.msra.mxu0 %v2374
    %6680 = vmatpush.msra.mxu0 %v2366
    %6681 = vmatpush.msra.mxu0 %v2358
    %6682 = vmatpush.msra.mxu0 %v2350
    %6683 = vmatpush.msra.mxu0 %v2342
    %6684 = vmatpush.msra.mxu0 %v2334
    %6685 = vmatpush.msra.mxu0 %v2326
    %6686 = vmatpush.msra.mxu0 %v2318
    %6687 = vmatpush.msra.mxu0 %v2310
    %6688 = vmatpush.msra.mxu0 %v2302
    %6689 = vmatpush.msra.mxu0 %v2294
    %6690 = vmatpush.msra.mxu0 %v2286
    %6691 = vmatpush.msra.mxu0 %v2278
    %6692 = vmatpush.msra.mxu0 %v2270
    %6693 = vmatmul.f32.gmra.mxu0 %v6592
    %v6694 = vpop.f32.mrf.mxu0
    %v6695 = vadd.f32 %v6675, %v6694
    %6696 = vdwg.mxu0
    %6697 = vmatpush.msra.mxu0 0.0
    %6698 = vmatpush.msra.mxu0 0.0
    %6699 = vmatpush.msra.mxu0 0.0
    %6700 = vmatpush.msra.mxu0 0.0
    %6701 = vmatpush.msra.mxu0 0.0
    %6702 = vmatpush.msra.mxu0 0.0
    %6703 = vmatpush.msra.mxu0 0.0
    %6704 = vmatpush.msra.mxu0 0.0
    %6705 = vmatpush.msra.mxu0 %v2454
    %6706 = vmatpush.msra.mxu0 %v2446
    %6707 = vmatpush.msra.mxu0 %v2438
    %6708 = vmatpush.msra.mxu0 %v2430
    %6709 = vmatpush.msra.mxu0 %v2422
    %6710 = vmatpush.msra.mxu0 %v2414
    %6711 = vmatpush.msra.mxu0 %v2406
    %6712 = vmatpush.msra.mxu0 %v2398
    %6713 = vmatmul.f32.gmra.mxu0 %v6595
    %v6714 = vpop.f32.mrf.mxu0
    %v6715 = vadd.f32 %v6695, %v6714
    %6716 = vdwg.mxu0
    %6717 = vmatpush.msra.mxu0 %v2263
    %6718 = vmatpush.msra.mxu0 %v2255
    %6719 = vmatpush.msra.mxu0 %v2247
    %6720 = vmatpush.msra.mxu0 %v2239
    %6721 = vmatpush.msra.mxu0 %v2231
    %6722 = vmatpush.msra.mxu0 %v2223
    %6723 = vmatpush.msra.mxu0 %v2215
    %6724 = vmatpush.msra.mxu0 %v2207
    %6725 = vmatpush.msra.mxu0 %v2199
    %6726 = vmatpush.msra.mxu0 %v2191
    %6727 = vmatpush.msra.mxu0 %v2183
    %6728 = vmatpush.msra.mxu0 %v2175
    %6729 = vmatpush.msra.mxu0 %v2167
    %6730 = vmatpush.msra.mxu0 %v2159
    %6731 = vmatpush.msra.mxu0 %v2151
    %6732 = vmatpush.msra.mxu0 %v2143
    %6733 = vmatmul.f32.gmra.mxu0 %v6591
    %v6734 = vpop.f32.mrf.mxu0
    %v6735 = vadd.f32 %v2479, %v6734
    %6736 = vdwg.mxu0
    %6737 = vmatpush.msra.mxu0 %v2391
    %6738 = vmatpush.msra.mxu0 %v2383
    %6739 = vmatpush.msra.mxu0 %v2375
    %6740 = vmatpush.msra.mxu0 %v2367
    %6741 = vmatpush.msra.mxu0 %v2359
    %6742 = vmatpush.msra.mxu0 %v2351
    %6743 = vmatpush.msra.mxu0 %v2343
    %6744 = vmatpush.msra.mxu0 %v2335
    %6745 = vmatpush.msra.mxu0 %v2327
    %6746 = vmatpush.msra.mxu0 %v2319
    %6747 = vmatpush.msra.mxu0 %v2311
    %6748 = vmatpush.msra.mxu0 %v2303
    %6749 = vmatpush.msra.mxu0 %v2295
    %6750 = vmatpush.msra.mxu0 %v2287
    %6751 = vmatpush.msra.mxu0 %v2279
    %6752 = vmatpush.msra.mxu0 %v2271
    %6753 = vmatmul.f32.gmra.mxu0 %v6592
    %v6754 = vpop.f32.mrf.mxu0
    %v6755 = vadd.f32 %v6735, %v6754
    %6756 = vdwg.mxu0
    %6757 = vmatpush.msra.mxu0 0.0
    %6758 = vmatpush.msra.mxu0 0.0
    %6759 = vmatpush.msra.mxu0 0.0
    %6760 = vmatpush.msra.mxu0 0.0
    %6761 = vmatpush.msra.mxu0 0.0
    %6762 = vmatpush.msra.mxu0 0.0
    %6763 = vmatpush.msra.mxu0 0.0
    %6764 = vmatpush.msra.mxu0 0.0
    %6765 = vmatpush.msra.mxu0 %v2455
    %6766 = vmatpush.msra.mxu0 %v2447
    %6767 = vmatpush.msra.mxu0 %v2439
    %6768 = vmatpush.msra.mxu0 %v2431
    %6769 = vmatpush.msra.mxu0 %v2423
    %6770 = vmatpush.msra.mxu0 %v2415
    %6771 = vmatpush.msra.mxu0 %v2407
    %6772 = vmatpush.msra.mxu0 %v2399
    %6773 = vmatmul.f32.gmra.mxu0 %v6595
    %v6774 = vpop.f32.mrf.mxu0
    %v6775 = vadd.f32 %v6755, %v6774
    %6776 = vdwg.mxu0
    %6777 = vmatpush.msra.mxu0 %v2264
    %6778 = vmatpush.msra.mxu0 %v2256
    %6779 = vmatpush.msra.mxu0 %v2248
    %6780 = vmatpush.msra.mxu0 %v2240
    %6781 = vmatpush.msra.mxu0 %v2232
    %6782 = vmatpush.msra.mxu0 %v2224
    %6783 = vmatpush.msra.mxu0 %v2216
    %6784 = vmatpush.msra.mxu0 %v2208
    %6785 = vmatpush.msra.mxu0 %v2200
    %6786 = vmatpush.msra.mxu0 %v2192
    %6787 = vmatpush.msra.mxu0 %v2184
    %6788 = vmatpush.msra.mxu0 %v2176
    %6789 = vmatpush.msra.mxu0 %v2168
    %6790 = vmatpush.msra.mxu0 %v2160
    %6791 = vmatpush.msra.mxu0 %v2152
    %6792 = vmatpush.msra.mxu0 %v2144
    %6793 = vmatmul.f32.gmra.mxu0 %v6591
    %v6794 = vpop.f32.mrf.mxu0
    %v6795 = vadd.f32 %v2480, %v6794
    %6796 = vdwg.mxu0
    %6797 = vmatpush.msra.mxu0 %v2392
    %6798 = vmatpush.msra.mxu0 %v2384
    %6799 = vmatpush.msra.mxu0 %v2376
    %6800 = vmatpush.msra.mxu0 %v2368
    %6801 = vmatpush.msra.mxu0 %v2360
    %6802 = vmatpush.msra.mxu0 %v2352
    %6803 = vmatpush.msra.mxu0 %v2344
    %6804 = vmatpush.msra.mxu0 %v2336
    %6805 = vmatpush.msra.mxu0 %v2328
    %6806 = vmatpush.msra.mxu0 %v2320
    %6807 = vmatpush.msra.mxu0 %v2312
    %6808 = vmatpush.msra.mxu0 %v2304
    %6809 = vmatpush.msra.mxu0 %v2296
    %6810 = vmatpush.msra.mxu0 %v2288
    %6811 = vmatpush.msra.mxu0 %v2280
    %6812 = vmatpush.msra.mxu0 %v2272
    %6813 = vmatmul.f32.gmra.mxu0 %v6592
    %v6814 = vpop.f32.mrf.mxu0
    %v6815 = vadd.f32 %v6795, %v6814
    %6816 = vdwg.mxu0
    %6817 = vmatpush.msra.mxu0 0.0
    %6818 = vmatpush.msra.mxu0 0.0
    %6819 = vmatpush.msra.mxu0 0.0
    %6820 = vmatpush.msra.mxu0 0.0
    %6821 = vmatpush.msra.mxu0 0.0
    %6822 = vmatpush.msra.mxu0 0.0
    %6823 = vmatpush.msra.mxu0 0.0
    %6824 = vmatpush.msra.mxu0 0.0
    %6825 = vmatpush.msra.mxu0 %v2456
    %6826 = vmatpush.msra.mxu0 %v2448
    %6827 = vmatpush.msra.mxu0 %v2440
    %6828 = vmatpush.msra.mxu0 %v2432
    %6829 = vmatpush.msra.mxu0 %v2424
    %6830 = vmatpush.msra.mxu0 %v2416
    %6831 = vmatpush.msra.mxu0 %v2408
    %6832 = vmatpush.msra.mxu0 %v2400
    %6833 = vmatmul.f32.gmra.mxu0 %v6595
    %v6834 = vpop.f32.mrf.mxu0
    %v6835 = vadd.f32 %v6815, %v6834
    %6836 = vdwg.mxu0
    %6837 = vmatpush.msra.mxu0 %v2265
    %6838 = vmatpush.msra.mxu0 %v2257
    %6839 = vmatpush.msra.mxu0 %v2249
    %6840 = vmatpush.msra.mxu0 %v2241
    %6841 = vmatpush.msra.mxu0 %v2233
    %6842 = vmatpush.msra.mxu0 %v2225
    %6843 = vmatpush.msra.mxu0 %v2217
    %6844 = vmatpush.msra.mxu0 %v2209
    %6845 = vmatpush.msra.mxu0 %v2201
    %6846 = vmatpush.msra.mxu0 %v2193
    %6847 = vmatpush.msra.mxu0 %v2185
    %6848 = vmatpush.msra.mxu0 %v2177
    %6849 = vmatpush.msra.mxu0 %v2169
    %6850 = vmatpush.msra.mxu0 %v2161
    %6851 = vmatpush.msra.mxu0 %v2153
    %6852 = vmatpush.msra.mxu0 %v2145
    %6853 = vmatmul.f32.gmra.mxu0 %v6591
    %v6854 = vpop.f32.mrf.mxu0
    %v6855 = vadd.f32 %v2481, %v6854
    %6856 = vdwg.mxu0
    %6857 = vmatpush.msra.mxu0 %v2393
    %6858 = vmatpush.msra.mxu0 %v2385
    %6859 = vmatpush.msra.mxu0 %v2377
    %6860 = vmatpush.msra.mxu0 %v2369
    %6861 = vmatpush.msra.mxu0 %v2361
    %6862 = vmatpush.msra.mxu0 %v2353
    %6863 = vmatpush.msra.mxu0 %v2345
    %6864 = vmatpush.msra.mxu0 %v2337
    %6865 = vmatpush.msra.mxu0 %v2329
    %6866 = vmatpush.msra.mxu0 %v2321
    %6867 = vmatpush.msra.mxu0 %v2313
    %6868 = vmatpush.msra.mxu0 %v2305
    %6869 = vmatpush.msra.mxu0 %v2297
    %6870 = vmatpush.msra.mxu0 %v2289
    %6871 = vmatpush.msra.mxu0 %v2281
    %6872 = vmatpush.msra.mxu0 %v2273
    %6873 = vmatmul.f32.gmra.mxu0 %v6592
    %v6874 = vpop.f32.mrf.mxu0
    %v6875 = vadd.f32 %v6855, %v6874
    %6876 = vdwg.mxu0
    %6877 = vmatpush.msra.mxu0 0.0
    %6878 = vmatpush.msra.mxu0 0.0
    %6879 = vmatpush.msra.mxu0 0.0
    %6880 = vmatpush.msra.mxu0 0.0
    %6881 = vmatpush.msra.mxu0 0.0
    %6882 = vmatpush.msra.mxu0 0.0
    %6883 = vmatpush.msra.mxu0 0.0
    %6884 = vmatpush.msra.mxu0 0.0
    %6885 = vmatpush.msra.mxu0 %v2457
    %6886 = vmatpush.msra.mxu0 %v2449
    %6887 = vmatpush.msra.mxu0 %v2441
    %6888 = vmatpush.msra.mxu0 %v2433
    %6889 = vmatpush.msra.mxu0 %v2425
    %6890 = vmatpush.msra.mxu0 %v2417
    %6891 = vmatpush.msra.mxu0 %v2409
    %6892 = vmatpush.msra.mxu0 %v2401
    %6893 = vmatmul.f32.gmra.mxu0 %v6595
    %v6894 = vpop.f32.mrf.mxu0
    %v6895 = vadd.f32 %v6875, %v6894
    %6896 = vdwg.mxu0
    %6897 = vmatpush.msra.mxu0 %v2266
    %6898 = vmatpush.msra.mxu0 %v2258
    %6899 = vmatpush.msra.mxu0 %v2250
    %6900 = vmatpush.msra.mxu0 %v2242
    %6901 = vmatpush.msra.mxu0 %v2234
    %6902 = vmatpush.msra.mxu0 %v2226
    %6903 = vmatpush.msra.mxu0 %v2218
    %6904 = vmatpush.msra.mxu0 %v2210
    %6905 = vmatpush.msra.mxu0 %v2202
    %6906 = vmatpush.msra.mxu0 %v2194
    %6907 = vmatpush.msra.mxu0 %v2186
    %6908 = vmatpush.msra.mxu0 %v2178
    %6909 = vmatpush.msra.mxu0 %v2170
    %6910 = vmatpush.msra.mxu0 %v2162
    %6911 = vmatpush.msra.mxu0 %v2154
    %6912 = vmatpush.msra.mxu0 %v2146
    %6913 = vmatmul.f32.gmra.mxu0 %v6591
    %v6914 = vpop.f32.mrf.mxu0
    %v6915 = vadd.f32 %v2482, %v6914
    %6916 = vdwg.mxu0
    %6917 = vmatpush.msra.mxu0 %v2394
    %6918 = vmatpush.msra.mxu0 %v2386
    %6919 = vmatpush.msra.mxu0 %v2378
    %6920 = vmatpush.msra.mxu0 %v2370
    %6921 = vmatpush.msra.mxu0 %v2362
    %6922 = vmatpush.msra.mxu0 %v2354
    %6923 = vmatpush.msra.mxu0 %v2346
    %6924 = vmatpush.msra.mxu0 %v2338
    %6925 = vmatpush.msra.mxu0 %v2330
    %6926 = vmatpush.msra.mxu0 %v2322
    %6927 = vmatpush.msra.mxu0 %v2314
    %6928 = vmatpush.msra.mxu0 %v2306
    %6929 = vmatpush.msra.mxu0 %v2298
    %6930 = vmatpush.msra.mxu0 %v2290
    %6931 = vmatpush.msra.mxu0 %v2282
    %6932 = vmatpush.msra.mxu0 %v2274
    %6933 = vmatmul.f32.gmra.mxu0 %v6592
    %v6934 = vpop.f32.mrf.mxu0
    %v6935 = vadd.f32 %v6915, %v6934
    %6936 = vdwg.mxu0
    %6937 = vmatpush.msra.mxu0 0.0
    %6938 = vmatpush.msra.mxu0 0.0
    %6939 = vmatpush.msra.mxu0 0.0
    %6940 = vmatpush.msra.mxu0 0.0
    %6941 = vmatpush.msra.mxu0 0.0
    %6942 = vmatpush.msra.mxu0 0.0
    %6943 = vmatpush.msra.mxu0 0.0
    %6944 = vmatpush.msra.mxu0 0.0
    %6945 = vmatpush.msra.mxu0 %v2458
    %6946 = vmatpush.msra.mxu0 %v2450
    %6947 = vmatpush.msra.mxu0 %v2442
    %6948 = vmatpush.msra.mxu0 %v2434
    %6949 = vmatpush.msra.mxu0 %v2426
    %6950 = vmatpush.msra.mxu0 %v2418
    %6951 = vmatpush.msra.mxu0 %v2410
    %6952 = vmatpush.msra.mxu0 %v2402
    %6953 = vmatmul.f32.gmra.mxu0 %v6595
    %v6954 = vpop.f32.mrf.mxu0
    %v6955 = vadd.f32 %v6935, %v6954
    %6956 = vdwg.mxu0
    %6957 = vmatpush.msra.mxu0 %v2267
    %6958 = vmatpush.msra.mxu0 %v2259
    %6959 = vmatpush.msra.mxu0 %v2251
    %6960 = vmatpush.msra.mxu0 %v2243
    %6961 = vmatpush.msra.mxu0 %v2235
    %6962 = vmatpush.msra.mxu0 %v2227
    %6963 = vmatpush.msra.mxu0 %v2219
    %6964 = vmatpush.msra.mxu0 %v2211
    %6965 = vmatpush.msra.mxu0 %v2203
    %6966 = vmatpush.msra.mxu0 %v2195
    %6967 = vmatpush.msra.mxu0 %v2187
    %6968 = vmatpush.msra.mxu0 %v2179
    %6969 = vmatpush.msra.mxu0 %v2171
    %6970 = vmatpush.msra.mxu0 %v2163
    %6971 = vmatpush.msra.mxu0 %v2155
    %6972 = vmatpush.msra.mxu0 %v2147
    %6973 = vmatmul.f32.gmra.mxu0 %v6591
    %v6974 = vpop.f32.mrf.mxu0
    %v6975 = vadd.f32 %v2483, %v6974
    %6976 = vdwg.mxu0
    %6977 = vmatpush.msra.mxu0 %v2395
    %6978 = vmatpush.msra.mxu0 %v2387
    %6979 = vmatpush.msra.mxu0 %v2379
    %6980 = vmatpush.msra.mxu0 %v2371
    %6981 = vmatpush.msra.mxu0 %v2363
    %6982 = vmatpush.msra.mxu0 %v2355
    %6983 = vmatpush.msra.mxu0 %v2347
    %6984 = vmatpush.msra.mxu0 %v2339
    %6985 = vmatpush.msra.mxu0 %v2331
    %6986 = vmatpush.msra.mxu0 %v2323
    %6987 = vmatpush.msra.mxu0 %v2315
    %6988 = vmatpush.msra.mxu0 %v2307
    %6989 = vmatpush.msra.mxu0 %v2299
    %6990 = vmatpush.msra.mxu0 %v2291
    %6991 = vmatpush.msra.mxu0 %v2283
    %6992 = vmatpush.msra.mxu0 %v2275
    %6993 = vmatmul.f32.gmra.mxu0 %v6592
    %v6994 = vpop.f32.mrf.mxu0
    %v6995 = vadd.f32 %v6975, %v6994
    %6996 = vdwg.mxu0
    %6997 = vmatpush.msra.mxu0 0.0
    %6998 = vmatpush.msra.mxu0 0.0
    %6999 = vmatpush.msra.mxu0 0.0
    %7000 = vmatpush.msra.mxu0 0.0
    %7001 = vmatpush.msra.mxu0 0.0
    %7002 = vmatpush.msra.mxu0 0.0
    %7003 = vmatpush.msra.mxu0 0.0
    %7004 = vmatpush.msra.mxu0 0.0
    %7005 = vmatpush.msra.mxu0 %v2459
    %7006 = vmatpush.msra.mxu0 %v2451
    %7007 = vmatpush.msra.mxu0 %v2443
    %7008 = vmatpush.msra.mxu0 %v2435
    %7009 = vmatpush.msra.mxu0 %v2427
    %7010 = vmatpush.msra.mxu0 %v2419
    %7011 = vmatpush.msra.mxu0 %v2411
    %7012 = vmatpush.msra.mxu0 %v2403
    %7013 = vmatmul.f32.gmra.mxu0 %v6595
    %v7014 = vpop.f32.mrf.mxu0
    %v7015 = vadd.f32 %v6995, %v7014
    %7016 = vdwg.mxu0
    %7017 = vmatpush.msra.mxu0 %v2268
    %7018 = vmatpush.msra.mxu0 %v2260
    %7019 = vmatpush.msra.mxu0 %v2252
    %7020 = vmatpush.msra.mxu0 %v2244
    %7021 = vmatpush.msra.mxu0 %v2236
    %7022 = vmatpush.msra.mxu0 %v2228
    %7023 = vmatpush.msra.mxu0 %v2220
    %7024 = vmatpush.msra.mxu0 %v2212
    %7025 = vmatpush.msra.mxu0 %v2204
    %7026 = vmatpush.msra.mxu0 %v2196
    %7027 = vmatpush.msra.mxu0 %v2188
    %7028 = vmatpush.msra.mxu0 %v2180
    %7029 = vmatpush.msra.mxu0 %v2172
    %7030 = vmatpush.msra.mxu0 %v2164
    %7031 = vmatpush.msra.mxu0 %v2156
    %7032 = vmatpush.msra.mxu0 %v2148
    %7033 = vmatmul.f32.gmra.mxu0 %v6591
    %v7034 = vpop.f32.mrf.mxu0
    %v7035 = vadd.f32 %v2484, %v7034
    %7036 = vdwg.mxu0
    %7037 = vmatpush.msra.mxu0 %v2396
    %7038 = vmatpush.msra.mxu0 %v2388
    %7039 = vmatpush.msra.mxu0 %v2380
    %7040 = vmatpush.msra.mxu0 %v2372
    %7041 = vmatpush.msra.mxu0 %v2364
    %7042 = vmatpush.msra.mxu0 %v2356
    %7043 = vmatpush.msra.mxu0 %v2348
    %7044 = vmatpush.msra.mxu0 %v2340
    %7045 = vmatpush.msra.mxu0 %v2332
    %7046 = vmatpush.msra.mxu0 %v2324
    %7047 = vmatpush.msra.mxu0 %v2316
    %7048 = vmatpush.msra.mxu0 %v2308
    %7049 = vmatpush.msra.mxu0 %v2300
    %7050 = vmatpush.msra.mxu0 %v2292
    %7051 = vmatpush.msra.mxu0 %v2284
    %7052 = vmatpush.msra.mxu0 %v2276
    %7053 = vmatmul.f32.gmra.mxu0 %v6592
    %v7054 = vpop.f32.mrf.mxu0
    %v7055 = vadd.f32 %v7035, %v7054
    %7056 = vdwg.mxu0
    %7057 = vmatpush.msra.mxu0 0.0
    %7058 = vmatpush.msra.mxu0 0.0
    %7059 = vmatpush.msra.mxu0 0.0
    %7060 = vmatpush.msra.mxu0 0.0
    %7061 = vmatpush.msra.mxu0 0.0
    %7062 = vmatpush.msra.mxu0 0.0
    %7063 = vmatpush.msra.mxu0 0.0
    %7064 = vmatpush.msra.mxu0 0.0
    %7065 = vmatpush.msra.mxu0 %v2460
    %7066 = vmatpush.msra.mxu0 %v2452
    %7067 = vmatpush.msra.mxu0 %v2444
    %7068 = vmatpush.msra.mxu0 %v2436
    %7069 = vmatpush.msra.mxu0 %v2428
    %7070 = vmatpush.msra.mxu0 %v2420
    %7071 = vmatpush.msra.mxu0 %v2412
    %7072 = vmatpush.msra.mxu0 %v2404
    %7073 = vmatmul.f32.gmra.mxu0 %v6595
    %v7074 = vpop.f32.mrf.mxu0
    %v7075 = vadd.f32 %v7055, %v7074
    %7076 = vdwg.mxu0
    %v7080 = vrot.slane %v6655, 3
    %v7081 = vrot.slane %v6715, 3
    %v7082 = vrot.slane %v6775, 3
    %v7083 = vrot.slane %v6655, 4
    %v7084 = vrot.slane %v6715, 4
    %v7085 = vrot.slane %v6775, 4
    %v7092 = vadd.f32 %v1975, %v7080
    %v7093 = vadd.f32 %v1998, %v7081
    %v7094 = vadd.f32 %v2021, %v7082
    %v7095 = vadd.f32 %v1978, %v7083
    %v7096 = vadd.f32 %v2001, %v7084
    %v7097 = vadd.f32 %v2024, %v7085
    %v7098 = vsub.f32 0.0, %v7092
    %v7099 = vsub.f32 0.0, %v7093
    %v7100 = vsub.f32 0.0, %v7094
    %v7101 = vsub.f32 0.0, %v7095
    %v7102 = vsub.f32 0.0, %v7096
    %v7103 = vsub.f32 0.0, %v7097
    %v7104 = vmul.f32 %v7098, 1.442695
    %v7105 = vpow.pop %v7104
    %v7106 = vmul.f32 %v7099, 1.442695
    %v7107 = vpow.pop %v7106
    %v7108 = vmul.f32 %v7100, 1.442695
    %v7109 = vpow.pop %v7108
    %v7110 = vmul.f32 %v7101, 1.442695
    %v7111 = vpow.pop %v7110
    %v7112 = vmul.f32 %v7102, 1.442695
    %v7113 = vpow.pop %v7112
    %v7114 = vmul.f32 %v7103, 1.442695
    %v7115 = vpow.pop %v7114
    %v7116 = vadd.f32 %v7105, 1.0
    %v7117 = vadd.f32 %v7107, 1.0
    %v7118 = vadd.f32 %v7109, 1.0
    %v7119 = vadd.f32 %v7111, 1.0
    %v7120 = vadd.f32 %v7113, 1.0
    %v7121 = vadd.f32 %v7115, 1.0
    %v7122 = vrcp.pop %v7116
    %v7123 = vmul.f32 %v7116, %v7122
    %v7124 = vsub.f32 1.0, %v7123
    %v7125 = vmul.f32 %v7122, %v7124
    %v7126 = vadd.f32 %v7122, %v7125
    %vm7127 = vweird.f32 %v7116
    %vm7128 = vweird.f32 %v7122
    %vm7129 = vmor %vm7127, %vm7128
    %v7130 = vsel %vm7129, %v7122, %v7126
    %v7131 = vand.u32 2147483647, %v7116
    %vm7132 = vcmp.eq.f32.partialorder %v7131, 8.507059e+37
    %v7133 = vand.u32 %v7116, 2147483648
    %v7134 = vor.u32 1.1754944e-38, %v7133
    %v7135 = vsel %vm7132, %v7134, %v7130
    %v7136 = vmul.f32 1.0, %v7135
    %v7137 = vrcp.pop %v7117
    %v7138 = vmul.f32 %v7117, %v7137
    %v7139 = vsub.f32 1.0, %v7138
    %v7140 = vmul.f32 %v7137, %v7139
    %v7141 = vadd.f32 %v7137, %v7140
    %vm7142 = vweird.f32 %v7117
    %vm7143 = vweird.f32 %v7137
    %vm7144 = vmor %vm7142, %vm7143
    %v7145 = vsel %vm7144, %v7137, %v7141
    %v7146 = vand.u32 2147483647, %v7117
    %vm7147 = vcmp.eq.f32.partialorder %v7146, 8.507059e+37
    %v7148 = vand.u32 %v7117, 2147483648
    %v7149 = vor.u32 1.1754944e-38, %v7148
    %v7150 = vsel %vm7147, %v7149, %v7145
    %v7151 = vmul.f32 1.0, %v7150
    %v7152 = vrcp.pop %v7118
    %v7153 = vmul.f32 %v7118, %v7152
    %v7154 = vsub.f32 1.0, %v7153
    %v7155 = vmul.f32 %v7152, %v7154
    %v7156 = vadd.f32 %v7152, %v7155
    %vm7157 = vweird.f32 %v7118
    %vm7158 = vweird.f32 %v7152
    %vm7159 = vmor %vm7157, %vm7158
    %v7160 = vsel %vm7159, %v7152, %v7156
    %v7161 = vand.u32 2147483647, %v7118
    %vm7162 = vcmp.eq.f32.partialorder %v7161, 8.507059e+37
    %v7163 = vand.u32 %v7118, 2147483648
    %v7164 = vor.u32 1.1754944e-38, %v7163
    %v7165 = vsel %vm7162, %v7164, %v7160
    %v7166 = vmul.f32 1.0, %v7165
    %v7167 = vrcp.pop %v7119
    %v7168 = vmul.f32 %v7119, %v7167
    %v7169 = vsub.f32 1.0, %v7168
    %v7170 = vmul.f32 %v7167, %v7169
    %v7171 = vadd.f32 %v7167, %v7170
    %vm7172 = vweird.f32 %v7119
    %vm7173 = vweird.f32 %v7167
    %vm7174 = vmor %vm7172, %vm7173
    %v7175 = vsel %vm7174, %v7167, %v7171
    %v7176 = vand.u32 2147483647, %v7119
    %vm7177 = vcmp.eq.f32.partialorder %v7176, 8.507059e+37
    %v7178 = vand.u32 %v7119, 2147483648
    %v7179 = vor.u32 1.1754944e-38, %v7178
    %v7180 = vsel %vm7177, %v7179, %v7175
    %v7181 = vmul.f32 1.0, %v7180
    %v7182 = vrcp.pop %v7120
    %v7183 = vmul.f32 %v7120, %v7182
    %v7184 = vsub.f32 1.0, %v7183
    %v7185 = vmul.f32 %v7182, %v7184
    %v7186 = vadd.f32 %v7182, %v7185
    %vm7187 = vweird.f32 %v7120
    %vm7188 = vweird.f32 %v7182
    %vm7189 = vmor %vm7187, %vm7188
    %v7190 = vsel %vm7189, %v7182, %v7186
    %v7191 = vand.u32 2147483647, %v7120
    %vm7192 = vcmp.eq.f32.partialorder %v7191, 8.507059e+37
    %v7193 = vand.u32 %v7120, 2147483648
    %v7194 = vor.u32 1.1754944e-38, %v7193
    %v7195 = vsel %vm7192, %v7194, %v7190
    %v7196 = vmul.f32 1.0, %v7195
    %v7197 = vrcp.pop %v7121
    %v7198 = vmul.f32 %v7121, %v7197
    %v7199 = vsub.f32 1.0, %v7198
    %v7200 = vmul.f32 %v7197, %v7199
    %v7201 = vadd.f32 %v7197, %v7200
    %vm7202 = vweird.f32 %v7121
    %vm7203 = vweird.f32 %v7197
    %vm7204 = vmor %vm7202, %vm7203
    %v7205 = vsel %vm7204, %v7197, %v7201
    %v7206 = vand.u32 2147483647, %v7121
    %vm7207 = vcmp.eq.f32.partialorder %v7206, 8.507059e+37
    %v7208 = vand.u32 %v7121, 2147483648
    %v7209 = vor.u32 1.1754944e-38, %v7208
    %v7210 = vsel %vm7207, %v7209, %v7205
    %v7211 = vmul.f32 1.0, %v7210
    %v7214 = vrot.slane %v6835, 3
    %v7215 = vrot.slane %v6895, 3
    %v7216 = vrot.slane %v6835, 4
    %v7217 = vrot.slane %v6895, 4
    %v7222 = vadd.f32 %v2044, %v7214
    %v7223 = vadd.f32 %v2067, %v7215
    %v7224 = vadd.f32 %v2047, %v7216
    %v7225 = vadd.f32 %v2070, %v7217
    %v7226 = vsub.f32 0.0, %v7222
    %v7227 = vsub.f32 0.0, %v7223
    %v7228 = vsub.f32 0.0, %v7224
    %v7229 = vsub.f32 0.0, %v7225
    %v7230 = vmul.f32 %v7226, 1.442695
    %v7231 = vpow.pop %v7230
    %v7232 = vmul.f32 %v7227, 1.442695
    %v7233 = vpow.pop %v7232
    %v7234 = vmul.f32 %v7228, 1.442695
    %v7235 = vpow.pop %v7234
    %v7236 = vmul.f32 %v7229, 1.442695
    %v7237 = vpow.pop %v7236
    %v7238 = vadd.f32 %v7231, 1.0
    %v7239 = vadd.f32 %v7233, 1.0
    %v7240 = vadd.f32 %v7235, 1.0
    %v7241 = vadd.f32 %v7237, 1.0
    %v7242 = vrcp.pop %v7238
    %v7243 = vmul.f32 %v7238, %v7242
    %v7244 = vsub.f32 1.0, %v7243
    %v7245 = vmul.f32 %v7242, %v7244
    %v7246 = vadd.f32 %v7242, %v7245
    %vm7247 = vweird.f32 %v7238
    %vm7248 = vweird.f32 %v7242
    %vm7249 = vmor %vm7247, %vm7248
    %v7250 = vsel %vm7249, %v7242, %v7246
    %v7251 = vand.u32 2147483647, %v7238
    %vm7252 = vcmp.eq.f32.partialorder %v7251, 8.507059e+37
    %v7253 = vand.u32 %v7238, 2147483648
    %v7254 = vor.u32 1.1754944e-38, %v7253
    %v7255 = vsel %vm7252, %v7254, %v7250
    %v7256 = vmul.f32 1.0, %v7255
    %v7257 = vrcp.pop %v7239
    %v7258 = vmul.f32 %v7239, %v7257
    %v7259 = vsub.f32 1.0, %v7258
    %v7260 = vmul.f32 %v7257, %v7259
    %v7261 = vadd.f32 %v7257, %v7260
    %vm7262 = vweird.f32 %v7239
    %vm7263 = vweird.f32 %v7257
    %vm7264 = vmor %vm7262, %vm7263
    %v7265 = vsel %vm7264, %v7257, %v7261
    %v7266 = vand.u32 2147483647, %v7239
    %vm7267 = vcmp.eq.f32.partialorder %v7266, 8.507059e+37
    %v7268 = vand.u32 %v7239, 2147483648
    %v7269 = vor.u32 1.1754944e-38, %v7268
    %v7270 = vsel %vm7267, %v7269, %v7265
    %v7271 = vmul.f32 1.0, %v7270
    %v7272 = vrcp.pop %v7240
    %v7273 = vmul.f32 %v7240, %v7272
    %v7274 = vsub.f32 1.0, %v7273
    %v7275 = vmul.f32 %v7272, %v7274
    %v7276 = vadd.f32 %v7272, %v7275
    %vm7277 = vweird.f32 %v7240
    %vm7278 = vweird.f32 %v7272
    %vm7279 = vmor %vm7277, %vm7278
    %v7280 = vsel %vm7279, %v7272, %v7276
    %v7281 = vand.u32 2147483647, %v7240
    %vm7282 = vcmp.eq.f32.partialorder %v7281, 8.507059e+37
    %v7283 = vand.u32 %v7240, 2147483648
    %v7284 = vor.u32 1.1754944e-38, %v7283
    %v7285 = vsel %vm7282, %v7284, %v7280
    %v7286 = vmul.f32 1.0, %v7285
    %v7287 = vrcp.pop %v7241
    %v7288 = vmul.f32 %v7241, %v7287
    %v7289 = vsub.f32 1.0, %v7288
    %v7290 = vmul.f32 %v7287, %v7289
    %v7291 = vadd.f32 %v7287, %v7290
    %vm7292 = vweird.f32 %v7241
    %vm7293 = vweird.f32 %v7287
    %vm7294 = vmor %vm7292, %vm7293
    %v7295 = vsel %vm7294, %v7287, %v7291
    %v7296 = vand.u32 2147483647, %v7241
    %vm7297 = vcmp.eq.f32.partialorder %v7296, 8.507059e+37
    %v7298 = vand.u32 %v7241, 2147483648
    %v7299 = vor.u32 1.1754944e-38, %v7298
    %v7300 = vsel %vm7297, %v7299, %v7295
    %v7301 = vmul.f32 1.0, %v7300
    %v7305 = vrot.slane %v6955, 3
    %v7306 = vrot.slane %v7015, 3
    %v7307 = vrot.slane %v7075, 3
    %v7308 = vrot.slane %v6955, 4
    %v7309 = vrot.slane %v7015, 4
    %v7310 = vrot.slane %v7075, 4
    %v7317 = vmul.f32 %v7136, %v7305
    %v7318 = vmul.f32 %v7151, %v7306
    %v7319 = vmul.f32 %v7166, %v7307
    %v7320 = vmul.f32 %v7181, %v7308
    %v7321 = vmul.f32 %v7196, %v7309
    %v7322 = vmul.f32 %v7211, %v7310
    %v7323 = vadd.f32 %v2090, %v7317
    %v7324 = vadd.f32 %v2113, %v7318
    %v7325 = vadd.f32 %v2136, %v7319
    %v7326 = vadd.f32 %v2093, %v7320
    %v7327 = vadd.f32 %v2116, %v7321
    %v7328 = vadd.f32 %v2139, %v7322
    %v7329 = vtanh.pop %v7323
    %v7330 = vtanh.pop %v7324
    %v7331 = vtanh.pop %v7325
    %v7332 = vtanh.pop %v7326
    %v7333 = vtanh.pop %v7327
    %v7334 = vtanh.pop %v7328
    %v7335 = vsub.f32 1.0, %v7166
    %v7336 = vsub.f32 1.0, %v7256
    %v7337 = vsub.f32 1.0, %v7271
    %v7338 = vsub.f32 1.0, %v7211
    %v7339 = vsub.f32 1.0, %v7286
    %v7340 = vsub.f32 1.0, %v7301
    %7347 = vrot.lane.b32.xlu0 %v7329, 64
    %v7348 = vpop.permute.xlu0 %7347
    %7349 = vrot.lane.b32.xlu0 %v7330, 64
    %v7350 = vpop.permute.xlu0 %7349
    %7351 = vrot.lane.b32.xlu0 %v7331, 64
    %v7352 = vpop.permute.xlu0 %7351
    %7353 = vrot.lane.b32.xlu0 %v7332, 64
    %v7354 = vpop.permute.xlu0 %7353
    %7355 = vrot.lane.b32.xlu0 %v7333, 64
    %v7356 = vpop.permute.xlu0 %7355
    %7357 = vrot.lane.b32.xlu0 %v7334, 64
    %v7358 = vpop.permute.xlu0 %7357
    %v7359 = vsel %vm990, %v7348, %v7350
    %v7360 = vsel %vm990, %v7350, %v7352
    %v7361 = vsel %vm990, %v7354, %v7356
    %v7362 = vsel %vm990, %v7356, %v7358
    %v7369 = vmul.f32 %v7335, %v7348
    %v7370 = vmul.f32 %v7336, %v7359
    %v7371 = vmul.f32 %v7337, %v7360
    %v7372 = vmul.f32 %v7338, %v7354
    %v7373 = vmul.f32 %v7339, %v7361
    %v7374 = vmul.f32 %v7340, %v7362
    %v7375 = vrot.slane %v6564, 7
    %v7376 = vrot.slane %v6565, 7
    %v7377 = vrot.slane %v6566, 7
    %v7378 = vrot.slane %v6567, 7
    %v7379 = vrot.slane %v6568, 7
    %v7380 = vrot.slane %v6569, 7
    %v7387 = vmul.f32 %v7166, %v7375
    %v7388 = vmul.f32 %v7256, %v7376
    %v7389 = vmul.f32 %v7271, %v7377
    %v7390 = vmul.f32 %v7211, %v7378
    %v7391 = vmul.f32 %v7286, %v7379
    %v7392 = vmul.f32 %v7301, %v7380
    %v7393 = vadd.f32 %v7369, %v7387
    %v7394 = vadd.f32 %v7370, %v7388
    %v7395 = vadd.f32 %v7371, %v7389
    %v7396 = vadd.f32 %v7372, %v7390
    %v7397 = vadd.f32 %v7373, %v7391
    %v7398 = vadd.f32 %v7374, %v7392
    %v7405 = vrot.slane %v7393, 5
    %v7406 = vrot.slane %v7396, 4
    %v7407 = vsel %vm3277, %v7406, %v7405
    %v7408 = vrot.slane %v7394, 5
    %v7409 = vrot.slane %v7397, 4
    %v7410 = vsel %vm3277, %v7409, %v7408
    %v7411 = vrot.slane %v7395, 5
    %v7412 = vrot.slane %v7398, 4
    %v7413 = vsel %vm3277, %v7412, %v7411
    %7414 = vrot.lane.b32.xlu0 %v7407, 64
    %v7415 = vpop.permute.xlu0 %7414
    %7416 = vrot.lane.b32.xlu0 %v7410, 64
    %v7417 = vpop.permute.xlu0 %7416
    %7418 = vrot.lane.b32.xlu0 %v7413, 64
    %v7419 = vpop.permute.xlu0 %7418
    %v7420 = vsel %vm990, %v7415, %v7417
    %v7421 = vsel %vm990, %v7417, %v7419
    %v7424 = vsel %vm990, %v7419, 0
    %7426 = vmatpush.msra.mxu0 %v2261
    %7427 = vmatpush.msra.mxu0 %v2253
    %7428 = vmatpush.msra.mxu0 %v2245
    %7429 = vmatpush.msra.mxu0 %v2237
    %7430 = vmatpush.msra.mxu0 %v2229
    %7431 = vmatpush.msra.mxu0 %v2221
    %7432 = vmatpush.msra.mxu0 %v2213
    %7433 = vmatpush.msra.mxu0 %v2205
    %7434 = vmatpush.msra.mxu0 %v2197
    %7435 = vmatpush.msra.mxu0 %v2189
    %7436 = vmatpush.msra.mxu0 %v2181
    %7437 = vmatpush.msra.mxu0 %v2173
    %7438 = vmatpush.msra.mxu0 %v2165
    %7439 = vmatpush.msra.mxu0 %v2157
    %7440 = vmatpush.msra.mxu0 %v2149
    %7441 = vmatpush.msra.mxu0 %v2141
    %7442 = vmatmul.f32.gmra.mxu0 %v7420
    %v7443 = vpop.f32.mrf.mxu0
    %v7444 = vadd.f32 %v2477, %v7443
    %7445 = vdwg.mxu0
    %7446 = vmatpush.msra.mxu0 %v2389
    %7447 = vmatpush.msra.mxu0 %v2381
    %7448 = vmatpush.msra.mxu0 %v2373
    %7449 = vmatpush.msra.mxu0 %v2365
    %7450 = vmatpush.msra.mxu0 %v2357
    %7451 = vmatpush.msra.mxu0 %v2349
    %7452 = vmatpush.msra.mxu0 %v2341
    %7453 = vmatpush.msra.mxu0 %v2333
    %7454 = vmatpush.msra.mxu0 %v2325
    %7455 = vmatpush.msra.mxu0 %v2317
    %7456 = vmatpush.msra.mxu0 %v2309
    %7457 = vmatpush.msra.mxu0 %v2301
    %7458 = vmatpush.msra.mxu0 %v2293
    %7459 = vmatpush.msra.mxu0 %v2285
    %7460 = vmatpush.msra.mxu0 %v2277
    %7461 = vmatpush.msra.mxu0 %v2269
    %7462 = vmatmul.f32.gmra.mxu0 %v7421
    %v7463 = vpop.f32.mrf.mxu0
    %v7464 = vadd.f32 %v7444, %v7463
    %7465 = vdwg.mxu0
    %7466 = vmatpush.msra.mxu0 0.0
    %7467 = vmatpush.msra.mxu0 0.0
    %7468 = vmatpush.msra.mxu0 0.0
    %7469 = vmatpush.msra.mxu0 0.0
    %7470 = vmatpush.msra.mxu0 0.0
    %7471 = vmatpush.msra.mxu0 0.0
    %7472 = vmatpush.msra.mxu0 0.0
    %7473 = vmatpush.msra.mxu0 0.0
    %7474 = vmatpush.msra.mxu0 %v2453
    %7475 = vmatpush.msra.mxu0 %v2445
    %7476 = vmatpush.msra.mxu0 %v2437
    %7477 = vmatpush.msra.mxu0 %v2429
    %7478 = vmatpush.msra.mxu0 %v2421
    %7479 = vmatpush.msra.mxu0 %v2413
    %7480 = vmatpush.msra.mxu0 %v2405
    %7481 = vmatpush.msra.mxu0 %v2397
    %7482 = vmatmul.f32.gmra.mxu0 %v7424
    %v7483 = vpop.f32.mrf.mxu0
    %v7484 = vadd.f32 %v7464, %v7483
    %7485 = vdwg.mxu0
    %7486 = vmatpush.msra.mxu0 %v2262
    %7487 = vmatpush.msra.mxu0 %v2254
    %7488 = vmatpush.msra.mxu0 %v2246
    %7489 = vmatpush.msra.mxu0 %v2238
    %7490 = vmatpush.msra.mxu0 %v2230
    %7491 = vmatpush.msra.mxu0 %v2222
    %7492 = vmatpush.msra.mxu0 %v2214
    %7493 = vmatpush.msra.mxu0 %v2206
    %7494 = vmatpush.msra.mxu0 %v2198
    %7495 = vmatpush.msra.mxu0 %v2190
    %7496 = vmatpush.msra.mxu0 %v2182
    %7497 = vmatpush.msra.mxu0 %v2174
    %7498 = vmatpush.msra.mxu0 %v2166
    %7499 = vmatpush.msra.mxu0 %v2158
    %7500 = vmatpush.msra.mxu0 %v2150
    %7501 = vmatpush.msra.mxu0 %v2142
    %7502 = vmatmul.f32.gmra.mxu0 %v7420
    %v7503 = vpop.f32.mrf.mxu0
    %v7504 = vadd.f32 %v2478, %v7503
    %7505 = vdwg.mxu0
    %7506 = vmatpush.msra.mxu0 %v2390
    %7507 = vmatpush.msra.mxu0 %v2382
    %7508 = vmatpush.msra.mxu0 %v2374
    %7509 = vmatpush.msra.mxu0 %v2366
    %7510 = vmatpush.msra.mxu0 %v2358
    %7511 = vmatpush.msra.mxu0 %v2350
    %7512 = vmatpush.msra.mxu0 %v2342
    %7513 = vmatpush.msra.mxu0 %v2334
    %7514 = vmatpush.msra.mxu0 %v2326
    %7515 = vmatpush.msra.mxu0 %v2318
    %7516 = vmatpush.msra.mxu0 %v2310
    %7517 = vmatpush.msra.mxu0 %v2302
    %7518 = vmatpush.msra.mxu0 %v2294
    %7519 = vmatpush.msra.mxu0 %v2286
    %7520 = vmatpush.msra.mxu0 %v2278
    %7521 = vmatpush.msra.mxu0 %v2270
    %7522 = vmatmul.f32.gmra.mxu0 %v7421
    %v7523 = vpop.f32.mrf.mxu0
    %v7524 = vadd.f32 %v7504, %v7523
    %7525 = vdwg.mxu0
    %7526 = vmatpush.msra.mxu0 0.0
    %7527 = vmatpush.msra.mxu0 0.0
    %7528 = vmatpush.msra.mxu0 0.0
    %7529 = vmatpush.msra.mxu0 0.0
    %7530 = vmatpush.msra.mxu0 0.0
    %7531 = vmatpush.msra.mxu0 0.0
    %7532 = vmatpush.msra.mxu0 0.0
    %7533 = vmatpush.msra.mxu0 0.0
    %7534 = vmatpush.msra.mxu0 %v2454
    %7535 = vmatpush.msra.mxu0 %v2446
    %7536 = vmatpush.msra.mxu0 %v2438
    %7537 = vmatpush.msra.mxu0 %v2430
    %7538 = vmatpush.msra.mxu0 %v2422
    %7539 = vmatpush.msra.mxu0 %v2414
    %7540 = vmatpush.msra.mxu0 %v2406
    %7541 = vmatpush.msra.mxu0 %v2398
    %7542 = vmatmul.f32.gmra.mxu0 %v7424
    %v7543 = vpop.f32.mrf.mxu0
    %v7544 = vadd.f32 %v7524, %v7543
    %7545 = vdwg.mxu0
    %7546 = vmatpush.msra.mxu0 %v2263
    %7547 = vmatpush.msra.mxu0 %v2255
    %7548 = vmatpush.msra.mxu0 %v2247
    %7549 = vmatpush.msra.mxu0 %v2239
    %7550 = vmatpush.msra.mxu0 %v2231
    %7551 = vmatpush.msra.mxu0 %v2223
    %7552 = vmatpush.msra.mxu0 %v2215
    %7553 = vmatpush.msra.mxu0 %v2207
    %7554 = vmatpush.msra.mxu0 %v2199
    %7555 = vmatpush.msra.mxu0 %v2191
    %7556 = vmatpush.msra.mxu0 %v2183
    %7557 = vmatpush.msra.mxu0 %v2175
    %7558 = vmatpush.msra.mxu0 %v2167
    %7559 = vmatpush.msra.mxu0 %v2159
    %7560 = vmatpush.msra.mxu0 %v2151
    %7561 = vmatpush.msra.mxu0 %v2143
    %7562 = vmatmul.f32.gmra.mxu0 %v7420
    %v7563 = vpop.f32.mrf.mxu0
    %v7564 = vadd.f32 %v2479, %v7563
    %7565 = vdwg.mxu0
    %7566 = vmatpush.msra.mxu0 %v2391
    %7567 = vmatpush.msra.mxu0 %v2383
    %7568 = vmatpush.msra.mxu0 %v2375
    %7569 = vmatpush.msra.mxu0 %v2367
    %7570 = vmatpush.msra.mxu0 %v2359
    %7571 = vmatpush.msra.mxu0 %v2351
    %7572 = vmatpush.msra.mxu0 %v2343
    %7573 = vmatpush.msra.mxu0 %v2335
    %7574 = vmatpush.msra.mxu0 %v2327
    %7575 = vmatpush.msra.mxu0 %v2319
    %7576 = vmatpush.msra.mxu0 %v2311
    %7577 = vmatpush.msra.mxu0 %v2303
    %7578 = vmatpush.msra.mxu0 %v2295
    %7579 = vmatpush.msra.mxu0 %v2287
    %7580 = vmatpush.msra.mxu0 %v2279
    %7581 = vmatpush.msra.mxu0 %v2271
    %7582 = vmatmul.f32.gmra.mxu0 %v7421
    %v7583 = vpop.f32.mrf.mxu0
    %v7584 = vadd.f32 %v7564, %v7583
    %7585 = vdwg.mxu0
    %7586 = vmatpush.msra.mxu0 0.0
    %7587 = vmatpush.msra.mxu0 0.0
    %7588 = vmatpush.msra.mxu0 0.0
    %7589 = vmatpush.msra.mxu0 0.0
    %7590 = vmatpush.msra.mxu0 0.0
    %7591 = vmatpush.msra.mxu0 0.0
    %7592 = vmatpush.msra.mxu0 0.0
    %7593 = vmatpush.msra.mxu0 0.0
    %7594 = vmatpush.msra.mxu0 %v2455
    %7595 = vmatpush.msra.mxu0 %v2447
    %7596 = vmatpush.msra.mxu0 %v2439
    %7597 = vmatpush.msra.mxu0 %v2431
    %7598 = vmatpush.msra.mxu0 %v2423
    %7599 = vmatpush.msra.mxu0 %v2415
    %7600 = vmatpush.msra.mxu0 %v2407
    %7601 = vmatpush.msra.mxu0 %v2399
    %7602 = vmatmul.f32.gmra.mxu0 %v7424
    %v7603 = vpop.f32.mrf.mxu0
    %v7604 = vadd.f32 %v7584, %v7603
    %7605 = vdwg.mxu0
    %7606 = vmatpush.msra.mxu0 %v2264
    %7607 = vmatpush.msra.mxu0 %v2256
    %7608 = vmatpush.msra.mxu0 %v2248
    %7609 = vmatpush.msra.mxu0 %v2240
    %7610 = vmatpush.msra.mxu0 %v2232
    %7611 = vmatpush.msra.mxu0 %v2224
    %7612 = vmatpush.msra.mxu0 %v2216
    %7613 = vmatpush.msra.mxu0 %v2208
    %7614 = vmatpush.msra.mxu0 %v2200
    %7615 = vmatpush.msra.mxu0 %v2192
    %7616 = vmatpush.msra.mxu0 %v2184
    %7617 = vmatpush.msra.mxu0 %v2176
    %7618 = vmatpush.msra.mxu0 %v2168
    %7619 = vmatpush.msra.mxu0 %v2160
    %7620 = vmatpush.msra.mxu0 %v2152
    %7621 = vmatpush.msra.mxu0 %v2144
    %7622 = vmatmul.f32.gmra.mxu0 %v7420
    %v7623 = vpop.f32.mrf.mxu0
    %v7624 = vadd.f32 %v2480, %v7623
    %7625 = vdwg.mxu0
    %7626 = vmatpush.msra.mxu0 %v2392
    %7627 = vmatpush.msra.mxu0 %v2384
    %7628 = vmatpush.msra.mxu0 %v2376
    %7629 = vmatpush.msra.mxu0 %v2368
    %7630 = vmatpush.msra.mxu0 %v2360
    %7631 = vmatpush.msra.mxu0 %v2352
    %7632 = vmatpush.msra.mxu0 %v2344
    %7633 = vmatpush.msra.mxu0 %v2336
    %7634 = vmatpush.msra.mxu0 %v2328
    %7635 = vmatpush.msra.mxu0 %v2320
    %7636 = vmatpush.msra.mxu0 %v2312
    %7637 = vmatpush.msra.mxu0 %v2304
    %7638 = vmatpush.msra.mxu0 %v2296
    %7639 = vmatpush.msra.mxu0 %v2288
    %7640 = vmatpush.msra.mxu0 %v2280
    %7641 = vmatpush.msra.mxu0 %v2272
    %7642 = vmatmul.f32.gmra.mxu0 %v7421
    %v7643 = vpop.f32.mrf.mxu0
    %v7644 = vadd.f32 %v7624, %v7643
    %7645 = vdwg.mxu0
    %7646 = vmatpush.msra.mxu0 0.0
    %7647 = vmatpush.msra.mxu0 0.0
    %7648 = vmatpush.msra.mxu0 0.0
    %7649 = vmatpush.msra.mxu0 0.0
    %7650 = vmatpush.msra.mxu0 0.0
    %7651 = vmatpush.msra.mxu0 0.0
    %7652 = vmatpush.msra.mxu0 0.0
    %7653 = vmatpush.msra.mxu0 0.0
    %7654 = vmatpush.msra.mxu0 %v2456
    %7655 = vmatpush.msra.mxu0 %v2448
    %7656 = vmatpush.msra.mxu0 %v2440
    %7657 = vmatpush.msra.mxu0 %v2432
    %7658 = vmatpush.msra.mxu0 %v2424
    %7659 = vmatpush.msra.mxu0 %v2416
    %7660 = vmatpush.msra.mxu0 %v2408
    %7661 = vmatpush.msra.mxu0 %v2400
    %7662 = vmatmul.f32.gmra.mxu0 %v7424
    %v7663 = vpop.f32.mrf.mxu0
    %v7664 = vadd.f32 %v7644, %v7663
    %7665 = vdwg.mxu0
    %7666 = vmatpush.msra.mxu0 %v2265
    %7667 = vmatpush.msra.mxu0 %v2257
    %7668 = vmatpush.msra.mxu0 %v2249
    %7669 = vmatpush.msra.mxu0 %v2241
    %7670 = vmatpush.msra.mxu0 %v2233
    %7671 = vmatpush.msra.mxu0 %v2225
    %7672 = vmatpush.msra.mxu0 %v2217
    %7673 = vmatpush.msra.mxu0 %v2209
    %7674 = vmatpush.msra.mxu0 %v2201
    %7675 = vmatpush.msra.mxu0 %v2193
    %7676 = vmatpush.msra.mxu0 %v2185
    %7677 = vmatpush.msra.mxu0 %v2177
    %7678 = vmatpush.msra.mxu0 %v2169
    %7679 = vmatpush.msra.mxu0 %v2161
    %7680 = vmatpush.msra.mxu0 %v2153
    %7681 = vmatpush.msra.mxu0 %v2145
    %7682 = vmatmul.f32.gmra.mxu0 %v7420
    %v7683 = vpop.f32.mrf.mxu0
    %v7684 = vadd.f32 %v2481, %v7683
    %7685 = vdwg.mxu0
    %7686 = vmatpush.msra.mxu0 %v2393
    %7687 = vmatpush.msra.mxu0 %v2385
    %7688 = vmatpush.msra.mxu0 %v2377
    %7689 = vmatpush.msra.mxu0 %v2369
    %7690 = vmatpush.msra.mxu0 %v2361
    %7691 = vmatpush.msra.mxu0 %v2353
    %7692 = vmatpush.msra.mxu0 %v2345
    %7693 = vmatpush.msra.mxu0 %v2337
    %7694 = vmatpush.msra.mxu0 %v2329
    %7695 = vmatpush.msra.mxu0 %v2321
    %7696 = vmatpush.msra.mxu0 %v2313
    %7697 = vmatpush.msra.mxu0 %v2305
    %7698 = vmatpush.msra.mxu0 %v2297
    %7699 = vmatpush.msra.mxu0 %v2289
    %7700 = vmatpush.msra.mxu0 %v2281
    %7701 = vmatpush.msra.mxu0 %v2273
    %7702 = vmatmul.f32.gmra.mxu0 %v7421
    %v7703 = vpop.f32.mrf.mxu0
    %v7704 = vadd.f32 %v7684, %v7703
    %7705 = vdwg.mxu0
    %7706 = vmatpush.msra.mxu0 0.0
    %7707 = vmatpush.msra.mxu0 0.0
    %7708 = vmatpush.msra.mxu0 0.0
    %7709 = vmatpush.msra.mxu0 0.0
    %7710 = vmatpush.msra.mxu0 0.0
    %7711 = vmatpush.msra.mxu0 0.0
    %7712 = vmatpush.msra.mxu0 0.0
    %7713 = vmatpush.msra.mxu0 0.0
    %7714 = vmatpush.msra.mxu0 %v2457
    %7715 = vmatpush.msra.mxu0 %v2449
    %7716 = vmatpush.msra.mxu0 %v2441
    %7717 = vmatpush.msra.mxu0 %v2433
    %7718 = vmatpush.msra.mxu0 %v2425
    %7719 = vmatpush.msra.mxu0 %v2417
    %7720 = vmatpush.msra.mxu0 %v2409
    %7721 = vmatpush.msra.mxu0 %v2401
    %7722 = vmatmul.f32.gmra.mxu0 %v7424
    %v7723 = vpop.f32.mrf.mxu0
    %v7724 = vadd.f32 %v7704, %v7723
    %7725 = vdwg.mxu0
    %7726 = vmatpush.msra.mxu0 %v2266
    %7727 = vmatpush.msra.mxu0 %v2258
    %7728 = vmatpush.msra.mxu0 %v2250
    %7729 = vmatpush.msra.mxu0 %v2242
    %7730 = vmatpush.msra.mxu0 %v2234
    %7731 = vmatpush.msra.mxu0 %v2226
    %7732 = vmatpush.msra.mxu0 %v2218
    %7733 = vmatpush.msra.mxu0 %v2210
    %7734 = vmatpush.msra.mxu0 %v2202
    %7735 = vmatpush.msra.mxu0 %v2194
    %7736 = vmatpush.msra.mxu0 %v2186
    %7737 = vmatpush.msra.mxu0 %v2178
    %7738 = vmatpush.msra.mxu0 %v2170
    %7739 = vmatpush.msra.mxu0 %v2162
    %7740 = vmatpush.msra.mxu0 %v2154
    %7741 = vmatpush.msra.mxu0 %v2146
    %7742 = vmatmul.f32.gmra.mxu0 %v7420
    %v7743 = vpop.f32.mrf.mxu0
    %v7744 = vadd.f32 %v2482, %v7743
    %7745 = vdwg.mxu0
    %7746 = vmatpush.msra.mxu0 %v2394
    %7747 = vmatpush.msra.mxu0 %v2386
    %7748 = vmatpush.msra.mxu0 %v2378
    %7749 = vmatpush.msra.mxu0 %v2370
    %7750 = vmatpush.msra.mxu0 %v2362
    %7751 = vmatpush.msra.mxu0 %v2354
    %7752 = vmatpush.msra.mxu0 %v2346
    %7753 = vmatpush.msra.mxu0 %v2338
    %7754 = vmatpush.msra.mxu0 %v2330
    %7755 = vmatpush.msra.mxu0 %v2322
    %7756 = vmatpush.msra.mxu0 %v2314
    %7757 = vmatpush.msra.mxu0 %v2306
    %7758 = vmatpush.msra.mxu0 %v2298
    %7759 = vmatpush.msra.mxu0 %v2290
    %7760 = vmatpush.msra.mxu0 %v2282
    %7761 = vmatpush.msra.mxu0 %v2274
    %7762 = vmatmul.f32.gmra.mxu0 %v7421
    %v7763 = vpop.f32.mrf.mxu0
    %v7764 = vadd.f32 %v7744, %v7763
    %7765 = vdwg.mxu0
    %7766 = vmatpush.msra.mxu0 0.0
    %7767 = vmatpush.msra.mxu0 0.0
    %7768 = vmatpush.msra.mxu0 0.0
    %7769 = vmatpush.msra.mxu0 0.0
    %7770 = vmatpush.msra.mxu0 0.0
    %7771 = vmatpush.msra.mxu0 0.0
    %7772 = vmatpush.msra.mxu0 0.0
    %7773 = vmatpush.msra.mxu0 0.0
    %7774 = vmatpush.msra.mxu0 %v2458
    %7775 = vmatpush.msra.mxu0 %v2450
    %7776 = vmatpush.msra.mxu0 %v2442
    %7777 = vmatpush.msra.mxu0 %v2434
    %7778 = vmatpush.msra.mxu0 %v2426
    %7779 = vmatpush.msra.mxu0 %v2418
    %7780 = vmatpush.msra.mxu0 %v2410
    %7781 = vmatpush.msra.mxu0 %v2402
    %7782 = vmatmul.f32.gmra.mxu0 %v7424
    %v7783 = vpop.f32.mrf.mxu0
    %v7784 = vadd.f32 %v7764, %v7783
    %7785 = vdwg.mxu0
    %7786 = vmatpush.msra.mxu0 %v2267
    %7787 = vmatpush.msra.mxu0 %v2259
    %7788 = vmatpush.msra.mxu0 %v2251
    %7789 = vmatpush.msra.mxu0 %v2243
    %7790 = vmatpush.msra.mxu0 %v2235
    %7791 = vmatpush.msra.mxu0 %v2227
    %7792 = vmatpush.msra.mxu0 %v2219
    %7793 = vmatpush.msra.mxu0 %v2211
    %7794 = vmatpush.msra.mxu0 %v2203
    %7795 = vmatpush.msra.mxu0 %v2195
    %7796 = vmatpush.msra.mxu0 %v2187
    %7797 = vmatpush.msra.mxu0 %v2179
    %7798 = vmatpush.msra.mxu0 %v2171
    %7799 = vmatpush.msra.mxu0 %v2163
    %7800 = vmatpush.msra.mxu0 %v2155
    %7801 = vmatpush.msra.mxu0 %v2147
    %7802 = vmatmul.f32.gmra.mxu0 %v7420
    %v7803 = vpop.f32.mrf.mxu0
    %v7804 = vadd.f32 %v2483, %v7803
    %7805 = vdwg.mxu0
    %7806 = vmatpush.msra.mxu0 %v2395
    %7807 = vmatpush.msra.mxu0 %v2387
    %7808 = vmatpush.msra.mxu0 %v2379
    %7809 = vmatpush.msra.mxu0 %v2371
    %7810 = vmatpush.msra.mxu0 %v2363
    %7811 = vmatpush.msra.mxu0 %v2355
    %7812 = vmatpush.msra.mxu0 %v2347
    %7813 = vmatpush.msra.mxu0 %v2339
    %7814 = vmatpush.msra.mxu0 %v2331
    %7815 = vmatpush.msra.mxu0 %v2323
    %7816 = vmatpush.msra.mxu0 %v2315
    %7817 = vmatpush.msra.mxu0 %v2307
    %7818 = vmatpush.msra.mxu0 %v2299
    %7819 = vmatpush.msra.mxu0 %v2291
    %7820 = vmatpush.msra.mxu0 %v2283
    %7821 = vmatpush.msra.mxu0 %v2275
    %7822 = vmatmul.f32.gmra.mxu0 %v7421
    %v7823 = vpop.f32.mrf.mxu0
    %v7824 = vadd.f32 %v7804, %v7823
    %7825 = vdwg.mxu0
    %7826 = vmatpush.msra.mxu0 0.0
    %7827 = vmatpush.msra.mxu0 0.0
    %7828 = vmatpush.msra.mxu0 0.0
    %7829 = vmatpush.msra.mxu0 0.0
    %7830 = vmatpush.msra.mxu0 0.0
    %7831 = vmatpush.msra.mxu0 0.0
    %7832 = vmatpush.msra.mxu0 0.0
    %7833 = vmatpush.msra.mxu0 0.0
    %7834 = vmatpush.msra.mxu0 %v2459
    %7835 = vmatpush.msra.mxu0 %v2451
    %7836 = vmatpush.msra.mxu0 %v2443
    %7837 = vmatpush.msra.mxu0 %v2435
    %7838 = vmatpush.msra.mxu0 %v2427
    %7839 = vmatpush.msra.mxu0 %v2419
    %7840 = vmatpush.msra.mxu0 %v2411
    %7841 = vmatpush.msra.mxu0 %v2403
    %7842 = vmatmul.f32.gmra.mxu0 %v7424
    %v7843 = vpop.f32.mrf.mxu0
    %v7844 = vadd.f32 %v7824, %v7843
    %7845 = vdwg.mxu0
    %7846 = vmatpush.msra.mxu0 %v2268
    %7847 = vmatpush.msra.mxu0 %v2260
    %7848 = vmatpush.msra.mxu0 %v2252
    %7849 = vmatpush.msra.mxu0 %v2244
    %7850 = vmatpush.msra.mxu0 %v2236
    %7851 = vmatpush.msra.mxu0 %v2228
    %7852 = vmatpush.msra.mxu0 %v2220
    %7853 = vmatpush.msra.mxu0 %v2212
    %7854 = vmatpush.msra.mxu0 %v2204
    %7855 = vmatpush.msra.mxu0 %v2196
    %7856 = vmatpush.msra.mxu0 %v2188
    %7857 = vmatpush.msra.mxu0 %v2180
    %7858 = vmatpush.msra.mxu0 %v2172
    %7859 = vmatpush.msra.mxu0 %v2164
    %7860 = vmatpush.msra.mxu0 %v2156
    %7861 = vmatpush.msra.mxu0 %v2148
    %7862 = vmatmul.f32.gmra.mxu0 %v7420
    %v7863 = vpop.f32.mrf.mxu0
    %v7864 = vadd.f32 %v2484, %v7863
    %7865 = vdwg.mxu0
    %7866 = vmatpush.msra.mxu0 %v2396
    %7867 = vmatpush.msra.mxu0 %v2388
    %7868 = vmatpush.msra.mxu0 %v2380
    %7869 = vmatpush.msra.mxu0 %v2372
    %7870 = vmatpush.msra.mxu0 %v2364
    %7871 = vmatpush.msra.mxu0 %v2356
    %7872 = vmatpush.msra.mxu0 %v2348
    %7873 = vmatpush.msra.mxu0 %v2340
    %7874 = vmatpush.msra.mxu0 %v2332
    %7875 = vmatpush.msra.mxu0 %v2324
    %7876 = vmatpush.msra.mxu0 %v2316
    %7877 = vmatpush.msra.mxu0 %v2308
    %7878 = vmatpush.msra.mxu0 %v2300
    %7879 = vmatpush.msra.mxu0 %v2292
    %7880 = vmatpush.msra.mxu0 %v2284
    %7881 = vmatpush.msra.mxu0 %v2276
    %7882 = vmatmul.f32.gmra.mxu0 %v7421
    %v7883 = vpop.f32.mrf.mxu0
    %v7884 = vadd.f32 %v7864, %v7883
    %7885 = vdwg.mxu0
    %7886 = vmatpush.msra.mxu0 0.0
    %7887 = vmatpush.msra.mxu0 0.0
    %7888 = vmatpush.msra.mxu0 0.0
    %7889 = vmatpush.msra.mxu0 0.0
    %7890 = vmatpush.msra.mxu0 0.0
    %7891 = vmatpush.msra.mxu0 0.0
    %7892 = vmatpush.msra.mxu0 0.0
    %7893 = vmatpush.msra.mxu0 0.0
    %7894 = vmatpush.msra.mxu0 %v2460
    %7895 = vmatpush.msra.mxu0 %v2452
    %7896 = vmatpush.msra.mxu0 %v2444
    %7897 = vmatpush.msra.mxu0 %v2436
    %7898 = vmatpush.msra.mxu0 %v2428
    %7899 = vmatpush.msra.mxu0 %v2420
    %7900 = vmatpush.msra.mxu0 %v2412
    %7901 = vmatpush.msra.mxu0 %v2404
    %7902 = vmatmul.f32.gmra.mxu0 %v7424
    %v7903 = vpop.f32.mrf.mxu0
    %v7904 = vadd.f32 %v7884, %v7903
    %7905 = vdwg.mxu0
    %v7909 = vrot.slane %v7484, 2
    %v7910 = vrot.slane %v7544, 2
    %v7911 = vrot.slane %v7604, 2
    %v7912 = vrot.slane %v7484, 3
    %v7913 = vrot.slane %v7544, 3
    %v7914 = vrot.slane %v7604, 3
    %v7921 = vadd.f32 %v1975, %v7909
    %v7922 = vadd.f32 %v1998, %v7910
    %v7923 = vadd.f32 %v2021, %v7911
    %v7924 = vadd.f32 %v1978, %v7912
    %v7925 = vadd.f32 %v2001, %v7913
    %v7926 = vadd.f32 %v2024, %v7914
    %v7927 = vsub.f32 0.0, %v7921
    %v7928 = vsub.f32 0.0, %v7922
    %v7929 = vsub.f32 0.0, %v7923
    %v7930 = vsub.f32 0.0, %v7924
    %v7931 = vsub.f32 0.0, %v7925
    %v7932 = vsub.f32 0.0, %v7926
    %v7933 = vmul.f32 %v7927, 1.442695
    %v7934 = vpow.pop %v7933
    %v7935 = vmul.f32 %v7928, 1.442695
    %v7936 = vpow.pop %v7935
    %v7937 = vmul.f32 %v7929, 1.442695
    %v7938 = vpow.pop %v7937
    %v7939 = vmul.f32 %v7930, 1.442695
    %v7940 = vpow.pop %v7939
    %v7941 = vmul.f32 %v7931, 1.442695
    %v7942 = vpow.pop %v7941
    %v7943 = vmul.f32 %v7932, 1.442695
    %v7944 = vpow.pop %v7943
    %v7945 = vadd.f32 %v7934, 1.0
    %v7946 = vadd.f32 %v7936, 1.0
    %v7947 = vadd.f32 %v7938, 1.0
    %v7948 = vadd.f32 %v7940, 1.0
    %v7949 = vadd.f32 %v7942, 1.0
    %v7950 = vadd.f32 %v7944, 1.0
    %v7951 = vrcp.pop %v7945
    %v7952 = vmul.f32 %v7945, %v7951
    %v7953 = vsub.f32 1.0, %v7952
    %v7954 = vmul.f32 %v7951, %v7953
    %v7955 = vadd.f32 %v7951, %v7954
    %vm7956 = vweird.f32 %v7945
    %vm7957 = vweird.f32 %v7951
    %vm7958 = vmor %vm7956, %vm7957
    %v7959 = vsel %vm7958, %v7951, %v7955
    %v7960 = vand.u32 2147483647, %v7945
    %vm7961 = vcmp.eq.f32.partialorder %v7960, 8.507059e+37
    %v7962 = vand.u32 %v7945, 2147483648
    %v7963 = vor.u32 1.1754944e-38, %v7962
    %v7964 = vsel %vm7961, %v7963, %v7959
    %v7965 = vmul.f32 1.0, %v7964
    %v7966 = vrcp.pop %v7946
    %v7967 = vmul.f32 %v7946, %v7966
    %v7968 = vsub.f32 1.0, %v7967
    %v7969 = vmul.f32 %v7966, %v7968
    %v7970 = vadd.f32 %v7966, %v7969
    %vm7971 = vweird.f32 %v7946
    %vm7972 = vweird.f32 %v7966
    %vm7973 = vmor %vm7971, %vm7972
    %v7974 = vsel %vm7973, %v7966, %v7970
    %v7975 = vand.u32 2147483647, %v7946
    %vm7976 = vcmp.eq.f32.partialorder %v7975, 8.507059e+37
    %v7977 = vand.u32 %v7946, 2147483648
    %v7978 = vor.u32 1.1754944e-38, %v7977
    %v7979 = vsel %vm7976, %v7978, %v7974
    %v7980 = vmul.f32 1.0, %v7979
    %v7981 = vrcp.pop %v7947
    %v7982 = vmul.f32 %v7947, %v7981
    %v7983 = vsub.f32 1.0, %v7982
    %v7984 = vmul.f32 %v7981, %v7983
    %v7985 = vadd.f32 %v7981, %v7984
    %vm7986 = vweird.f32 %v7947
    %vm7987 = vweird.f32 %v7981
    %vm7988 = vmor %vm7986, %vm7987
    %v7989 = vsel %vm7988, %v7981, %v7985
    %v7990 = vand.u32 2147483647, %v7947
    %vm7991 = vcmp.eq.f32.partialorder %v7990, 8.507059e+37
    %v7992 = vand.u32 %v7947, 2147483648
    %v7993 = vor.u32 1.1754944e-38, %v7992
    %v7994 = vsel %vm7991, %v7993, %v7989
    %v7995 = vmul.f32 1.0, %v7994
    %v7996 = vrcp.pop %v7948
    %v7997 = vmul.f32 %v7948, %v7996
    %v7998 = vsub.f32 1.0, %v7997
    %v7999 = vmul.f32 %v7996, %v7998
    %v8000 = vadd.f32 %v7996, %v7999
    %vm8001 = vweird.f32 %v7948
    %vm8002 = vweird.f32 %v7996
    %vm8003 = vmor %vm8001, %vm8002
    %v8004 = vsel %vm8003, %v7996, %v8000
    %v8005 = vand.u32 2147483647, %v7948
    %vm8006 = vcmp.eq.f32.partialorder %v8005, 8.507059e+37
    %v8007 = vand.u32 %v7948, 2147483648
    %v8008 = vor.u32 1.1754944e-38, %v8007
    %v8009 = vsel %vm8006, %v8008, %v8004
    %v8010 = vmul.f32 1.0, %v8009
    %v8011 = vrcp.pop %v7949
    %v8012 = vmul.f32 %v7949, %v8011
    %v8013 = vsub.f32 1.0, %v8012
    %v8014 = vmul.f32 %v8011, %v8013
    %v8015 = vadd.f32 %v8011, %v8014
    %vm8016 = vweird.f32 %v7949
    %vm8017 = vweird.f32 %v8011
    %vm8018 = vmor %vm8016, %vm8017
    %v8019 = vsel %vm8018, %v8011, %v8015
    %v8020 = vand.u32 2147483647, %v7949
    %vm8021 = vcmp.eq.f32.partialorder %v8020, 8.507059e+37
    %v8022 = vand.u32 %v7949, 2147483648
    %v8023 = vor.u32 1.1754944e-38, %v8022
    %v8024 = vsel %vm8021, %v8023, %v8019
    %v8025 = vmul.f32 1.0, %v8024
    %v8026 = vrcp.pop %v7950
    %v8027 = vmul.f32 %v7950, %v8026
    %v8028 = vsub.f32 1.0, %v8027
    %v8029 = vmul.f32 %v8026, %v8028
    %v8030 = vadd.f32 %v8026, %v8029
    %vm8031 = vweird.f32 %v7950
    %vm8032 = vweird.f32 %v8026
    %vm8033 = vmor %vm8031, %vm8032
    %v8034 = vsel %vm8033, %v8026, %v8030
    %v8035 = vand.u32 2147483647, %v7950
    %vm8036 = vcmp.eq.f32.partialorder %v8035, 8.507059e+37
    %v8037 = vand.u32 %v7950, 2147483648
    %v8038 = vor.u32 1.1754944e-38, %v8037
    %v8039 = vsel %vm8036, %v8038, %v8034
    %v8040 = vmul.f32 1.0, %v8039
    %v8043 = vrot.slane %v7664, 2
    %v8044 = vrot.slane %v7724, 2
    %v8045 = vrot.slane %v7664, 3
    %v8046 = vrot.slane %v7724, 3
    %v8051 = vadd.f32 %v2044, %v8043
    %v8052 = vadd.f32 %v2067, %v8044
    %v8053 = vadd.f32 %v2047, %v8045
    %v8054 = vadd.f32 %v2070, %v8046
    %v8055 = vsub.f32 0.0, %v8051
    %v8056 = vsub.f32 0.0, %v8052
    %v8057 = vsub.f32 0.0, %v8053
    %v8058 = vsub.f32 0.0, %v8054
    %v8059 = vmul.f32 %v8055, 1.442695
    %v8060 = vpow.pop %v8059
    %v8061 = vmul.f32 %v8056, 1.442695
    %v8062 = vpow.pop %v8061
    %v8063 = vmul.f32 %v8057, 1.442695
    %v8064 = vpow.pop %v8063
    %v8065 = vmul.f32 %v8058, 1.442695
    %v8066 = vpow.pop %v8065
    %v8067 = vadd.f32 %v8060, 1.0
    %v8068 = vadd.f32 %v8062, 1.0
    %v8069 = vadd.f32 %v8064, 1.0
    %v8070 = vadd.f32 %v8066, 1.0
    %v8071 = vrcp.pop %v8067
    %v8072 = vmul.f32 %v8067, %v8071
    %v8073 = vsub.f32 1.0, %v8072
    %v8074 = vmul.f32 %v8071, %v8073
    %v8075 = vadd.f32 %v8071, %v8074
    %vm8076 = vweird.f32 %v8067
    %vm8077 = vweird.f32 %v8071
    %vm8078 = vmor %vm8076, %vm8077
    %v8079 = vsel %vm8078, %v8071, %v8075
    %v8080 = vand.u32 2147483647, %v8067
    %vm8081 = vcmp.eq.f32.partialorder %v8080, 8.507059e+37
    %v8082 = vand.u32 %v8067, 2147483648
    %v8083 = vor.u32 1.1754944e-38, %v8082
    %v8084 = vsel %vm8081, %v8083, %v8079
    %v8085 = vmul.f32 1.0, %v8084
    %v8086 = vrcp.pop %v8068
    %v8087 = vmul.f32 %v8068, %v8086
    %v8088 = vsub.f32 1.0, %v8087
    %v8089 = vmul.f32 %v8086, %v8088
    %v8090 = vadd.f32 %v8086, %v8089
    %vm8091 = vweird.f32 %v8068
    %vm8092 = vweird.f32 %v8086
    %vm8093 = vmor %vm8091, %vm8092
    %v8094 = vsel %vm8093, %v8086, %v8090
    %v8095 = vand.u32 2147483647, %v8068
    %vm8096 = vcmp.eq.f32.partialorder %v8095, 8.507059e+37
    %v8097 = vand.u32 %v8068, 2147483648
    %v8098 = vor.u32 1.1754944e-38, %v8097
    %v8099 = vsel %vm8096, %v8098, %v8094
    %v8100 = vmul.f32 1.0, %v8099
    %v8101 = vrcp.pop %v8069
    %v8102 = vmul.f32 %v8069, %v8101
    %v8103 = vsub.f32 1.0, %v8102
    %v8104 = vmul.f32 %v8101, %v8103
    %v8105 = vadd.f32 %v8101, %v8104
    %vm8106 = vweird.f32 %v8069
    %vm8107 = vweird.f32 %v8101
    %vm8108 = vmor %vm8106, %vm8107
    %v8109 = vsel %vm8108, %v8101, %v8105
    %v8110 = vand.u32 2147483647, %v8069
    %vm8111 = vcmp.eq.f32.partialorder %v8110, 8.507059e+37
    %v8112 = vand.u32 %v8069, 2147483648
    %v8113 = vor.u32 1.1754944e-38, %v8112
    %v8114 = vsel %vm8111, %v8113, %v8109
    %v8115 = vmul.f32 1.0, %v8114
    %v8116 = vrcp.pop %v8070
    %v8117 = vmul.f32 %v8070, %v8116
    %v8118 = vsub.f32 1.0, %v8117
    %v8119 = vmul.f32 %v8116, %v8118
    %v8120 = vadd.f32 %v8116, %v8119
    %vm8121 = vweird.f32 %v8070
    %vm8122 = vweird.f32 %v8116
    %vm8123 = vmor %vm8121, %vm8122
    %v8124 = vsel %vm8123, %v8116, %v8120
    %v8125 = vand.u32 2147483647, %v8070
    %vm8126 = vcmp.eq.f32.partialorder %v8125, 8.507059e+37
    %v8127 = vand.u32 %v8070, 2147483648
    %v8128 = vor.u32 1.1754944e-38, %v8127
    %v8129 = vsel %vm8126, %v8128, %v8124
    %v8130 = vmul.f32 1.0, %v8129
    %v8134 = vrot.slane %v7784, 2
    %v8135 = vrot.slane %v7844, 2
    %v8136 = vrot.slane %v7904, 2
    %v8137 = vrot.slane %v7784, 3
    %v8138 = vrot.slane %v7844, 3
    %v8139 = vrot.slane %v7904, 3
    %v8146 = vmul.f32 %v7965, %v8134
    %v8147 = vmul.f32 %v7980, %v8135
    %v8148 = vmul.f32 %v7995, %v8136
    %v8149 = vmul.f32 %v8010, %v8137
    %v8150 = vmul.f32 %v8025, %v8138
    %v8151 = vmul.f32 %v8040, %v8139
    %v8152 = vadd.f32 %v2090, %v8146
    %v8153 = vadd.f32 %v2113, %v8147
    %v8154 = vadd.f32 %v2136, %v8148
    %v8155 = vadd.f32 %v2093, %v8149
    %v8156 = vadd.f32 %v2116, %v8150
    %v8157 = vadd.f32 %v2139, %v8151
    %v8158 = vtanh.pop %v8152
    %v8159 = vtanh.pop %v8153
    %v8160 = vtanh.pop %v8154
    %v8161 = vtanh.pop %v8155
    %v8162 = vtanh.pop %v8156
    %v8163 = vtanh.pop %v8157
    %v8164 = vsub.f32 1.0, %v7995
    %v8165 = vsub.f32 1.0, %v8085
    %v8166 = vsub.f32 1.0, %v8100
    %v8167 = vsub.f32 1.0, %v8040
    %v8168 = vsub.f32 1.0, %v8115
    %v8169 = vsub.f32 1.0, %v8130
    %8176 = vrot.lane.b32.xlu0 %v8158, 64
    %v8177 = vpop.permute.xlu0 %8176
    %8178 = vrot.lane.b32.xlu0 %v8159, 64
    %v8179 = vpop.permute.xlu0 %8178
    %8180 = vrot.lane.b32.xlu0 %v8160, 64
    %v8181 = vpop.permute.xlu0 %8180
    %8182 = vrot.lane.b32.xlu0 %v8161, 64
    %v8183 = vpop.permute.xlu0 %8182
    %8184 = vrot.lane.b32.xlu0 %v8162, 64
    %v8185 = vpop.permute.xlu0 %8184
    %8186 = vrot.lane.b32.xlu0 %v8163, 64
    %v8187 = vpop.permute.xlu0 %8186
    %v8188 = vsel %vm990, %v8177, %v8179
    %v8189 = vsel %vm990, %v8179, %v8181
    %v8190 = vsel %vm990, %v8183, %v8185
    %v8191 = vsel %vm990, %v8185, %v8187
    %v8198 = vmul.f32 %v8164, %v8177
    %v8199 = vmul.f32 %v8165, %v8188
    %v8200 = vmul.f32 %v8166, %v8189
    %v8201 = vmul.f32 %v8167, %v8183
    %v8202 = vmul.f32 %v8168, %v8190
    %v8203 = vmul.f32 %v8169, %v8191
    %v8204 = vrot.slane %v7393, 7
    %v8205 = vrot.slane %v7394, 7
    %v8206 = vrot.slane %v7395, 7
    %v8207 = vrot.slane %v7396, 7
    %v8208 = vrot.slane %v7397, 7
    %v8209 = vrot.slane %v7398, 7
    %v8216 = vmul.f32 %v7995, %v8204
    %v8217 = vmul.f32 %v8085, %v8205
    %v8218 = vmul.f32 %v8100, %v8206
    %v8219 = vmul.f32 %v8040, %v8207
    %v8220 = vmul.f32 %v8115, %v8208
    %v8221 = vmul.f32 %v8130, %v8209
    %v8222 = vadd.f32 %v8198, %v8216
    %v8223 = vadd.f32 %v8199, %v8217
    %v8224 = vadd.f32 %v8200, %v8218
    %v8225 = vadd.f32 %v8201, %v8219
    %v8226 = vadd.f32 %v8202, %v8220
    %v8227 = vadd.f32 %v8203, %v8221
    %v8234 = vrot.slane %v8222, 6
    %v8235 = vrot.slane %v8225, 5
    %v8236 = vsel %vm3277, %v8235, %v8234
    %v8237 = vrot.slane %v8223, 6
    %v8238 = vrot.slane %v8226, 5
    %v8239 = vsel %vm3277, %v8238, %v8237
    %v8240 = vrot.slane %v8224, 6
    %v8241 = vrot.slane %v8227, 5
    %v8242 = vsel %vm3277, %v8241, %v8240
    %8243 = vrot.lane.b32.xlu0 %v8236, 64
    %v8244 = vpop.permute.xlu0 %8243
    %8245 = vrot.lane.b32.xlu0 %v8239, 64
    %v8246 = vpop.permute.xlu0 %8245
    %8247 = vrot.lane.b32.xlu0 %v8242, 64
    %v8248 = vpop.permute.xlu0 %8247
    %v8249 = vsel %vm990, %v8244, %v8246
    %v8250 = vsel %vm990, %v8246, %v8248
    %v8253 = vsel %vm990, %v8248, 0
    %8255 = vmatpush.msra.mxu0 %v2261
    %8256 = vmatpush.msra.mxu0 %v2253
    %8257 = vmatpush.msra.mxu0 %v2245
    %8258 = vmatpush.msra.mxu0 %v2237
    %8259 = vmatpush.msra.mxu0 %v2229
    %8260 = vmatpush.msra.mxu0 %v2221
    %8261 = vmatpush.msra.mxu0 %v2213
    %8262 = vmatpush.msra.mxu0 %v2205
    %8263 = vmatpush.msra.mxu0 %v2197
    %8264 = vmatpush.msra.mxu0 %v2189
    %8265 = vmatpush.msra.mxu0 %v2181
    %8266 = vmatpush.msra.mxu0 %v2173
    %8267 = vmatpush.msra.mxu0 %v2165
    %8268 = vmatpush.msra.mxu0 %v2157
    %8269 = vmatpush.msra.mxu0 %v2149
    %8270 = vmatpush.msra.mxu0 %v2141
    %8271 = vmatmul.f32.gmra.mxu0 %v8249
    %v8272 = vpop.f32.mrf.mxu0
    %v8273 = vadd.f32 %v2477, %v8272
    %8274 = vdwg.mxu0
    %8275 = vmatpush.msra.mxu0 %v2389
    %8276 = vmatpush.msra.mxu0 %v2381
    %8277 = vmatpush.msra.mxu0 %v2373
    %8278 = vmatpush.msra.mxu0 %v2365
    %8279 = vmatpush.msra.mxu0 %v2357
    %8280 = vmatpush.msra.mxu0 %v2349
    %8281 = vmatpush.msra.mxu0 %v2341
    %8282 = vmatpush.msra.mxu0 %v2333
    %8283 = vmatpush.msra.mxu0 %v2325
    %8284 = vmatpush.msra.mxu0 %v2317
    %8285 = vmatpush.msra.mxu0 %v2309
    %8286 = vmatpush.msra.mxu0 %v2301
    %8287 = vmatpush.msra.mxu0 %v2293
    %8288 = vmatpush.msra.mxu0 %v2285
    %8289 = vmatpush.msra.mxu0 %v2277
    %8290 = vmatpush.msra.mxu0 %v2269
    %8291 = vmatmul.f32.gmra.mxu0 %v8250
    %v8292 = vpop.f32.mrf.mxu0
    %v8293 = vadd.f32 %v8273, %v8292
    %8294 = vdwg.mxu0
    %8295 = vmatpush.msra.mxu0 0.0
    %8296 = vmatpush.msra.mxu0 0.0
    %8297 = vmatpush.msra.mxu0 0.0
    %8298 = vmatpush.msra.mxu0 0.0
    %8299 = vmatpush.msra.mxu0 0.0
    %8300 = vmatpush.msra.mxu0 0.0
    %8301 = vmatpush.msra.mxu0 0.0
    %8302 = vmatpush.msra.mxu0 0.0
    %8303 = vmatpush.msra.mxu0 %v2453
    %8304 = vmatpush.msra.mxu0 %v2445
    %8305 = vmatpush.msra.mxu0 %v2437
    %8306 = vmatpush.msra.mxu0 %v2429
    %8307 = vmatpush.msra.mxu0 %v2421
    %8308 = vmatpush.msra.mxu0 %v2413
    %8309 = vmatpush.msra.mxu0 %v2405
    %8310 = vmatpush.msra.mxu0 %v2397
    %8311 = vmatmul.f32.gmra.mxu0 %v8253
    %v8312 = vpop.f32.mrf.mxu0
    %v8313 = vadd.f32 %v8293, %v8312
    %8314 = vdwg.mxu0
    %8315 = vmatpush.msra.mxu0 %v2262
    %8316 = vmatpush.msra.mxu0 %v2254
    %8317 = vmatpush.msra.mxu0 %v2246
    %8318 = vmatpush.msra.mxu0 %v2238
    %8319 = vmatpush.msra.mxu0 %v2230
    %8320 = vmatpush.msra.mxu0 %v2222
    %8321 = vmatpush.msra.mxu0 %v2214
    %8322 = vmatpush.msra.mxu0 %v2206
    %8323 = vmatpush.msra.mxu0 %v2198
    %8324 = vmatpush.msra.mxu0 %v2190
    %8325 = vmatpush.msra.mxu0 %v2182
    %8326 = vmatpush.msra.mxu0 %v2174
    %8327 = vmatpush.msra.mxu0 %v2166
    %8328 = vmatpush.msra.mxu0 %v2158
    %8329 = vmatpush.msra.mxu0 %v2150
    %8330 = vmatpush.msra.mxu0 %v2142
    %8331 = vmatmul.f32.gmra.mxu0 %v8249
    %v8332 = vpop.f32.mrf.mxu0
    %v8333 = vadd.f32 %v2478, %v8332
    %8334 = vdwg.mxu0
    %8335 = vmatpush.msra.mxu0 %v2390
    %8336 = vmatpush.msra.mxu0 %v2382
    %8337 = vmatpush.msra.mxu0 %v2374
    %8338 = vmatpush.msra.mxu0 %v2366
    %8339 = vmatpush.msra.mxu0 %v2358
    %8340 = vmatpush.msra.mxu0 %v2350
    %8341 = vmatpush.msra.mxu0 %v2342
    %8342 = vmatpush.msra.mxu0 %v2334
    %8343 = vmatpush.msra.mxu0 %v2326
    %8344 = vmatpush.msra.mxu0 %v2318
    %8345 = vmatpush.msra.mxu0 %v2310
    %8346 = vmatpush.msra.mxu0 %v2302
    %8347 = vmatpush.msra.mxu0 %v2294
    %8348 = vmatpush.msra.mxu0 %v2286
    %8349 = vmatpush.msra.mxu0 %v2278
    %8350 = vmatpush.msra.mxu0 %v2270
    %8351 = vmatmul.f32.gmra.mxu0 %v8250
    %v8352 = vpop.f32.mrf.mxu0
    %v8353 = vadd.f32 %v8333, %v8352
    %8354 = vdwg.mxu0
    %8355 = vmatpush.msra.mxu0 0.0
    %8356 = vmatpush.msra.mxu0 0.0
    %8357 = vmatpush.msra.mxu0 0.0
    %8358 = vmatpush.msra.mxu0 0.0
    %8359 = vmatpush.msra.mxu0 0.0
    %8360 = vmatpush.msra.mxu0 0.0
    %8361 = vmatpush.msra.mxu0 0.0
    %8362 = vmatpush.msra.mxu0 0.0
    %8363 = vmatpush.msra.mxu0 %v2454
    %8364 = vmatpush.msra.mxu0 %v2446
    %8365 = vmatpush.msra.mxu0 %v2438
    %8366 = vmatpush.msra.mxu0 %v2430
    %8367 = vmatpush.msra.mxu0 %v2422
    %8368 = vmatpush.msra.mxu0 %v2414
    %8369 = vmatpush.msra.mxu0 %v2406
    %8370 = vmatpush.msra.mxu0 %v2398
    %8371 = vmatmul.f32.gmra.mxu0 %v8253
    %v8372 = vpop.f32.mrf.mxu0
    %v8373 = vadd.f32 %v8353, %v8372
    %8374 = vdwg.mxu0
    %8375 = vmatpush.msra.mxu0 %v2263
    %8376 = vmatpush.msra.mxu0 %v2255
    %8377 = vmatpush.msra.mxu0 %v2247
    %8378 = vmatpush.msra.mxu0 %v2239
    %8379 = vmatpush.msra.mxu0 %v2231
    %8380 = vmatpush.msra.mxu0 %v2223
    %8381 = vmatpush.msra.mxu0 %v2215
    %8382 = vmatpush.msra.mxu0 %v2207
    %8383 = vmatpush.msra.mxu0 %v2199
    %8384 = vmatpush.msra.mxu0 %v2191
    %8385 = vmatpush.msra.mxu0 %v2183
    %8386 = vmatpush.msra.mxu0 %v2175
    %8387 = vmatpush.msra.mxu0 %v2167
    %8388 = vmatpush.msra.mxu0 %v2159
    %8389 = vmatpush.msra.mxu0 %v2151
    %8390 = vmatpush.msra.mxu0 %v2143
    %8391 = vmatmul.f32.gmra.mxu0 %v8249
    %v8392 = vpop.f32.mrf.mxu0
    %v8393 = vadd.f32 %v2479, %v8392
    %8394 = vdwg.mxu0
    %8395 = vmatpush.msra.mxu0 %v2391
    %8396 = vmatpush.msra.mxu0 %v2383
    %8397 = vmatpush.msra.mxu0 %v2375
    %8398 = vmatpush.msra.mxu0 %v2367
    %8399 = vmatpush.msra.mxu0 %v2359
    %8400 = vmatpush.msra.mxu0 %v2351
    %8401 = vmatpush.msra.mxu0 %v2343
    %8402 = vmatpush.msra.mxu0 %v2335
    %8403 = vmatpush.msra.mxu0 %v2327
    %8404 = vmatpush.msra.mxu0 %v2319
    %8405 = vmatpush.msra.mxu0 %v2311
    %8406 = vmatpush.msra.mxu0 %v2303
    %8407 = vmatpush.msra.mxu0 %v2295
    %8408 = vmatpush.msra.mxu0 %v2287
    %8409 = vmatpush.msra.mxu0 %v2279
    %8410 = vmatpush.msra.mxu0 %v2271
    %8411 = vmatmul.f32.gmra.mxu0 %v8250
    %v8412 = vpop.f32.mrf.mxu0
    %v8413 = vadd.f32 %v8393, %v8412
    %8414 = vdwg.mxu0
    %8415 = vmatpush.msra.mxu0 0.0
    %8416 = vmatpush.msra.mxu0 0.0
    %8417 = vmatpush.msra.mxu0 0.0
    %8418 = vmatpush.msra.mxu0 0.0
    %8419 = vmatpush.msra.mxu0 0.0
    %8420 = vmatpush.msra.mxu0 0.0
    %8421 = vmatpush.msra.mxu0 0.0
    %8422 = vmatpush.msra.mxu0 0.0
    %8423 = vmatpush.msra.mxu0 %v2455
    %8424 = vmatpush.msra.mxu0 %v2447
    %8425 = vmatpush.msra.mxu0 %v2439
    %8426 = vmatpush.msra.mxu0 %v2431
    %8427 = vmatpush.msra.mxu0 %v2423
    %8428 = vmatpush.msra.mxu0 %v2415
    %8429 = vmatpush.msra.mxu0 %v2407
    %8430 = vmatpush.msra.mxu0 %v2399
    %8431 = vmatmul.f32.gmra.mxu0 %v8253
    %v8432 = vpop.f32.mrf.mxu0
    %v8433 = vadd.f32 %v8413, %v8432
    %8434 = vdwg.mxu0
    %8435 = vmatpush.msra.mxu0 %v2264
    %8436 = vmatpush.msra.mxu0 %v2256
    %8437 = vmatpush.msra.mxu0 %v2248
    %8438 = vmatpush.msra.mxu0 %v2240
    %8439 = vmatpush.msra.mxu0 %v2232
    %8440 = vmatpush.msra.mxu0 %v2224
    %8441 = vmatpush.msra.mxu0 %v2216
    %8442 = vmatpush.msra.mxu0 %v2208
    %8443 = vmatpush.msra.mxu0 %v2200
    %8444 = vmatpush.msra.mxu0 %v2192
    %8445 = vmatpush.msra.mxu0 %v2184
    %8446 = vmatpush.msra.mxu0 %v2176
    %8447 = vmatpush.msra.mxu0 %v2168
    %8448 = vmatpush.msra.mxu0 %v2160
    %8449 = vmatpush.msra.mxu0 %v2152
    %8450 = vmatpush.msra.mxu0 %v2144
    %8451 = vmatmul.f32.gmra.mxu0 %v8249
    %v8452 = vpop.f32.mrf.mxu0
    %v8453 = vadd.f32 %v2480, %v8452
    %8454 = vdwg.mxu0
    %8455 = vmatpush.msra.mxu0 %v2392
    %8456 = vmatpush.msra.mxu0 %v2384
    %8457 = vmatpush.msra.mxu0 %v2376
    %8458 = vmatpush.msra.mxu0 %v2368
    %8459 = vmatpush.msra.mxu0 %v2360
    %8460 = vmatpush.msra.mxu0 %v2352
    %8461 = vmatpush.msra.mxu0 %v2344
    %8462 = vmatpush.msra.mxu0 %v2336
    %8463 = vmatpush.msra.mxu0 %v2328
    %8464 = vmatpush.msra.mxu0 %v2320
    %8465 = vmatpush.msra.mxu0 %v2312
    %8466 = vmatpush.msra.mxu0 %v2304
    %8467 = vmatpush.msra.mxu0 %v2296
    %8468 = vmatpush.msra.mxu0 %v2288
    %8469 = vmatpush.msra.mxu0 %v2280
    %8470 = vmatpush.msra.mxu0 %v2272
    %8471 = vmatmul.f32.gmra.mxu0 %v8250
    %v8472 = vpop.f32.mrf.mxu0
    %v8473 = vadd.f32 %v8453, %v8472
    %8474 = vdwg.mxu0
    %8475 = vmatpush.msra.mxu0 0.0
    %8476 = vmatpush.msra.mxu0 0.0
    %8477 = vmatpush.msra.mxu0 0.0
    %8478 = vmatpush.msra.mxu0 0.0
    %8479 = vmatpush.msra.mxu0 0.0
    %8480 = vmatpush.msra.mxu0 0.0
    %8481 = vmatpush.msra.mxu0 0.0
    %8482 = vmatpush.msra.mxu0 0.0
    %8483 = vmatpush.msra.mxu0 %v2456
    %8484 = vmatpush.msra.mxu0 %v2448
    %8485 = vmatpush.msra.mxu0 %v2440
    %8486 = vmatpush.msra.mxu0 %v2432
    %8487 = vmatpush.msra.mxu0 %v2424
    %8488 = vmatpush.msra.mxu0 %v2416
    %8489 = vmatpush.msra.mxu0 %v2408
    %8490 = vmatpush.msra.mxu0 %v2400
    %8491 = vmatmul.f32.gmra.mxu0 %v8253
    %v8492 = vpop.f32.mrf.mxu0
    %v8493 = vadd.f32 %v8473, %v8492
    %8494 = vdwg.mxu0
    %8495 = vmatpush.msra.mxu0 %v2265
    %8496 = vmatpush.msra.mxu0 %v2257
    %8497 = vmatpush.msra.mxu0 %v2249
    %8498 = vmatpush.msra.mxu0 %v2241
    %8499 = vmatpush.msra.mxu0 %v2233
    %8500 = vmatpush.msra.mxu0 %v2225
    %8501 = vmatpush.msra.mxu0 %v2217
    %8502 = vmatpush.msra.mxu0 %v2209
    %8503 = vmatpush.msra.mxu0 %v2201
    %8504 = vmatpush.msra.mxu0 %v2193
    %8505 = vmatpush.msra.mxu0 %v2185
    %8506 = vmatpush.msra.mxu0 %v2177
    %8507 = vmatpush.msra.mxu0 %v2169
    %8508 = vmatpush.msra.mxu0 %v2161
    %8509 = vmatpush.msra.mxu0 %v2153
    %8510 = vmatpush.msra.mxu0 %v2145
    %8511 = vmatmul.f32.gmra.mxu0 %v8249
    %v8512 = vpop.f32.mrf.mxu0
    %v8513 = vadd.f32 %v2481, %v8512
    %8514 = vdwg.mxu0
    %8515 = vmatpush.msra.mxu0 %v2393
    %8516 = vmatpush.msra.mxu0 %v2385
    %8517 = vmatpush.msra.mxu0 %v2377
    %8518 = vmatpush.msra.mxu0 %v2369
    %8519 = vmatpush.msra.mxu0 %v2361
    %8520 = vmatpush.msra.mxu0 %v2353
    %8521 = vmatpush.msra.mxu0 %v2345
    %8522 = vmatpush.msra.mxu0 %v2337
    %8523 = vmatpush.msra.mxu0 %v2329
    %8524 = vmatpush.msra.mxu0 %v2321
    %8525 = vmatpush.msra.mxu0 %v2313
    %8526 = vmatpush.msra.mxu0 %v2305
    %8527 = vmatpush.msra.mxu0 %v2297
    %8528 = vmatpush.msra.mxu0 %v2289
    %8529 = vmatpush.msra.mxu0 %v2281
    %8530 = vmatpush.msra.mxu0 %v2273
    %8531 = vmatmul.f32.gmra.mxu0 %v8250
    %v8532 = vpop.f32.mrf.mxu0
    %v8533 = vadd.f32 %v8513, %v8532
    %8534 = vdwg.mxu0
    %8535 = vmatpush.msra.mxu0 0.0
    %8536 = vmatpush.msra.mxu0 0.0
    %8537 = vmatpush.msra.mxu0 0.0
    %8538 = vmatpush.msra.mxu0 0.0
    %8539 = vmatpush.msra.mxu0 0.0
    %8540 = vmatpush.msra.mxu0 0.0
    %8541 = vmatpush.msra.mxu0 0.0
    %8542 = vmatpush.msra.mxu0 0.0
    %8543 = vmatpush.msra.mxu0 %v2457
    %8544 = vmatpush.msra.mxu0 %v2449
    %8545 = vmatpush.msra.mxu0 %v2441
    %8546 = vmatpush.msra.mxu0 %v2433
    %8547 = vmatpush.msra.mxu0 %v2425
    %8548 = vmatpush.msra.mxu0 %v2417
    %8549 = vmatpush.msra.mxu0 %v2409
    %8550 = vmatpush.msra.mxu0 %v2401
    %8551 = vmatmul.f32.gmra.mxu0 %v8253
    %v8552 = vpop.f32.mrf.mxu0
    %v8553 = vadd.f32 %v8533, %v8552
    %8554 = vdwg.mxu0
    %8555 = vmatpush.msra.mxu0 %v2266
    %8556 = vmatpush.msra.mxu0 %v2258
    %8557 = vmatpush.msra.mxu0 %v2250
    %8558 = vmatpush.msra.mxu0 %v2242
    %8559 = vmatpush.msra.mxu0 %v2234
    %8560 = vmatpush.msra.mxu0 %v2226
    %8561 = vmatpush.msra.mxu0 %v2218
    %8562 = vmatpush.msra.mxu0 %v2210
    %8563 = vmatpush.msra.mxu0 %v2202
    %8564 = vmatpush.msra.mxu0 %v2194
    %8565 = vmatpush.msra.mxu0 %v2186
    %8566 = vmatpush.msra.mxu0 %v2178
    %8567 = vmatpush.msra.mxu0 %v2170
    %8568 = vmatpush.msra.mxu0 %v2162
    %8569 = vmatpush.msra.mxu0 %v2154
    %8570 = vmatpush.msra.mxu0 %v2146
    %8571 = vmatmul.f32.gmra.mxu0 %v8249
    %v8572 = vpop.f32.mrf.mxu0
    %v8573 = vadd.f32 %v2482, %v8572
    %8574 = vdwg.mxu0
    %8575 = vmatpush.msra.mxu0 %v2394
    %8576 = vmatpush.msra.mxu0 %v2386
    %8577 = vmatpush.msra.mxu0 %v2378
    %8578 = vmatpush.msra.mxu0 %v2370
    %8579 = vmatpush.msra.mxu0 %v2362
    %8580 = vmatpush.msra.mxu0 %v2354
    %8581 = vmatpush.msra.mxu0 %v2346
    %8582 = vmatpush.msra.mxu0 %v2338
    %8583 = vmatpush.msra.mxu0 %v2330
    %8584 = vmatpush.msra.mxu0 %v2322
    %8585 = vmatpush.msra.mxu0 %v2314
    %8586 = vmatpush.msra.mxu0 %v2306
    %8587 = vmatpush.msra.mxu0 %v2298
    %8588 = vmatpush.msra.mxu0 %v2290
    %8589 = vmatpush.msra.mxu0 %v2282
    %8590 = vmatpush.msra.mxu0 %v2274
    %8591 = vmatmul.f32.gmra.mxu0 %v8250
    %v8592 = vpop.f32.mrf.mxu0
    %v8593 = vadd.f32 %v8573, %v8592
    %8594 = vdwg.mxu0
    %8595 = vmatpush.msra.mxu0 0.0
    %8596 = vmatpush.msra.mxu0 0.0
    %8597 = vmatpush.msra.mxu0 0.0
    %8598 = vmatpush.msra.mxu0 0.0
    %8599 = vmatpush.msra.mxu0 0.0
    %8600 = vmatpush.msra.mxu0 0.0
    %8601 = vmatpush.msra.mxu0 0.0
    %8602 = vmatpush.msra.mxu0 0.0
    %8603 = vmatpush.msra.mxu0 %v2458
    %8604 = vmatpush.msra.mxu0 %v2450
    %8605 = vmatpush.msra.mxu0 %v2442
    %8606 = vmatpush.msra.mxu0 %v2434
    %8607 = vmatpush.msra.mxu0 %v2426
    %8608 = vmatpush.msra.mxu0 %v2418
    %8609 = vmatpush.msra.mxu0 %v2410
    %8610 = vmatpush.msra.mxu0 %v2402
    %8611 = vmatmul.f32.gmra.mxu0 %v8253
    %v8612 = vpop.f32.mrf.mxu0
    %v8613 = vadd.f32 %v8593, %v8612
    %8614 = vdwg.mxu0
    %8615 = vmatpush.msra.mxu0 %v2267
    %8616 = vmatpush.msra.mxu0 %v2259
    %8617 = vmatpush.msra.mxu0 %v2251
    %8618 = vmatpush.msra.mxu0 %v2243
    %8619 = vmatpush.msra.mxu0 %v2235
    %8620 = vmatpush.msra.mxu0 %v2227
    %8621 = vmatpush.msra.mxu0 %v2219
    %8622 = vmatpush.msra.mxu0 %v2211
    %8623 = vmatpush.msra.mxu0 %v2203
    %8624 = vmatpush.msra.mxu0 %v2195
    %8625 = vmatpush.msra.mxu0 %v2187
    %8626 = vmatpush.msra.mxu0 %v2179
    %8627 = vmatpush.msra.mxu0 %v2171
    %8628 = vmatpush.msra.mxu0 %v2163
    %8629 = vmatpush.msra.mxu0 %v2155
    %8630 = vmatpush.msra.mxu0 %v2147
    %8631 = vmatmul.f32.gmra.mxu0 %v8249
    %v8632 = vpop.f32.mrf.mxu0
    %v8633 = vadd.f32 %v2483, %v8632
    %8634 = vdwg.mxu0
    %8635 = vmatpush.msra.mxu0 %v2395
    %8636 = vmatpush.msra.mxu0 %v2387
    %8637 = vmatpush.msra.mxu0 %v2379
    %8638 = vmatpush.msra.mxu0 %v2371
    %8639 = vmatpush.msra.mxu0 %v2363
    %8640 = vmatpush.msra.mxu0 %v2355
    %8641 = vmatpush.msra.mxu0 %v2347
    %8642 = vmatpush.msra.mxu0 %v2339
    %8643 = vmatpush.msra.mxu0 %v2331
    %8644 = vmatpush.msra.mxu0 %v2323
    %8645 = vmatpush.msra.mxu0 %v2315
    %8646 = vmatpush.msra.mxu0 %v2307
    %8647 = vmatpush.msra.mxu0 %v2299
    %8648 = vmatpush.msra.mxu0 %v2291
    %8649 = vmatpush.msra.mxu0 %v2283
    %8650 = vmatpush.msra.mxu0 %v2275
    %8651 = vmatmul.f32.gmra.mxu0 %v8250
    %v8652 = vpop.f32.mrf.mxu0
    %v8653 = vadd.f32 %v8633, %v8652
    %8654 = vdwg.mxu0
    %8655 = vmatpush.msra.mxu0 0.0
    %8656 = vmatpush.msra.mxu0 0.0
    %8657 = vmatpush.msra.mxu0 0.0
    %8658 = vmatpush.msra.mxu0 0.0
    %8659 = vmatpush.msra.mxu0 0.0
    %8660 = vmatpush.msra.mxu0 0.0
    %8661 = vmatpush.msra.mxu0 0.0
    %8662 = vmatpush.msra.mxu0 0.0
    %8663 = vmatpush.msra.mxu0 %v2459
    %8664 = vmatpush.msra.mxu0 %v2451
    %8665 = vmatpush.msra.mxu0 %v2443
    %8666 = vmatpush.msra.mxu0 %v2435
    %8667 = vmatpush.msra.mxu0 %v2427
    %8668 = vmatpush.msra.mxu0 %v2419
    %8669 = vmatpush.msra.mxu0 %v2411
    %8670 = vmatpush.msra.mxu0 %v2403
    %8671 = vmatmul.f32.gmra.mxu0 %v8253
    %v8672 = vpop.f32.mrf.mxu0
    %v8673 = vadd.f32 %v8653, %v8672
    %8674 = vdwg.mxu0
    %8675 = vmatpush.msra.mxu0 %v2268
    %8676 = vmatpush.msra.mxu0 %v2260
    %8677 = vmatpush.msra.mxu0 %v2252
    %8678 = vmatpush.msra.mxu0 %v2244
    %8679 = vmatpush.msra.mxu0 %v2236
    %8680 = vmatpush.msra.mxu0 %v2228
    %8681 = vmatpush.msra.mxu0 %v2220
    %8682 = vmatpush.msra.mxu0 %v2212
    %8683 = vmatpush.msra.mxu0 %v2204
    %8684 = vmatpush.msra.mxu0 %v2196
    %8685 = vmatpush.msra.mxu0 %v2188
    %8686 = vmatpush.msra.mxu0 %v2180
    %8687 = vmatpush.msra.mxu0 %v2172
    %8688 = vmatpush.msra.mxu0 %v2164
    %8689 = vmatpush.msra.mxu0 %v2156
    %8690 = vmatpush.msra.mxu0 %v2148
    %8691 = vmatmul.f32.gmra.mxu0 %v8249
    %v8692 = vpop.f32.mrf.mxu0
    %v8693 = vadd.f32 %v2484, %v8692
    %8694 = vdwg.mxu0
    %8695 = vmatpush.msra.mxu0 %v2396
    %8696 = vmatpush.msra.mxu0 %v2388
    %8697 = vmatpush.msra.mxu0 %v2380
    %8698 = vmatpush.msra.mxu0 %v2372
    %8699 = vmatpush.msra.mxu0 %v2364
    %8700 = vmatpush.msra.mxu0 %v2356
    %8701 = vmatpush.msra.mxu0 %v2348
    %8702 = vmatpush.msra.mxu0 %v2340
    %8703 = vmatpush.msra.mxu0 %v2332
    %8704 = vmatpush.msra.mxu0 %v2324
    %8705 = vmatpush.msra.mxu0 %v2316
    %8706 = vmatpush.msra.mxu0 %v2308
    %8707 = vmatpush.msra.mxu0 %v2300
    %8708 = vmatpush.msra.mxu0 %v2292
    %8709 = vmatpush.msra.mxu0 %v2284
    %8710 = vmatpush.msra.mxu0 %v2276
    %8711 = vmatmul.f32.gmra.mxu0 %v8250
    %v8712 = vpop.f32.mrf.mxu0
    %v8713 = vadd.f32 %v8693, %v8712
    %8714 = vdwg.mxu0
    %8715 = vmatpush.msra.mxu0 0.0
    %8716 = vmatpush.msra.mxu0 0.0
    %8717 = vmatpush.msra.mxu0 0.0
    %8718 = vmatpush.msra.mxu0 0.0
    %8719 = vmatpush.msra.mxu0 0.0
    %8720 = vmatpush.msra.mxu0 0.0
    %8721 = vmatpush.msra.mxu0 0.0
    %8722 = vmatpush.msra.mxu0 0.0
    %8723 = vmatpush.msra.mxu0 %v2460
    %8724 = vmatpush.msra.mxu0 %v2452
    %8725 = vmatpush.msra.mxu0 %v2444
    %8726 = vmatpush.msra.mxu0 %v2436
    %8727 = vmatpush.msra.mxu0 %v2428
    %8728 = vmatpush.msra.mxu0 %v2420
    %8729 = vmatpush.msra.mxu0 %v2412
    %8730 = vmatpush.msra.mxu0 %v2404
    %8731 = vmatmul.f32.gmra.mxu0 %v8253
    %v8732 = vpop.f32.mrf.mxu0
    %v8733 = vadd.f32 %v8713, %v8732
    %8734 = vdwg.mxu0
    %v8738 = vrot.slane %v8313, 1
    %v8739 = vrot.slane %v8373, 1
    %v8740 = vrot.slane %v8433, 1
    %v8741 = vrot.slane %v8313, 2
    %v8742 = vrot.slane %v8373, 2
    %v8743 = vrot.slane %v8433, 2
    %v8750 = vadd.f32 %v1975, %v8738
    %v8751 = vadd.f32 %v1998, %v8739
    %v8752 = vadd.f32 %v2021, %v8740
    %v8753 = vadd.f32 %v1978, %v8741
    %v8754 = vadd.f32 %v2001, %v8742
    %v8755 = vadd.f32 %v2024, %v8743
    %v8756 = vsub.f32 0.0, %v8750
    %v8757 = vsub.f32 0.0, %v8751
    %v8758 = vsub.f32 0.0, %v8752
    %v8759 = vsub.f32 0.0, %v8753
    %v8760 = vsub.f32 0.0, %v8754
    %v8761 = vsub.f32 0.0, %v8755
    %v8762 = vmul.f32 %v8756, 1.442695
    %v8763 = vpow.pop %v8762
    %v8764 = vmul.f32 %v8757, 1.442695
    %v8765 = vpow.pop %v8764
    %v8766 = vmul.f32 %v8758, 1.442695
    %v8767 = vpow.pop %v8766
    %v8768 = vmul.f32 %v8759, 1.442695
    %v8769 = vpow.pop %v8768
    %v8770 = vmul.f32 %v8760, 1.442695
    %v8771 = vpow.pop %v8770
    %v8772 = vmul.f32 %v8761, 1.442695
    %v8773 = vpow.pop %v8772
    %v8774 = vadd.f32 %v8763, 1.0
    %v8775 = vadd.f32 %v8765, 1.0
    %v8776 = vadd.f32 %v8767, 1.0
    %v8777 = vadd.f32 %v8769, 1.0
    %v8778 = vadd.f32 %v8771, 1.0
    %v8779 = vadd.f32 %v8773, 1.0
    %v8780 = vrcp.pop %v8774
    %v8781 = vmul.f32 %v8774, %v8780
    %v8782 = vsub.f32 1.0, %v8781
    %v8783 = vmul.f32 %v8780, %v8782
    %v8784 = vadd.f32 %v8780, %v8783
    %vm8785 = vweird.f32 %v8774
    %vm8786 = vweird.f32 %v8780
    %vm8787 = vmor %vm8785, %vm8786
    %v8788 = vsel %vm8787, %v8780, %v8784
    %v8789 = vand.u32 2147483647, %v8774
    %vm8790 = vcmp.eq.f32.partialorder %v8789, 8.507059e+37
    %v8791 = vand.u32 %v8774, 2147483648
    %v8792 = vor.u32 1.1754944e-38, %v8791
    %v8793 = vsel %vm8790, %v8792, %v8788
    %v8794 = vmul.f32 1.0, %v8793
    %v8795 = vrcp.pop %v8775
    %v8796 = vmul.f32 %v8775, %v8795
    %v8797 = vsub.f32 1.0, %v8796
    %v8798 = vmul.f32 %v8795, %v8797
    %v8799 = vadd.f32 %v8795, %v8798
    %vm8800 = vweird.f32 %v8775
    %vm8801 = vweird.f32 %v8795
    %vm8802 = vmor %vm8800, %vm8801
    %v8803 = vsel %vm8802, %v8795, %v8799
    %v8804 = vand.u32 2147483647, %v8775
    %vm8805 = vcmp.eq.f32.partialorder %v8804, 8.507059e+37
    %v8806 = vand.u32 %v8775, 2147483648
    %v8807 = vor.u32 1.1754944e-38, %v8806
    %v8808 = vsel %vm8805, %v8807, %v8803
    %v8809 = vmul.f32 1.0, %v8808
    %v8810 = vrcp.pop %v8776
    %v8811 = vmul.f32 %v8776, %v8810
    %v8812 = vsub.f32 1.0, %v8811
    %v8813 = vmul.f32 %v8810, %v8812
    %v8814 = vadd.f32 %v8810, %v8813
    %vm8815 = vweird.f32 %v8776
    %vm8816 = vweird.f32 %v8810
    %vm8817 = vmor %vm8815, %vm8816
    %v8818 = vsel %vm8817, %v8810, %v8814
    %v8819 = vand.u32 2147483647, %v8776
    %vm8820 = vcmp.eq.f32.partialorder %v8819, 8.507059e+37
    %v8821 = vand.u32 %v8776, 2147483648
    %v8822 = vor.u32 1.1754944e-38, %v8821
    %v8823 = vsel %vm8820, %v8822, %v8818
    %v8824 = vmul.f32 1.0, %v8823
    %v8825 = vrcp.pop %v8777
    %v8826 = vmul.f32 %v8777, %v8825
    %v8827 = vsub.f32 1.0, %v8826
    %v8828 = vmul.f32 %v8825, %v8827
    %v8829 = vadd.f32 %v8825, %v8828
    %vm8830 = vweird.f32 %v8777
    %vm8831 = vweird.f32 %v8825
    %vm8832 = vmor %vm8830, %vm8831
    %v8833 = vsel %vm8832, %v8825, %v8829
    %v8834 = vand.u32 2147483647, %v8777
    %vm8835 = vcmp.eq.f32.partialorder %v8834, 8.507059e+37
    %v8836 = vand.u32 %v8777, 2147483648
    %v8837 = vor.u32 1.1754944e-38, %v8836
    %v8838 = vsel %vm8835, %v8837, %v8833
    %v8839 = vmul.f32 1.0, %v8838
    %v8840 = vrcp.pop %v8778
    %v8841 = vmul.f32 %v8778, %v8840
    %v8842 = vsub.f32 1.0, %v8841
    %v8843 = vmul.f32 %v8840, %v8842
    %v8844 = vadd.f32 %v8840, %v8843
    %vm8845 = vweird.f32 %v8778
    %vm8846 = vweird.f32 %v8840
    %vm8847 = vmor %vm8845, %vm8846
    %v8848 = vsel %vm8847, %v8840, %v8844
    %v8849 = vand.u32 2147483647, %v8778
    %vm8850 = vcmp.eq.f32.partialorder %v8849, 8.507059e+37
    %v8851 = vand.u32 %v8778, 2147483648
    %v8852 = vor.u32 1.1754944e-38, %v8851
    %v8853 = vsel %vm8850, %v8852, %v8848
    %v8854 = vmul.f32 1.0, %v8853
    %v8855 = vrcp.pop %v8779
    %v8856 = vmul.f32 %v8779, %v8855
    %v8857 = vsub.f32 1.0, %v8856
    %v8858 = vmul.f32 %v8855, %v8857
    %v8859 = vadd.f32 %v8855, %v8858
    %vm8860 = vweird.f32 %v8779
    %vm8861 = vweird.f32 %v8855
    %vm8862 = vmor %vm8860, %vm8861
    %v8863 = vsel %vm8862, %v8855, %v8859
    %v8864 = vand.u32 2147483647, %v8779
    %vm8865 = vcmp.eq.f32.partialorder %v8864, 8.507059e+37
    %v8866 = vand.u32 %v8779, 2147483648
    %v8867 = vor.u32 1.1754944e-38, %v8866
    %v8868 = vsel %vm8865, %v8867, %v8863
    %v8869 = vmul.f32 1.0, %v8868
    %v8872 = vrot.slane %v8493, 1
    %v8873 = vrot.slane %v8553, 1
    %v8874 = vrot.slane %v8493, 2
    %v8875 = vrot.slane %v8553, 2
    %v8880 = vadd.f32 %v2044, %v8872
    %v8881 = vadd.f32 %v2067, %v8873
    %v8882 = vadd.f32 %v2047, %v8874
    %v8883 = vadd.f32 %v2070, %v8875
    %v8884 = vsub.f32 0.0, %v8880
    %v8885 = vsub.f32 0.0, %v8881
    %v8886 = vsub.f32 0.0, %v8882
    %v8887 = vsub.f32 0.0, %v8883
    %v8888 = vmul.f32 %v8884, 1.442695
    %v8889 = vpow.pop %v8888
    %v8890 = vmul.f32 %v8885, 1.442695
    %v8891 = vpow.pop %v8890
    %v8892 = vmul.f32 %v8886, 1.442695
    %v8893 = vpow.pop %v8892
    %v8894 = vmul.f32 %v8887, 1.442695
    %v8895 = vpow.pop %v8894
    %v8896 = vadd.f32 %v8889, 1.0
    %v8897 = vadd.f32 %v8891, 1.0
    %v8898 = vadd.f32 %v8893, 1.0
    %v8899 = vadd.f32 %v8895, 1.0
    %v8900 = vrcp.pop %v8896
    %v8901 = vmul.f32 %v8896, %v8900
    %v8902 = vsub.f32 1.0, %v8901
    %v8903 = vmul.f32 %v8900, %v8902
    %v8904 = vadd.f32 %v8900, %v8903
    %vm8905 = vweird.f32 %v8896
    %vm8906 = vweird.f32 %v8900
    %vm8907 = vmor %vm8905, %vm8906
    %v8908 = vsel %vm8907, %v8900, %v8904
    %v8909 = vand.u32 2147483647, %v8896
    %vm8910 = vcmp.eq.f32.partialorder %v8909, 8.507059e+37
    %v8911 = vand.u32 %v8896, 2147483648
    %v8912 = vor.u32 1.1754944e-38, %v8911
    %v8913 = vsel %vm8910, %v8912, %v8908
    %v8914 = vmul.f32 1.0, %v8913
    %v8915 = vrcp.pop %v8897
    %v8916 = vmul.f32 %v8897, %v8915
    %v8917 = vsub.f32 1.0, %v8916
    %v8918 = vmul.f32 %v8915, %v8917
    %v8919 = vadd.f32 %v8915, %v8918
    %vm8920 = vweird.f32 %v8897
    %vm8921 = vweird.f32 %v8915
    %vm8922 = vmor %vm8920, %vm8921
    %v8923 = vsel %vm8922, %v8915, %v8919
    %v8924 = vand.u32 2147483647, %v8897
    %vm8925 = vcmp.eq.f32.partialorder %v8924, 8.507059e+37
    %v8926 = vand.u32 %v8897, 2147483648
    %v8927 = vor.u32 1.1754944e-38, %v8926
    %v8928 = vsel %vm8925, %v8927, %v8923
    %v8929 = vmul.f32 1.0, %v8928
    %v8930 = vrcp.pop %v8898
    %v8931 = vmul.f32 %v8898, %v8930
    %v8932 = vsub.f32 1.0, %v8931
    %v8933 = vmul.f32 %v8930, %v8932
    %v8934 = vadd.f32 %v8930, %v8933
    %vm8935 = vweird.f32 %v8898
    %vm8936 = vweird.f32 %v8930
    %vm8937 = vmor %vm8935, %vm8936
    %v8938 = vsel %vm8937, %v8930, %v8934
    %v8939 = vand.u32 2147483647, %v8898
    %vm8940 = vcmp.eq.f32.partialorder %v8939, 8.507059e+37
    %v8941 = vand.u32 %v8898, 2147483648
    %v8942 = vor.u32 1.1754944e-38, %v8941
    %v8943 = vsel %vm8940, %v8942, %v8938
    %v8944 = vmul.f32 1.0, %v8943
    %v8945 = vrcp.pop %v8899
    %v8946 = vmul.f32 %v8899, %v8945
    %v8947 = vsub.f32 1.0, %v8946
    %v8948 = vmul.f32 %v8945, %v8947
    %v8949 = vadd.f32 %v8945, %v8948
    %vm8950 = vweird.f32 %v8899
    %vm8951 = vweird.f32 %v8945
    %vm8952 = vmor %vm8950, %vm8951
    %v8953 = vsel %vm8952, %v8945, %v8949
    %v8954 = vand.u32 2147483647, %v8899
    %vm8955 = vcmp.eq.f32.partialorder %v8954, 8.507059e+37
    %v8956 = vand.u32 %v8899, 2147483648
    %v8957 = vor.u32 1.1754944e-38, %v8956
    %v8958 = vsel %vm8955, %v8957, %v8953
    %v8959 = vmul.f32 1.0, %v8958
    %v8963 = vrot.slane %v8613, 1
    %v8964 = vrot.slane %v8673, 1
    %v8965 = vrot.slane %v8733, 1
    %v8966 = vrot.slane %v8613, 2
    %v8967 = vrot.slane %v8673, 2
    %v8968 = vrot.slane %v8733, 2
    %v8975 = vmul.f32 %v8794, %v8963
    %v8976 = vmul.f32 %v8809, %v8964
    %v8977 = vmul.f32 %v8824, %v8965
    %v8978 = vmul.f32 %v8839, %v8966
    %v8979 = vmul.f32 %v8854, %v8967
    %v8980 = vmul.f32 %v8869, %v8968
    %v8981 = vadd.f32 %v2090, %v8975
    %v8982 = vadd.f32 %v2113, %v8976
    %v8983 = vadd.f32 %v2136, %v8977
    %v8984 = vadd.f32 %v2093, %v8978
    %v8985 = vadd.f32 %v2116, %v8979
    %v8986 = vadd.f32 %v2139, %v8980
    %v8987 = vtanh.pop %v8981
    %v8988 = vtanh.pop %v8982
    %v8989 = vtanh.pop %v8983
    %v8990 = vtanh.pop %v8984
    %v8991 = vtanh.pop %v8985
    %v8992 = vtanh.pop %v8986
    %v8993 = vsub.f32 1.0, %v8824
    %v8994 = vsub.f32 1.0, %v8914
    %v8995 = vsub.f32 1.0, %v8929
    %v8996 = vsub.f32 1.0, %v8869
    %v8997 = vsub.f32 1.0, %v8944
    %v8998 = vsub.f32 1.0, %v8959
    %9005 = vrot.lane.b32.xlu0 %v8987, 64
    %v9006 = vpop.permute.xlu0 %9005
    %9007 = vrot.lane.b32.xlu0 %v8988, 64
    %v9008 = vpop.permute.xlu0 %9007
    %9009 = vrot.lane.b32.xlu0 %v8989, 64
    %v9010 = vpop.permute.xlu0 %9009
    %9011 = vrot.lane.b32.xlu0 %v8990, 64
    %v9012 = vpop.permute.xlu0 %9011
    %9013 = vrot.lane.b32.xlu0 %v8991, 64
    %v9014 = vpop.permute.xlu0 %9013
    %9015 = vrot.lane.b32.xlu0 %v8992, 64
    %v9016 = vpop.permute.xlu0 %9015
    %v9017 = vsel %vm990, %v9006, %v9008
    %v9018 = vsel %vm990, %v9008, %v9010
    %v9019 = vsel %vm990, %v9012, %v9014
    %v9020 = vsel %vm990, %v9014, %v9016
    %v9027 = vmul.f32 %v8993, %v9006
    %v9028 = vmul.f32 %v8994, %v9017
    %v9029 = vmul.f32 %v8995, %v9018
    %v9030 = vmul.f32 %v8996, %v9012
    %v9031 = vmul.f32 %v8997, %v9019
    %v9032 = vmul.f32 %v8998, %v9020
    %v9033 = vrot.slane %v8222, 7
    %v9034 = vrot.slane %v8223, 7
    %v9035 = vrot.slane %v8224, 7
    %v9036 = vrot.slane %v8225, 7
    %v9037 = vrot.slane %v8226, 7
    %v9038 = vrot.slane %v8227, 7
    %v9045 = vmul.f32 %v8824, %v9033
    %v9046 = vmul.f32 %v8914, %v9034
    %v9047 = vmul.f32 %v8929, %v9035
    %v9048 = vmul.f32 %v8869, %v9036
    %v9049 = vmul.f32 %v8944, %v9037
    %v9050 = vmul.f32 %v8959, %v9038
    %v9051 = vadd.f32 %v9027, %v9045
    %v9052 = vadd.f32 %v9028, %v9046
    %v9053 = vadd.f32 %v9029, %v9047
    %v9054 = vadd.f32 %v9030, %v9048
    %v9055 = vadd.f32 %v9031, %v9049
    %v9056 = vadd.f32 %v9032, %v9050
    %v9057 = vld [vmem:[#allocation20] sm:$0x7]
    %v9058 = vld [vmem:[%s14] sm:$0xff]
    %v9059 = vld [vmem:[%s14 + $0x8] sm:$0xff]
    %v9060 = vld [vmem:[%s14 + $0x10] sm:$0xff]
    %v9061 = vld [vmem:[%s14 + $0x18] sm:$0xff]
    %v9062 = vld [vmem:[%s14 + $0x20] sm:$0xff]
    %v9063 = vld [vmem:[%s14 + $0x28] sm:$0xff]
    %v9064 = vld [vmem:[%s14 + $0x30] sm:$0xff]
    %v9065 = vld [vmem:[%s14 + $0x38] sm:$0xff]
    %v9066 = vld [vmem:[%s14 + $0x40] sm:$0xff]
    %v9067 = vld [vmem:[%s14 + $0x48] sm:$0xff]
    %v9068 = vld [vmem:[%s14 + $0x50] sm:$0xff]
    %v9069 = vld [vmem:[%s14 + $0x58] sm:$0xff]
    %v9070 = vld [vmem:[%s14 + $0x60] sm:$0xff]
    %v9071 = vld [vmem:[%s14 + $0x68] sm:$0xff]
    %v9072 = vld [vmem:[%s14 + $0x70] sm:$0xff]
    %v9073 = vld [vmem:[%s14 + $0x78] sm:$0xff]
    %v9074 = vld [vmem:[%s14 + $0x80] sm:$0xff]
    %v9075 = vld [vmem:[%s14 + $0x88] sm:$0xff]
    %v9076 = vld [vmem:[%s14 + $0x90] sm:$0xff]
    %v9077 = vld [vmem:[%s14 + $0x98] sm:$0xff]
    %v9078 = vld [vmem:[%s14 + $0xa0] sm:$0xff]
    %v9079 = vld [vmem:[%s14 + $0xa8] sm:$0xff]
    %v9080 = vld [vmem:[%s14 + $0xb0] sm:$0xff]
    %v9081 = vld [vmem:[%s14 + $0xb8] sm:$0xff]
    %v9082 = vld [vmem:[%s14 + $0xc0] sm:$0xff]
    %v9083 = vld [vmem:[%s14 + $0xc8] sm:$0xff]
    %v9084 = vld [vmem:[%s14 + $0xd0] sm:$0xff]
    %v9085 = vld [vmem:[%s14 + $0xd8] sm:$0xff]
    %v9086 = vld [vmem:[%s14 + $0xe0] sm:$0xff]
    %v9087 = vld [vmem:[%s14 + $0xe8] sm:$0xff]
    %v9088 = vld [vmem:[%s14 + $0xf0] sm:$0xff]
    %v9089 = vld [vmem:[%s14 + $0xf8] sm:$0xff]
    %v9090 = vld [vmem:[%s14 + $0x100] sm:$0xff]
    %v9091 = vld [vmem:[%s14 + $0x108] sm:$0xff]
    %v9092 = vld [vmem:[%s14 + $0x110] sm:$0xff]
    %v9093 = vld [vmem:[%s14 + $0x118] sm:$0xff]
    %v9094 = vld [vmem:[%s14 + $0x120] sm:$0xff]
    %v9095 = vld [vmem:[%s14 + $0x128] sm:$0xff]
    %v9096 = vld [vmem:[%s14 + $0x130] sm:$0xff]
    %v9097 = vld [vmem:[%s14 + $0x138] sm:$0xff]
    %v9098 = vperm.slane %v9057, 0
    %v9105 = vrot.slane %v9051, 7
    %v9106 = vrot.slane %v9054, 6
    %v9107 = vsel %vm3277, %v9106, %v9105
    %v9108 = vrot.slane %v9052, 7
    %v9109 = vrot.slane %v9055, 6
    %v9110 = vsel %vm3277, %v9109, %v9108
    %v9111 = vrot.slane %v9053, 7
    %v9112 = vrot.slane %v9056, 6
    %v9113 = vsel %vm3277, %v9112, %v9111
    %9114 = vrot.lane.b32.xlu0 %v9107, 64
    %v9115 = vpop.permute.xlu0 %9114
    %9116 = vrot.lane.b32.xlu0 %v9110, 64
    %v9117 = vpop.permute.xlu0 %9116
    %9118 = vrot.lane.b32.xlu0 %v9113, 64
    %v9119 = vpop.permute.xlu0 %9118
    %v9120 = vsel %vm990, %v9115, %v9117
    %v9121 = vsel %vm990, %v9117, %v9119
    %v9124 = vsel %vm990, %v9119, 0
    %9126 = vmatpush.msra.mxu0 %v9073
    %9127 = vmatpush.msra.mxu0 %v9072
    %9128 = vmatpush.msra.mxu0 %v9071
    %9129 = vmatpush.msra.mxu0 %v9070
    %9130 = vmatpush.msra.mxu0 %v9069
    %9131 = vmatpush.msra.mxu0 %v9068
    %9132 = vmatpush.msra.mxu0 %v9067
    %9133 = vmatpush.msra.mxu0 %v9066
    %9134 = vmatpush.msra.mxu0 %v9065
    %9135 = vmatpush.msra.mxu0 %v9064
    %9136 = vmatpush.msra.mxu0 %v9063
    %9137 = vmatpush.msra.mxu0 %v9062
    %9138 = vmatpush.msra.mxu0 %v9061
    %9139 = vmatpush.msra.mxu0 %v9060
    %9140 = vmatpush.msra.mxu0 %v9059
    %9141 = vmatpush.msra.mxu0 %v9058
    %9142 = vmatmul.f32.gmra.mxu0 %v9120
    %v9143 = vpop.f32.mrf.mxu0
    %v9144 = vadd.f32 %v9098, %v9143
    %9145 = vdwg.mxu0
    %9146 = vmatpush.msra.mxu0 %v9089
    %9147 = vmatpush.msra.mxu0 %v9088
    %9148 = vmatpush.msra.mxu0 %v9087
    %9149 = vmatpush.msra.mxu0 %v9086
    %9150 = vmatpush.msra.mxu0 %v9085
    %9151 = vmatpush.msra.mxu0 %v9084
    %9152 = vmatpush.msra.mxu0 %v9083
    %9153 = vmatpush.msra.mxu0 %v9082
    %9154 = vmatpush.msra.mxu0 %v9081
    %9155 = vmatpush.msra.mxu0 %v9080
    %9156 = vmatpush.msra.mxu0 %v9079
    %9157 = vmatpush.msra.mxu0 %v9078
    %9158 = vmatpush.msra.mxu0 %v9077
    %9159 = vmatpush.msra.mxu0 %v9076
    %9160 = vmatpush.msra.mxu0 %v9075
    %9161 = vmatpush.msra.mxu0 %v9074
    %9162 = vmatmul.f32.gmra.mxu0 %v9121
    %v9163 = vpop.f32.mrf.mxu0
    %v9164 = vadd.f32 %v9144, %v9163
    %9165 = vdwg.mxu0
    %9166 = vmatpush.msra.mxu0 0.0
    %9167 = vmatpush.msra.mxu0 0.0
    %9168 = vmatpush.msra.mxu0 0.0
    %9169 = vmatpush.msra.mxu0 0.0
    %9170 = vmatpush.msra.mxu0 0.0
    %9171 = vmatpush.msra.mxu0 0.0
    %9172 = vmatpush.msra.mxu0 0.0
    %9173 = vmatpush.msra.mxu0 0.0
    %9174 = vmatpush.msra.mxu0 %v9097
    %9175 = vmatpush.msra.mxu0 %v9096
    %9176 = vmatpush.msra.mxu0 %v9095
    %9177 = vmatpush.msra.mxu0 %v9094
    %9178 = vmatpush.msra.mxu0 %v9093
    %9179 = vmatpush.msra.mxu0 %v9092
    %9180 = vmatpush.msra.mxu0 %v9091
    %9181 = vmatpush.msra.mxu0 %v9090
    %9182 = vmatmul.f32.gmra.mxu0 %v9124
    %v9183 = vpop.f32.mrf.mxu0
    %v9184 = vadd.f32 %v9164, %v9183
    %9185 = vdwg.mxu0
    %v9186 = vld [vmem:[%s15] sm:$0xff]
    %v9187 = vld [vmem:[%s15 + $0x8] sm:$0xff]
    %v9188 = vld [vmem:[%s15 + $0x10] sm:$0xff]
    %v9189 = vld [vmem:[%s15 + $0x18] sm:$0xff]
    %v9190 = vld [vmem:[%s15 + $0x20] sm:$0xff]
    %v9191 = vld [vmem:[%s15 + $0x28] sm:$0xff]
    %v9192 = vld [vmem:[%s15 + $0x30] sm:$0xff]
    %v9193 = vld [vmem:[%s15 + $0x38] sm:$0xff]
    %v9194 = vld [vmem:[%s15 + $0x40] sm:$0xff]
    %v9195 = vld [vmem:[%s15 + $0x48] sm:$0xff]
    %v9196 = vperm.slane %v9057, 1
    %vm9197 = vcmask 654336
    %v9199 = vsel %vm9197, %v9184, 0
    %9201 = vmatpush.msra.mxu0 0.0
    %9202 = vmatpush.msra.mxu0 0.0
    %9203 = vmatpush.msra.mxu0 0.0
    %9204 = vmatpush.msra.mxu0 0.0
    %9205 = vmatpush.msra.mxu0 0.0
    %9206 = vmatpush.msra.mxu0 0.0
    %9207 = vmatpush.msra.mxu0 %v9195
    %9208 = vmatpush.msra.mxu0 %v9194
    %9209 = vmatpush.msra.mxu0 %v9193
    %9210 = vmatpush.msra.mxu0 %v9192
    %9211 = vmatpush.msra.mxu0 %v9191
    %9212 = vmatpush.msra.mxu0 %v9190
    %9213 = vmatpush.msra.mxu0 %v9189
    %9214 = vmatpush.msra.mxu0 %v9188
    %9215 = vmatpush.msra.mxu0 %v9187
    %9216 = vmatpush.msra.mxu0 %v9186
    %9217 = vmatmul.f32.gmra.mxu0 %v9199
    %v9218 = vpop.f32.mrf.mxu0
    %v9219 = vadd.f32 %v9196, %v9218
    %9220 = vdwg.mxu0
    %v9221 = vld [vmem:[%s16] sm:$0xff]
    %v9222 = vld [vmem:[%s16 + $0x8] sm:$0xff]
    %v9223 = vld [vmem:[%s16 + $0x10] sm:$0xf]
    %v9224 = vperm.slane %v9057, 2
    %vm9225 = vcmask 162816
    %v9227 = vsel %vm9225, %v9219, 0
    %vm9229 = vcmask 1043456
    %v9231 = vsel %vm9229, %v9223, 0
    %9233 = vmatpush.msra.mxu0 0.0
    %9234 = vmatpush.msra.mxu0 0.0
    %9235 = vmatpush.msra.mxu0 0.0
    %9236 = vmatpush.msra.mxu0 0.0
    %9237 = vmatpush.msra.mxu0 0.0
    %9238 = vmatpush.msra.mxu0 0.0
    %9239 = vmatpush.msra.mxu0 0.0
    %9240 = vmatpush.msra.mxu0 0.0
    %9241 = vmatpush.msra.mxu0 0.0
    %9242 = vmatpush.msra.mxu0 0.0
    %9243 = vmatpush.msra.mxu0 0.0
    %9244 = vmatpush.msra.mxu0 0.0
    %9245 = vmatpush.msra.mxu0 0.0
    %9246 = vmatpush.msra.mxu0 %v9231
    %9247 = vmatpush.msra.mxu0 %v9222
    %9248 = vmatpush.msra.mxu0 %v9221
    %9249 = vmatmul.f32.gmra.mxu0 %v9227
    %v9250 = vpop.f32.mrf.mxu0
    %v9251 = vadd.f32 %v9224, %v9250
    %9252 = vdwg.mxu0
    %vm9253 = vcmask 25600
    %v9254 = vsel %vm9253, %v9251, -inf
    %9255 = vmax.xlane.f32.xlu0 %v9254
    %v9256 = vpop.xlane.xlu0 %9255
    %v9257 = vsub.f32 %v9251, %v9256
    %v9258 = vmul.f32 %v9257, 1.442695
    %v9259 = vpow.pop %v9258
    %v9260 = vsel %vm9253, %v9259, 0.0
    %9261 = vadd.xlane.f32.xlu0 %v9260
    %v9262 = vpop.xlane.xlu0 %9261
    %v9263 = vrcp.pop %v9262
    %v9264 = vmul.f32 %v9262, %v9263
    %v9265 = vsub.f32 1.0, %v9264
    %v9266 = vmul.f32 %v9263, %v9265
    %v9267 = vadd.f32 %v9263, %v9266
    %vm9268 = vweird.f32 %v9262
    %vm9269 = vweird.f32 %v9263
    %vm9270 = vmor %vm9268, %vm9269
    %v9271 = vsel %vm9270, %v9263, %v9267
    %v9272 = vand.u32 2147483647, %v9262
    %vm9273 = vcmp.eq.f32.partialorder %v9272, 8.507059e+37
    %v9274 = vand.u32 %v9262, 2147483648
    %v9275 = vor.u32 1.1754944e-38, %v9274
    %v9276 = vsel %vm9273, %v9275, %v9271
    %v9277 = vmul.f32 %v9259, %v9276
    %9278 = vst.msk [vmem:[#allocation22] sm:$0x3] %vm9253, %v9277
    // Predicated region
    $region122: #{gru_model_forward.1} parent=1 // pred_check
      _
    $region123: #{gru_model_forward.1} parent=1 // pred_check_branch
      %9280 = sbr.rel (0) target = $region125
    $region124: #{gru_model_forward.1} parent=1 // pred_region
      %9282 = vsyncadd [#allocation4], 0
      %s9284 = sshll.u32 [#allocation22], 4
      %s9285 = int_to_ptr.vmem [resolvable:$true] %s9284
      %s9286 = sshll.u32 %s18, 4
      %s9287 = int_to_ptr.hbm [resolvable:$true] %s9286
      %9289 = dma.vmem_to_hbm [thread:$0]  %s9285, 32, %s9287, [#allocation4]
    $region125: #{gru_model_forward.1} parent=1 // pred_fallthru
      _
    // Predicated region
    $region126: #{gru_model_forward.1} parent=1 // pred_check
      _
    $region127: #{gru_model_forward.1} parent=1 // pred_check_branch
      %9291 = sbr.rel (0) target = $region129
    $region128: #{gru_model_forward.1} parent=1 // pred_region
      %9293 = dma.done [#allocation4], 32
    $region129: #{gru_model_forward.1} parent=1 // pred_fallthru
      _
    %9294 = vsyncpa [#allocation3], 1
    %9295 = vsyncpa [#allocation6], 1
    %9296 = vsyncpa [#allocation9], 1
    %9297 = vsyncpa [#allocation12], 1
    %9298 = vsyncpa [#allocation15], 1
    %9299 = vsyncpa [#allocation18], 1
    %9300 = vsyncpa [#allocation21], 1
    %9301 = vsyncpa [#allocation4], 1

</llo_original>
